<compile_context>
chip_gen: v5e
topology: v5e:2x2
jax: 0.10.0
libtpu: 0.0.40
codegen_flags: <defaults>
</compile_context>

<pallas_src>
import math
from math import prod

import jax
import jax.numpy as jnp
from jax import lax
from jax.experimental import pallas as pl
from jax.experimental.pallas import tpu as pltpu


# ----------------------------------------------------------------------------- helpers

def _cdiv(a, b):
    return -(-a // b)


def _get_stripe_info(stripe_size_in, stripe_groups_in, stripe_shift, input_resolution):
    stripe_size, shift_size = [], []
    for s, g, d in zip(stripe_size_in, stripe_groups_in, input_resolution):
        if g is None:
            stripe_size.append(s)
            shift_size.append(s // 2 if stripe_shift else 0)
        else:
            stripe_size.append(d // g)
            shift_size.append(0 if g == 1 else d // (g * 2))
    return stripe_size, shift_size


def window_partition(x, ws):
    B, H, W, C = x.shape
    x = x.reshape(B, H // ws[0], ws[0], W // ws[1], ws[1], C)
    x = jnp.transpose(x, (0, 1, 3, 2, 4, 5))
    return x.reshape(-1, ws[0], ws[1], C)


def window_reverse(windows, ws, x_size):
    H, W = x_size
    B = windows.shape[0] // ((H // ws[0]) * (W // ws[1]))
    x = windows.reshape(B, H // ws[0], W // ws[1], ws[0], ws[1], -1)
    x = jnp.transpose(x, (0, 1, 3, 2, 4, 5))
    return x.reshape(B, H, W, -1)


def affine_bias(p, table, index, num_heads, n_q, n_k):
    """AffineTransform bias: CPB-MLP(table) -> gather -> 16*sigmoid.  (XLA glue, tiny)"""
    t = table.reshape(-1, 2).astype(jnp.float32)
    hidden = jax.nn.relu(t @ p["w1"].T + p["b1"])          # (T, 512)
    bias_table = hidden @ p["w2"].T                        # (T, heads)
    bias = bias_table[index.reshape(-1)]                   # (n_q*n_k, heads)
    bias = bias.reshape(n_q, n_k, num_heads).transpose(2, 0, 1)
    return 16.0 * jax.nn.sigmoid(bias)                     # (heads, n_q, n_k)


def affine_scale(p):
    """clamp(logit_scale, max=log(100)).exp() -> per-head scalar."""
    ls = jnp.minimum(p["logit_scale"].reshape(-1), math.log(1.0 / 0.01))
    return jnp.exp(ls)                                     # (heads,)


# ----------------------------------------------------------------------------- kernel

def _make_kernel(mm_dtype, approx_softmax):
    """Kernel over one block of Wb windows; heads are a (merged) batch dim."""
    f32 = jnp.float32

    def _l2norm(x):            # matches F.normalize(dim=-1, eps=1e-12)
        ss = jnp.sum(x * x, axis=-1, keepdims=True)
        return x * lax.rsqrt(jnp.maximum(ss, 1e-24))       # EUP rsqrt, no divide

    def _softmax(x):
        m = jnp.max(x, axis=-1, keepdims=True)
        e = jnp.exp(x - m)
        d = jnp.sum(e, axis=-1, keepdims=True)
        if approx_softmax:
            return e * pl.reciprocal(d, approx=True)       # inference-only option
        return e / d                                       # exact (default)

    def _bmm_nt(x, y):
        # (nh, Wb, M, K) x (nh, Wb, N, K)^T -> (nh, Wb, M, N); batch dims merged
        nh_, wb_, M, K = x.shape
        N = y.shape[2]
        r = jnp.einsum("bmk,bnk->bmn",
                       x.reshape(nh_ * wb_, M, K).astype(mm_dtype),
                       y.reshape(nh_ * wb_, N, K).astype(mm_dtype),
                       preferred_element_type=f32)
        return r.reshape(nh_, wb_, M, N)

    def _bmm_nn(x, y):
        # (nh, Wb, M, K) x (nh, Wb, K, N) -> (nh, Wb, M, N); batch dims merged
        nh_, wb_, M, K = x.shape
        N = y.shape[3]
        r = jnp.einsum("bmk,bkn->bmn",
                       x.reshape(nh_ * wb_, M, K).astype(mm_dtype),
                       y.reshape(nh_ * wb_, K, N).astype(mm_dtype),
                       preferred_element_type=f32)
        return r.reshape(nh_, wb_, M, N)

    def kernel(qkv_ref, a_ref, b1_ref, b2_ref, s1_ref, s2_ref, o_ref):
        # anchor is used by both attentions -> normalize once
        an = _l2norm(a_ref[...].astype(f32))               # (nh, Wb, N2, hd)
        s1 = s1_ref[...]                                   # (nh, 1, 1, 1) f32
        s2 = s2_ref[...]

        # --- attention 1: anchor -> window, logits (nh, Wb, N2, N1) -------------
        kn = _l2norm(qkv_ref[1].astype(f32))               # (nh, Wb, N1, hd)
        logits1 = _bmm_nt(an * s1, kn) + b1_ref[...][:, None]
        p1 = _softmax(logits1)
        x1 = _bmm_nn(p1, qkv_ref[2])                       # (nh, Wb, N2, hd) f32

        # --- attention 2: window -> anchor, logits (nh, Wb, N1, N2) -------------
        qn = _l2norm(qkv_ref[0].astype(f32))               # (nh, Wb, N1, hd)
        logits2 = _bmm_nt(qn * s2, an) + b2_ref[...][:, None]
        p2 = _softmax(logits2)
        out = _bmm_nn(p2, x1)                              # (nh, Wb, N1, hd)

        o_ref[...] = out.astype(o_ref.dtype)

    return kernel


# ----------------------------------------------------------------------------- block sizing / VMEM accounting

def _vmem_budget_bytes():
    """Generation-aware budget (v5e/v6e: 128 MiB physical, v7x: 64 MiB)."""
    cap = 64 << 20
    try:
        cap = int(pltpu.get_tpu_info().vmem_capacity_bytes)
    except Exception:
        pass
    return max(16 << 20, int(cap * 0.55))


def _preferred_min_grid_steps():
    """v7x: 2 TensorCores share a 'parallel' grid axis -> prefer >=2 (even) steps.
    v5e/v6e: single TensorCore -> one big block is best (fewest ~0.35us steps)."""
    try:
        kind = jax.devices()[0].device_kind.lower()
        if "v7" in kind or "tpu7" in kind or "7x" in kind:
            return 2
    except Exception:
        pass
    return 1


def _per_window_vmem_bytes(N1, N2, dim, num_heads, in_itemsize, out_itemsize):
    hd = dim // num_heads
    # double-buffered pipelined I/O blocks
    io = 2 * ((3 * N1 + N2) * dim * in_itemsize + N1 * dim * out_itemsize)
    # f32 in-kernel temporaries: normalized q/k/a, logits+probs of both attentions,
    # x1, and the output tile before the final cast
    tmp = 4 * ((3 * N1 + 2 * N2) * dim
               + 4 * num_heads * N1 * N2
               + num_heads * (N1 + N2) * hd)
    return io + tmp


def _pick_windows_per_block(B_, per_window_bytes, resident_bytes, *,
                            vmem_budget_bytes, min_steps=1):
    avail = max(vmem_budget_bytes - resident_bytes, per_window_bytes)
    wb = int(min(B_, max(1, avail // max(per_window_bytes, 1))))
    if min_steps > 1 and B_ > 1:
        wb = min(wb, _cdiv(B_, min_steps))          # at least min_steps grid steps
        steps = _cdiv(B_, wb)
        if steps % min_steps:                       # make step count a multiple
            steps = _cdiv(steps, min_steps) * min_steps
            wb = _cdiv(B_, steps)
    # prefer an exact divisor of B_ (no padded windows) if it costs < 25% of the block
    divisors = [d for d in range(1, wb + 1) if B_ % d == 0]
    best = max(divisors) if divisors else 1
    if best * 4 >= wb * 3:
        wb = best
    return max(int(wb), 1)


# ----------------------------------------------------------------------------- pallas wrapper

def anchor_stripe_attn_pallas(qkv5, anchor5, bias1, bias2, scale1, scale2, *,
                              out_dtype, approx_softmax=False, windows_per_block=None):
    """qkv5: (3, nh, B_, N1, hd) head-major (f32 or bf16); anchor5: (nh, B_, N2, hd);
       bias1: (nh, N2, N1) f32; bias2: (nh, N1, N2) f32; scales: (nh,) f32.
       Returns (nh, B_, N1, hd) in out_dtype."""
    _, nh, B_, N1, hd = qkv5.shape
    N2 = anchor5.shape[2]
    dim = nh * hd
    mm_dtype = jnp.bfloat16 if qkv5.dtype == jnp.bfloat16 else jnp.float32

    in_itemsize = jnp.dtype(qkv5.dtype).itemsize
    out_itemsize = jnp.dtype(out_dtype).itemsize
    per_window = _per_window_vmem_bytes(N1, N2, dim, nh, in_itemsize, out_itemsize)
    resident = 4 * (2 * nh * N1 * N2 + 2 * nh) + 4096      # bias tables + scales
    budget = _vmem_budget_bytes()

    wb = windows_per_block or _pick_windows_per_block(
        B_, per_window, resident, vmem_budget_bytes=budget,
        min_steps=_preferred_min_grid_steps())
    steps = _cdiv(B_, wb)
    B_pad = steps * wb
    if B_pad != B_:
        pad = B_pad - B_
        qkv5 = jnp.pad(qkv5, ((0, 0), (0, 0), (0, pad), (0, 0), (0, 0)))
        anchor5 = jnp.pad(anchor5, ((0, 0), (0, pad), (0, 0), (0, 0)))

    s1 = scale1.reshape(nh, 1, 1, 1).astype(jnp.float32)
    s2 = scale2.reshape(nh, 1, 1, 1).astype(jnp.float32)

    in_specs = [
        pl.BlockSpec((3, nh, wb, N1, hd), lambda b: (0, 0, b, 0, 0)),   # qkv (head-major)
        pl.BlockSpec((nh, wb, N2, hd), lambda b: (0, b, 0, 0)),         # anchor
        pl.BlockSpec((nh, N2, N1), lambda b: (0, 0, 0)),                # bias1 (resident)
        pl.BlockSpec((nh, N1, N2), lambda b: (0, 0, 0)),                # bias2 (resident)
        pl.BlockSpec((nh, 1, 1, 1), lambda b: (0, 0, 0, 0)),            # scale1
        pl.BlockSpec((nh, 1, 1, 1), lambda b: (0, 0, 0, 0)),            # scale2
    ]
    out_specs = pl.BlockSpec((nh, wb, N1, hd), lambda b: (0, b, 0, 0))

    kernel = _make_kernel(mm_dtype, approx_softmax)
    out = pl.pallas_call(
        kernel,
        out_shape=jax.ShapeDtypeStruct((nh, B_pad, N1, hd), out_dtype),
        grid=(steps,),
        in_specs=in_specs,
        out_specs=out_specs,
        compiler_params=pltpu.CompilerParams(
            dimension_semantics=("parallel",),
            vmem_limit_bytes=int(budget)),
    )(qkv5, anchor5, bias1, bias2, s1, s2)

    return out[:, :B_] if B_pad != B_ else out


# ----------------------------------------------------------------------------- module forward

def anchor_stripe_attention_forward(params, qkv, anchor, x_size, table,
                                    index_a2w, index_w2a,
                                    mask_a2w=None, mask_w2a=None, *,
                                    stripe_size_in, stripe_groups, stripe_shift,
                                    num_heads, anchor_window_down_factor,
                                    compute_dtype=jnp.float32, approx_softmax=False):
    if mask_a2w is not None or mask_w2a is not None:
        # TODO(synk): shifted-window attention masks are not wired into the kernel.
        raise NotImplementedError(
            "shifted-window attention masks are not supported by the Pallas kernel")

    H, W = x_size
    B, L, C = qkv.shape
    dim = C // 3
    hd = dim // num_heads
    df = anchor_window_down_factor

    qkv = qkv.reshape(B, H, W, C)
    stripe_size, shift_size = _get_stripe_info(stripe_size_in, stripe_groups,
                                               stripe_shift, x_size)
    anchor_stripe_size = [s // df for s in stripe_size]
    anchor_shift_size = [s // df for s in shift_size]

    if stripe_shift:
        qkv = jnp.roll(qkv, (-shift_size[0], -shift_size[1]), axis=(1, 2))
        anchor = jnp.roll(anchor, (-anchor_shift_size[0], -anchor_shift_size[1]), axis=(1, 2))

    N1 = prod(stripe_size)
    N2 = prod(anchor_stripe_size)

    qkv_w = window_partition(qkv, stripe_size).reshape(-1, N1, C)
    anchor_w = window_partition(anchor, anchor_stripe_size).reshape(-1, N2, dim)
    B_ = qkv_w.shape[0]

    # Head-major layouts (XLA glue, one-off): heads become a free major ref axis.
    qkv5 = qkv_w.reshape(B_, N1, 3, num_heads, hd).transpose(2, 3, 0, 1, 4)  # (3,nh,B_,N1,hd)
    anchor5 = anchor_w.reshape(B_, N2, num_heads, hd).transpose(2, 0, 1, 3)  # (nh,B_,N2,hd)

    bias1 = affine_bias(params["t1"], table, index_a2w, num_heads, N2, N1)
    bias2 = affine_bias(params["t2"], table, index_w2a, num_heads, N1, N2)
    scale1 = affine_scale(params["t1"])
    scale2 = affine_scale(params["t2"])

    if compute_dtype == jnp.bfloat16:
        # Halves q/k/v/anchor and output DMA; bf16 MXU path (v6e/v7x); all
        # elementwise/softmax math stays f32 in-kernel.
        qkv5 = qkv5.astype(jnp.bfloat16)
        anchor5 = anchor5.astype(jnp.bfloat16)
        out_dtype = jnp.bfloat16
    else:
        out_dtype = qkv5.dtype

    out = anchor_stripe_attn_pallas(qkv5, anchor5, bias1, bias2, scale1, scale2,
                                    out_dtype=out_dtype,
                                    approx_softmax=approx_softmax)     # (nh,B_,N1,hd)

    x = out.transpose(1, 2, 0, 3).reshape(B_, N1, dim)                 # channel-last glue
    x = x.reshape(B_, stripe_size[0], stripe_size[1], dim)
    x = window_reverse(x, stripe_size, x_size)
    if stripe_shift:
        x = jnp.roll(x, tuple(shift_size), axis=(1, 2))
    return x.reshape(B, H * W, dim)


# ----------------------------------------------------------------------------- reference (pure JAX)

def _reference_forward(params, qkv, anchor, x_size, table, index_a2w, index_w2a, **kw):
    H, W = x_size
    B, L, C = qkv.shape
    dim = C // 3
    nh = kw["num_heads"]
    hd = dim // nh
    df = kw["anchor_window_down_factor"]
    stripe_size, _ = _get_stripe_info(kw["stripe_size_in"], kw["stripe_groups"],
                                      kw["stripe_shift"], x_size)
    aws = [s // df for s in stripe_size]
    N1, N2 = prod(stripe_size), prod(aws)
    qkv4 = qkv.reshape(B, H, W, C)
    qw = window_partition(qkv4, stripe_size).reshape(-1, N1, C)
    aw = window_partition(anchor, aws).reshape(-1, N2, dim)
    B_ = qw.shape[0]
    qw = qw.reshape(B_, N1, 3, nh, hd).transpose(2, 0, 3, 1, 4)
    q, k, v = qw[0], qw[1], qw[2]
    a = aw.reshape(B_, N2, nh, hd).transpose(0, 2, 1, 3)

    def l2n(x):
        return x / jnp.maximum(jnp.linalg.norm(x, axis=-1, keepdims=True), 1e-12)

    b1 = affine_bias(params["t1"], table, index_a2w, nh, N2, N1)
    b2 = affine_bias(params["t2"], table, index_w2a, nh, N1, N2)
    s1, s2 = affine_scale(params["t1"]), affine_scale(params["t2"])

    attn1 = jnp.einsum("bhnd,bhmd->bhnm", l2n(a), l2n(k)) * s1[None, :, None, None] + b1[None]
    attn1 = jax.nn.softmax(attn1, axis=-1)
    x1 = jnp.einsum("bhnm,bhmd->bhnd", attn1, v)
    attn2 = jnp.einsum("bhnd,bhmd->bhnm", l2n(q), l2n(a)) * s2[None, :, None, None] + b2[None]
    attn2 = jax.nn.softmax(attn2, axis=-1)
    out = jnp.einsum("bhnm,bhmd->bhnd", attn2, x1)
    x = out.transpose(0, 2, 1, 3).reshape(B_, stripe_size[0], stripe_size[1], dim)
    x = window_reverse(x, stripe_size, x_size)
    return x.reshape(B, H * W, dim)


# ----------------------------------------------------------------------------- main

if __name__ == "__main__":
    key = jax.random.PRNGKey(0)

    # Module config (small shapes)
    B, H, W = 2, 16, 16
    num_heads = 2
    dim = 16                       # C // 3
    C = 3 * dim
    stripe_size_in = [8, 8]
    stripe_groups = [None, None]
    stripe_shift = False
    anchor_window_down_factor = 2
    cpb_hidden = 512

    # Deterministic parameter init (two AffineTransforms)
    ks = jax.random.split(key, 10)

    def make_transform(k1, k2, k3):
        return {
            "logit_scale": jnp.full((num_heads, 1, 1), math.log(10.0), jnp.float32),
            "w1": 0.02 * jax.random.normal(k1, (cpb_hidden, 2), jnp.float32),
            "b1": 0.01 * jax.random.normal(k2, (cpb_hidden,), jnp.float32),
            "w2": 0.02 * jax.random.normal(k3, (num_heads, cpb_hidden), jnp.float32),
        }

    params = {"t1": make_transform(ks[0], ks[1], ks[2]),
              "t2": make_transform(ks[3], ks[4], ks[5])}

    # Inputs
    qkv = jax.random.normal(ks[6], (B, H * W, C), jnp.float32)
    anchor = jax.random.normal(ks[7], (B, H // anchor_window_down_factor,
                                       W // anchor_window_down_factor, dim), jnp.float32)

    # Relative coords table + indices (synthetic, consistent shapes)
    th = tw = 2 * stripe_size_in[0] - 1
    coords_h = jnp.linspace(-1.0, 1.0, th)
    coords_w = jnp.linspace(-1.0, 1.0, tw)
    table = jnp.stack(jnp.meshgrid(coords_h, coords_w, indexing="ij"), axis=-1)[None]  # (1,15,15,2)

    N1 = prod(stripe_size_in)
    N2 = prod([s // anchor_window_down_factor for s in stripe_size_in])
    index_a2w = jax.random.randint(ks[8], (N2, N1), 0, th * tw, jnp.int32)
    index_w2a = jax.random.randint(ks[9], (N1, N2), 0, th * tw, jnp.int32)

    kwargs = dict(stripe_size_in=stripe_size_in, stripe_groups=stripe_groups,
                  stripe_shift=stripe_shift, num_heads=num_heads,
                  anchor_window_down_factor=anchor_window_down_factor)

    ref = _reference_forward(params, qkv, anchor, (H, W), table, index_a2w, index_w2a, **kwargs)
    ref = jax.block_until_ready(ref)

    # f32 path (default): exact softmax -> tight check
    out = anchor_stripe_attention_forward(params, qkv, anchor, (H, W), table,
                                          index_a2w, index_w2a, None, None, **kwargs)
    out = jax.block_until_ready(out)
    assert out.shape == (B, H * W, dim), out.shape
    assert jnp.allclose(out, ref, atol=2e-3, rtol=2e-3), float(jnp.max(jnp.abs(out - ref)))

    # bf16-input/output path (v6e/v7x DMA+MXU optimization): loose check vs f32 ref
    out_bf16 = anchor_stripe_attention_forward(params, qkv, anchor, (H, W), table,
                                               index_a2w, index_w2a, None, None,
                                               compute_dtype=jnp.bfloat16, **kwargs)
    out_bf16 = jax.block_until_ready(out_bf16)
    assert out_bf16.shape == (B, H * W, dim), out_bf16.shape
    out_bf16_f32 = out_bf16.astype(jnp.float32)
    assert bool(jnp.all(jnp.isfinite(out_bf16_f32)))
    assert float(jnp.max(jnp.abs(out_bf16_f32 - ref))) < 0.5

    print("KERNEL_OK")
</pallas_src>

<mosaic_0001>
module attributes {stable_mosaic.version = 11 : i64} {
  func.func @kernel(%arg0: i32, %arg1: memref<3x2x8x64x8xf32, #tpu.memory_space<vmem>>, %arg2: memref<2x8x16x8xf32, #tpu.memory_space<vmem>>, %arg3: memref<2x16x64xf32, #tpu.memory_space<vmem>>, %arg4: memref<2x64x16xf32, #tpu.memory_space<vmem>>, %arg5: memref<2x1x1x1xf32, #tpu.memory_space<vmem>>, %arg6: memref<2x1x1x1xf32, #tpu.memory_space<vmem>>, %arg7: memref<2x8x64x8xf32, #tpu.memory_space<vmem>>) attributes {dimension_semantics = [#tpu.dimension_semantics<parallel>], iteration_bounds = array<i64: 1>, scalar_prefetch = 0 : i64, scratch_operands = 0 : i64, tpu.core_type = #tpu.core_type<tc>, window_params = [{transform_indices = @transform_0, window_bounds = array<i64: 3, 2, 8, 64, 8>}, {transform_indices = @transform_1, window_bounds = array<i64: 2, 8, 16, 8>}, {pipeline_mode = #tpu.pipeline_mode<synchronous>, transform_indices = @transform_2, window_bounds = array<i64: 2, 16, 64>}, {pipeline_mode = #tpu.pipeline_mode<synchronous>, transform_indices = @transform_3, window_bounds = array<i64: 2, 64, 16>}, {pipeline_mode = #tpu.pipeline_mode<synchronous>, transform_indices = @transform_4, window_bounds = array<i64: 2, 1, 1, 1>}, {pipeline_mode = #tpu.pipeline_mode<synchronous>, transform_indices = @transform_5, window_bounds = array<i64: 2, 1, 1, 1>}, {transform_indices = @transform_6, window_bounds = array<i64: 2, 8, 64, 8>}]} {
    %c0 = arith.constant 0 : index
    %c0_0 = arith.constant 0 : index
    %c0_1 = arith.constant 0 : index
    %c0_2 = arith.constant 0 : index
    %0 = vector.load %arg2[%c0, %c0_0, %c0_1, %c0_2] : memref<2x8x16x8xf32, #tpu.memory_space<vmem>>, vector<2x8x16x8xf32>
    %1 = arith.mulf %0, %0 : vector<2x8x16x8xf32>
    %cst = arith.constant dense<0.000000e+00> : vector<2x8x16xf32>
    %2 = vector.multi_reduction <add>, %1, %cst [3] : vector<2x8x16x8xf32> to vector<2x8x16xf32>
    %3 = vector.shape_cast %2 : vector<2x8x16xf32> to vector<2x8x16x1xf32>
    %cst_3 = arith.constant 1.000000e-24 : f32
    %4 = vector.broadcast %cst_3 : f32 to vector<2x8x16x1xf32>
    %5 = arith.maximumf %3, %4 : vector<2x8x16x1xf32>
    %6 = math.rsqrt %5 : vector<2x8x16x1xf32>
    %7 = vector.broadcast %6 : vector<2x8x16x1xf32> to vector<2x8x16x8xf32>
    %8 = arith.mulf %0, %7 : vector<2x8x16x8xf32>
    %c0_4 = arith.constant 0 : index
    %c0_5 = arith.constant 0 : index
    %c0_6 = arith.constant 0 : index
    %c0_7 = arith.constant 0 : index
    %9 = vector.load %arg5[%c0_4, %c0_5, %c0_6, %c0_7] : memref<2x1x1x1xf32, #tpu.memory_space<vmem>>, vector<2x1x1x1xf32>
    %c0_8 = arith.constant 0 : index
    %c0_9 = arith.constant 0 : index
    %c0_10 = arith.constant 0 : index
    %c0_11 = arith.constant 0 : index
    %10 = vector.load %arg6[%c0_8, %c0_9, %c0_10, %c0_11] : memref<2x1x1x1xf32, #tpu.memory_space<vmem>>, vector<2x1x1x1xf32>
    %c1 = arith.constant 1 : index
    %c0_12 = arith.constant 0 : index
    %c0_13 = arith.constant 0 : index
    %c0_14 = arith.constant 0 : index
    %c0_15 = arith.constant 0 : index
    %11 = vector.load %arg1[%c1, %c0_12, %c0_13, %c0_14, %c0_15] : memref<3x2x8x64x8xf32, #tpu.memory_space<vmem>>, vector<1x2x8x64x8xf32>
    %12 = vector.shape_cast %11 : vector<1x2x8x64x8xf32> to vector<2x8x64x8xf32>
    %13 = arith.mulf %12, %12 : vector<2x8x64x8xf32>
    %cst_16 = arith.constant dense<0.000000e+00> : vector<2x8x64xf32>
    %14 = vector.multi_reduction <add>, %13, %cst_16 [3] : vector<2x8x64x8xf32> to vector<2x8x64xf32>
    %15 = vector.shape_cast %14 : vector<2x8x64xf32> to vector<2x8x64x1xf32>
    %cst_17 = arith.constant 1.000000e-24 : f32
    %16 = vector.broadcast %cst_17 : f32 to vector<2x8x64x1xf32>
    %17 = arith.maximumf %15, %16 : vector<2x8x64x1xf32>
    %18 = math.rsqrt %17 : vector<2x8x64x1xf32>
    %19 = vector.broadcast %18 : vector<2x8x64x1xf32> to vector<2x8x64x8xf32>
    %20 = arith.mulf %12, %19 : vector<2x8x64x8xf32>
    %21 = vector.broadcast %9 : vector<2x1x1x1xf32> to vector<2x8x16x8xf32>
    %22 = arith.mulf %8, %21 : vector<2x8x16x8xf32>
    %23 = vector.shape_cast %22 : vector<2x8x16x8xf32> to vector<16x16x8xf32>
    %24 = vector.shape_cast %20 : vector<2x8x64x8xf32> to vector<16x64x8xf32>
    "tpu.trace_start"() <{level = 10 : i32, message = "bmk,bnk->bmn"}> : () -> ()
    %cst_18 = arith.constant dense<0.000000e+00> : vector<16x16x64xf32>
    %25 = tpu.matmul %23, %24, %cst_18 {dimension_numbers = #tpu.dot_dimension_numbers<[2], [2], [1], [1], [0, 0, 0, 1, 1, 1], [0], [0]>} : vector<16x16x8xf32>, vector<16x64x8xf32>, vector<16x16x64xf32> -> vector<16x16x64xf32>
    "tpu.trace_stop"() : () -> ()
    %26 = vector.shape_cast %25 : vector<16x16x64xf32> to vector<2x8x16x64xf32>
    %c0_19 = arith.constant 0 : index
    %c0_20 = arith.constant 0 : index
    %c0_21 = arith.constant 0 : index
    %27 = vector.load %arg3[%c0_19, %c0_20, %c0_21] : memref<2x16x64xf32, #tpu.memory_space<vmem>>, vector<2x16x64xf32>
    %28 = vector.shape_cast %27 : vector<2x16x64xf32> to vector<2x1x16x64xf32>
    %29 = vector.broadcast %28 : vector<2x1x16x64xf32> to vector<2x8x16x64xf32>
    %30 = arith.addf %26, %29 : vector<2x8x16x64xf32>
    %cst_22 = arith.constant dense<0xFF800000> : vector<2x8x16xf32>
    %31 = vector.multi_reduction <maximumf>, %30, %cst_22 [3] : vector<2x8x16x64xf32> to vector<2x8x16xf32>
    %32 = vector.shape_cast %31 : vector<2x8x16xf32> to vector<2x8x16x1xf32>
    %33 = vector.broadcast %32 : vector<2x8x16x1xf32> to vector<2x8x16x64xf32>
    %34 = arith.subf %30, %33 : vector<2x8x16x64xf32>
    %35 = math.exp %34 : vector<2x8x16x64xf32>
    %cst_23 = arith.constant dense<0.000000e+00> : vector<2x8x16xf32>
    %36 = vector.multi_reduction <add>, %35, %cst_23 [3] : vector<2x8x16x64xf32> to vector<2x8x16xf32>
    %37 = vector.shape_cast %36 : vector<2x8x16xf32> to vector<2x8x16x1xf32>
    %38 = vector.broadcast %37 : vector<2x8x16x1xf32> to vector<2x8x16x64xf32>
    %39 = arith.divf %35, %38 : vector<2x8x16x64xf32>
    %c2 = arith.constant 2 : index
    %c0_24 = arith.constant 0 : index
    %c0_25 = arith.constant 0 : index
    %c0_26 = arith.constant 0 : index
    %c0_27 = arith.constant 0 : index
    %40 = vector.load %arg1[%c2, %c0_24, %c0_25, %c0_26, %c0_27] : memref<3x2x8x64x8xf32, #tpu.memory_space<vmem>>, vector<1x2x8x64x8xf32>
    %41 = vector.shape_cast %40 : vector<1x2x8x64x8xf32> to vector<2x8x64x8xf32>
    %42 = vector.shape_cast %39 : vector<2x8x16x64xf32> to vector<16x16x64xf32>
    %43 = vector.shape_cast %41 : vector<2x8x64x8xf32> to vector<16x64x8xf32>
    "tpu.trace_start"() <{level = 10 : i32, message = "bmk,bkn->bmn"}> : () -> ()
    %cst_28 = arith.constant dense<0.000000e+00> : vector<16x16x8xf32>
    %44 = tpu.matmul %42, %43, %cst_28 {dimension_numbers = #tpu.dot_dimension_numbers<[2], [1], [1], [2], [0, 0, 0, 1, 1, 2], [0], [0]>} : vector<16x16x64xf32>, vector<16x64x8xf32>, vector<16x16x8xf32> -> vector<16x16x8xf32>
    "tpu.trace_stop"() : () -> ()
    %45 = vector.shape_cast %44 : vector<16x16x8xf32> to vector<2x8x16x8xf32>
    %c0_29 = arith.constant 0 : index
    %c0_30 = arith.constant 0 : index
    %c0_31 = arith.constant 0 : index
    %c0_32 = arith.constant 0 : index
    %c0_33 = arith.constant 0 : index
    %46 = vector.load %arg1[%c0_29, %c0_30, %c0_31, %c0_32, %c0_33] : memref<3x2x8x64x8xf32, #tpu.memory_space<vmem>>, vector<1x2x8x64x8xf32>
    %47 = vector.shape_cast %46 : vector<1x2x8x64x8xf32> to vector<2x8x64x8xf32>
    %48 = arith.mulf %47, %47 : vector<2x8x64x8xf32>
    %cst_34 = arith.constant dense<0.000000e+00> : vector<2x8x64xf32>
    %49 = vector.multi_reduction <add>, %48, %cst_34 [3] : vector<2x8x64x8xf32> to vector<2x8x64xf32>
    %50 = vector.shape_cast %49 : vector<2x8x64xf32> to vector<2x8x64x1xf32>
    %cst_35 = arith.constant 1.000000e-24 : f32
    %51 = vector.broadcast %cst_35 : f32 to vector<2x8x64x1xf32>
    %52 = arith.maximumf %50, %51 : vector<2x8x64x1xf32>
    %53 = math.rsqrt %52 : vector<2x8x64x1xf32>
    %54 = vector.broadcast %53 : vector<2x8x64x1xf32> to vector<2x8x64x8xf32>
    %55 = arith.mulf %47, %54 : vector<2x8x64x8xf32>
    %56 = vector.broadcast %10 : vector<2x1x1x1xf32> to vector<2x8x64x8xf32>
    %57 = arith.mulf %55, %56 : vector<2x8x64x8xf32>
    %58 = vector.shape_cast %57 : vector<2x8x64x8xf32> to vector<16x64x8xf32>
    %59 = vector.shape_cast %8 : vector<2x8x16x8xf32> to vector<16x16x8xf32>
    "tpu.trace_start"() <{level = 10 : i32, message = "bmk,bnk->bmn"}> : () -> ()
    %cst_36 = arith.constant dense<0.000000e+00> : vector<16x64x16xf32>
    %60 = tpu.matmul %58, %59, %cst_36 {dimension_numbers = #tpu.dot_dimension_numbers<[2], [2], [1], [1], [0, 0, 0, 1, 1, 1], [0], [0]>} : vector<16x64x8xf32>, vector<16x16x8xf32>, vector<16x64x16xf32> -> vector<16x64x16xf32>
    "tpu.trace_stop"() : () -> ()
    %61 = vector.shape_cast %60 : vector<16x64x16xf32> to vector<2x8x64x16xf32>
    %c0_37 = arith.constant 0 : index
    %c0_38 = arith.constant 0 : index
    %c0_39 = arith.constant 0 : index
    %62 = vector.load %arg4[%c0_37, %c0_38, %c0_39] : memref<2x64x16xf32, #tpu.memory_space<vmem>>, vector<2x64x16xf32>
    %63 = vector.shape_cast %62 : vector<2x64x16xf32> to vector<2x1x64x16xf32>
    %64 = vector.broadcast %63 : vector<2x1x64x16xf32> to vector<2x8x64x16xf32>
    %65 = arith.addf %61, %64 : vector<2x8x64x16xf32>
    %cst_40 = arith.constant dense<0xFF800000> : vector<2x8x64xf32>
    %66 = vector.multi_reduction <maximumf>, %65, %cst_40 [3] : vector<2x8x64x16xf32> to vector<2x8x64xf32>
    %67 = vector.shape_cast %66 : vector<2x8x64xf32> to vector<2x8x64x1xf32>
    %68 = vector.broadcast %67 : vector<2x8x64x1xf32> to vector<2x8x64x16xf32>
    %69 = arith.subf %65, %68 : vector<2x8x64x16xf32>
    %70 = math.exp %69 : vector<2x8x64x16xf32>
    %cst_41 = arith.constant dense<0.000000e+00> : vector<2x8x64xf32>
    %71 = vector.multi_reduction <add>, %70, %cst_41 [3] : vector<2x8x64x16xf32> to vector<2x8x64xf32>
    %72 = vector.shape_cast %71 : vector<2x8x64xf32> to vector<2x8x64x1xf32>
    %73 = vector.broadcast %72 : vector<2x8x64x1xf32> to vector<2x8x64x16xf32>
    %74 = arith.divf %70, %73 : vector<2x8x64x16xf32>
    %75 = vector.shape_cast %74 : vector<2x8x64x16xf32> to vector<16x64x16xf32>
    %76 = vector.shape_cast %45 : vector<2x8x16x8xf32> to vector<16x16x8xf32>
    "tpu.trace_start"() <{level = 10 : i32, message = "bmk,bkn->bmn"}> : () -> ()
    %cst_42 = arith.constant dense<0.000000e+00> : vector<16x64x8xf32>
    %77 = tpu.matmul %75, %76, %cst_42 {dimension_numbers = #tpu.dot_dimension_numbers<[2], [1], [1], [2], [0, 0, 0, 1, 1, 2], [0], [0]>} : vector<16x64x16xf32>, vector<16x16x8xf32>, vector<16x64x8xf32> -> vector<16x64x8xf32>
    "tpu.trace_stop"() : () -> ()
    %78 = vector.shape_cast %77 : vector<16x64x8xf32> to vector<2x8x64x8xf32>
    %c0_43 = arith.constant 0 : index
    %c0_44 = arith.constant 0 : index
    %c0_45 = arith.constant 0 : index
    %c0_46 = arith.constant 0 : index
    %79 = vector.load %arg7[%c0_43, %c0_44, %c0_45, %c0_46] : memref<2x8x64x8xf32, #tpu.memory_space<vmem>>, vector<2x8x64x8xf32>
    tpu.vector_store %arg7[%c0_43, %c0_44, %c0_45, %c0_46], %78 {strides = array<i32>} : memref<2x8x64x8xf32, #tpu.memory_space<vmem>>, vector<2x8x64x8xf32>,
    return
  }
  func.func @transform_0(%arg0: i32) -> (i32, i32, i32, i32, i32) {
    %c0_i32 = arith.constant 0 : i32
    %c0_i32_0 = arith.constant 0 : i32
    %c0_i32_1 = arith.constant 0 : i32
    %c0_i32_2 = arith.constant 0 : i32
    %c0_i32_3 = arith.constant 0 : i32
    return %c0_i32, %c0_i32_0, %arg0, %c0_i32_1, %c0_i32_2 : i32, i32, i32, i32, i32
  }
  func.func @transform_1(%arg0: i32) -> (i32, i32, i32, i32) {
    %c0_i32 = arith.constant 0 : i32
    %c0_i32_0 = arith.constant 0 : i32
    %c0_i32_1 = arith.constant 0 : i32
    %c0_i32_2 = arith.constant 0 : i32
    return %c0_i32, %arg0, %c0_i32_0, %c0_i32_1 : i32, i32, i32, i32
  }
  func.func @transform_2(%arg0: i32) -> (i32, i32, i32) {
    %c0_i32 = arith.constant 0 : i32
    %c0_i32_0 = arith.constant 0 : i32
    %c0_i32_1 = arith.constant 0 : i32
    %c0_i32_2 = arith.constant 0 : i32
    return %c0_i32, %c0_i32_0, %c0_i32_1 : i32, i32, i32
  }
  func.func @transform_3(%arg0: i32) -> (i32, i32, i32) {
    %c0_i32 = arith.constant 0 : i32
    %c0_i32_0 = arith.constant 0 : i32
    %c0_i32_1 = arith.constant 0 : i32
    %c0_i32_2 = arith.constant 0 : i32
    return %c0_i32, %c0_i32_0, %c0_i32_1 : i32, i32, i32
  }
  func.func @transform_4(%arg0: i32) -> (i32, i32, i32, i32) {
    %c0_i32 = arith.constant 0 : i32
    %c0_i32_0 = arith.constant 0 : i32
    %c0_i32_1 = arith.constant 0 : i32
    %c0_i32_2 = arith.constant 0 : i32
    %c0_i32_3 = arith.constant 0 : i32
    return %c0_i32, %c0_i32_0, %c0_i32_1, %c0_i32_2 : i32, i32, i32, i32
  }
  func.func @transform_5(%arg0: i32) -> (i32, i32, i32, i32) {
    %c0_i32 = arith.constant 0 : i32
    %c0_i32_0 = arith.constant 0 : i32
    %c0_i32_1 = arith.constant 0 : i32
    %c0_i32_2 = arith.constant 0 : i32
    %c0_i32_3 = arith.constant 0 : i32
    return %c0_i32, %c0_i32_0, %c0_i32_1, %c0_i32_2 : i32, i32, i32, i32
  }
  func.func @transform_6(%arg0: i32) -> (i32, i32, i32, i32) {
    %c0_i32 = arith.constant 0 : i32
    %c0_i32_0 = arith.constant 0 : i32
    %c0_i32_1 = arith.constant 0 : i32
    %c0_i32_2 = arith.constant 0 : i32
    return %c0_i32, %arg0, %c0_i32_0, %c0_i32_1 : i32, i32, i32, i32
  }
}

</mosaic_0001>

<llo_original>
// kernel: tpu_custom_call.1
$region0: #{tpu_custom_call.1}
  #allocation0 [shape = 'u32[]', space=smem, size = 0x4, offset = 0x4, fixed_abs, tag = 'smem constant byte address 0x4 - core index']
  #allocation1 [shape = 'u32[72,128]{1,0:T(1,128)}', space=vmem, size = 0x9000, scoped, tag = 'internal scratch']
  %s0 = inlined_call_operand.vmem [shape: f32[3,2,8,64,8], index: 0, kind: input, shape index: {}]
  %s1 = inlined_call_operand.vmem [shape: f32[2,8,16,8], index: 1, kind: input, shape index: {}]
  %s2 = inlined_call_operand.vmem [shape: f32[2,16,64], index: 2, kind: input, shape index: {}]
  %s3 = inlined_call_operand.vmem [shape: f32[2,64,16], index: 3, kind: input, shape index: {}]
  %s4 = inlined_call_operand.vmem [shape: f32[2,1,1,1], index: 4, kind: input, shape index: {}]
  %s5 = inlined_call_operand.vmem [shape: f32[2,1,1,1], index: 5, kind: input, shape index: {}]
  %s6 = inlined_call_operand.vmem [shape: f32[2,8,64,8], index: 6, kind: output, shape index: {}]
  %s7 = sld [smem:[#allocation0]]
  $region34: #{tpu_custom_call.1} parent=0
    _
  %s9 = ssub.s32 1, %s7
  %s10 = scalar_select 0, %s9, %s7
  // Predicated region
  $region2: #{tpu_custom_call.1} parent=0 // pred_check
    _
  $region3: #{tpu_custom_call.1} parent=0 // pred_check_branch
    %12 = sbr.rel (0) target = $region5
  $region4: #{tpu_custom_call.1} parent=0 // pred_region
    _
  $region5: #{tpu_custom_call.1} parent=0 // pred_fallthru
    _
  // Predicated region
  $region6: #{tpu_custom_call.1} parent=0 // pred_check
    _
  $region7: #{tpu_custom_call.1} parent=0 // pred_check_branch
    %14 = sbr.rel (0) target = $region9
  $region8: #{tpu_custom_call.1} parent=0 // pred_region
    _
  $region9: #{tpu_custom_call.1} parent=0 // pred_fallthru
    _
  // Predicated region
  $region10: #{tpu_custom_call.1} parent=0 // pred_check
    _
  $region11: #{tpu_custom_call.1} parent=0 // pred_check_branch
    %16 = sbr.rel (0) target = $region13
  $region12: #{tpu_custom_call.1} parent=0 // pred_region
    _
  $region13: #{tpu_custom_call.1} parent=0 // pred_fallthru
    _
  // Predicated region
  $region14: #{tpu_custom_call.1} parent=0 // pred_check
    _
  $region15: #{tpu_custom_call.1} parent=0 // pred_check_branch
    %18 = sbr.rel (0) target = $region17
  $region16: #{tpu_custom_call.1} parent=0 // pred_region
    _
  $region17: #{tpu_custom_call.1} parent=0 // pred_fallthru
    _
  // Predicated region
  $region18: #{tpu_custom_call.1} parent=0 // pred_check
    _
  $region19: #{tpu_custom_call.1} parent=0 // pred_check_branch
    %20 = sbr.rel (0) target = $region21
  $region20: #{tpu_custom_call.1} parent=0 // pred_region
    _
  $region21: #{tpu_custom_call.1} parent=0 // pred_fallthru
    _
  // Predicated region
  $region22: #{tpu_custom_call.1} parent=0 // pred_check
    _
  $region23: #{tpu_custom_call.1} parent=0 // pred_check_branch
    %22 = sbr.rel (0) target = $region25
  $region24: #{tpu_custom_call.1} parent=0 // pred_region
    _
  $region25: #{tpu_custom_call.1} parent=0 // pred_fallthru
    _
  %v23 = vld [vmem:[%s1] sm:$0xff]
  %v24 = vld [vmem:[%s1 + $0x8] sm:$0xff]
  %v25 = vld [vmem:[%s1 + $0x10] sm:$0xff]
  %v26 = vld [vmem:[%s1 + $0x18] sm:$0xff]
  %v27 = vld [vmem:[%s1 + $0x20] sm:$0xff]
  %v28 = vld [vmem:[%s1 + $0x28] sm:$0xff]
  %v29 = vld [vmem:[%s1 + $0x30] sm:$0xff]
  %v30 = vld [vmem:[%s1 + $0x38] sm:$0xff]
  %v31 = vld [vmem:[%s1 + $0x40] sm:$0xff]
  %v32 = vld [vmem:[%s1 + $0x48] sm:$0xff]
  %v33 = vld [vmem:[%s1 + $0x50] sm:$0xff]
  %v34 = vld [vmem:[%s1 + $0x58] sm:$0xff]
  %v35 = vld [vmem:[%s1 + $0x60] sm:$0xff]
  %v36 = vld [vmem:[%s1 + $0x68] sm:$0xff]
  %v37 = vld [vmem:[%s1 + $0x70] sm:$0xff]
  %v38 = vld [vmem:[%s1 + $0x78] sm:$0xff]
  %v39 = vld [vmem:[%s1 + $0x80] sm:$0xff]
  %v40 = vld [vmem:[%s1 + $0x88] sm:$0xff]
  %v41 = vld [vmem:[%s1 + $0x90] sm:$0xff]
  %v42 = vld [vmem:[%s1 + $0x98] sm:$0xff]
  %v43 = vld [vmem:[%s1 + $0xa0] sm:$0xff]
  %v44 = vld [vmem:[%s1 + $0xa8] sm:$0xff]
  %v45 = vld [vmem:[%s1 + $0xb0] sm:$0xff]
  %v46 = vld [vmem:[%s1 + $0xb8] sm:$0xff]
  %v47 = vld [vmem:[%s1 + $0xc0] sm:$0xff]
  %v48 = vld [vmem:[%s1 + $0xc8] sm:$0xff]
  %v49 = vld [vmem:[%s1 + $0xd0] sm:$0xff]
  %v50 = vld [vmem:[%s1 + $0xd8] sm:$0xff]
  %v51 = vld [vmem:[%s1 + $0xe0] sm:$0xff]
  %v52 = vld [vmem:[%s1 + $0xe8] sm:$0xff]
  %v53 = vld [vmem:[%s1 + $0xf0] sm:$0xff]
  %v54 = vld [vmem:[%s1 + $0xf8] sm:$0xff]
  %v55 = vmul.f32 %v23, %v23
  %v56 = vmul.f32 %v24, %v24
  %v57 = vmul.f32 %v25, %v25
  %v58 = vmul.f32 %v26, %v26
  %v59 = vmul.f32 %v27, %v27
  %v60 = vmul.f32 %v28, %v28
  %v61 = vmul.f32 %v29, %v29
  %v62 = vmul.f32 %v30, %v30
  %v63 = vmul.f32 %v31, %v31
  %v64 = vmul.f32 %v32, %v32
  %v65 = vmul.f32 %v33, %v33
  %v66 = vmul.f32 %v34, %v34
  %v67 = vmul.f32 %v35, %v35
  %v68 = vmul.f32 %v36, %v36
  %v69 = vmul.f32 %v37, %v37
  %v70 = vmul.f32 %v38, %v38
  %v71 = vmul.f32 %v39, %v39
  %v72 = vmul.f32 %v40, %v40
  %v73 = vmul.f32 %v41, %v41
  %v74 = vmul.f32 %v42, %v42
  %v75 = vmul.f32 %v43, %v43
  %v76 = vmul.f32 %v44, %v44
  %v77 = vmul.f32 %v45, %v45
  %v78 = vmul.f32 %v46, %v46
  %v79 = vmul.f32 %v47, %v47
  %v80 = vmul.f32 %v48, %v48
  %v81 = vmul.f32 %v49, %v49
  %v82 = vmul.f32 %v50, %v50
  %v83 = vmul.f32 %v51, %v51
  %v84 = vmul.f32 %v52, %v52
  %v85 = vmul.f32 %v53, %v53
  %v86 = vmul.f32 %v54, %v54
  %vm87 = vcmask 64512
  %v88 = vsel %vm87, %v55, 0.0
  %89 = vadd.xlane.f32.xlu0 %v88
  %v90 = vpop.xlane.xlu0 %89
  %v91 = vsel %vm87, %v56, 0.0
  %92 = vadd.xlane.f32.xlu0 %v91
  %v93 = vpop.xlane.xlu0 %92
  %v94 = vsel %vm87, %v57, 0.0
  %95 = vadd.xlane.f32.xlu0 %v94
  %v96 = vpop.xlane.xlu0 %95
  %v97 = vsel %vm87, %v58, 0.0
  %98 = vadd.xlane.f32.xlu0 %v97
  %v99 = vpop.xlane.xlu0 %98
  %v100 = vsel %vm87, %v59, 0.0
  %101 = vadd.xlane.f32.xlu0 %v100
  %v102 = vpop.xlane.xlu0 %101
  %v103 = vsel %vm87, %v60, 0.0
  %104 = vadd.xlane.f32.xlu0 %v103
  %v105 = vpop.xlane.xlu0 %104
  %v106 = vsel %vm87, %v61, 0.0
  %107 = vadd.xlane.f32.xlu0 %v106
  %v108 = vpop.xlane.xlu0 %107
  %v109 = vsel %vm87, %v62, 0.0
  %110 = vadd.xlane.f32.xlu0 %v109
  %v111 = vpop.xlane.xlu0 %110
  %v112 = vsel %vm87, %v63, 0.0
  %113 = vadd.xlane.f32.xlu0 %v112
  %v114 = vpop.xlane.xlu0 %113
  %v115 = vsel %vm87, %v64, 0.0
  %116 = vadd.xlane.f32.xlu0 %v115
  %v117 = vpop.xlane.xlu0 %116
  %v118 = vsel %vm87, %v65, 0.0
  %119 = vadd.xlane.f32.xlu0 %v118
  %v120 = vpop.xlane.xlu0 %119
  %v121 = vsel %vm87, %v66, 0.0
  %122 = vadd.xlane.f32.xlu0 %v121
  %v123 = vpop.xlane.xlu0 %122
  %v124 = vsel %vm87, %v67, 0.0
  %125 = vadd.xlane.f32.xlu0 %v124
  %v126 = vpop.xlane.xlu0 %125
  %v127 = vsel %vm87, %v68, 0.0
  %128 = vadd.xlane.f32.xlu0 %v127
  %v129 = vpop.xlane.xlu0 %128
  %v130 = vsel %vm87, %v69, 0.0
  %131 = vadd.xlane.f32.xlu0 %v130
  %v132 = vpop.xlane.xlu0 %131
  %v133 = vsel %vm87, %v70, 0.0
  %134 = vadd.xlane.f32.xlu0 %v133
  %v135 = vpop.xlane.xlu0 %134
  %v136 = vsel %vm87, %v71, 0.0
  %137 = vadd.xlane.f32.xlu0 %v136
  %v138 = vpop.xlane.xlu0 %137
  %v139 = vsel %vm87, %v72, 0.0
  %140 = vadd.xlane.f32.xlu0 %v139
  %v141 = vpop.xlane.xlu0 %140
  %v142 = vsel %vm87, %v73, 0.0
  %143 = vadd.xlane.f32.xlu0 %v142
  %v144 = vpop.xlane.xlu0 %143
  %v145 = vsel %vm87, %v74, 0.0
  %146 = vadd.xlane.f32.xlu0 %v145
  %v147 = vpop.xlane.xlu0 %146
  %v148 = vsel %vm87, %v75, 0.0
  %149 = vadd.xlane.f32.xlu0 %v148
  %v150 = vpop.xlane.xlu0 %149
  %v151 = vsel %vm87, %v76, 0.0
  %152 = vadd.xlane.f32.xlu0 %v151
  %v153 = vpop.xlane.xlu0 %152
  %v154 = vsel %vm87, %v77, 0.0
  %155 = vadd.xlane.f32.xlu0 %v154
  %v156 = vpop.xlane.xlu0 %155
  %v157 = vsel %vm87, %v78, 0.0
  %158 = vadd.xlane.f32.xlu0 %v157
  %v159 = vpop.xlane.xlu0 %158
  %v160 = vsel %vm87, %v79, 0.0
  %161 = vadd.xlane.f32.xlu0 %v160
  %v162 = vpop.xlane.xlu0 %161
  %v163 = vsel %vm87, %v80, 0.0
  %164 = vadd.xlane.f32.xlu0 %v163
  %v165 = vpop.xlane.xlu0 %164
  %v166 = vsel %vm87, %v81, 0.0
  %167 = vadd.xlane.f32.xlu0 %v166
  %v168 = vpop.xlane.xlu0 %167
  %v169 = vsel %vm87, %v82, 0.0
  %170 = vadd.xlane.f32.xlu0 %v169
  %v171 = vpop.xlane.xlu0 %170
  %v172 = vsel %vm87, %v83, 0.0
  %173 = vadd.xlane.f32.xlu0 %v172
  %v174 = vpop.xlane.xlu0 %173
  %v175 = vsel %vm87, %v84, 0.0
  %176 = vadd.xlane.f32.xlu0 %v175
  %v177 = vpop.xlane.xlu0 %176
  %v178 = vsel %vm87, %v85, 0.0
  %179 = vadd.xlane.f32.xlu0 %v178
  %v180 = vpop.xlane.xlu0 %179
  %v181 = vsel %vm87, %v86, 0.0
  %182 = vadd.xlane.f32.xlu0 %v181
  %v183 = vpop.xlane.xlu0 %182
  %v184 = vmax.f32 %v90, 1e-24
  %v185 = vmax.f32 %v93, 1e-24
  %v186 = vmax.f32 %v96, 1e-24
  %v187 = vmax.f32 %v99, 1e-24
  %v188 = vmax.f32 %v102, 1e-24
  %v189 = vmax.f32 %v105, 1e-24
  %v190 = vmax.f32 %v108, 1e-24
  %v191 = vmax.f32 %v111, 1e-24
  %v192 = vmax.f32 %v114, 1e-24
  %v193 = vmax.f32 %v117, 1e-24
  %v194 = vmax.f32 %v120, 1e-24
  %v195 = vmax.f32 %v123, 1e-24
  %v196 = vmax.f32 %v126, 1e-24
  %v197 = vmax.f32 %v129, 1e-24
  %v198 = vmax.f32 %v132, 1e-24
  %v199 = vmax.f32 %v135, 1e-24
  %v200 = vmax.f32 %v138, 1e-24
  %v201 = vmax.f32 %v141, 1e-24
  %v202 = vmax.f32 %v144, 1e-24
  %v203 = vmax.f32 %v147, 1e-24
  %v204 = vmax.f32 %v150, 1e-24
  %v205 = vmax.f32 %v153, 1e-24
  %v206 = vmax.f32 %v156, 1e-24
  %v207 = vmax.f32 %v159, 1e-24
  %v208 = vmax.f32 %v162, 1e-24
  %v209 = vmax.f32 %v165, 1e-24
  %v210 = vmax.f32 %v168, 1e-24
  %v211 = vmax.f32 %v171, 1e-24
  %v212 = vmax.f32 %v174, 1e-24
  %v213 = vmax.f32 %v177, 1e-24
  %v214 = vmax.f32 %v180, 1e-24
  %v215 = vmax.f32 %v183, 1e-24
  %v216 = vrsqrt.pop %v184
  %v217 = vmul.f32 %v216, %v184
  %v218 = vmul.f32 %v217, %v216
  %v219 = vmul.f32 0.5, %v218
  %v220 = vsub.f32 1.5, %v219
  %v221 = vmul.f32 %v216, %v220
  %vm222 = vweird.f32 %v184
  %vm223 = vweird.f32 %v216
  %vm224 = vmor %vm222, %vm223
  %v225 = vsel %vm224, %v216, %v221
  %v226 = vrsqrt.pop %v185
  %v227 = vmul.f32 %v226, %v185
  %v228 = vmul.f32 %v227, %v226
  %v229 = vmul.f32 0.5, %v228
  %v230 = vsub.f32 1.5, %v229
  %v231 = vmul.f32 %v226, %v230
  %vm232 = vweird.f32 %v185
  %vm233 = vweird.f32 %v226
  %vm234 = vmor %vm232, %vm233
  %v235 = vsel %vm234, %v226, %v231
  %v236 = vrsqrt.pop %v186
  %v237 = vmul.f32 %v236, %v186
  %v238 = vmul.f32 %v237, %v236
  %v239 = vmul.f32 0.5, %v238
  %v240 = vsub.f32 1.5, %v239
  %v241 = vmul.f32 %v236, %v240
  %vm242 = vweird.f32 %v186
  %vm243 = vweird.f32 %v236
  %vm244 = vmor %vm242, %vm243
  %v245 = vsel %vm244, %v236, %v241
  %v246 = vrsqrt.pop %v187
  %v247 = vmul.f32 %v246, %v187
  %v248 = vmul.f32 %v247, %v246
  %v249 = vmul.f32 0.5, %v248
  %v250 = vsub.f32 1.5, %v249
  %v251 = vmul.f32 %v246, %v250
  %vm252 = vweird.f32 %v187
  %vm253 = vweird.f32 %v246
  %vm254 = vmor %vm252, %vm253
  %v255 = vsel %vm254, %v246, %v251
  %v256 = vrsqrt.pop %v188
  %v257 = vmul.f32 %v256, %v188
  %v258 = vmul.f32 %v257, %v256
  %v259 = vmul.f32 0.5, %v258
  %v260 = vsub.f32 1.5, %v259
  %v261 = vmul.f32 %v256, %v260
  %vm262 = vweird.f32 %v188
  %vm263 = vweird.f32 %v256
  %vm264 = vmor %vm262, %vm263
  %v265 = vsel %vm264, %v256, %v261
  %v266 = vrsqrt.pop %v189
  %v267 = vmul.f32 %v266, %v189
  %v268 = vmul.f32 %v267, %v266
  %v269 = vmul.f32 0.5, %v268
  %v270 = vsub.f32 1.5, %v269
  %v271 = vmul.f32 %v266, %v270
  %vm272 = vweird.f32 %v189
  %vm273 = vweird.f32 %v266
  %vm274 = vmor %vm272, %vm273
  %v275 = vsel %vm274, %v266, %v271
  %v276 = vrsqrt.pop %v190
  %v277 = vmul.f32 %v276, %v190
  %v278 = vmul.f32 %v277, %v276
  %v279 = vmul.f32 0.5, %v278
  %v280 = vsub.f32 1.5, %v279
  %v281 = vmul.f32 %v276, %v280
  %vm282 = vweird.f32 %v190
  %vm283 = vweird.f32 %v276
  %vm284 = vmor %vm282, %vm283
  %v285 = vsel %vm284, %v276, %v281
  %v286 = vrsqrt.pop %v191
  %v287 = vmul.f32 %v286, %v191
  %v288 = vmul.f32 %v287, %v286
  %v289 = vmul.f32 0.5, %v288
  %v290 = vsub.f32 1.5, %v289
  %v291 = vmul.f32 %v286, %v290
  %vm292 = vweird.f32 %v191
  %vm293 = vweird.f32 %v286
  %vm294 = vmor %vm292, %vm293
  %v295 = vsel %vm294, %v286, %v291
  %v296 = vrsqrt.pop %v192
  %v297 = vmul.f32 %v296, %v192
  %v298 = vmul.f32 %v297, %v296
  %v299 = vmul.f32 0.5, %v298
  %v300 = vsub.f32 1.5, %v299
  %v301 = vmul.f32 %v296, %v300
  %vm302 = vweird.f32 %v192
  %vm303 = vweird.f32 %v296
  %vm304 = vmor %vm302, %vm303
  %v305 = vsel %vm304, %v296, %v301
  %v306 = vrsqrt.pop %v193
  %v307 = vmul.f32 %v306, %v193
  %v308 = vmul.f32 %v307, %v306
  %v309 = vmul.f32 0.5, %v308
  %v310 = vsub.f32 1.5, %v309
  %v311 = vmul.f32 %v306, %v310
  %vm312 = vweird.f32 %v193
  %vm313 = vweird.f32 %v306
  %vm314 = vmor %vm312, %vm313
  %v315 = vsel %vm314, %v306, %v311
  %v316 = vrsqrt.pop %v194
  %v317 = vmul.f32 %v316, %v194
  %v318 = vmul.f32 %v317, %v316
  %v319 = vmul.f32 0.5, %v318
  %v320 = vsub.f32 1.5, %v319
  %v321 = vmul.f32 %v316, %v320
  %vm322 = vweird.f32 %v194
  %vm323 = vweird.f32 %v316
  %vm324 = vmor %vm322, %vm323
  %v325 = vsel %vm324, %v316, %v321
  %v326 = vrsqrt.pop %v195
  %v327 = vmul.f32 %v326, %v195
  %v328 = vmul.f32 %v327, %v326
  %v329 = vmul.f32 0.5, %v328
  %v330 = vsub.f32 1.5, %v329
  %v331 = vmul.f32 %v326, %v330
  %vm332 = vweird.f32 %v195
  %vm333 = vweird.f32 %v326
  %vm334 = vmor %vm332, %vm333
  %v335 = vsel %vm334, %v326, %v331
  %v336 = vrsqrt.pop %v196
  %v337 = vmul.f32 %v336, %v196
  %v338 = vmul.f32 %v337, %v336
  %v339 = vmul.f32 0.5, %v338
  %v340 = vsub.f32 1.5, %v339
  %v341 = vmul.f32 %v336, %v340
  %vm342 = vweird.f32 %v196
  %vm343 = vweird.f32 %v336
  %vm344 = vmor %vm342, %vm343
  %v345 = vsel %vm344, %v336, %v341
  %v346 = vrsqrt.pop %v197
  %v347 = vmul.f32 %v346, %v197
  %v348 = vmul.f32 %v347, %v346
  %v349 = vmul.f32 0.5, %v348
  %v350 = vsub.f32 1.5, %v349
  %v351 = vmul.f32 %v346, %v350
  %vm352 = vweird.f32 %v197
  %vm353 = vweird.f32 %v346
  %vm354 = vmor %vm352, %vm353
  %v355 = vsel %vm354, %v346, %v351
  %v356 = vrsqrt.pop %v198
  %v357 = vmul.f32 %v356, %v198
  %v358 = vmul.f32 %v357, %v356
  %v359 = vmul.f32 0.5, %v358
  %v360 = vsub.f32 1.5, %v359
  %v361 = vmul.f32 %v356, %v360
  %vm362 = vweird.f32 %v198
  %vm363 = vweird.f32 %v356
  %vm364 = vmor %vm362, %vm363
  %v365 = vsel %vm364, %v356, %v361
  %v366 = vrsqrt.pop %v199
  %v367 = vmul.f32 %v366, %v199
  %v368 = vmul.f32 %v367, %v366
  %v369 = vmul.f32 0.5, %v368
  %v370 = vsub.f32 1.5, %v369
  %v371 = vmul.f32 %v366, %v370
  %vm372 = vweird.f32 %v199
  %vm373 = vweird.f32 %v366
  %vm374 = vmor %vm372, %vm373
  %v375 = vsel %vm374, %v366, %v371
  %v376 = vrsqrt.pop %v200
  %v377 = vmul.f32 %v376, %v200
  %v378 = vmul.f32 %v377, %v376
  %v379 = vmul.f32 0.5, %v378
  %v380 = vsub.f32 1.5, %v379
  %v381 = vmul.f32 %v376, %v380
  %vm382 = vweird.f32 %v200
  %vm383 = vweird.f32 %v376
  %vm384 = vmor %vm382, %vm383
  %v385 = vsel %vm384, %v376, %v381
  %v386 = vrsqrt.pop %v201
  %v387 = vmul.f32 %v386, %v201
  %v388 = vmul.f32 %v387, %v386
  %v389 = vmul.f32 0.5, %v388
  %v390 = vsub.f32 1.5, %v389
  %v391 = vmul.f32 %v386, %v390
  %vm392 = vweird.f32 %v201
  %vm393 = vweird.f32 %v386
  %vm394 = vmor %vm392, %vm393
  %v395 = vsel %vm394, %v386, %v391
  %v396 = vrsqrt.pop %v202
  %v397 = vmul.f32 %v396, %v202
  %v398 = vmul.f32 %v397, %v396
  %v399 = vmul.f32 0.5, %v398
  %v400 = vsub.f32 1.5, %v399
  %v401 = vmul.f32 %v396, %v400
  %vm402 = vweird.f32 %v202
  %vm403 = vweird.f32 %v396
  %vm404 = vmor %vm402, %vm403
  %v405 = vsel %vm404, %v396, %v401
  %v406 = vrsqrt.pop %v203
  %v407 = vmul.f32 %v406, %v203
  %v408 = vmul.f32 %v407, %v406
  %v409 = vmul.f32 0.5, %v408
  %v410 = vsub.f32 1.5, %v409
  %v411 = vmul.f32 %v406, %v410
  %vm412 = vweird.f32 %v203
  %vm413 = vweird.f32 %v406
  %vm414 = vmor %vm412, %vm413
  %v415 = vsel %vm414, %v406, %v411
  %v416 = vrsqrt.pop %v204
  %v417 = vmul.f32 %v416, %v204
  %v418 = vmul.f32 %v417, %v416
  %v419 = vmul.f32 0.5, %v418
  %v420 = vsub.f32 1.5, %v419
  %v421 = vmul.f32 %v416, %v420
  %vm422 = vweird.f32 %v204
  %vm423 = vweird.f32 %v416
  %vm424 = vmor %vm422, %vm423
  %v425 = vsel %vm424, %v416, %v421
  %v426 = vrsqrt.pop %v205
  %v427 = vmul.f32 %v426, %v205
  %v428 = vmul.f32 %v427, %v426
  %v429 = vmul.f32 0.5, %v428
  %v430 = vsub.f32 1.5, %v429
  %v431 = vmul.f32 %v426, %v430
  %vm432 = vweird.f32 %v205
  %vm433 = vweird.f32 %v426
  %vm434 = vmor %vm432, %vm433
  %v435 = vsel %vm434, %v426, %v431
  %v436 = vrsqrt.pop %v206
  %v437 = vmul.f32 %v436, %v206
  %v438 = vmul.f32 %v437, %v436
  %v439 = vmul.f32 0.5, %v438
  %v440 = vsub.f32 1.5, %v439
  %v441 = vmul.f32 %v436, %v440
  %vm442 = vweird.f32 %v206
  %vm443 = vweird.f32 %v436
  %vm444 = vmor %vm442, %vm443
  %v445 = vsel %vm444, %v436, %v441
  %v446 = vrsqrt.pop %v207
  %v447 = vmul.f32 %v446, %v207
  %v448 = vmul.f32 %v447, %v446
  %v449 = vmul.f32 0.5, %v448
  %v450 = vsub.f32 1.5, %v449
  %v451 = vmul.f32 %v446, %v450
  %vm452 = vweird.f32 %v207
  %vm453 = vweird.f32 %v446
  %vm454 = vmor %vm452, %vm453
  %v455 = vsel %vm454, %v446, %v451
  %v456 = vrsqrt.pop %v208
  %v457 = vmul.f32 %v456, %v208
  %v458 = vmul.f32 %v457, %v456
  %v459 = vmul.f32 0.5, %v458
  %v460 = vsub.f32 1.5, %v459
  %v461 = vmul.f32 %v456, %v460
  %vm462 = vweird.f32 %v208
  %vm463 = vweird.f32 %v456
  %vm464 = vmor %vm462, %vm463
  %v465 = vsel %vm464, %v456, %v461
  %v466 = vrsqrt.pop %v209
  %v467 = vmul.f32 %v466, %v209
  %v468 = vmul.f32 %v467, %v466
  %v469 = vmul.f32 0.5, %v468
  %v470 = vsub.f32 1.5, %v469
  %v471 = vmul.f32 %v466, %v470
  %vm472 = vweird.f32 %v209
  %vm473 = vweird.f32 %v466
  %vm474 = vmor %vm472, %vm473
  %v475 = vsel %vm474, %v466, %v471
  %v476 = vrsqrt.pop %v210
  %v477 = vmul.f32 %v476, %v210
  %v478 = vmul.f32 %v477, %v476
  %v479 = vmul.f32 0.5, %v478
  %v480 = vsub.f32 1.5, %v479
  %v481 = vmul.f32 %v476, %v480
  %vm482 = vweird.f32 %v210
  %vm483 = vweird.f32 %v476
  %vm484 = vmor %vm482, %vm483
  %v485 = vsel %vm484, %v476, %v481
  %v486 = vrsqrt.pop %v211
  %v487 = vmul.f32 %v486, %v211
  %v488 = vmul.f32 %v487, %v486
  %v489 = vmul.f32 0.5, %v488
  %v490 = vsub.f32 1.5, %v489
  %v491 = vmul.f32 %v486, %v490
  %vm492 = vweird.f32 %v211
  %vm493 = vweird.f32 %v486
  %vm494 = vmor %vm492, %vm493
  %v495 = vsel %vm494, %v486, %v491
  %v496 = vrsqrt.pop %v212
  %v497 = vmul.f32 %v496, %v212
  %v498 = vmul.f32 %v497, %v496
  %v499 = vmul.f32 0.5, %v498
  %v500 = vsub.f32 1.5, %v499
  %v501 = vmul.f32 %v496, %v500
  %vm502 = vweird.f32 %v212
  %vm503 = vweird.f32 %v496
  %vm504 = vmor %vm502, %vm503
  %v505 = vsel %vm504, %v496, %v501
  %v506 = vrsqrt.pop %v213
  %v507 = vmul.f32 %v506, %v213
  %v508 = vmul.f32 %v507, %v506
  %v509 = vmul.f32 0.5, %v508
  %v510 = vsub.f32 1.5, %v509
  %v511 = vmul.f32 %v506, %v510
  %vm512 = vweird.f32 %v213
  %vm513 = vweird.f32 %v506
  %vm514 = vmor %vm512, %vm513
  %v515 = vsel %vm514, %v506, %v511
  %v516 = vrsqrt.pop %v214
  %v517 = vmul.f32 %v516, %v214
  %v518 = vmul.f32 %v517, %v516
  %v519 = vmul.f32 0.5, %v518
  %v520 = vsub.f32 1.5, %v519
  %v521 = vmul.f32 %v516, %v520
  %vm522 = vweird.f32 %v214
  %vm523 = vweird.f32 %v516
  %vm524 = vmor %vm522, %vm523
  %v525 = vsel %vm524, %v516, %v521
  %v526 = vrsqrt.pop %v215
  %v527 = vmul.f32 %v526, %v215
  %v528 = vmul.f32 %v527, %v526
  %v529 = vmul.f32 0.5, %v528
  %v530 = vsub.f32 1.5, %v529
  %v531 = vmul.f32 %v526, %v530
  %vm532 = vweird.f32 %v215
  %vm533 = vweird.f32 %v526
  %vm534 = vmor %vm532, %vm533
  %v535 = vsel %vm534, %v526, %v531
  %v536 = vmul.f32 %v23, %v225
  %v537 = vmul.f32 %v24, %v235
  %v538 = vmul.f32 %v25, %v245
  %v539 = vmul.f32 %v26, %v255
  %v540 = vmul.f32 %v27, %v265
  %v541 = vmul.f32 %v28, %v275
  %v542 = vmul.f32 %v29, %v285
  %v543 = vmul.f32 %v30, %v295
  %v544 = vmul.f32 %v31, %v305
  %v545 = vmul.f32 %v32, %v315
  %v546 = vmul.f32 %v33, %v325
  %v547 = vmul.f32 %v34, %v335
  %v548 = vmul.f32 %v35, %v345
  %v549 = vmul.f32 %v36, %v355
  %v550 = vmul.f32 %v37, %v365
  %v551 = vmul.f32 %v38, %v375
  %v552 = vmul.f32 %v39, %v385
  %v553 = vmul.f32 %v40, %v395
  %v554 = vmul.f32 %v41, %v405
  %v555 = vmul.f32 %v42, %v415
  %v556 = vmul.f32 %v43, %v425
  %v557 = vmul.f32 %v44, %v435
  %v558 = vmul.f32 %v45, %v445
  %v559 = vmul.f32 %v46, %v455
  %v560 = vmul.f32 %v47, %v465
  %v561 = vmul.f32 %v48, %v475
  %v562 = vmul.f32 %v49, %v485
  %v563 = vmul.f32 %v50, %v495
  %v564 = vmul.f32 %v51, %v505
  %v565 = vmul.f32 %v52, %v515
  %v566 = vmul.f32 %v53, %v525
  %v567 = vmul.f32 %v54, %v535
  %v568 = vld [vmem:[%s4] sm:$0x1]
  %v569 = vld [vmem:[%s4 + $0x1] sm:$0x1]
  %v570 = vld [vmem:[%s5] sm:$0x1]
  %v571 = vld [vmem:[%s5 + $0x1] sm:$0x1]
  %s572 = scalar_lea.vmem %s0, 1024
  %v573 = vld [vmem:[%s572] sm:$0xff]
  %v574 = vld [vmem:[%s572 + $0x8] sm:$0xff]
  %v575 = vld [vmem:[%s572 + $0x10] sm:$0xff]
  %v576 = vld [vmem:[%s572 + $0x18] sm:$0xff]
  %v577 = vld [vmem:[%s572 + $0x20] sm:$0xff]
  %v578 = vld [vmem:[%s572 + $0x28] sm:$0xff]
  %v579 = vld [vmem:[%s572 + $0x30] sm:$0xff]
  %v580 = vld [vmem:[%s572 + $0x38] sm:$0xff]
  %v581 = vld [vmem:[%s572 + $0x40] sm:$0xff]
  %v582 = vld [vmem:[%s572 + $0x48] sm:$0xff]
  %v583 = vld [vmem:[%s572 + $0x50] sm:$0xff]
  %v584 = vld [vmem:[%s572 + $0x58] sm:$0xff]
  %v585 = vld [vmem:[%s572 + $0x60] sm:$0xff]
  %v586 = vld [vmem:[%s572 + $0x68] sm:$0xff]
  %v587 = vld [vmem:[%s572 + $0x70] sm:$0xff]
  %v588 = vld [vmem:[%s572 + $0x78] sm:$0xff]
  %v589 = vld [vmem:[%s572 + $0x80] sm:$0xff]
  %v590 = vld [vmem:[%s572 + $0x88] sm:$0xff]
  %v591 = vld [vmem:[%s572 + $0x90] sm:$0xff]
  %v592 = vld [vmem:[%s572 + $0x98] sm:$0xff]
  %v593 = vld [vmem:[%s572 + $0xa0] sm:$0xff]
  %v594 = vld [vmem:[%s572 + $0xa8] sm:$0xff]
  %v595 = vld [vmem:[%s572 + $0xb0] sm:$0xff]
  %v596 = vld [vmem:[%s572 + $0xb8] sm:$0xff]
  %v597 = vld [vmem:[%s572 + $0xc0] sm:$0xff]
  %v598 = vld [vmem:[%s572 + $0xc8] sm:$0xff]
  %v599 = vld [vmem:[%s572 + $0xd0] sm:$0xff]
  %v600 = vld [vmem:[%s572 + $0xd8] sm:$0xff]
  %v601 = vld [vmem:[%s572 + $0xe0] sm:$0xff]
  %v602 = vld [vmem:[%s572 + $0xe8] sm:$0xff]
  %v603 = vld [vmem:[%s572 + $0xf0] sm:$0xff]
  %v604 = vld [vmem:[%s572 + $0xf8] sm:$0xff]
  %v605 = vld [vmem:[%s572 + $0x100] sm:$0xff]
  %v606 = vld [vmem:[%s572 + $0x108] sm:$0xff]
  %v607 = vld [vmem:[%s572 + $0x110] sm:$0xff]
  %v608 = vld [vmem:[%s572 + $0x118] sm:$0xff]
  %v609 = vld [vmem:[%s572 + $0x120] sm:$0xff]
  %v610 = vld [vmem:[%s572 + $0x128] sm:$0xff]
  %v611 = vld [vmem:[%s572 + $0x130] sm:$0xff]
  %v612 = vld [vmem:[%s572 + $0x138] sm:$0xff]
  %v613 = vld [vmem:[%s572 + $0x140] sm:$0xff]
  %v614 = vld [vmem:[%s572 + $0x148] sm:$0xff]
  %v615 = vld [vmem:[%s572 + $0x150] sm:$0xff]
  %v616 = vld [vmem:[%s572 + $0x158] sm:$0xff]
  %v617 = vld [vmem:[%s572 + $0x160] sm:$0xff]
  %v618 = vld [vmem:[%s572 + $0x168] sm:$0xff]
  %v619 = vld [vmem:[%s572 + $0x170] sm:$0xff]
  %v620 = vld [vmem:[%s572 + $0x178] sm:$0xff]
  %v621 = vld [vmem:[%s572 + $0x180] sm:$0xff]
  %v622 = vld [vmem:[%s572 + $0x188] sm:$0xff]
  %v623 = vld [vmem:[%s572 + $0x190] sm:$0xff]
  %v624 = vld [vmem:[%s572 + $0x198] sm:$0xff]
  %v625 = vld [vmem:[%s572 + $0x1a0] sm:$0xff]
  %v626 = vld [vmem:[%s572 + $0x1a8] sm:$0xff]
  %v627 = vld [vmem:[%s572 + $0x1b0] sm:$0xff]
  %v628 = vld [vmem:[%s572 + $0x1b8] sm:$0xff]
  %v629 = vld [vmem:[%s572 + $0x1c0] sm:$0xff]
  %v630 = vld [vmem:[%s572 + $0x1c8] sm:$0xff]
  %v631 = vld [vmem:[%s572 + $0x1d0] sm:$0xff]
  %v632 = vld [vmem:[%s572 + $0x1d8] sm:$0xff]
  %v633 = vld [vmem:[%s572 + $0x1e0] sm:$0xff]
  %v634 = vld [vmem:[%s572 + $0x1e8] sm:$0xff]
  %v635 = vld [vmem:[%s572 + $0x1f0] sm:$0xff]
  %v636 = vld [vmem:[%s572 + $0x1f8] sm:$0xff]
  %v637 = vld [vmem:[%s572 + $0x200] sm:$0xff]
  %v638 = vld [vmem:[%s572 + $0x208] sm:$0xff]
  %v639 = vld [vmem:[%s572 + $0x210] sm:$0xff]
  %v640 = vld [vmem:[%s572 + $0x218] sm:$0xff]
  %v641 = vld [vmem:[%s572 + $0x220] sm:$0xff]
  %v642 = vld [vmem:[%s572 + $0x228] sm:$0xff]
  %v643 = vld [vmem:[%s572 + $0x230] sm:$0xff]
  %v644 = vld [vmem:[%s572 + $0x238] sm:$0xff]
  %v645 = vld [vmem:[%s572 + $0x240] sm:$0xff]
  %v646 = vld [vmem:[%s572 + $0x248] sm:$0xff]
  %v647 = vld [vmem:[%s572 + $0x250] sm:$0xff]
  %v648 = vld [vmem:[%s572 + $0x258] sm:$0xff]
  %v649 = vld [vmem:[%s572 + $0x260] sm:$0xff]
  %v650 = vld [vmem:[%s572 + $0x268] sm:$0xff]
  %v651 = vld [vmem:[%s572 + $0x270] sm:$0xff]
  %v652 = vld [vmem:[%s572 + $0x278] sm:$0xff]
  %v653 = vld [vmem:[%s572 + $0x280] sm:$0xff]
  %v654 = vld [vmem:[%s572 + $0x288] sm:$0xff]
  %v655 = vld [vmem:[%s572 + $0x290] sm:$0xff]
  %v656 = vld [vmem:[%s572 + $0x298] sm:$0xff]
  %v657 = vld [vmem:[%s572 + $0x2a0] sm:$0xff]
  %v658 = vld [vmem:[%s572 + $0x2a8] sm:$0xff]
  %v659 = vld [vmem:[%s572 + $0x2b0] sm:$0xff]
  %v660 = vld [vmem:[%s572 + $0x2b8] sm:$0xff]
  %v661 = vld [vmem:[%s572 + $0x2c0] sm:$0xff]
  %v662 = vld [vmem:[%s572 + $0x2c8] sm:$0xff]
  %v663 = vld [vmem:[%s572 + $0x2d0] sm:$0xff]
  %v664 = vld [vmem:[%s572 + $0x2d8] sm:$0xff]
  %v665 = vld [vmem:[%s572 + $0x2e0] sm:$0xff]
  %v666 = vld [vmem:[%s572 + $0x2e8] sm:$0xff]
  %v667 = vld [vmem:[%s572 + $0x2f0] sm:$0xff]
  %v668 = vld [vmem:[%s572 + $0x2f8] sm:$0xff]
  %v669 = vld [vmem:[%s572 + $0x300] sm:$0xff]
  %v670 = vld [vmem:[%s572 + $0x308] sm:$0xff]
  %v671 = vld [vmem:[%s572 + $0x310] sm:$0xff]
  %v672 = vld [vmem:[%s572 + $0x318] sm:$0xff]
  %v673 = vld [vmem:[%s572 + $0x320] sm:$0xff]
  %v674 = vld [vmem:[%s572 + $0x328] sm:$0xff]
  %v675 = vld [vmem:[%s572 + $0x330] sm:$0xff]
  %v676 = vld [vmem:[%s572 + $0x338] sm:$0xff]
  %v677 = vld [vmem:[%s572 + $0x340] sm:$0xff]
  %v678 = vld [vmem:[%s572 + $0x348] sm:$0xff]
  %v679 = vld [vmem:[%s572 + $0x350] sm:$0xff]
  %v680 = vld [vmem:[%s572 + $0x358] sm:$0xff]
  %v681 = vld [vmem:[%s572 + $0x360] sm:$0xff]
  %v682 = vld [vmem:[%s572 + $0x368] sm:$0xff]
  %v683 = vld [vmem:[%s572 + $0x370] sm:$0xff]
  %v684 = vld [vmem:[%s572 + $0x378] sm:$0xff]
  %v685 = vld [vmem:[%s572 + $0x380] sm:$0xff]
  %v686 = vld [vmem:[%s572 + $0x388] sm:$0xff]
  %v687 = vld [vmem:[%s572 + $0x390] sm:$0xff]
  %v688 = vld [vmem:[%s572 + $0x398] sm:$0xff]
  %v689 = vld [vmem:[%s572 + $0x3a0] sm:$0xff]
  %v690 = vld [vmem:[%s572 + $0x3a8] sm:$0xff]
  %v691 = vld [vmem:[%s572 + $0x3b0] sm:$0xff]
  %v692 = vld [vmem:[%s572 + $0x3b8] sm:$0xff]
  %v693 = vld [vmem:[%s572 + $0x3c0] sm:$0xff]
  %v694 = vld [vmem:[%s572 + $0x3c8] sm:$0xff]
  %v695 = vld [vmem:[%s572 + $0x3d0] sm:$0xff]
  %v696 = vld [vmem:[%s572 + $0x3d8] sm:$0xff]
  %v697 = vld [vmem:[%s572 + $0x3e0] sm:$0xff]
  %v698 = vld [vmem:[%s572 + $0x3e8] sm:$0xff]
  %v699 = vld [vmem:[%s572 + $0x3f0] sm:$0xff]
  %v700 = vld [vmem:[%s572 + $0x3f8] sm:$0xff]
  %v701 = vmul.f32 %v573, %v573
  %v702 = vmul.f32 %v574, %v574
  %v703 = vmul.f32 %v575, %v575
  %v704 = vmul.f32 %v576, %v576
  %v705 = vmul.f32 %v577, %v577
  %v706 = vmul.f32 %v578, %v578
  %v707 = vmul.f32 %v579, %v579
  %v708 = vmul.f32 %v580, %v580
  %v709 = vmul.f32 %v581, %v581
  %v710 = vmul.f32 %v582, %v582
  %v711 = vmul.f32 %v583, %v583
  %v712 = vmul.f32 %v584, %v584
  %v713 = vmul.f32 %v585, %v585
  %v714 = vmul.f32 %v586, %v586
  %v715 = vmul.f32 %v587, %v587
  %v716 = vmul.f32 %v588, %v588
  %v717 = vmul.f32 %v589, %v589
  %v718 = vmul.f32 %v590, %v590
  %v719 = vmul.f32 %v591, %v591
  %v720 = vmul.f32 %v592, %v592
  %v721 = vmul.f32 %v593, %v593
  %v722 = vmul.f32 %v594, %v594
  %v723 = vmul.f32 %v595, %v595
  %v724 = vmul.f32 %v596, %v596
  %v725 = vmul.f32 %v597, %v597
  %v726 = vmul.f32 %v598, %v598
  %v727 = vmul.f32 %v599, %v599
  %v728 = vmul.f32 %v600, %v600
  %v729 = vmul.f32 %v601, %v601
  %v730 = vmul.f32 %v602, %v602
  %v731 = vmul.f32 %v603, %v603
  %v732 = vmul.f32 %v604, %v604
  %v733 = vmul.f32 %v605, %v605
  %v734 = vmul.f32 %v606, %v606
  %v735 = vmul.f32 %v607, %v607
  %v736 = vmul.f32 %v608, %v608
  %v737 = vmul.f32 %v609, %v609
  %v738 = vmul.f32 %v610, %v610
  %v739 = vmul.f32 %v611, %v611
  %v740 = vmul.f32 %v612, %v612
  %v741 = vmul.f32 %v613, %v613
  %v742 = vmul.f32 %v614, %v614
  %v743 = vmul.f32 %v615, %v615
  %v744 = vmul.f32 %v616, %v616
  %v745 = vmul.f32 %v617, %v617
  %v746 = vmul.f32 %v618, %v618
  %v747 = vmul.f32 %v619, %v619
  %v748 = vmul.f32 %v620, %v620
  %v749 = vmul.f32 %v621, %v621
  %v750 = vmul.f32 %v622, %v622
  %v751 = vmul.f32 %v623, %v623
  %v752 = vmul.f32 %v624, %v624
  %v753 = vmul.f32 %v625, %v625
  %v754 = vmul.f32 %v626, %v626
  %v755 = vmul.f32 %v627, %v627
  %v756 = vmul.f32 %v628, %v628
  %v757 = vmul.f32 %v629, %v629
  %v758 = vmul.f32 %v630, %v630
  %v759 = vmul.f32 %v631, %v631
  %v760 = vmul.f32 %v632, %v632
  %v761 = vmul.f32 %v633, %v633
  %v762 = vmul.f32 %v634, %v634
  %v763 = vmul.f32 %v635, %v635
  %v764 = vmul.f32 %v636, %v636
  %v765 = vmul.f32 %v637, %v637
  %v766 = vmul.f32 %v638, %v638
  %v767 = vmul.f32 %v639, %v639
  %v768 = vmul.f32 %v640, %v640
  %v769 = vmul.f32 %v641, %v641
  %v770 = vmul.f32 %v642, %v642
  %v771 = vmul.f32 %v643, %v643
  %v772 = vmul.f32 %v644, %v644
  %v773 = vmul.f32 %v645, %v645
  %v774 = vmul.f32 %v646, %v646
  %v775 = vmul.f32 %v647, %v647
  %v776 = vmul.f32 %v648, %v648
  %v777 = vmul.f32 %v649, %v649
  %v778 = vmul.f32 %v650, %v650
  %v779 = vmul.f32 %v651, %v651
  %v780 = vmul.f32 %v652, %v652
  %v781 = vmul.f32 %v653, %v653
  %v782 = vmul.f32 %v654, %v654
  %v783 = vmul.f32 %v655, %v655
  %v784 = vmul.f32 %v656, %v656
  %v785 = vmul.f32 %v657, %v657
  %v786 = vmul.f32 %v658, %v658
  %v787 = vmul.f32 %v659, %v659
  %v788 = vmul.f32 %v660, %v660
  %v789 = vmul.f32 %v661, %v661
  %v790 = vmul.f32 %v662, %v662
  %v791 = vmul.f32 %v663, %v663
  %v792 = vmul.f32 %v664, %v664
  %v793 = vmul.f32 %v665, %v665
  %v794 = vmul.f32 %v666, %v666
  %v795 = vmul.f32 %v667, %v667
  %v796 = vmul.f32 %v668, %v668
  %v797 = vmul.f32 %v669, %v669
  %v798 = vmul.f32 %v670, %v670
  %v799 = vmul.f32 %v671, %v671
  %v800 = vmul.f32 %v672, %v672
  %v801 = vmul.f32 %v673, %v673
  %v802 = vmul.f32 %v674, %v674
  %v803 = vmul.f32 %v675, %v675
  %v804 = vmul.f32 %v676, %v676
  %v805 = vmul.f32 %v677, %v677
  %v806 = vmul.f32 %v678, %v678
  %v807 = vmul.f32 %v679, %v679
  %v808 = vmul.f32 %v680, %v680
  %v809 = vmul.f32 %v681, %v681
  %v810 = vmul.f32 %v682, %v682
  %v811 = vmul.f32 %v683, %v683
  %v812 = vmul.f32 %v684, %v684
  %v813 = vmul.f32 %v685, %v685
  %v814 = vmul.f32 %v686, %v686
  %v815 = vmul.f32 %v687, %v687
  %v816 = vmul.f32 %v688, %v688
  %v817 = vmul.f32 %v689, %v689
  %v818 = vmul.f32 %v690, %v690
  %v819 = vmul.f32 %v691, %v691
  %v820 = vmul.f32 %v692, %v692
  %v821 = vmul.f32 %v693, %v693
  %v822 = vmul.f32 %v694, %v694
  %v823 = vmul.f32 %v695, %v695
  %v824 = vmul.f32 %v696, %v696
  %v825 = vmul.f32 %v697, %v697
  %v826 = vmul.f32 %v698, %v698
  %v827 = vmul.f32 %v699, %v699
  %v828 = vmul.f32 %v700, %v700
  %v829 = vsel %vm87, %v701, 0.0
  %830 = vadd.xlane.f32.xlu0 %v829
  %v831 = vpop.xlane.xlu0 %830
  %v832 = vsel %vm87, %v702, 0.0
  %833 = vadd.xlane.f32.xlu0 %v832
  %v834 = vpop.xlane.xlu0 %833
  %v835 = vsel %vm87, %v703, 0.0
  %836 = vadd.xlane.f32.xlu0 %v835
  %v837 = vpop.xlane.xlu0 %836
  %v838 = vsel %vm87, %v704, 0.0
  %839 = vadd.xlane.f32.xlu0 %v838
  %v840 = vpop.xlane.xlu0 %839
  %v841 = vsel %vm87, %v705, 0.0
  %842 = vadd.xlane.f32.xlu0 %v841
  %v843 = vpop.xlane.xlu0 %842
  %v844 = vsel %vm87, %v706, 0.0
  %845 = vadd.xlane.f32.xlu0 %v844
  %v846 = vpop.xlane.xlu0 %845
  %v847 = vsel %vm87, %v707, 0.0
  %848 = vadd.xlane.f32.xlu0 %v847
  %v849 = vpop.xlane.xlu0 %848
  %v850 = vsel %vm87, %v708, 0.0
  %851 = vadd.xlane.f32.xlu0 %v850
  %v852 = vpop.xlane.xlu0 %851
  %v853 = vsel %vm87, %v709, 0.0
  %854 = vadd.xlane.f32.xlu0 %v853
  %v855 = vpop.xlane.xlu0 %854
  %v856 = vsel %vm87, %v710, 0.0
  %857 = vadd.xlane.f32.xlu0 %v856
  %v858 = vpop.xlane.xlu0 %857
  %v859 = vsel %vm87, %v711, 0.0
  %860 = vadd.xlane.f32.xlu0 %v859
  %v861 = vpop.xlane.xlu0 %860
  %v862 = vsel %vm87, %v712, 0.0
  %863 = vadd.xlane.f32.xlu0 %v862
  %v864 = vpop.xlane.xlu0 %863
  %v865 = vsel %vm87, %v713, 0.0
  %866 = vadd.xlane.f32.xlu0 %v865
  %v867 = vpop.xlane.xlu0 %866
  %v868 = vsel %vm87, %v714, 0.0
  %869 = vadd.xlane.f32.xlu0 %v868
  %v870 = vpop.xlane.xlu0 %869
  %v871 = vsel %vm87, %v715, 0.0
  %872 = vadd.xlane.f32.xlu0 %v871
  %v873 = vpop.xlane.xlu0 %872
  %v874 = vsel %vm87, %v716, 0.0
  %875 = vadd.xlane.f32.xlu0 %v874
  %v876 = vpop.xlane.xlu0 %875
  %v877 = vsel %vm87, %v717, 0.0
  %878 = vadd.xlane.f32.xlu0 %v877
  %v879 = vpop.xlane.xlu0 %878
  %v880 = vsel %vm87, %v718, 0.0
  %881 = vadd.xlane.f32.xlu0 %v880
  %v882 = vpop.xlane.xlu0 %881
  %v883 = vsel %vm87, %v719, 0.0
  %884 = vadd.xlane.f32.xlu0 %v883
  %v885 = vpop.xlane.xlu0 %884
  %v886 = vsel %vm87, %v720, 0.0
  %887 = vadd.xlane.f32.xlu0 %v886
  %v888 = vpop.xlane.xlu0 %887
  %v889 = vsel %vm87, %v721, 0.0
  %890 = vadd.xlane.f32.xlu0 %v889
  %v891 = vpop.xlane.xlu0 %890
  %v892 = vsel %vm87, %v722, 0.0
  %893 = vadd.xlane.f32.xlu0 %v892
  %v894 = vpop.xlane.xlu0 %893
  %v895 = vsel %vm87, %v723, 0.0
  %896 = vadd.xlane.f32.xlu0 %v895
  %v897 = vpop.xlane.xlu0 %896
  %v898 = vsel %vm87, %v724, 0.0
  %899 = vadd.xlane.f32.xlu0 %v898
  %v900 = vpop.xlane.xlu0 %899
  %v901 = vsel %vm87, %v725, 0.0
  %902 = vadd.xlane.f32.xlu0 %v901
  %v903 = vpop.xlane.xlu0 %902
  %v904 = vsel %vm87, %v726, 0.0
  %905 = vadd.xlane.f32.xlu0 %v904
  %v906 = vpop.xlane.xlu0 %905
  %v907 = vsel %vm87, %v727, 0.0
  %908 = vadd.xlane.f32.xlu0 %v907
  %v909 = vpop.xlane.xlu0 %908
  %v910 = vsel %vm87, %v728, 0.0
  %911 = vadd.xlane.f32.xlu0 %v910
  %v912 = vpop.xlane.xlu0 %911
  %v913 = vsel %vm87, %v729, 0.0
  %914 = vadd.xlane.f32.xlu0 %v913
  %v915 = vpop.xlane.xlu0 %914
  %v916 = vsel %vm87, %v730, 0.0
  %917 = vadd.xlane.f32.xlu0 %v916
  %v918 = vpop.xlane.xlu0 %917
  %v919 = vsel %vm87, %v731, 0.0
  %920 = vadd.xlane.f32.xlu0 %v919
  %v921 = vpop.xlane.xlu0 %920
  %v922 = vsel %vm87, %v732, 0.0
  %923 = vadd.xlane.f32.xlu0 %v922
  %v924 = vpop.xlane.xlu0 %923
  %v925 = vsel %vm87, %v733, 0.0
  %926 = vadd.xlane.f32.xlu0 %v925
  %v927 = vpop.xlane.xlu0 %926
  %v928 = vsel %vm87, %v734, 0.0
  %929 = vadd.xlane.f32.xlu0 %v928
  %v930 = vpop.xlane.xlu0 %929
  %v931 = vsel %vm87, %v735, 0.0
  %932 = vadd.xlane.f32.xlu0 %v931
  %v933 = vpop.xlane.xlu0 %932
  %v934 = vsel %vm87, %v736, 0.0
  %935 = vadd.xlane.f32.xlu0 %v934
  %v936 = vpop.xlane.xlu0 %935
  %v937 = vsel %vm87, %v737, 0.0
  %938 = vadd.xlane.f32.xlu0 %v937
  %v939 = vpop.xlane.xlu0 %938
  %v940 = vsel %vm87, %v738, 0.0
  %941 = vadd.xlane.f32.xlu0 %v940
  %v942 = vpop.xlane.xlu0 %941
  %v943 = vsel %vm87, %v739, 0.0
  %944 = vadd.xlane.f32.xlu0 %v943
  %v945 = vpop.xlane.xlu0 %944
  %v946 = vsel %vm87, %v740, 0.0
  %947 = vadd.xlane.f32.xlu0 %v946
  %v948 = vpop.xlane.xlu0 %947
  %v949 = vsel %vm87, %v741, 0.0
  %950 = vadd.xlane.f32.xlu0 %v949
  %v951 = vpop.xlane.xlu0 %950
  %v952 = vsel %vm87, %v742, 0.0
  %953 = vadd.xlane.f32.xlu0 %v952
  %v954 = vpop.xlane.xlu0 %953
  %v955 = vsel %vm87, %v743, 0.0
  %956 = vadd.xlane.f32.xlu0 %v955
  %v957 = vpop.xlane.xlu0 %956
  %v958 = vsel %vm87, %v744, 0.0
  %959 = vadd.xlane.f32.xlu0 %v958
  %v960 = vpop.xlane.xlu0 %959
  %v961 = vsel %vm87, %v745, 0.0
  %962 = vadd.xlane.f32.xlu0 %v961
  %v963 = vpop.xlane.xlu0 %962
  %v964 = vsel %vm87, %v746, 0.0
  %965 = vadd.xlane.f32.xlu0 %v964
  %v966 = vpop.xlane.xlu0 %965
  %v967 = vsel %vm87, %v747, 0.0
  %968 = vadd.xlane.f32.xlu0 %v967
  %v969 = vpop.xlane.xlu0 %968
  %v970 = vsel %vm87, %v748, 0.0
  %971 = vadd.xlane.f32.xlu0 %v970
  %v972 = vpop.xlane.xlu0 %971
  %v973 = vsel %vm87, %v749, 0.0
  %974 = vadd.xlane.f32.xlu0 %v973
  %v975 = vpop.xlane.xlu0 %974
  %v976 = vsel %vm87, %v750, 0.0
  %977 = vadd.xlane.f32.xlu0 %v976
  %v978 = vpop.xlane.xlu0 %977
  %v979 = vsel %vm87, %v751, 0.0
  %980 = vadd.xlane.f32.xlu0 %v979
  %v981 = vpop.xlane.xlu0 %980
  %v982 = vsel %vm87, %v752, 0.0
  %983 = vadd.xlane.f32.xlu0 %v982
  %v984 = vpop.xlane.xlu0 %983
  %v985 = vsel %vm87, %v753, 0.0
  %986 = vadd.xlane.f32.xlu0 %v985
  %v987 = vpop.xlane.xlu0 %986
  %v988 = vsel %vm87, %v754, 0.0
  %989 = vadd.xlane.f32.xlu0 %v988
  %v990 = vpop.xlane.xlu0 %989
  %v991 = vsel %vm87, %v755, 0.0
  %992 = vadd.xlane.f32.xlu0 %v991
  %v993 = vpop.xlane.xlu0 %992
  %v994 = vsel %vm87, %v756, 0.0
  %995 = vadd.xlane.f32.xlu0 %v994
  %v996 = vpop.xlane.xlu0 %995
  %v997 = vsel %vm87, %v757, 0.0
  %998 = vadd.xlane.f32.xlu0 %v997
  %v999 = vpop.xlane.xlu0 %998
  %v1000 = vsel %vm87, %v758, 0.0
  %1001 = vadd.xlane.f32.xlu0 %v1000
  %v1002 = vpop.xlane.xlu0 %1001
  %v1003 = vsel %vm87, %v759, 0.0
  %1004 = vadd.xlane.f32.xlu0 %v1003
  %v1005 = vpop.xlane.xlu0 %1004
  %v1006 = vsel %vm87, %v760, 0.0
  %1007 = vadd.xlane.f32.xlu0 %v1006
  %v1008 = vpop.xlane.xlu0 %1007
  %v1009 = vsel %vm87, %v761, 0.0
  %1010 = vadd.xlane.f32.xlu0 %v1009
  %v1011 = vpop.xlane.xlu0 %1010
  %v1012 = vsel %vm87, %v762, 0.0
  %1013 = vadd.xlane.f32.xlu0 %v1012
  %v1014 = vpop.xlane.xlu0 %1013
  %v1015 = vsel %vm87, %v763, 0.0
  %1016 = vadd.xlane.f32.xlu0 %v1015
  %v1017 = vpop.xlane.xlu0 %1016
  %v1018 = vsel %vm87, %v764, 0.0
  %1019 = vadd.xlane.f32.xlu0 %v1018
  %v1020 = vpop.xlane.xlu0 %1019
  %v1021 = vsel %vm87, %v765, 0.0
  %1022 = vadd.xlane.f32.xlu0 %v1021
  %v1023 = vpop.xlane.xlu0 %1022
  %v1024 = vsel %vm87, %v766, 0.0
  %1025 = vadd.xlane.f32.xlu0 %v1024
  %v1026 = vpop.xlane.xlu0 %1025
  %v1027 = vsel %vm87, %v767, 0.0
  %1028 = vadd.xlane.f32.xlu0 %v1027
  %v1029 = vpop.xlane.xlu0 %1028
  %v1030 = vsel %vm87, %v768, 0.0
  %1031 = vadd.xlane.f32.xlu0 %v1030
  %v1032 = vpop.xlane.xlu0 %1031
  %v1033 = vsel %vm87, %v769, 0.0
  %1034 = vadd.xlane.f32.xlu0 %v1033
  %v1035 = vpop.xlane.xlu0 %1034
  %v1036 = vsel %vm87, %v770, 0.0
  %1037 = vadd.xlane.f32.xlu0 %v1036
  %v1038 = vpop.xlane.xlu0 %1037
  %v1039 = vsel %vm87, %v771, 0.0
  %1040 = vadd.xlane.f32.xlu0 %v1039
  %v1041 = vpop.xlane.xlu0 %1040
  %v1042 = vsel %vm87, %v772, 0.0
  %1043 = vadd.xlane.f32.xlu0 %v1042
  %v1044 = vpop.xlane.xlu0 %1043
  %v1045 = vsel %vm87, %v773, 0.0
  %1046 = vadd.xlane.f32.xlu0 %v1045
  %v1047 = vpop.xlane.xlu0 %1046
  %v1048 = vsel %vm87, %v774, 0.0
  %1049 = vadd.xlane.f32.xlu0 %v1048
  %v1050 = vpop.xlane.xlu0 %1049
  %v1051 = vsel %vm87, %v775, 0.0
  %1052 = vadd.xlane.f32.xlu0 %v1051
  %v1053 = vpop.xlane.xlu0 %1052
  %v1054 = vsel %vm87, %v776, 0.0
  %1055 = vadd.xlane.f32.xlu0 %v1054
  %v1056 = vpop.xlane.xlu0 %1055
  %v1057 = vsel %vm87, %v777, 0.0
  %1058 = vadd.xlane.f32.xlu0 %v1057
  %v1059 = vpop.xlane.xlu0 %1058
  %v1060 = vsel %vm87, %v778, 0.0
  %1061 = vadd.xlane.f32.xlu0 %v1060
  %v1062 = vpop.xlane.xlu0 %1061
  %v1063 = vsel %vm87, %v779, 0.0
  %1064 = vadd.xlane.f32.xlu0 %v1063
  %v1065 = vpop.xlane.xlu0 %1064
  %v1066 = vsel %vm87, %v780, 0.0
  %1067 = vadd.xlane.f32.xlu0 %v1066
  %v1068 = vpop.xlane.xlu0 %1067
  %v1069 = vsel %vm87, %v781, 0.0
  %1070 = vadd.xlane.f32.xlu0 %v1069
  %v1071 = vpop.xlane.xlu0 %1070
  %v1072 = vsel %vm87, %v782, 0.0
  %1073 = vadd.xlane.f32.xlu0 %v1072
  %v1074 = vpop.xlane.xlu0 %1073
  %v1075 = vsel %vm87, %v783, 0.0
  %1076 = vadd.xlane.f32.xlu0 %v1075
  %v1077 = vpop.xlane.xlu0 %1076
  %v1078 = vsel %vm87, %v784, 0.0
  %1079 = vadd.xlane.f32.xlu0 %v1078
  %v1080 = vpop.xlane.xlu0 %1079
  %v1081 = vsel %vm87, %v785, 0.0
  %1082 = vadd.xlane.f32.xlu0 %v1081
  %v1083 = vpop.xlane.xlu0 %1082
  %v1084 = vsel %vm87, %v786, 0.0
  %1085 = vadd.xlane.f32.xlu0 %v1084
  %v1086 = vpop.xlane.xlu0 %1085
  %v1087 = vsel %vm87, %v787, 0.0
  %1088 = vadd.xlane.f32.xlu0 %v1087
  %v1089 = vpop.xlane.xlu0 %1088
  %v1090 = vsel %vm87, %v788, 0.0
  %1091 = vadd.xlane.f32.xlu0 %v1090
  %v1092 = vpop.xlane.xlu0 %1091
  %v1093 = vsel %vm87, %v789, 0.0
  %1094 = vadd.xlane.f32.xlu0 %v1093
  %v1095 = vpop.xlane.xlu0 %1094
  %v1096 = vsel %vm87, %v790, 0.0
  %1097 = vadd.xlane.f32.xlu0 %v1096
  %v1098 = vpop.xlane.xlu0 %1097
  %v1099 = vsel %vm87, %v791, 0.0
  %1100 = vadd.xlane.f32.xlu0 %v1099
  %v1101 = vpop.xlane.xlu0 %1100
  %v1102 = vsel %vm87, %v792, 0.0
  %1103 = vadd.xlane.f32.xlu0 %v1102
  %v1104 = vpop.xlane.xlu0 %1103
  %v1105 = vsel %vm87, %v793, 0.0
  %1106 = vadd.xlane.f32.xlu0 %v1105
  %v1107 = vpop.xlane.xlu0 %1106
  %v1108 = vsel %vm87, %v794, 0.0
  %1109 = vadd.xlane.f32.xlu0 %v1108
  %v1110 = vpop.xlane.xlu0 %1109
  %v1111 = vsel %vm87, %v795, 0.0
  %1112 = vadd.xlane.f32.xlu0 %v1111
  %v1113 = vpop.xlane.xlu0 %1112
  %v1114 = vsel %vm87, %v796, 0.0
  %1115 = vadd.xlane.f32.xlu0 %v1114
  %v1116 = vpop.xlane.xlu0 %1115
  %v1117 = vsel %vm87, %v797, 0.0
  %1118 = vadd.xlane.f32.xlu0 %v1117
  %v1119 = vpop.xlane.xlu0 %1118
  %v1120 = vsel %vm87, %v798, 0.0
  %1121 = vadd.xlane.f32.xlu0 %v1120
  %v1122 = vpop.xlane.xlu0 %1121
  %v1123 = vsel %vm87, %v799, 0.0
  %1124 = vadd.xlane.f32.xlu0 %v1123
  %v1125 = vpop.xlane.xlu0 %1124
  %v1126 = vsel %vm87, %v800, 0.0
  %1127 = vadd.xlane.f32.xlu0 %v1126
  %v1128 = vpop.xlane.xlu0 %1127
  %v1129 = vsel %vm87, %v801, 0.0
  %1130 = vadd.xlane.f32.xlu0 %v1129
  %v1131 = vpop.xlane.xlu0 %1130
  %v1132 = vsel %vm87, %v802, 0.0
  %1133 = vadd.xlane.f32.xlu0 %v1132
  %v1134 = vpop.xlane.xlu0 %1133
  %v1135 = vsel %vm87, %v803, 0.0
  %1136 = vadd.xlane.f32.xlu0 %v1135
  %v1137 = vpop.xlane.xlu0 %1136
  %v1138 = vsel %vm87, %v804, 0.0
  %1139 = vadd.xlane.f32.xlu0 %v1138
  %v1140 = vpop.xlane.xlu0 %1139
  %v1141 = vsel %vm87, %v805, 0.0
  %1142 = vadd.xlane.f32.xlu0 %v1141
  %v1143 = vpop.xlane.xlu0 %1142
  %v1144 = vsel %vm87, %v806, 0.0
  %1145 = vadd.xlane.f32.xlu0 %v1144
  %v1146 = vpop.xlane.xlu0 %1145
  %v1147 = vsel %vm87, %v807, 0.0
  %1148 = vadd.xlane.f32.xlu0 %v1147
  %v1149 = vpop.xlane.xlu0 %1148
  %v1150 = vsel %vm87, %v808, 0.0
  %1151 = vadd.xlane.f32.xlu0 %v1150
  %v1152 = vpop.xlane.xlu0 %1151
  %v1153 = vsel %vm87, %v809, 0.0
  %1154 = vadd.xlane.f32.xlu0 %v1153
  %v1155 = vpop.xlane.xlu0 %1154
  %v1156 = vsel %vm87, %v810, 0.0
  %1157 = vadd.xlane.f32.xlu0 %v1156
  %v1158 = vpop.xlane.xlu0 %1157
  %v1159 = vsel %vm87, %v811, 0.0
  %1160 = vadd.xlane.f32.xlu0 %v1159
  %v1161 = vpop.xlane.xlu0 %1160
  %v1162 = vsel %vm87, %v812, 0.0
  %1163 = vadd.xlane.f32.xlu0 %v1162
  %v1164 = vpop.xlane.xlu0 %1163
  %v1165 = vsel %vm87, %v813, 0.0
  %1166 = vadd.xlane.f32.xlu0 %v1165
  %v1167 = vpop.xlane.xlu0 %1166
  %v1168 = vsel %vm87, %v814, 0.0
  %1169 = vadd.xlane.f32.xlu0 %v1168
  %v1170 = vpop.xlane.xlu0 %1169
  %v1171 = vsel %vm87, %v815, 0.0
  %1172 = vadd.xlane.f32.xlu0 %v1171
  %v1173 = vpop.xlane.xlu0 %1172
  %v1174 = vsel %vm87, %v816, 0.0
  %1175 = vadd.xlane.f32.xlu0 %v1174
  %v1176 = vpop.xlane.xlu0 %1175
  %v1177 = vsel %vm87, %v817, 0.0
  %1178 = vadd.xlane.f32.xlu0 %v1177
  %v1179 = vpop.xlane.xlu0 %1178
  %v1180 = vsel %vm87, %v818, 0.0
  %1181 = vadd.xlane.f32.xlu0 %v1180
  %v1182 = vpop.xlane.xlu0 %1181
  %v1183 = vsel %vm87, %v819, 0.0
  %1184 = vadd.xlane.f32.xlu0 %v1183
  %v1185 = vpop.xlane.xlu0 %1184
  %v1186 = vsel %vm87, %v820, 0.0
  %1187 = vadd.xlane.f32.xlu0 %v1186
  %v1188 = vpop.xlane.xlu0 %1187
  %v1189 = vsel %vm87, %v821, 0.0
  %1190 = vadd.xlane.f32.xlu0 %v1189
  %v1191 = vpop.xlane.xlu0 %1190
  %v1192 = vsel %vm87, %v822, 0.0
  %1193 = vadd.xlane.f32.xlu0 %v1192
  %v1194 = vpop.xlane.xlu0 %1193
  %v1195 = vsel %vm87, %v823, 0.0
  %1196 = vadd.xlane.f32.xlu0 %v1195
  %v1197 = vpop.xlane.xlu0 %1196
  %v1198 = vsel %vm87, %v824, 0.0
  %1199 = vadd.xlane.f32.xlu0 %v1198
  %v1200 = vpop.xlane.xlu0 %1199
  %v1201 = vsel %vm87, %v825, 0.0
  %1202 = vadd.xlane.f32.xlu0 %v1201
  %v1203 = vpop.xlane.xlu0 %1202
  %v1204 = vsel %vm87, %v826, 0.0
  %1205 = vadd.xlane.f32.xlu0 %v1204
  %v1206 = vpop.xlane.xlu0 %1205
  %v1207 = vsel %vm87, %v827, 0.0
  %1208 = vadd.xlane.f32.xlu0 %v1207
  %v1209 = vpop.xlane.xlu0 %1208
  %v1210 = vsel %vm87, %v828, 0.0
  %1211 = vadd.xlane.f32.xlu0 %v1210
  %v1212 = vpop.xlane.xlu0 %1211
  %v1213 = vmax.f32 %v831, 1e-24
  %v1214 = vmax.f32 %v834, 1e-24
  %v1215 = vmax.f32 %v837, 1e-24
  %v1216 = vmax.f32 %v840, 1e-24
  %v1217 = vmax.f32 %v843, 1e-24
  %v1218 = vmax.f32 %v846, 1e-24
  %v1219 = vmax.f32 %v849, 1e-24
  %v1220 = vmax.f32 %v852, 1e-24
  %v1221 = vmax.f32 %v855, 1e-24
  %v1222 = vmax.f32 %v858, 1e-24
  %v1223 = vmax.f32 %v861, 1e-24
  %v1224 = vmax.f32 %v864, 1e-24
  %v1225 = vmax.f32 %v867, 1e-24
  %v1226 = vmax.f32 %v870, 1e-24
  %v1227 = vmax.f32 %v873, 1e-24
  %v1228 = vmax.f32 %v876, 1e-24
  %v1229 = vmax.f32 %v879, 1e-24
  %v1230 = vmax.f32 %v882, 1e-24
  %v1231 = vmax.f32 %v885, 1e-24
  %v1232 = vmax.f32 %v888, 1e-24
  %v1233 = vmax.f32 %v891, 1e-24
  %v1234 = vmax.f32 %v894, 1e-24
  %v1235 = vmax.f32 %v897, 1e-24
  %v1236 = vmax.f32 %v900, 1e-24
  %v1237 = vmax.f32 %v903, 1e-24
  %v1238 = vmax.f32 %v906, 1e-24
  %v1239 = vmax.f32 %v909, 1e-24
  %v1240 = vmax.f32 %v912, 1e-24
  %v1241 = vmax.f32 %v915, 1e-24
  %v1242 = vmax.f32 %v918, 1e-24
  %v1243 = vmax.f32 %v921, 1e-24
  %v1244 = vmax.f32 %v924, 1e-24
  %v1245 = vmax.f32 %v927, 1e-24
  %v1246 = vmax.f32 %v930, 1e-24
  %v1247 = vmax.f32 %v933, 1e-24
  %v1248 = vmax.f32 %v936, 1e-24
  %v1249 = vmax.f32 %v939, 1e-24
  %v1250 = vmax.f32 %v942, 1e-24
  %v1251 = vmax.f32 %v945, 1e-24
  %v1252 = vmax.f32 %v948, 1e-24
  %v1253 = vmax.f32 %v951, 1e-24
  %v1254 = vmax.f32 %v954, 1e-24
  %v1255 = vmax.f32 %v957, 1e-24
  %v1256 = vmax.f32 %v960, 1e-24
  %v1257 = vmax.f32 %v963, 1e-24
  %v1258 = vmax.f32 %v966, 1e-24
  %v1259 = vmax.f32 %v969, 1e-24
  %v1260 = vmax.f32 %v972, 1e-24
  %v1261 = vmax.f32 %v975, 1e-24
  %v1262 = vmax.f32 %v978, 1e-24
  %v1263 = vmax.f32 %v981, 1e-24
  %v1264 = vmax.f32 %v984, 1e-24
  %v1265 = vmax.f32 %v987, 1e-24
  %v1266 = vmax.f32 %v990, 1e-24
  %v1267 = vmax.f32 %v993, 1e-24
  %v1268 = vmax.f32 %v996, 1e-24
  %v1269 = vmax.f32 %v999, 1e-24
  %v1270 = vmax.f32 %v1002, 1e-24
  %v1271 = vmax.f32 %v1005, 1e-24
  %v1272 = vmax.f32 %v1008, 1e-24
  %v1273 = vmax.f32 %v1011, 1e-24
  %v1274 = vmax.f32 %v1014, 1e-24
  %v1275 = vmax.f32 %v1017, 1e-24
  %v1276 = vmax.f32 %v1020, 1e-24
  %v1277 = vmax.f32 %v1023, 1e-24
  %v1278 = vmax.f32 %v1026, 1e-24
  %v1279 = vmax.f32 %v1029, 1e-24
  %v1280 = vmax.f32 %v1032, 1e-24
  %v1281 = vmax.f32 %v1035, 1e-24
  %v1282 = vmax.f32 %v1038, 1e-24
  %v1283 = vmax.f32 %v1041, 1e-24
  %v1284 = vmax.f32 %v1044, 1e-24
  %v1285 = vmax.f32 %v1047, 1e-24
  %v1286 = vmax.f32 %v1050, 1e-24
  %v1287 = vmax.f32 %v1053, 1e-24
  %v1288 = vmax.f32 %v1056, 1e-24
  %v1289 = vmax.f32 %v1059, 1e-24
  %v1290 = vmax.f32 %v1062, 1e-24
  %v1291 = vmax.f32 %v1065, 1e-24
  %v1292 = vmax.f32 %v1068, 1e-24
  %v1293 = vmax.f32 %v1071, 1e-24
  %v1294 = vmax.f32 %v1074, 1e-24
  %v1295 = vmax.f32 %v1077, 1e-24
  %v1296 = vmax.f32 %v1080, 1e-24
  %v1297 = vmax.f32 %v1083, 1e-24
  %v1298 = vmax.f32 %v1086, 1e-24
  %v1299 = vmax.f32 %v1089, 1e-24
  %v1300 = vmax.f32 %v1092, 1e-24
  %v1301 = vmax.f32 %v1095, 1e-24
  %v1302 = vmax.f32 %v1098, 1e-24
  %v1303 = vmax.f32 %v1101, 1e-24
  %v1304 = vmax.f32 %v1104, 1e-24
  %v1305 = vmax.f32 %v1107, 1e-24
  %v1306 = vmax.f32 %v1110, 1e-24
  %v1307 = vmax.f32 %v1113, 1e-24
  %v1308 = vmax.f32 %v1116, 1e-24
  %v1309 = vmax.f32 %v1119, 1e-24
  %v1310 = vmax.f32 %v1122, 1e-24
  %v1311 = vmax.f32 %v1125, 1e-24
  %v1312 = vmax.f32 %v1128, 1e-24
  %v1313 = vmax.f32 %v1131, 1e-24
  %v1314 = vmax.f32 %v1134, 1e-24
  %v1315 = vmax.f32 %v1137, 1e-24
  %v1316 = vmax.f32 %v1140, 1e-24
  %v1317 = vmax.f32 %v1143, 1e-24
  %v1318 = vmax.f32 %v1146, 1e-24
  %v1319 = vmax.f32 %v1149, 1e-24
  %v1320 = vmax.f32 %v1152, 1e-24
  %v1321 = vmax.f32 %v1155, 1e-24
  %v1322 = vmax.f32 %v1158, 1e-24
  %v1323 = vmax.f32 %v1161, 1e-24
  %v1324 = vmax.f32 %v1164, 1e-24
  %v1325 = vmax.f32 %v1167, 1e-24
  %v1326 = vmax.f32 %v1170, 1e-24
  %v1327 = vmax.f32 %v1173, 1e-24
  %v1328 = vmax.f32 %v1176, 1e-24
  %v1329 = vmax.f32 %v1179, 1e-24
  %v1330 = vmax.f32 %v1182, 1e-24
  %v1331 = vmax.f32 %v1185, 1e-24
  %v1332 = vmax.f32 %v1188, 1e-24
  %v1333 = vmax.f32 %v1191, 1e-24
  %v1334 = vmax.f32 %v1194, 1e-24
  %v1335 = vmax.f32 %v1197, 1e-24
  %v1336 = vmax.f32 %v1200, 1e-24
  %v1337 = vmax.f32 %v1203, 1e-24
  %v1338 = vmax.f32 %v1206, 1e-24
  %v1339 = vmax.f32 %v1209, 1e-24
  %v1340 = vmax.f32 %v1212, 1e-24
  %v1341 = vrsqrt.pop %v1213
  %v1342 = vmul.f32 %v1341, %v1213
  %v1343 = vmul.f32 %v1342, %v1341
  %v1344 = vmul.f32 0.5, %v1343
  %v1345 = vsub.f32 1.5, %v1344
  %v1346 = vmul.f32 %v1341, %v1345
  %vm1347 = vweird.f32 %v1213
  %vm1348 = vweird.f32 %v1341
  %vm1349 = vmor %vm1347, %vm1348
  %v1350 = vsel %vm1349, %v1341, %v1346
  %v1351 = vrsqrt.pop %v1214
  %v1352 = vmul.f32 %v1351, %v1214
  %v1353 = vmul.f32 %v1352, %v1351
  %v1354 = vmul.f32 0.5, %v1353
  %v1355 = vsub.f32 1.5, %v1354
  %v1356 = vmul.f32 %v1351, %v1355
  %vm1357 = vweird.f32 %v1214
  %vm1358 = vweird.f32 %v1351
  %vm1359 = vmor %vm1357, %vm1358
  %v1360 = vsel %vm1359, %v1351, %v1356
  %v1361 = vrsqrt.pop %v1215
  %v1362 = vmul.f32 %v1361, %v1215
  %v1363 = vmul.f32 %v1362, %v1361
  %v1364 = vmul.f32 0.5, %v1363
  %v1365 = vsub.f32 1.5, %v1364
  %v1366 = vmul.f32 %v1361, %v1365
  %vm1367 = vweird.f32 %v1215
  %vm1368 = vweird.f32 %v1361
  %vm1369 = vmor %vm1367, %vm1368
  %v1370 = vsel %vm1369, %v1361, %v1366
  %v1371 = vrsqrt.pop %v1216
  %v1372 = vmul.f32 %v1371, %v1216
  %v1373 = vmul.f32 %v1372, %v1371
  %v1374 = vmul.f32 0.5, %v1373
  %v1375 = vsub.f32 1.5, %v1374
  %v1376 = vmul.f32 %v1371, %v1375
  %vm1377 = vweird.f32 %v1216
  %vm1378 = vweird.f32 %v1371
  %vm1379 = vmor %vm1377, %vm1378
  %v1380 = vsel %vm1379, %v1371, %v1376
  %v1381 = vrsqrt.pop %v1217
  %v1382 = vmul.f32 %v1381, %v1217
  %v1383 = vmul.f32 %v1382, %v1381
  %v1384 = vmul.f32 0.5, %v1383
  %v1385 = vsub.f32 1.5, %v1384
  %v1386 = vmul.f32 %v1381, %v1385
  %vm1387 = vweird.f32 %v1217
  %vm1388 = vweird.f32 %v1381
  %vm1389 = vmor %vm1387, %vm1388
  %v1390 = vsel %vm1389, %v1381, %v1386
  %v1391 = vrsqrt.pop %v1218
  %v1392 = vmul.f32 %v1391, %v1218
  %v1393 = vmul.f32 %v1392, %v1391
  %v1394 = vmul.f32 0.5, %v1393
  %v1395 = vsub.f32 1.5, %v1394
  %v1396 = vmul.f32 %v1391, %v1395
  %vm1397 = vweird.f32 %v1218
  %vm1398 = vweird.f32 %v1391
  %vm1399 = vmor %vm1397, %vm1398
  %v1400 = vsel %vm1399, %v1391, %v1396
  %v1401 = vrsqrt.pop %v1219
  %v1402 = vmul.f32 %v1401, %v1219
  %v1403 = vmul.f32 %v1402, %v1401
  %v1404 = vmul.f32 0.5, %v1403
  %v1405 = vsub.f32 1.5, %v1404
  %v1406 = vmul.f32 %v1401, %v1405
  %vm1407 = vweird.f32 %v1219
  %vm1408 = vweird.f32 %v1401
  %vm1409 = vmor %vm1407, %vm1408
  %v1410 = vsel %vm1409, %v1401, %v1406
  %v1411 = vrsqrt.pop %v1220
  %v1412 = vmul.f32 %v1411, %v1220
  %v1413 = vmul.f32 %v1412, %v1411
  %v1414 = vmul.f32 0.5, %v1413
  %v1415 = vsub.f32 1.5, %v1414
  %v1416 = vmul.f32 %v1411, %v1415
  %vm1417 = vweird.f32 %v1220
  %vm1418 = vweird.f32 %v1411
  %vm1419 = vmor %vm1417, %vm1418
  %v1420 = vsel %vm1419, %v1411, %v1416
  %v1421 = vrsqrt.pop %v1221
  %v1422 = vmul.f32 %v1421, %v1221
  %v1423 = vmul.f32 %v1422, %v1421
  %v1424 = vmul.f32 0.5, %v1423
  %v1425 = vsub.f32 1.5, %v1424
  %v1426 = vmul.f32 %v1421, %v1425
  %vm1427 = vweird.f32 %v1221
  %vm1428 = vweird.f32 %v1421
  %vm1429 = vmor %vm1427, %vm1428
  %v1430 = vsel %vm1429, %v1421, %v1426
  %v1431 = vrsqrt.pop %v1222
  %v1432 = vmul.f32 %v1431, %v1222
  %v1433 = vmul.f32 %v1432, %v1431
  %v1434 = vmul.f32 0.5, %v1433
  %v1435 = vsub.f32 1.5, %v1434
  %v1436 = vmul.f32 %v1431, %v1435
  %vm1437 = vweird.f32 %v1222
  %vm1438 = vweird.f32 %v1431
  %vm1439 = vmor %vm1437, %vm1438
  %v1440 = vsel %vm1439, %v1431, %v1436
  %v1441 = vrsqrt.pop %v1223
  %v1442 = vmul.f32 %v1441, %v1223
  %v1443 = vmul.f32 %v1442, %v1441
  %v1444 = vmul.f32 0.5, %v1443
  %v1445 = vsub.f32 1.5, %v1444
  %v1446 = vmul.f32 %v1441, %v1445
  %vm1447 = vweird.f32 %v1223
  %vm1448 = vweird.f32 %v1441
  %vm1449 = vmor %vm1447, %vm1448
  %v1450 = vsel %vm1449, %v1441, %v1446
  %v1451 = vrsqrt.pop %v1224
  %v1452 = vmul.f32 %v1451, %v1224
  %v1453 = vmul.f32 %v1452, %v1451
  %v1454 = vmul.f32 0.5, %v1453
  %v1455 = vsub.f32 1.5, %v1454
  %v1456 = vmul.f32 %v1451, %v1455
  %vm1457 = vweird.f32 %v1224
  %vm1458 = vweird.f32 %v1451
  %vm1459 = vmor %vm1457, %vm1458
  %v1460 = vsel %vm1459, %v1451, %v1456
  %v1461 = vrsqrt.pop %v1225
  %v1462 = vmul.f32 %v1461, %v1225
  %v1463 = vmul.f32 %v1462, %v1461
  %v1464 = vmul.f32 0.5, %v1463
  %v1465 = vsub.f32 1.5, %v1464
  %v1466 = vmul.f32 %v1461, %v1465
  %vm1467 = vweird.f32 %v1225
  %vm1468 = vweird.f32 %v1461
  %vm1469 = vmor %vm1467, %vm1468
  %v1470 = vsel %vm1469, %v1461, %v1466
  %v1471 = vrsqrt.pop %v1226
  %v1472 = vmul.f32 %v1471, %v1226
  %v1473 = vmul.f32 %v1472, %v1471
  %v1474 = vmul.f32 0.5, %v1473
  %v1475 = vsub.f32 1.5, %v1474
  %v1476 = vmul.f32 %v1471, %v1475
  %vm1477 = vweird.f32 %v1226
  %vm1478 = vweird.f32 %v1471
  %vm1479 = vmor %vm1477, %vm1478
  %v1480 = vsel %vm1479, %v1471, %v1476
  %v1481 = vrsqrt.pop %v1227
  %v1482 = vmul.f32 %v1481, %v1227
  %v1483 = vmul.f32 %v1482, %v1481
  %v1484 = vmul.f32 0.5, %v1483
  %v1485 = vsub.f32 1.5, %v1484
  %v1486 = vmul.f32 %v1481, %v1485
  %vm1487 = vweird.f32 %v1227
  %vm1488 = vweird.f32 %v1481
  %vm1489 = vmor %vm1487, %vm1488
  %v1490 = vsel %vm1489, %v1481, %v1486
  %v1491 = vrsqrt.pop %v1228
  %v1492 = vmul.f32 %v1491, %v1228
  %v1493 = vmul.f32 %v1492, %v1491
  %v1494 = vmul.f32 0.5, %v1493
  %v1495 = vsub.f32 1.5, %v1494
  %v1496 = vmul.f32 %v1491, %v1495
  %vm1497 = vweird.f32 %v1228
  %vm1498 = vweird.f32 %v1491
  %vm1499 = vmor %vm1497, %vm1498
  %v1500 = vsel %vm1499, %v1491, %v1496
  %v1501 = vrsqrt.pop %v1229
  %v1502 = vmul.f32 %v1501, %v1229
  %v1503 = vmul.f32 %v1502, %v1501
  %v1504 = vmul.f32 0.5, %v1503
  %v1505 = vsub.f32 1.5, %v1504
  %v1506 = vmul.f32 %v1501, %v1505
  %vm1507 = vweird.f32 %v1229
  %vm1508 = vweird.f32 %v1501
  %vm1509 = vmor %vm1507, %vm1508
  %v1510 = vsel %vm1509, %v1501, %v1506
  %v1511 = vrsqrt.pop %v1230
  %v1512 = vmul.f32 %v1511, %v1230
  %v1513 = vmul.f32 %v1512, %v1511
  %v1514 = vmul.f32 0.5, %v1513
  %v1515 = vsub.f32 1.5, %v1514
  %v1516 = vmul.f32 %v1511, %v1515
  %vm1517 = vweird.f32 %v1230
  %vm1518 = vweird.f32 %v1511
  %vm1519 = vmor %vm1517, %vm1518
  %v1520 = vsel %vm1519, %v1511, %v1516
  %v1521 = vrsqrt.pop %v1231
  %v1522 = vmul.f32 %v1521, %v1231
  %v1523 = vmul.f32 %v1522, %v1521
  %v1524 = vmul.f32 0.5, %v1523
  %v1525 = vsub.f32 1.5, %v1524
  %v1526 = vmul.f32 %v1521, %v1525
  %vm1527 = vweird.f32 %v1231
  %vm1528 = vweird.f32 %v1521
  %vm1529 = vmor %vm1527, %vm1528
  %v1530 = vsel %vm1529, %v1521, %v1526
  %v1531 = vrsqrt.pop %v1232
  %v1532 = vmul.f32 %v1531, %v1232
  %v1533 = vmul.f32 %v1532, %v1531
  %v1534 = vmul.f32 0.5, %v1533
  %v1535 = vsub.f32 1.5, %v1534
  %v1536 = vmul.f32 %v1531, %v1535
  %vm1537 = vweird.f32 %v1232
  %vm1538 = vweird.f32 %v1531
  %vm1539 = vmor %vm1537, %vm1538
  %v1540 = vsel %vm1539, %v1531, %v1536
  %v1541 = vrsqrt.pop %v1233
  %v1542 = vmul.f32 %v1541, %v1233
  %v1543 = vmul.f32 %v1542, %v1541
  %v1544 = vmul.f32 0.5, %v1543
  %v1545 = vsub.f32 1.5, %v1544
  %v1546 = vmul.f32 %v1541, %v1545
  %vm1547 = vweird.f32 %v1233
  %vm1548 = vweird.f32 %v1541
  %vm1549 = vmor %vm1547, %vm1548
  %v1550 = vsel %vm1549, %v1541, %v1546
  %v1551 = vrsqrt.pop %v1234
  %v1552 = vmul.f32 %v1551, %v1234
  %v1553 = vmul.f32 %v1552, %v1551
  %v1554 = vmul.f32 0.5, %v1553
  %v1555 = vsub.f32 1.5, %v1554
  %v1556 = vmul.f32 %v1551, %v1555
  %vm1557 = vweird.f32 %v1234
  %vm1558 = vweird.f32 %v1551
  %vm1559 = vmor %vm1557, %vm1558
  %v1560 = vsel %vm1559, %v1551, %v1556
  %v1561 = vrsqrt.pop %v1235
  %v1562 = vmul.f32 %v1561, %v1235
  %v1563 = vmul.f32 %v1562, %v1561
  %v1564 = vmul.f32 0.5, %v1563
  %v1565 = vsub.f32 1.5, %v1564
  %v1566 = vmul.f32 %v1561, %v1565
  %vm1567 = vweird.f32 %v1235
  %vm1568 = vweird.f32 %v1561
  %vm1569 = vmor %vm1567, %vm1568
  %v1570 = vsel %vm1569, %v1561, %v1566
  %v1571 = vrsqrt.pop %v1236
  %v1572 = vmul.f32 %v1571, %v1236
  %v1573 = vmul.f32 %v1572, %v1571
  %v1574 = vmul.f32 0.5, %v1573
  %v1575 = vsub.f32 1.5, %v1574
  %v1576 = vmul.f32 %v1571, %v1575
  %vm1577 = vweird.f32 %v1236
  %vm1578 = vweird.f32 %v1571
  %vm1579 = vmor %vm1577, %vm1578
  %v1580 = vsel %vm1579, %v1571, %v1576
  %v1581 = vrsqrt.pop %v1237
  %v1582 = vmul.f32 %v1581, %v1237
  %v1583 = vmul.f32 %v1582, %v1581
  %v1584 = vmul.f32 0.5, %v1583
  %v1585 = vsub.f32 1.5, %v1584
  %v1586 = vmul.f32 %v1581, %v1585
  %vm1587 = vweird.f32 %v1237
  %vm1588 = vweird.f32 %v1581
  %vm1589 = vmor %vm1587, %vm1588
  %v1590 = vsel %vm1589, %v1581, %v1586
  %v1591 = vrsqrt.pop %v1238
  %v1592 = vmul.f32 %v1591, %v1238
  %v1593 = vmul.f32 %v1592, %v1591
  %v1594 = vmul.f32 0.5, %v1593
  %v1595 = vsub.f32 1.5, %v1594
  %v1596 = vmul.f32 %v1591, %v1595
  %vm1597 = vweird.f32 %v1238
  %vm1598 = vweird.f32 %v1591
  %vm1599 = vmor %vm1597, %vm1598
  %v1600 = vsel %vm1599, %v1591, %v1596
  %v1601 = vrsqrt.pop %v1239
  %v1602 = vmul.f32 %v1601, %v1239
  %v1603 = vmul.f32 %v1602, %v1601
  %v1604 = vmul.f32 0.5, %v1603
  %v1605 = vsub.f32 1.5, %v1604
  %v1606 = vmul.f32 %v1601, %v1605
  %vm1607 = vweird.f32 %v1239
  %vm1608 = vweird.f32 %v1601
  %vm1609 = vmor %vm1607, %vm1608
  %v1610 = vsel %vm1609, %v1601, %v1606
  %v1611 = vrsqrt.pop %v1240
  %v1612 = vmul.f32 %v1611, %v1240
  %v1613 = vmul.f32 %v1612, %v1611
  %v1614 = vmul.f32 0.5, %v1613
  %v1615 = vsub.f32 1.5, %v1614
  %v1616 = vmul.f32 %v1611, %v1615
  %vm1617 = vweird.f32 %v1240
  %vm1618 = vweird.f32 %v1611
  %vm1619 = vmor %vm1617, %vm1618
  %v1620 = vsel %vm1619, %v1611, %v1616
  %v1621 = vrsqrt.pop %v1241
  %v1622 = vmul.f32 %v1621, %v1241
  %v1623 = vmul.f32 %v1622, %v1621
  %v1624 = vmul.f32 0.5, %v1623
  %v1625 = vsub.f32 1.5, %v1624
  %v1626 = vmul.f32 %v1621, %v1625
  %vm1627 = vweird.f32 %v1241
  %vm1628 = vweird.f32 %v1621
  %vm1629 = vmor %vm1627, %vm1628
  %v1630 = vsel %vm1629, %v1621, %v1626
  %v1631 = vrsqrt.pop %v1242
  %v1632 = vmul.f32 %v1631, %v1242
  %v1633 = vmul.f32 %v1632, %v1631
  %v1634 = vmul.f32 0.5, %v1633
  %v1635 = vsub.f32 1.5, %v1634
  %v1636 = vmul.f32 %v1631, %v1635
  %vm1637 = vweird.f32 %v1242
  %vm1638 = vweird.f32 %v1631
  %vm1639 = vmor %vm1637, %vm1638
  %v1640 = vsel %vm1639, %v1631, %v1636
  %v1641 = vrsqrt.pop %v1243
  %v1642 = vmul.f32 %v1641, %v1243
  %v1643 = vmul.f32 %v1642, %v1641
  %v1644 = vmul.f32 0.5, %v1643
  %v1645 = vsub.f32 1.5, %v1644
  %v1646 = vmul.f32 %v1641, %v1645
  %vm1647 = vweird.f32 %v1243
  %vm1648 = vweird.f32 %v1641
  %vm1649 = vmor %vm1647, %vm1648
  %v1650 = vsel %vm1649, %v1641, %v1646
  %v1651 = vrsqrt.pop %v1244
  %v1652 = vmul.f32 %v1651, %v1244
  %v1653 = vmul.f32 %v1652, %v1651
  %v1654 = vmul.f32 0.5, %v1653
  %v1655 = vsub.f32 1.5, %v1654
  %v1656 = vmul.f32 %v1651, %v1655
  %vm1657 = vweird.f32 %v1244
  %vm1658 = vweird.f32 %v1651
  %vm1659 = vmor %vm1657, %vm1658
  %v1660 = vsel %vm1659, %v1651, %v1656
  %v1661 = vrsqrt.pop %v1245
  %v1662 = vmul.f32 %v1661, %v1245
  %v1663 = vmul.f32 %v1662, %v1661
  %v1664 = vmul.f32 0.5, %v1663
  %v1665 = vsub.f32 1.5, %v1664
  %v1666 = vmul.f32 %v1661, %v1665
  %vm1667 = vweird.f32 %v1245
  %vm1668 = vweird.f32 %v1661
  %vm1669 = vmor %vm1667, %vm1668
  %v1670 = vsel %vm1669, %v1661, %v1666
  %v1671 = vrsqrt.pop %v1246
  %v1672 = vmul.f32 %v1671, %v1246
  %v1673 = vmul.f32 %v1672, %v1671
  %v1674 = vmul.f32 0.5, %v1673
  %v1675 = vsub.f32 1.5, %v1674
  %v1676 = vmul.f32 %v1671, %v1675
  %vm1677 = vweird.f32 %v1246
  %vm1678 = vweird.f32 %v1671
  %vm1679 = vmor %vm1677, %vm1678
  %v1680 = vsel %vm1679, %v1671, %v1676
  %v1681 = vrsqrt.pop %v1247
  %v1682 = vmul.f32 %v1681, %v1247
  %v1683 = vmul.f32 %v1682, %v1681
  %v1684 = vmul.f32 0.5, %v1683
  %v1685 = vsub.f32 1.5, %v1684
  %v1686 = vmul.f32 %v1681, %v1685
  %vm1687 = vweird.f32 %v1247
  %vm1688 = vweird.f32 %v1681
  %vm1689 = vmor %vm1687, %vm1688
  %v1690 = vsel %vm1689, %v1681, %v1686
  %v1691 = vrsqrt.pop %v1248
  %v1692 = vmul.f32 %v1691, %v1248
  %v1693 = vmul.f32 %v1692, %v1691
  %v1694 = vmul.f32 0.5, %v1693
  %v1695 = vsub.f32 1.5, %v1694
  %v1696 = vmul.f32 %v1691, %v1695
  %vm1697 = vweird.f32 %v1248
  %vm1698 = vweird.f32 %v1691
  %vm1699 = vmor %vm1697, %vm1698
  %v1700 = vsel %vm1699, %v1691, %v1696
  %v1701 = vrsqrt.pop %v1249
  %v1702 = vmul.f32 %v1701, %v1249
  %v1703 = vmul.f32 %v1702, %v1701
  %v1704 = vmul.f32 0.5, %v1703
  %v1705 = vsub.f32 1.5, %v1704
  %v1706 = vmul.f32 %v1701, %v1705
  %vm1707 = vweird.f32 %v1249
  %vm1708 = vweird.f32 %v1701
  %vm1709 = vmor %vm1707, %vm1708
  %v1710 = vsel %vm1709, %v1701, %v1706
  %v1711 = vrsqrt.pop %v1250
  %v1712 = vmul.f32 %v1711, %v1250
  %v1713 = vmul.f32 %v1712, %v1711
  %v1714 = vmul.f32 0.5, %v1713
  %v1715 = vsub.f32 1.5, %v1714
  %v1716 = vmul.f32 %v1711, %v1715
  %vm1717 = vweird.f32 %v1250
  %vm1718 = vweird.f32 %v1711
  %vm1719 = vmor %vm1717, %vm1718
  %v1720 = vsel %vm1719, %v1711, %v1716
  %v1721 = vrsqrt.pop %v1251
  %v1722 = vmul.f32 %v1721, %v1251
  %v1723 = vmul.f32 %v1722, %v1721
  %v1724 = vmul.f32 0.5, %v1723
  %v1725 = vsub.f32 1.5, %v1724
  %v1726 = vmul.f32 %v1721, %v1725
  %vm1727 = vweird.f32 %v1251
  %vm1728 = vweird.f32 %v1721
  %vm1729 = vmor %vm1727, %vm1728
  %v1730 = vsel %vm1729, %v1721, %v1726
  %v1731 = vrsqrt.pop %v1252
  %v1732 = vmul.f32 %v1731, %v1252
  %v1733 = vmul.f32 %v1732, %v1731
  %v1734 = vmul.f32 0.5, %v1733
  %v1735 = vsub.f32 1.5, %v1734
  %v1736 = vmul.f32 %v1731, %v1735
  %vm1737 = vweird.f32 %v1252
  %vm1738 = vweird.f32 %v1731
  %vm1739 = vmor %vm1737, %vm1738
  %v1740 = vsel %vm1739, %v1731, %v1736
  %v1741 = vrsqrt.pop %v1253
  %v1742 = vmul.f32 %v1741, %v1253
  %v1743 = vmul.f32 %v1742, %v1741
  %v1744 = vmul.f32 0.5, %v1743
  %v1745 = vsub.f32 1.5, %v1744
  %v1746 = vmul.f32 %v1741, %v1745
  %vm1747 = vweird.f32 %v1253
  %vm1748 = vweird.f32 %v1741
  %vm1749 = vmor %vm1747, %vm1748
  %v1750 = vsel %vm1749, %v1741, %v1746
  %v1751 = vrsqrt.pop %v1254
  %v1752 = vmul.f32 %v1751, %v1254
  %v1753 = vmul.f32 %v1752, %v1751
  %v1754 = vmul.f32 0.5, %v1753
  %v1755 = vsub.f32 1.5, %v1754
  %v1756 = vmul.f32 %v1751, %v1755
  %vm1757 = vweird.f32 %v1254
  %vm1758 = vweird.f32 %v1751
  %vm1759 = vmor %vm1757, %vm1758
  %v1760 = vsel %vm1759, %v1751, %v1756
  %v1761 = vrsqrt.pop %v1255
  %v1762 = vmul.f32 %v1761, %v1255
  %v1763 = vmul.f32 %v1762, %v1761
  %v1764 = vmul.f32 0.5, %v1763
  %v1765 = vsub.f32 1.5, %v1764
  %v1766 = vmul.f32 %v1761, %v1765
  %vm1767 = vweird.f32 %v1255
  %vm1768 = vweird.f32 %v1761
  %vm1769 = vmor %vm1767, %vm1768
  %v1770 = vsel %vm1769, %v1761, %v1766
  %v1771 = vrsqrt.pop %v1256
  %v1772 = vmul.f32 %v1771, %v1256
  %v1773 = vmul.f32 %v1772, %v1771
  %v1774 = vmul.f32 0.5, %v1773
  %v1775 = vsub.f32 1.5, %v1774
  %v1776 = vmul.f32 %v1771, %v1775
  %vm1777 = vweird.f32 %v1256
  %vm1778 = vweird.f32 %v1771
  %vm1779 = vmor %vm1777, %vm1778
  %v1780 = vsel %vm1779, %v1771, %v1776
  %v1781 = vrsqrt.pop %v1257
  %v1782 = vmul.f32 %v1781, %v1257
  %v1783 = vmul.f32 %v1782, %v1781
  %v1784 = vmul.f32 0.5, %v1783
  %v1785 = vsub.f32 1.5, %v1784
  %v1786 = vmul.f32 %v1781, %v1785
  %vm1787 = vweird.f32 %v1257
  %vm1788 = vweird.f32 %v1781
  %vm1789 = vmor %vm1787, %vm1788
  %v1790 = vsel %vm1789, %v1781, %v1786
  %v1791 = vrsqrt.pop %v1258
  %v1792 = vmul.f32 %v1791, %v1258
  %v1793 = vmul.f32 %v1792, %v1791
  %v1794 = vmul.f32 0.5, %v1793
  %v1795 = vsub.f32 1.5, %v1794
  %v1796 = vmul.f32 %v1791, %v1795
  %vm1797 = vweird.f32 %v1258
  %vm1798 = vweird.f32 %v1791
  %vm1799 = vmor %vm1797, %vm1798
  %v1800 = vsel %vm1799, %v1791, %v1796
  %v1801 = vrsqrt.pop %v1259
  %v1802 = vmul.f32 %v1801, %v1259
  %v1803 = vmul.f32 %v1802, %v1801
  %v1804 = vmul.f32 0.5, %v1803
  %v1805 = vsub.f32 1.5, %v1804
  %v1806 = vmul.f32 %v1801, %v1805
  %vm1807 = vweird.f32 %v1259
  %vm1808 = vweird.f32 %v1801
  %vm1809 = vmor %vm1807, %vm1808
  %v1810 = vsel %vm1809, %v1801, %v1806
  %v1811 = vrsqrt.pop %v1260
  %v1812 = vmul.f32 %v1811, %v1260
  %v1813 = vmul.f32 %v1812, %v1811
  %v1814 = vmul.f32 0.5, %v1813
  %v1815 = vsub.f32 1.5, %v1814
  %v1816 = vmul.f32 %v1811, %v1815
  %vm1817 = vweird.f32 %v1260
  %vm1818 = vweird.f32 %v1811
  %vm1819 = vmor %vm1817, %vm1818
  %v1820 = vsel %vm1819, %v1811, %v1816
  %v1821 = vrsqrt.pop %v1261
  %v1822 = vmul.f32 %v1821, %v1261
  %v1823 = vmul.f32 %v1822, %v1821
  %v1824 = vmul.f32 0.5, %v1823
  %v1825 = vsub.f32 1.5, %v1824
  %v1826 = vmul.f32 %v1821, %v1825
  %vm1827 = vweird.f32 %v1261
  %vm1828 = vweird.f32 %v1821
  %vm1829 = vmor %vm1827, %vm1828
  %v1830 = vsel %vm1829, %v1821, %v1826
  %v1831 = vrsqrt.pop %v1262
  %v1832 = vmul.f32 %v1831, %v1262
  %v1833 = vmul.f32 %v1832, %v1831
  %v1834 = vmul.f32 0.5, %v1833
  %v1835 = vsub.f32 1.5, %v1834
  %v1836 = vmul.f32 %v1831, %v1835
  %vm1837 = vweird.f32 %v1262
  %vm1838 = vweird.f32 %v1831
  %vm1839 = vmor %vm1837, %vm1838
  %v1840 = vsel %vm1839, %v1831, %v1836
  %v1841 = vrsqrt.pop %v1263
  %v1842 = vmul.f32 %v1841, %v1263
  %v1843 = vmul.f32 %v1842, %v1841
  %v1844 = vmul.f32 0.5, %v1843
  %v1845 = vsub.f32 1.5, %v1844
  %v1846 = vmul.f32 %v1841, %v1845
  %vm1847 = vweird.f32 %v1263
  %vm1848 = vweird.f32 %v1841
  %vm1849 = vmor %vm1847, %vm1848
  %v1850 = vsel %vm1849, %v1841, %v1846
  %v1851 = vrsqrt.pop %v1264
  %v1852 = vmul.f32 %v1851, %v1264
  %v1853 = vmul.f32 %v1852, %v1851
  %v1854 = vmul.f32 0.5, %v1853
  %v1855 = vsub.f32 1.5, %v1854
  %v1856 = vmul.f32 %v1851, %v1855
  %vm1857 = vweird.f32 %v1264
  %vm1858 = vweird.f32 %v1851
  %vm1859 = vmor %vm1857, %vm1858
  %v1860 = vsel %vm1859, %v1851, %v1856
  %v1861 = vrsqrt.pop %v1265
  %v1862 = vmul.f32 %v1861, %v1265
  %v1863 = vmul.f32 %v1862, %v1861
  %v1864 = vmul.f32 0.5, %v1863
  %v1865 = vsub.f32 1.5, %v1864
  %v1866 = vmul.f32 %v1861, %v1865
  %vm1867 = vweird.f32 %v1265
  %vm1868 = vweird.f32 %v1861
  %vm1869 = vmor %vm1867, %vm1868
  %v1870 = vsel %vm1869, %v1861, %v1866
  %v1871 = vrsqrt.pop %v1266
  %v1872 = vmul.f32 %v1871, %v1266
  %v1873 = vmul.f32 %v1872, %v1871
  %v1874 = vmul.f32 0.5, %v1873
  %v1875 = vsub.f32 1.5, %v1874
  %v1876 = vmul.f32 %v1871, %v1875
  %vm1877 = vweird.f32 %v1266
  %vm1878 = vweird.f32 %v1871
  %vm1879 = vmor %vm1877, %vm1878
  %v1880 = vsel %vm1879, %v1871, %v1876
  %v1881 = vrsqrt.pop %v1267
  %v1882 = vmul.f32 %v1881, %v1267
  %v1883 = vmul.f32 %v1882, %v1881
  %v1884 = vmul.f32 0.5, %v1883
  %v1885 = vsub.f32 1.5, %v1884
  %v1886 = vmul.f32 %v1881, %v1885
  %vm1887 = vweird.f32 %v1267
  %vm1888 = vweird.f32 %v1881
  %vm1889 = vmor %vm1887, %vm1888
  %v1890 = vsel %vm1889, %v1881, %v1886
  %v1891 = vrsqrt.pop %v1268
  %v1892 = vmul.f32 %v1891, %v1268
  %v1893 = vmul.f32 %v1892, %v1891
  %v1894 = vmul.f32 0.5, %v1893
  %v1895 = vsub.f32 1.5, %v1894
  %v1896 = vmul.f32 %v1891, %v1895
  %vm1897 = vweird.f32 %v1268
  %vm1898 = vweird.f32 %v1891
  %vm1899 = vmor %vm1897, %vm1898
  %v1900 = vsel %vm1899, %v1891, %v1896
  %v1901 = vrsqrt.pop %v1269
  %v1902 = vmul.f32 %v1901, %v1269
  %v1903 = vmul.f32 %v1902, %v1901
  %v1904 = vmul.f32 0.5, %v1903
  %v1905 = vsub.f32 1.5, %v1904
  %v1906 = vmul.f32 %v1901, %v1905
  %vm1907 = vweird.f32 %v1269
  %vm1908 = vweird.f32 %v1901
  %vm1909 = vmor %vm1907, %vm1908
  %v1910 = vsel %vm1909, %v1901, %v1906
  %v1911 = vrsqrt.pop %v1270
  %v1912 = vmul.f32 %v1911, %v1270
  %v1913 = vmul.f32 %v1912, %v1911
  %v1914 = vmul.f32 0.5, %v1913
  %v1915 = vsub.f32 1.5, %v1914
  %v1916 = vmul.f32 %v1911, %v1915
  %vm1917 = vweird.f32 %v1270
  %vm1918 = vweird.f32 %v1911
  %vm1919 = vmor %vm1917, %vm1918
  %v1920 = vsel %vm1919, %v1911, %v1916
  %v1921 = vrsqrt.pop %v1271
  %v1922 = vmul.f32 %v1921, %v1271
  %v1923 = vmul.f32 %v1922, %v1921
  %v1924 = vmul.f32 0.5, %v1923
  %v1925 = vsub.f32 1.5, %v1924
  %v1926 = vmul.f32 %v1921, %v1925
  %vm1927 = vweird.f32 %v1271
  %vm1928 = vweird.f32 %v1921
  %vm1929 = vmor %vm1927, %vm1928
  %v1930 = vsel %vm1929, %v1921, %v1926
  %v1931 = vrsqrt.pop %v1272
  %v1932 = vmul.f32 %v1931, %v1272
  %v1933 = vmul.f32 %v1932, %v1931
  %v1934 = vmul.f32 0.5, %v1933
  %v1935 = vsub.f32 1.5, %v1934
  %v1936 = vmul.f32 %v1931, %v1935
  %vm1937 = vweird.f32 %v1272
  %vm1938 = vweird.f32 %v1931
  %vm1939 = vmor %vm1937, %vm1938
  %v1940 = vsel %vm1939, %v1931, %v1936
  %v1941 = vrsqrt.pop %v1273
  %v1942 = vmul.f32 %v1941, %v1273
  %v1943 = vmul.f32 %v1942, %v1941
  %v1944 = vmul.f32 0.5, %v1943
  %v1945 = vsub.f32 1.5, %v1944
  %v1946 = vmul.f32 %v1941, %v1945
  %vm1947 = vweird.f32 %v1273
  %vm1948 = vweird.f32 %v1941
  %vm1949 = vmor %vm1947, %vm1948
  %v1950 = vsel %vm1949, %v1941, %v1946
  %v1951 = vrsqrt.pop %v1274
  %v1952 = vmul.f32 %v1951, %v1274
  %v1953 = vmul.f32 %v1952, %v1951
  %v1954 = vmul.f32 0.5, %v1953
  %v1955 = vsub.f32 1.5, %v1954
  %v1956 = vmul.f32 %v1951, %v1955
  %vm1957 = vweird.f32 %v1274
  %vm1958 = vweird.f32 %v1951
  %vm1959 = vmor %vm1957, %vm1958
  %v1960 = vsel %vm1959, %v1951, %v1956
  %v1961 = vrsqrt.pop %v1275
  %v1962 = vmul.f32 %v1961, %v1275
  %v1963 = vmul.f32 %v1962, %v1961
  %v1964 = vmul.f32 0.5, %v1963
  %v1965 = vsub.f32 1.5, %v1964
  %v1966 = vmul.f32 %v1961, %v1965
  %vm1967 = vweird.f32 %v1275
  %vm1968 = vweird.f32 %v1961
  %vm1969 = vmor %vm1967, %vm1968
  %v1970 = vsel %vm1969, %v1961, %v1966
  %v1971 = vrsqrt.pop %v1276
  %v1972 = vmul.f32 %v1971, %v1276
  %v1973 = vmul.f32 %v1972, %v1971
  %v1974 = vmul.f32 0.5, %v1973
  %v1975 = vsub.f32 1.5, %v1974
  %v1976 = vmul.f32 %v1971, %v1975
  %vm1977 = vweird.f32 %v1276
  %vm1978 = vweird.f32 %v1971
  %vm1979 = vmor %vm1977, %vm1978
  %v1980 = vsel %vm1979, %v1971, %v1976
  %v1981 = vrsqrt.pop %v1277
  %v1982 = vmul.f32 %v1981, %v1277
  %v1983 = vmul.f32 %v1982, %v1981
  %v1984 = vmul.f32 0.5, %v1983
  %v1985 = vsub.f32 1.5, %v1984
  %v1986 = vmul.f32 %v1981, %v1985
  %vm1987 = vweird.f32 %v1277
  %vm1988 = vweird.f32 %v1981
  %vm1989 = vmor %vm1987, %vm1988
  %v1990 = vsel %vm1989, %v1981, %v1986
  %v1991 = vrsqrt.pop %v1278
  %v1992 = vmul.f32 %v1991, %v1278
  %v1993 = vmul.f32 %v1992, %v1991
  %v1994 = vmul.f32 0.5, %v1993
  %v1995 = vsub.f32 1.5, %v1994
  %v1996 = vmul.f32 %v1991, %v1995
  %vm1997 = vweird.f32 %v1278
  %vm1998 = vweird.f32 %v1991
  %vm1999 = vmor %vm1997, %vm1998
  %v2000 = vsel %vm1999, %v1991, %v1996
  %v2001 = vrsqrt.pop %v1279
  %v2002 = vmul.f32 %v2001, %v1279
  %v2003 = vmul.f32 %v2002, %v2001
  %v2004 = vmul.f32 0.5, %v2003
  %v2005 = vsub.f32 1.5, %v2004
  %v2006 = vmul.f32 %v2001, %v2005
  %vm2007 = vweird.f32 %v1279
  %vm2008 = vweird.f32 %v2001
  %vm2009 = vmor %vm2007, %vm2008
  %v2010 = vsel %vm2009, %v2001, %v2006
  %v2011 = vrsqrt.pop %v1280
  %v2012 = vmul.f32 %v2011, %v1280
  %v2013 = vmul.f32 %v2012, %v2011
  %v2014 = vmul.f32 0.5, %v2013
  %v2015 = vsub.f32 1.5, %v2014
  %v2016 = vmul.f32 %v2011, %v2015
  %vm2017 = vweird.f32 %v1280
  %vm2018 = vweird.f32 %v2011
  %vm2019 = vmor %vm2017, %vm2018
  %v2020 = vsel %vm2019, %v2011, %v2016
  %v2021 = vrsqrt.pop %v1281
  %v2022 = vmul.f32 %v2021, %v1281
  %v2023 = vmul.f32 %v2022, %v2021
  %v2024 = vmul.f32 0.5, %v2023
  %v2025 = vsub.f32 1.5, %v2024
  %v2026 = vmul.f32 %v2021, %v2025
  %vm2027 = vweird.f32 %v1281
  %vm2028 = vweird.f32 %v2021
  %vm2029 = vmor %vm2027, %vm2028
  %v2030 = vsel %vm2029, %v2021, %v2026
  %v2031 = vrsqrt.pop %v1282
  %v2032 = vmul.f32 %v2031, %v1282
  %v2033 = vmul.f32 %v2032, %v2031
  %v2034 = vmul.f32 0.5, %v2033
  %v2035 = vsub.f32 1.5, %v2034
  %v2036 = vmul.f32 %v2031, %v2035
  %vm2037 = vweird.f32 %v1282
  %vm2038 = vweird.f32 %v2031
  %vm2039 = vmor %vm2037, %vm2038
  %v2040 = vsel %vm2039, %v2031, %v2036
  %v2041 = vrsqrt.pop %v1283
  %v2042 = vmul.f32 %v2041, %v1283
  %v2043 = vmul.f32 %v2042, %v2041
  %v2044 = vmul.f32 0.5, %v2043
  %v2045 = vsub.f32 1.5, %v2044
  %v2046 = vmul.f32 %v2041, %v2045
  %vm2047 = vweird.f32 %v1283
  %vm2048 = vweird.f32 %v2041
  %vm2049 = vmor %vm2047, %vm2048
  %v2050 = vsel %vm2049, %v2041, %v2046
  %v2051 = vrsqrt.pop %v1284
  %v2052 = vmul.f32 %v2051, %v1284
  %v2053 = vmul.f32 %v2052, %v2051
  %v2054 = vmul.f32 0.5, %v2053
  %v2055 = vsub.f32 1.5, %v2054
  %v2056 = vmul.f32 %v2051, %v2055
  %vm2057 = vweird.f32 %v1284
  %vm2058 = vweird.f32 %v2051
  %vm2059 = vmor %vm2057, %vm2058
  %v2060 = vsel %vm2059, %v2051, %v2056
  %v2061 = vrsqrt.pop %v1285
  %v2062 = vmul.f32 %v2061, %v1285
  %v2063 = vmul.f32 %v2062, %v2061
  %v2064 = vmul.f32 0.5, %v2063
  %v2065 = vsub.f32 1.5, %v2064
  %v2066 = vmul.f32 %v2061, %v2065
  %vm2067 = vweird.f32 %v1285
  %vm2068 = vweird.f32 %v2061
  %vm2069 = vmor %vm2067, %vm2068
  %v2070 = vsel %vm2069, %v2061, %v2066
  %v2071 = vrsqrt.pop %v1286
  %v2072 = vmul.f32 %v2071, %v1286
  %v2073 = vmul.f32 %v2072, %v2071
  %v2074 = vmul.f32 0.5, %v2073
  %v2075 = vsub.f32 1.5, %v2074
  %v2076 = vmul.f32 %v2071, %v2075
  %vm2077 = vweird.f32 %v1286
  %vm2078 = vweird.f32 %v2071
  %vm2079 = vmor %vm2077, %vm2078
  %v2080 = vsel %vm2079, %v2071, %v2076
  %v2081 = vrsqrt.pop %v1287
  %v2082 = vmul.f32 %v2081, %v1287
  %v2083 = vmul.f32 %v2082, %v2081
  %v2084 = vmul.f32 0.5, %v2083
  %v2085 = vsub.f32 1.5, %v2084
  %v2086 = vmul.f32 %v2081, %v2085
  %vm2087 = vweird.f32 %v1287
  %vm2088 = vweird.f32 %v2081
  %vm2089 = vmor %vm2087, %vm2088
  %v2090 = vsel %vm2089, %v2081, %v2086
  %v2091 = vrsqrt.pop %v1288
  %v2092 = vmul.f32 %v2091, %v1288
  %v2093 = vmul.f32 %v2092, %v2091
  %v2094 = vmul.f32 0.5, %v2093
  %v2095 = vsub.f32 1.5, %v2094
  %v2096 = vmul.f32 %v2091, %v2095
  %vm2097 = vweird.f32 %v1288
  %vm2098 = vweird.f32 %v2091
  %vm2099 = vmor %vm2097, %vm2098
  %v2100 = vsel %vm2099, %v2091, %v2096
  %v2101 = vrsqrt.pop %v1289
  %v2102 = vmul.f32 %v2101, %v1289
  %v2103 = vmul.f32 %v2102, %v2101
  %v2104 = vmul.f32 0.5, %v2103
  %v2105 = vsub.f32 1.5, %v2104
  %v2106 = vmul.f32 %v2101, %v2105
  %vm2107 = vweird.f32 %v1289
  %vm2108 = vweird.f32 %v2101
  %vm2109 = vmor %vm2107, %vm2108
  %v2110 = vsel %vm2109, %v2101, %v2106
  %v2111 = vrsqrt.pop %v1290
  %v2112 = vmul.f32 %v2111, %v1290
  %v2113 = vmul.f32 %v2112, %v2111
  %v2114 = vmul.f32 0.5, %v2113
  %v2115 = vsub.f32 1.5, %v2114
  %v2116 = vmul.f32 %v2111, %v2115
  %vm2117 = vweird.f32 %v1290
  %vm2118 = vweird.f32 %v2111
  %vm2119 = vmor %vm2117, %vm2118
  %v2120 = vsel %vm2119, %v2111, %v2116
  %v2121 = vrsqrt.pop %v1291
  %v2122 = vmul.f32 %v2121, %v1291
  %v2123 = vmul.f32 %v2122, %v2121
  %v2124 = vmul.f32 0.5, %v2123
  %v2125 = vsub.f32 1.5, %v2124
  %v2126 = vmul.f32 %v2121, %v2125
  %vm2127 = vweird.f32 %v1291
  %vm2128 = vweird.f32 %v2121
  %vm2129 = vmor %vm2127, %vm2128
  %v2130 = vsel %vm2129, %v2121, %v2126
  %v2131 = vrsqrt.pop %v1292
  %v2132 = vmul.f32 %v2131, %v1292
  %v2133 = vmul.f32 %v2132, %v2131
  %v2134 = vmul.f32 0.5, %v2133
  %v2135 = vsub.f32 1.5, %v2134
  %v2136 = vmul.f32 %v2131, %v2135
  %vm2137 = vweird.f32 %v1292
  %vm2138 = vweird.f32 %v2131
  %vm2139 = vmor %vm2137, %vm2138
  %v2140 = vsel %vm2139, %v2131, %v2136
  %v2141 = vrsqrt.pop %v1293
  %v2142 = vmul.f32 %v2141, %v1293
  %v2143 = vmul.f32 %v2142, %v2141
  %v2144 = vmul.f32 0.5, %v2143
  %v2145 = vsub.f32 1.5, %v2144
  %v2146 = vmul.f32 %v2141, %v2145
  %vm2147 = vweird.f32 %v1293
  %vm2148 = vweird.f32 %v2141
  %vm2149 = vmor %vm2147, %vm2148
  %v2150 = vsel %vm2149, %v2141, %v2146
  %v2151 = vrsqrt.pop %v1294
  %v2152 = vmul.f32 %v2151, %v1294
  %v2153 = vmul.f32 %v2152, %v2151
  %v2154 = vmul.f32 0.5, %v2153
  %v2155 = vsub.f32 1.5, %v2154
  %v2156 = vmul.f32 %v2151, %v2155
  %vm2157 = vweird.f32 %v1294
  %vm2158 = vweird.f32 %v2151
  %vm2159 = vmor %vm2157, %vm2158
  %v2160 = vsel %vm2159, %v2151, %v2156
  %v2161 = vrsqrt.pop %v1295
  %v2162 = vmul.f32 %v2161, %v1295
  %v2163 = vmul.f32 %v2162, %v2161
  %v2164 = vmul.f32 0.5, %v2163
  %v2165 = vsub.f32 1.5, %v2164
  %v2166 = vmul.f32 %v2161, %v2165
  %vm2167 = vweird.f32 %v1295
  %vm2168 = vweird.f32 %v2161
  %vm2169 = vmor %vm2167, %vm2168
  %v2170 = vsel %vm2169, %v2161, %v2166
  %v2171 = vrsqrt.pop %v1296
  %v2172 = vmul.f32 %v2171, %v1296
  %v2173 = vmul.f32 %v2172, %v2171
  %v2174 = vmul.f32 0.5, %v2173
  %v2175 = vsub.f32 1.5, %v2174
  %v2176 = vmul.f32 %v2171, %v2175
  %vm2177 = vweird.f32 %v1296
  %vm2178 = vweird.f32 %v2171
  %vm2179 = vmor %vm2177, %vm2178
  %v2180 = vsel %vm2179, %v2171, %v2176
  %v2181 = vrsqrt.pop %v1297
  %v2182 = vmul.f32 %v2181, %v1297
  %v2183 = vmul.f32 %v2182, %v2181
  %v2184 = vmul.f32 0.5, %v2183
  %v2185 = vsub.f32 1.5, %v2184
  %v2186 = vmul.f32 %v2181, %v2185
  %vm2187 = vweird.f32 %v1297
  %vm2188 = vweird.f32 %v2181
  %vm2189 = vmor %vm2187, %vm2188
  %v2190 = vsel %vm2189, %v2181, %v2186
  %v2191 = vrsqrt.pop %v1298
  %v2192 = vmul.f32 %v2191, %v1298
  %v2193 = vmul.f32 %v2192, %v2191
  %v2194 = vmul.f32 0.5, %v2193
  %v2195 = vsub.f32 1.5, %v2194
  %v2196 = vmul.f32 %v2191, %v2195
  %vm2197 = vweird.f32 %v1298
  %vm2198 = vweird.f32 %v2191
  %vm2199 = vmor %vm2197, %vm2198
  %v2200 = vsel %vm2199, %v2191, %v2196
  %v2201 = vrsqrt.pop %v1299
  %v2202 = vmul.f32 %v2201, %v1299
  %v2203 = vmul.f32 %v2202, %v2201
  %v2204 = vmul.f32 0.5, %v2203
  %v2205 = vsub.f32 1.5, %v2204
  %v2206 = vmul.f32 %v2201, %v2205
  %vm2207 = vweird.f32 %v1299
  %vm2208 = vweird.f32 %v2201
  %vm2209 = vmor %vm2207, %vm2208
  %v2210 = vsel %vm2209, %v2201, %v2206
  %v2211 = vrsqrt.pop %v1300
  %v2212 = vmul.f32 %v2211, %v1300
  %v2213 = vmul.f32 %v2212, %v2211
  %v2214 = vmul.f32 0.5, %v2213
  %v2215 = vsub.f32 1.5, %v2214
  %v2216 = vmul.f32 %v2211, %v2215
  %vm2217 = vweird.f32 %v1300
  %vm2218 = vweird.f32 %v2211
  %vm2219 = vmor %vm2217, %vm2218
  %v2220 = vsel %vm2219, %v2211, %v2216
  %v2221 = vrsqrt.pop %v1301
  %v2222 = vmul.f32 %v2221, %v1301
  %v2223 = vmul.f32 %v2222, %v2221
  %v2224 = vmul.f32 0.5, %v2223
  %v2225 = vsub.f32 1.5, %v2224
  %v2226 = vmul.f32 %v2221, %v2225
  %vm2227 = vweird.f32 %v1301
  %vm2228 = vweird.f32 %v2221
  %vm2229 = vmor %vm2227, %vm2228
  %v2230 = vsel %vm2229, %v2221, %v2226
  %v2231 = vrsqrt.pop %v1302
  %v2232 = vmul.f32 %v2231, %v1302
  %v2233 = vmul.f32 %v2232, %v2231
  %v2234 = vmul.f32 0.5, %v2233
  %v2235 = vsub.f32 1.5, %v2234
  %v2236 = vmul.f32 %v2231, %v2235
  %vm2237 = vweird.f32 %v1302
  %vm2238 = vweird.f32 %v2231
  %vm2239 = vmor %vm2237, %vm2238
  %v2240 = vsel %vm2239, %v2231, %v2236
  %v2241 = vrsqrt.pop %v1303
  %v2242 = vmul.f32 %v2241, %v1303
  %v2243 = vmul.f32 %v2242, %v2241
  %v2244 = vmul.f32 0.5, %v2243
  %v2245 = vsub.f32 1.5, %v2244
  %v2246 = vmul.f32 %v2241, %v2245
  %vm2247 = vweird.f32 %v1303
  %vm2248 = vweird.f32 %v2241
  %vm2249 = vmor %vm2247, %vm2248
  %v2250 = vsel %vm2249, %v2241, %v2246
  %v2251 = vrsqrt.pop %v1304
  %v2252 = vmul.f32 %v2251, %v1304
  %v2253 = vmul.f32 %v2252, %v2251
  %v2254 = vmul.f32 0.5, %v2253
  %v2255 = vsub.f32 1.5, %v2254
  %v2256 = vmul.f32 %v2251, %v2255
  %vm2257 = vweird.f32 %v1304
  %vm2258 = vweird.f32 %v2251
  %vm2259 = vmor %vm2257, %vm2258
  %v2260 = vsel %vm2259, %v2251, %v2256
  %v2261 = vrsqrt.pop %v1305
  %v2262 = vmul.f32 %v2261, %v1305
  %v2263 = vmul.f32 %v2262, %v2261
  %v2264 = vmul.f32 0.5, %v2263
  %v2265 = vsub.f32 1.5, %v2264
  %v2266 = vmul.f32 %v2261, %v2265
  %vm2267 = vweird.f32 %v1305
  %vm2268 = vweird.f32 %v2261
  %vm2269 = vmor %vm2267, %vm2268
  %v2270 = vsel %vm2269, %v2261, %v2266
  %v2271 = vrsqrt.pop %v1306
  %v2272 = vmul.f32 %v2271, %v1306
  %v2273 = vmul.f32 %v2272, %v2271
  %v2274 = vmul.f32 0.5, %v2273
  %v2275 = vsub.f32 1.5, %v2274
  %v2276 = vmul.f32 %v2271, %v2275
  %vm2277 = vweird.f32 %v1306
  %vm2278 = vweird.f32 %v2271
  %vm2279 = vmor %vm2277, %vm2278
  %v2280 = vsel %vm2279, %v2271, %v2276
  %v2281 = vrsqrt.pop %v1307
  %v2282 = vmul.f32 %v2281, %v1307
  %v2283 = vmul.f32 %v2282, %v2281
  %v2284 = vmul.f32 0.5, %v2283
  %v2285 = vsub.f32 1.5, %v2284
  %v2286 = vmul.f32 %v2281, %v2285
  %vm2287 = vweird.f32 %v1307
  %vm2288 = vweird.f32 %v2281
  %vm2289 = vmor %vm2287, %vm2288
  %v2290 = vsel %vm2289, %v2281, %v2286
  %v2291 = vrsqrt.pop %v1308
  %v2292 = vmul.f32 %v2291, %v1308
  %v2293 = vmul.f32 %v2292, %v2291
  %v2294 = vmul.f32 0.5, %v2293
  %v2295 = vsub.f32 1.5, %v2294
  %v2296 = vmul.f32 %v2291, %v2295
  %vm2297 = vweird.f32 %v1308
  %vm2298 = vweird.f32 %v2291
  %vm2299 = vmor %vm2297, %vm2298
  %v2300 = vsel %vm2299, %v2291, %v2296
  %v2301 = vrsqrt.pop %v1309
  %v2302 = vmul.f32 %v2301, %v1309
  %v2303 = vmul.f32 %v2302, %v2301
  %v2304 = vmul.f32 0.5, %v2303
  %v2305 = vsub.f32 1.5, %v2304
  %v2306 = vmul.f32 %v2301, %v2305
  %vm2307 = vweird.f32 %v1309
  %vm2308 = vweird.f32 %v2301
  %vm2309 = vmor %vm2307, %vm2308
  %v2310 = vsel %vm2309, %v2301, %v2306
  %v2311 = vrsqrt.pop %v1310
  %v2312 = vmul.f32 %v2311, %v1310
  %v2313 = vmul.f32 %v2312, %v2311
  %v2314 = vmul.f32 0.5, %v2313
  %v2315 = vsub.f32 1.5, %v2314
  %v2316 = vmul.f32 %v2311, %v2315
  %vm2317 = vweird.f32 %v1310
  %vm2318 = vweird.f32 %v2311
  %vm2319 = vmor %vm2317, %vm2318
  %v2320 = vsel %vm2319, %v2311, %v2316
  %v2321 = vrsqrt.pop %v1311
  %v2322 = vmul.f32 %v2321, %v1311
  %v2323 = vmul.f32 %v2322, %v2321
  %v2324 = vmul.f32 0.5, %v2323
  %v2325 = vsub.f32 1.5, %v2324
  %v2326 = vmul.f32 %v2321, %v2325
  %vm2327 = vweird.f32 %v1311
  %vm2328 = vweird.f32 %v2321
  %vm2329 = vmor %vm2327, %vm2328
  %v2330 = vsel %vm2329, %v2321, %v2326
  %v2331 = vrsqrt.pop %v1312
  %v2332 = vmul.f32 %v2331, %v1312
  %v2333 = vmul.f32 %v2332, %v2331
  %v2334 = vmul.f32 0.5, %v2333
  %v2335 = vsub.f32 1.5, %v2334
  %v2336 = vmul.f32 %v2331, %v2335
  %vm2337 = vweird.f32 %v1312
  %vm2338 = vweird.f32 %v2331
  %vm2339 = vmor %vm2337, %vm2338
  %v2340 = vsel %vm2339, %v2331, %v2336
  %v2341 = vrsqrt.pop %v1313
  %v2342 = vmul.f32 %v2341, %v1313
  %v2343 = vmul.f32 %v2342, %v2341
  %v2344 = vmul.f32 0.5, %v2343
  %v2345 = vsub.f32 1.5, %v2344
  %v2346 = vmul.f32 %v2341, %v2345
  %vm2347 = vweird.f32 %v1313
  %vm2348 = vweird.f32 %v2341
  %vm2349 = vmor %vm2347, %vm2348
  %v2350 = vsel %vm2349, %v2341, %v2346
  %v2351 = vrsqrt.pop %v1314
  %v2352 = vmul.f32 %v2351, %v1314
  %v2353 = vmul.f32 %v2352, %v2351
  %v2354 = vmul.f32 0.5, %v2353
  %v2355 = vsub.f32 1.5, %v2354
  %v2356 = vmul.f32 %v2351, %v2355
  %vm2357 = vweird.f32 %v1314
  %vm2358 = vweird.f32 %v2351
  %vm2359 = vmor %vm2357, %vm2358
  %v2360 = vsel %vm2359, %v2351, %v2356
  %v2361 = vrsqrt.pop %v1315
  %v2362 = vmul.f32 %v2361, %v1315
  %v2363 = vmul.f32 %v2362, %v2361
  %v2364 = vmul.f32 0.5, %v2363
  %v2365 = vsub.f32 1.5, %v2364
  %v2366 = vmul.f32 %v2361, %v2365
  %vm2367 = vweird.f32 %v1315
  %vm2368 = vweird.f32 %v2361
  %vm2369 = vmor %vm2367, %vm2368
  %v2370 = vsel %vm2369, %v2361, %v2366
  %v2371 = vrsqrt.pop %v1316
  %v2372 = vmul.f32 %v2371, %v1316
  %v2373 = vmul.f32 %v2372, %v2371
  %v2374 = vmul.f32 0.5, %v2373
  %v2375 = vsub.f32 1.5, %v2374
  %v2376 = vmul.f32 %v2371, %v2375
  %vm2377 = vweird.f32 %v1316
  %vm2378 = vweird.f32 %v2371
  %vm2379 = vmor %vm2377, %vm2378
  %v2380 = vsel %vm2379, %v2371, %v2376
  %v2381 = vrsqrt.pop %v1317
  %v2382 = vmul.f32 %v2381, %v1317
  %v2383 = vmul.f32 %v2382, %v2381
  %v2384 = vmul.f32 0.5, %v2383
  %v2385 = vsub.f32 1.5, %v2384
  %v2386 = vmul.f32 %v2381, %v2385
  %vm2387 = vweird.f32 %v1317
  %vm2388 = vweird.f32 %v2381
  %vm2389 = vmor %vm2387, %vm2388
  %v2390 = vsel %vm2389, %v2381, %v2386
  %v2391 = vrsqrt.pop %v1318
  %v2392 = vmul.f32 %v2391, %v1318
  %v2393 = vmul.f32 %v2392, %v2391
  %v2394 = vmul.f32 0.5, %v2393
  %v2395 = vsub.f32 1.5, %v2394
  %v2396 = vmul.f32 %v2391, %v2395
  %vm2397 = vweird.f32 %v1318
  %vm2398 = vweird.f32 %v2391
  %vm2399 = vmor %vm2397, %vm2398
  %v2400 = vsel %vm2399, %v2391, %v2396
  %v2401 = vrsqrt.pop %v1319
  %v2402 = vmul.f32 %v2401, %v1319
  %v2403 = vmul.f32 %v2402, %v2401
  %v2404 = vmul.f32 0.5, %v2403
  %v2405 = vsub.f32 1.5, %v2404
  %v2406 = vmul.f32 %v2401, %v2405
  %vm2407 = vweird.f32 %v1319
  %vm2408 = vweird.f32 %v2401
  %vm2409 = vmor %vm2407, %vm2408
  %v2410 = vsel %vm2409, %v2401, %v2406
  %v2411 = vrsqrt.pop %v1320
  %v2412 = vmul.f32 %v2411, %v1320
  %v2413 = vmul.f32 %v2412, %v2411
  %v2414 = vmul.f32 0.5, %v2413
  %v2415 = vsub.f32 1.5, %v2414
  %v2416 = vmul.f32 %v2411, %v2415
  %vm2417 = vweird.f32 %v1320
  %vm2418 = vweird.f32 %v2411
  %vm2419 = vmor %vm2417, %vm2418
  %v2420 = vsel %vm2419, %v2411, %v2416
  %v2421 = vrsqrt.pop %v1321
  %v2422 = vmul.f32 %v2421, %v1321
  %v2423 = vmul.f32 %v2422, %v2421
  %v2424 = vmul.f32 0.5, %v2423
  %v2425 = vsub.f32 1.5, %v2424
  %v2426 = vmul.f32 %v2421, %v2425
  %vm2427 = vweird.f32 %v1321
  %vm2428 = vweird.f32 %v2421
  %vm2429 = vmor %vm2427, %vm2428
  %v2430 = vsel %vm2429, %v2421, %v2426
  %v2431 = vrsqrt.pop %v1322
  %v2432 = vmul.f32 %v2431, %v1322
  %v2433 = vmul.f32 %v2432, %v2431
  %v2434 = vmul.f32 0.5, %v2433
  %v2435 = vsub.f32 1.5, %v2434
  %v2436 = vmul.f32 %v2431, %v2435
  %vm2437 = vweird.f32 %v1322
  %vm2438 = vweird.f32 %v2431
  %vm2439 = vmor %vm2437, %vm2438
  %v2440 = vsel %vm2439, %v2431, %v2436
  %v2441 = vrsqrt.pop %v1323
  %v2442 = vmul.f32 %v2441, %v1323
  %v2443 = vmul.f32 %v2442, %v2441
  %v2444 = vmul.f32 0.5, %v2443
  %v2445 = vsub.f32 1.5, %v2444
  %v2446 = vmul.f32 %v2441, %v2445
  %vm2447 = vweird.f32 %v1323
  %vm2448 = vweird.f32 %v2441
  %vm2449 = vmor %vm2447, %vm2448
  %v2450 = vsel %vm2449, %v2441, %v2446
  %v2451 = vrsqrt.pop %v1324
  %v2452 = vmul.f32 %v2451, %v1324
  %v2453 = vmul.f32 %v2452, %v2451
  %v2454 = vmul.f32 0.5, %v2453
  %v2455 = vsub.f32 1.5, %v2454
  %v2456 = vmul.f32 %v2451, %v2455
  %vm2457 = vweird.f32 %v1324
  %vm2458 = vweird.f32 %v2451
  %vm2459 = vmor %vm2457, %vm2458
  %v2460 = vsel %vm2459, %v2451, %v2456
  %v2461 = vrsqrt.pop %v1325
  %v2462 = vmul.f32 %v2461, %v1325
  %v2463 = vmul.f32 %v2462, %v2461
  %v2464 = vmul.f32 0.5, %v2463
  %v2465 = vsub.f32 1.5, %v2464
  %v2466 = vmul.f32 %v2461, %v2465
  %vm2467 = vweird.f32 %v1325
  %vm2468 = vweird.f32 %v2461
  %vm2469 = vmor %vm2467, %vm2468
  %v2470 = vsel %vm2469, %v2461, %v2466
  %v2471 = vrsqrt.pop %v1326
  %v2472 = vmul.f32 %v2471, %v1326
  %v2473 = vmul.f32 %v2472, %v2471
  %v2474 = vmul.f32 0.5, %v2473
  %v2475 = vsub.f32 1.5, %v2474
  %v2476 = vmul.f32 %v2471, %v2475
  %vm2477 = vweird.f32 %v1326
  %vm2478 = vweird.f32 %v2471
  %vm2479 = vmor %vm2477, %vm2478
  %v2480 = vsel %vm2479, %v2471, %v2476
  %v2481 = vrsqrt.pop %v1327
  %v2482 = vmul.f32 %v2481, %v1327
  %v2483 = vmul.f32 %v2482, %v2481
  %v2484 = vmul.f32 0.5, %v2483
  %v2485 = vsub.f32 1.5, %v2484
  %v2486 = vmul.f32 %v2481, %v2485
  %vm2487 = vweird.f32 %v1327
  %vm2488 = vweird.f32 %v2481
  %vm2489 = vmor %vm2487, %vm2488
  %v2490 = vsel %vm2489, %v2481, %v2486
  %v2491 = vrsqrt.pop %v1328
  %v2492 = vmul.f32 %v2491, %v1328
  %v2493 = vmul.f32 %v2492, %v2491
  %v2494 = vmul.f32 0.5, %v2493
  %v2495 = vsub.f32 1.5, %v2494
  %v2496 = vmul.f32 %v2491, %v2495
  %vm2497 = vweird.f32 %v1328
  %vm2498 = vweird.f32 %v2491
  %vm2499 = vmor %vm2497, %vm2498
  %v2500 = vsel %vm2499, %v2491, %v2496
  %v2501 = vrsqrt.pop %v1329
  %v2502 = vmul.f32 %v2501, %v1329
  %v2503 = vmul.f32 %v2502, %v2501
  %v2504 = vmul.f32 0.5, %v2503
  %v2505 = vsub.f32 1.5, %v2504
  %v2506 = vmul.f32 %v2501, %v2505
  %vm2507 = vweird.f32 %v1329
  %vm2508 = vweird.f32 %v2501
  %vm2509 = vmor %vm2507, %vm2508
  %v2510 = vsel %vm2509, %v2501, %v2506
  %v2511 = vrsqrt.pop %v1330
  %v2512 = vmul.f32 %v2511, %v1330
  %v2513 = vmul.f32 %v2512, %v2511
  %v2514 = vmul.f32 0.5, %v2513
  %v2515 = vsub.f32 1.5, %v2514
  %v2516 = vmul.f32 %v2511, %v2515
  %vm2517 = vweird.f32 %v1330
  %vm2518 = vweird.f32 %v2511
  %vm2519 = vmor %vm2517, %vm2518
  %v2520 = vsel %vm2519, %v2511, %v2516
  %v2521 = vrsqrt.pop %v1331
  %v2522 = vmul.f32 %v2521, %v1331
  %v2523 = vmul.f32 %v2522, %v2521
  %v2524 = vmul.f32 0.5, %v2523
  %v2525 = vsub.f32 1.5, %v2524
  %v2526 = vmul.f32 %v2521, %v2525
  %vm2527 = vweird.f32 %v1331
  %vm2528 = vweird.f32 %v2521
  %vm2529 = vmor %vm2527, %vm2528
  %v2530 = vsel %vm2529, %v2521, %v2526
  %v2531 = vrsqrt.pop %v1332
  %v2532 = vmul.f32 %v2531, %v1332
  %v2533 = vmul.f32 %v2532, %v2531
  %v2534 = vmul.f32 0.5, %v2533
  %v2535 = vsub.f32 1.5, %v2534
  %v2536 = vmul.f32 %v2531, %v2535
  %vm2537 = vweird.f32 %v1332
  %vm2538 = vweird.f32 %v2531
  %vm2539 = vmor %vm2537, %vm2538
  %v2540 = vsel %vm2539, %v2531, %v2536
  %v2541 = vrsqrt.pop %v1333
  %v2542 = vmul.f32 %v2541, %v1333
  %v2543 = vmul.f32 %v2542, %v2541
  %v2544 = vmul.f32 0.5, %v2543
  %v2545 = vsub.f32 1.5, %v2544
  %v2546 = vmul.f32 %v2541, %v2545
  %vm2547 = vweird.f32 %v1333
  %vm2548 = vweird.f32 %v2541
  %vm2549 = vmor %vm2547, %vm2548
  %v2550 = vsel %vm2549, %v2541, %v2546
  %v2551 = vrsqrt.pop %v1334
  %v2552 = vmul.f32 %v2551, %v1334
  %v2553 = vmul.f32 %v2552, %v2551
  %v2554 = vmul.f32 0.5, %v2553
  %v2555 = vsub.f32 1.5, %v2554
  %v2556 = vmul.f32 %v2551, %v2555
  %vm2557 = vweird.f32 %v1334
  %vm2558 = vweird.f32 %v2551
  %vm2559 = vmor %vm2557, %vm2558
  %v2560 = vsel %vm2559, %v2551, %v2556
  %v2561 = vrsqrt.pop %v1335
  %v2562 = vmul.f32 %v2561, %v1335
  %v2563 = vmul.f32 %v2562, %v2561
  %v2564 = vmul.f32 0.5, %v2563
  %v2565 = vsub.f32 1.5, %v2564
  %v2566 = vmul.f32 %v2561, %v2565
  %vm2567 = vweird.f32 %v1335
  %vm2568 = vweird.f32 %v2561
  %vm2569 = vmor %vm2567, %vm2568
  %v2570 = vsel %vm2569, %v2561, %v2566
  %v2571 = vrsqrt.pop %v1336
  %v2572 = vmul.f32 %v2571, %v1336
  %v2573 = vmul.f32 %v2572, %v2571
  %v2574 = vmul.f32 0.5, %v2573
  %v2575 = vsub.f32 1.5, %v2574
  %v2576 = vmul.f32 %v2571, %v2575
  %vm2577 = vweird.f32 %v1336
  %vm2578 = vweird.f32 %v2571
  %vm2579 = vmor %vm2577, %vm2578
  %v2580 = vsel %vm2579, %v2571, %v2576
  %v2581 = vrsqrt.pop %v1337
  %v2582 = vmul.f32 %v2581, %v1337
  %v2583 = vmul.f32 %v2582, %v2581
  %v2584 = vmul.f32 0.5, %v2583
  %v2585 = vsub.f32 1.5, %v2584
  %v2586 = vmul.f32 %v2581, %v2585
  %vm2587 = vweird.f32 %v1337
  %vm2588 = vweird.f32 %v2581
  %vm2589 = vmor %vm2587, %vm2588
  %v2590 = vsel %vm2589, %v2581, %v2586
  %v2591 = vrsqrt.pop %v1338
  %v2592 = vmul.f32 %v2591, %v1338
  %v2593 = vmul.f32 %v2592, %v2591
  %v2594 = vmul.f32 0.5, %v2593
  %v2595 = vsub.f32 1.5, %v2594
  %v2596 = vmul.f32 %v2591, %v2595
  %vm2597 = vweird.f32 %v1338
  %vm2598 = vweird.f32 %v2591
  %vm2599 = vmor %vm2597, %vm2598
  %v2600 = vsel %vm2599, %v2591, %v2596
  %v2601 = vrsqrt.pop %v1339
  %v2602 = vmul.f32 %v2601, %v1339
  %v2603 = vmul.f32 %v2602, %v2601
  %v2604 = vmul.f32 0.5, %v2603
  %v2605 = vsub.f32 1.5, %v2604
  %v2606 = vmul.f32 %v2601, %v2605
  %vm2607 = vweird.f32 %v1339
  %vm2608 = vweird.f32 %v2601
  %vm2609 = vmor %vm2607, %vm2608
  %v2610 = vsel %vm2609, %v2601, %v2606
  %v2611 = vrsqrt.pop %v1340
  %v2612 = vmul.f32 %v2611, %v1340
  %v2613 = vmul.f32 %v2612, %v2611
  %v2614 = vmul.f32 0.5, %v2613
  %v2615 = vsub.f32 1.5, %v2614
  %v2616 = vmul.f32 %v2611, %v2615
  %vm2617 = vweird.f32 %v1340
  %vm2618 = vweird.f32 %v2611
  %vm2619 = vmor %vm2617, %vm2618
  %v2620 = vsel %vm2619, %v2611, %v2616
  %v2621 = vmul.f32 %v573, %v1350
  %v2622 = vmul.f32 %v574, %v1360
  %v2623 = vmul.f32 %v575, %v1370
  %v2624 = vmul.f32 %v576, %v1380
  %v2625 = vmul.f32 %v577, %v1390
  %v2626 = vmul.f32 %v578, %v1400
  %v2627 = vmul.f32 %v579, %v1410
  %v2628 = vmul.f32 %v580, %v1420
  %v2629 = vmul.f32 %v581, %v1430
  %v2630 = vmul.f32 %v582, %v1440
  %v2631 = vmul.f32 %v583, %v1450
  %v2632 = vmul.f32 %v584, %v1460
  %v2633 = vmul.f32 %v585, %v1470
  %v2634 = vmul.f32 %v586, %v1480
  %v2635 = vmul.f32 %v587, %v1490
  %v2636 = vmul.f32 %v588, %v1500
  %v2637 = vmul.f32 %v589, %v1510
  %v2638 = vmul.f32 %v590, %v1520
  %v2639 = vmul.f32 %v591, %v1530
  %v2640 = vmul.f32 %v592, %v1540
  %v2641 = vmul.f32 %v593, %v1550
  %v2642 = vmul.f32 %v594, %v1560
  %v2643 = vmul.f32 %v595, %v1570
  %v2644 = vmul.f32 %v596, %v1580
  %v2645 = vmul.f32 %v597, %v1590
  %v2646 = vmul.f32 %v598, %v1600
  %v2647 = vmul.f32 %v599, %v1610
  %v2648 = vmul.f32 %v600, %v1620
  %v2649 = vmul.f32 %v601, %v1630
  %v2650 = vmul.f32 %v602, %v1640
  %v2651 = vmul.f32 %v603, %v1650
  %v2652 = vmul.f32 %v604, %v1660
  %v2653 = vmul.f32 %v605, %v1670
  %v2654 = vmul.f32 %v606, %v1680
  %v2655 = vmul.f32 %v607, %v1690
  %v2656 = vmul.f32 %v608, %v1700
  %v2657 = vmul.f32 %v609, %v1710
  %v2658 = vmul.f32 %v610, %v1720
  %v2659 = vmul.f32 %v611, %v1730
  %v2660 = vmul.f32 %v612, %v1740
  %v2661 = vmul.f32 %v613, %v1750
  %v2662 = vmul.f32 %v614, %v1760
  %v2663 = vmul.f32 %v615, %v1770
  %v2664 = vmul.f32 %v616, %v1780
  %v2665 = vmul.f32 %v617, %v1790
  %v2666 = vmul.f32 %v618, %v1800
  %v2667 = vmul.f32 %v619, %v1810
  %v2668 = vmul.f32 %v620, %v1820
  %v2669 = vmul.f32 %v621, %v1830
  %v2670 = vmul.f32 %v622, %v1840
  %v2671 = vmul.f32 %v623, %v1850
  %v2672 = vmul.f32 %v624, %v1860
  %v2673 = vmul.f32 %v625, %v1870
  %v2674 = vmul.f32 %v626, %v1880
  %v2675 = vmul.f32 %v627, %v1890
  %v2676 = vmul.f32 %v628, %v1900
  %v2677 = vmul.f32 %v629, %v1910
  %v2678 = vmul.f32 %v630, %v1920
  %v2679 = vmul.f32 %v631, %v1930
  %v2680 = vmul.f32 %v632, %v1940
  %v2681 = vmul.f32 %v633, %v1950
  %v2682 = vmul.f32 %v634, %v1960
  %v2683 = vmul.f32 %v635, %v1970
  %v2684 = vmul.f32 %v636, %v1980
  %v2685 = vmul.f32 %v637, %v1990
  %v2686 = vmul.f32 %v638, %v2000
  %v2687 = vmul.f32 %v639, %v2010
  %v2688 = vmul.f32 %v640, %v2020
  %v2689 = vmul.f32 %v641, %v2030
  %v2690 = vmul.f32 %v642, %v2040
  %v2691 = vmul.f32 %v643, %v2050
  %v2692 = vmul.f32 %v644, %v2060
  %v2693 = vmul.f32 %v645, %v2070
  %v2694 = vmul.f32 %v646, %v2080
  %v2695 = vmul.f32 %v647, %v2090
  %v2696 = vmul.f32 %v648, %v2100
  %v2697 = vmul.f32 %v649, %v2110
  %v2698 = vmul.f32 %v650, %v2120
  %v2699 = vmul.f32 %v651, %v2130
  %v2700 = vmul.f32 %v652, %v2140
  %v2701 = vmul.f32 %v653, %v2150
  %v2702 = vmul.f32 %v654, %v2160
  %v2703 = vmul.f32 %v655, %v2170
  %v2704 = vmul.f32 %v656, %v2180
  %v2705 = vmul.f32 %v657, %v2190
  %v2706 = vmul.f32 %v658, %v2200
  %v2707 = vmul.f32 %v659, %v2210
  %v2708 = vmul.f32 %v660, %v2220
  %v2709 = vmul.f32 %v661, %v2230
  %v2710 = vmul.f32 %v662, %v2240
  %v2711 = vmul.f32 %v663, %v2250
  %v2712 = vmul.f32 %v664, %v2260
  %v2713 = vmul.f32 %v665, %v2270
  %v2714 = vmul.f32 %v666, %v2280
  %v2715 = vmul.f32 %v667, %v2290
  %v2716 = vmul.f32 %v668, %v2300
  %v2717 = vmul.f32 %v669, %v2310
  %v2718 = vmul.f32 %v670, %v2320
  %v2719 = vmul.f32 %v671, %v2330
  %v2720 = vmul.f32 %v672, %v2340
  %v2721 = vmul.f32 %v673, %v2350
  %v2722 = vmul.f32 %v674, %v2360
  %v2723 = vmul.f32 %v675, %v2370
  %v2724 = vmul.f32 %v676, %v2380
  %v2725 = vmul.f32 %v677, %v2390
  %v2726 = vmul.f32 %v678, %v2400
  %v2727 = vmul.f32 %v679, %v2410
  %v2728 = vmul.f32 %v680, %v2420
  %v2729 = vmul.f32 %v681, %v2430
  %v2730 = vmul.f32 %v682, %v2440
  %v2731 = vmul.f32 %v683, %v2450
  %v2732 = vmul.f32 %v684, %v2460
  %v2733 = vmul.f32 %v685, %v2470
  %v2734 = vmul.f32 %v686, %v2480
  %v2735 = vmul.f32 %v687, %v2490
  %v2736 = vmul.f32 %v688, %v2500
  %v2737 = vmul.f32 %v689, %v2510
  %v2738 = vmul.f32 %v690, %v2520
  %v2739 = vmul.f32 %v691, %v2530
  %v2740 = vmul.f32 %v692, %v2540
  %v2741 = vmul.f32 %v693, %v2550
  %v2742 = vmul.f32 %v694, %v2560
  %v2743 = vmul.f32 %v695, %v2570
  %v2744 = vmul.f32 %v696, %v2580
  %v2745 = vmul.f32 %v697, %v2590
  %v2746 = vmul.f32 %v698, %v2600
  %v2747 = vmul.f32 %v699, %v2610
  %v2748 = vmul.f32 %v700, %v2620
  %v2751 = vperm.slane %v568, 0
  %v2752 = vperm.slane %v569, 0
  %2753 = vset.pattern.permute.xlu0 0
  %2754 = vperm.xlu0 %2753, %v2751
  %v2755 = vpop.permute.xlu0 %2754
  %2757 = vset.pattern.permute.xlu0 0
  %2758 = vperm.xlu0 %2757, %v2752
  %v2759 = vpop.permute.xlu0 %2758
  %v2761 = vmul.f32 %v536, %v2755
  %v2762 = vmul.f32 %v537, %v2755
  %v2763 = vmul.f32 %v538, %v2755
  %v2764 = vmul.f32 %v539, %v2755
  %v2765 = vmul.f32 %v540, %v2755
  %v2766 = vmul.f32 %v541, %v2755
  %v2767 = vmul.f32 %v542, %v2755
  %v2768 = vmul.f32 %v543, %v2755
  %v2769 = vmul.f32 %v544, %v2755
  %v2770 = vmul.f32 %v545, %v2755
  %v2771 = vmul.f32 %v546, %v2755
  %v2772 = vmul.f32 %v547, %v2755
  %v2773 = vmul.f32 %v548, %v2755
  %v2774 = vmul.f32 %v549, %v2755
  %v2775 = vmul.f32 %v550, %v2755
  %v2776 = vmul.f32 %v551, %v2755
  %v2777 = vmul.f32 %v552, %v2759
  %v2778 = vmul.f32 %v553, %v2759
  %v2779 = vmul.f32 %v554, %v2759
  %v2780 = vmul.f32 %v555, %v2759
  %v2781 = vmul.f32 %v556, %v2759
  %v2782 = vmul.f32 %v557, %v2759
  %v2783 = vmul.f32 %v558, %v2759
  %v2784 = vmul.f32 %v559, %v2759
  %v2785 = vmul.f32 %v560, %v2759
  %v2786 = vmul.f32 %v561, %v2759
  %v2787 = vmul.f32 %v562, %v2759
  %v2788 = vmul.f32 %v563, %v2759
  %v2789 = vmul.f32 %v564, %v2759
  %v2790 = vmul.f32 %v565, %v2759
  %v2791 = vmul.f32 %v566, %v2759
  %v2792 = vmul.f32 %v567, %v2759
  %v2794 = vsel %vm87, %v2761, 0
  %v2797 = vsel %vm87, %v2762, 0
  %v2800 = vsel %vm87, %v2621, 0
  %v2803 = vsel %vm87, %v2622, 0
  %v2806 = vsel %vm87, %v2623, 0
  %v2809 = vsel %vm87, %v2624, 0
  %v2812 = vsel %vm87, %v2625, 0
  %v2815 = vsel %vm87, %v2626, 0
  %v2818 = vsel %vm87, %v2627, 0
  %v2821 = vsel %vm87, %v2628, 0
  %2823 = vmatpush.xpose.msra.mxu0 0.0
  %2824 = vmatpush.xpose.msra.mxu0 0.0
  %2825 = vmatpush.xpose.msra.mxu0 0.0
  %2826 = vmatpush.xpose.msra.mxu0 0.0
  %2827 = vmatpush.xpose.msra.mxu0 0.0
  %2828 = vmatpush.xpose.msra.mxu0 0.0
  %2829 = vmatpush.xpose.msra.mxu0 0.0
  %2830 = vmatpush.xpose.msra.mxu0 0.0
  %2831 = vmatpush.xpose.msra.mxu0 %v2821
  %2832 = vmatpush.xpose.msra.mxu0 %v2818
  %2833 = vmatpush.xpose.msra.mxu0 %v2815
  %2834 = vmatpush.xpose.msra.mxu0 %v2812
  %2835 = vmatpush.xpose.msra.mxu0 %v2809
  %2836 = vmatpush.xpose.msra.mxu0 %v2806
  %2837 = vmatpush.xpose.msra.mxu0 %v2803
  %2838 = vmatpush.xpose.msra.mxu0 %v2800
  %2839 = vmatmul.f32.gmra.mxu0 %v2794
  %v2840 = vpop.f32.mrf.mxu0
  %v2841 = vadd.f32 0.0, %v2840
  %2842 = vmatmul.f32.gmra.mxu0 %v2797
  %v2843 = vpop.f32.mrf.mxu0
  %v2844 = vadd.f32 0.0, %v2843
  %2845 = vdwg.mxu0
  %v2847 = vsel %vm87, %v2763, 0
  %v2850 = vsel %vm87, %v2764, 0
  %v2853 = vsel %vm87, %v2629, 0
  %v2856 = vsel %vm87, %v2630, 0
  %v2859 = vsel %vm87, %v2631, 0
  %v2862 = vsel %vm87, %v2632, 0
  %v2865 = vsel %vm87, %v2633, 0
  %v2868 = vsel %vm87, %v2634, 0
  %v2871 = vsel %vm87, %v2635, 0
  %v2874 = vsel %vm87, %v2636, 0
  %2876 = vmatpush.xpose.msra.mxu0 0.0
  %2877 = vmatpush.xpose.msra.mxu0 0.0
  %2878 = vmatpush.xpose.msra.mxu0 0.0
  %2879 = vmatpush.xpose.msra.mxu0 0.0
  %2880 = vmatpush.xpose.msra.mxu0 0.0
  %2881 = vmatpush.xpose.msra.mxu0 0.0
  %2882 = vmatpush.xpose.msra.mxu0 0.0
  %2883 = vmatpush.xpose.msra.mxu0 0.0
  %2884 = vmatpush.xpose.msra.mxu0 %v2874
  %2885 = vmatpush.xpose.msra.mxu0 %v2871
  %2886 = vmatpush.xpose.msra.mxu0 %v2868
  %2887 = vmatpush.xpose.msra.mxu0 %v2865
  %2888 = vmatpush.xpose.msra.mxu0 %v2862
  %2889 = vmatpush.xpose.msra.mxu0 %v2859
  %2890 = vmatpush.xpose.msra.mxu0 %v2856
  %2891 = vmatpush.xpose.msra.mxu0 %v2853
  %2892 = vmatmul.f32.gmra.mxu0 %v2847
  %v2893 = vpop.f32.mrf.mxu0
  %v2894 = vadd.f32 0.0, %v2893
  %2895 = vmatmul.f32.gmra.mxu0 %v2850
  %v2896 = vpop.f32.mrf.mxu0
  %v2897 = vadd.f32 0.0, %v2896
  %2898 = vdwg.mxu0
  %v2900 = vsel %vm87, %v2765, 0
  %v2903 = vsel %vm87, %v2766, 0
  %v2906 = vsel %vm87, %v2637, 0
  %v2909 = vsel %vm87, %v2638, 0
  %v2912 = vsel %vm87, %v2639, 0
  %v2915 = vsel %vm87, %v2640, 0
  %v2918 = vsel %vm87, %v2641, 0
  %v2921 = vsel %vm87, %v2642, 0
  %v2924 = vsel %vm87, %v2643, 0
  %v2927 = vsel %vm87, %v2644, 0
  %2929 = vmatpush.xpose.msra.mxu0 0.0
  %2930 = vmatpush.xpose.msra.mxu0 0.0
  %2931 = vmatpush.xpose.msra.mxu0 0.0
  %2932 = vmatpush.xpose.msra.mxu0 0.0
  %2933 = vmatpush.xpose.msra.mxu0 0.0
  %2934 = vmatpush.xpose.msra.mxu0 0.0
  %2935 = vmatpush.xpose.msra.mxu0 0.0
  %2936 = vmatpush.xpose.msra.mxu0 0.0
  %2937 = vmatpush.xpose.msra.mxu0 %v2927
  %2938 = vmatpush.xpose.msra.mxu0 %v2924
  %2939 = vmatpush.xpose.msra.mxu0 %v2921
  %2940 = vmatpush.xpose.msra.mxu0 %v2918
  %2941 = vmatpush.xpose.msra.mxu0 %v2915
  %2942 = vmatpush.xpose.msra.mxu0 %v2912
  %2943 = vmatpush.xpose.msra.mxu0 %v2909
  %2944 = vmatpush.xpose.msra.mxu0 %v2906
  %2945 = vmatmul.f32.gmra.mxu0 %v2900
  %v2946 = vpop.f32.mrf.mxu0
  %v2947 = vadd.f32 0.0, %v2946
  %2948 = vmatmul.f32.gmra.mxu0 %v2903
  %v2949 = vpop.f32.mrf.mxu0
  %v2950 = vadd.f32 0.0, %v2949
  %2951 = vdwg.mxu0
  %v2953 = vsel %vm87, %v2767, 0
  %v2956 = vsel %vm87, %v2768, 0
  %v2959 = vsel %vm87, %v2645, 0
  %v2962 = vsel %vm87, %v2646, 0
  %v2965 = vsel %vm87, %v2647, 0
  %v2968 = vsel %vm87, %v2648, 0
  %v2971 = vsel %vm87, %v2649, 0
  %v2974 = vsel %vm87, %v2650, 0
  %v2977 = vsel %vm87, %v2651, 0
  %v2980 = vsel %vm87, %v2652, 0
  %2982 = vmatpush.xpose.msra.mxu0 0.0
  %2983 = vmatpush.xpose.msra.mxu0 0.0
  %2984 = vmatpush.xpose.msra.mxu0 0.0
  %2985 = vmatpush.xpose.msra.mxu0 0.0
  %2986 = vmatpush.xpose.msra.mxu0 0.0
  %2987 = vmatpush.xpose.msra.mxu0 0.0
  %2988 = vmatpush.xpose.msra.mxu0 0.0
  %2989 = vmatpush.xpose.msra.mxu0 0.0
  %2990 = vmatpush.xpose.msra.mxu0 %v2980
  %2991 = vmatpush.xpose.msra.mxu0 %v2977
  %2992 = vmatpush.xpose.msra.mxu0 %v2974
  %2993 = vmatpush.xpose.msra.mxu0 %v2971
  %2994 = vmatpush.xpose.msra.mxu0 %v2968
  %2995 = vmatpush.xpose.msra.mxu0 %v2965
  %2996 = vmatpush.xpose.msra.mxu0 %v2962
  %2997 = vmatpush.xpose.msra.mxu0 %v2959
  %2998 = vmatmul.f32.gmra.mxu0 %v2953
  %v2999 = vpop.f32.mrf.mxu0
  %v3000 = vadd.f32 0.0, %v2999
  %3001 = vmatmul.f32.gmra.mxu0 %v2956
  %v3002 = vpop.f32.mrf.mxu0
  %v3003 = vadd.f32 0.0, %v3002
  %3004 = vdwg.mxu0
  %v3006 = vsel %vm87, %v2769, 0
  %v3009 = vsel %vm87, %v2770, 0
  %v3012 = vsel %vm87, %v2653, 0
  %v3015 = vsel %vm87, %v2654, 0
  %v3018 = vsel %vm87, %v2655, 0
  %v3021 = vsel %vm87, %v2656, 0
  %v3024 = vsel %vm87, %v2657, 0
  %v3027 = vsel %vm87, %v2658, 0
  %v3030 = vsel %vm87, %v2659, 0
  %v3033 = vsel %vm87, %v2660, 0
  %3035 = vmatpush.xpose.msra.mxu0 0.0
  %3036 = vmatpush.xpose.msra.mxu0 0.0
  %3037 = vmatpush.xpose.msra.mxu0 0.0
  %3038 = vmatpush.xpose.msra.mxu0 0.0
  %3039 = vmatpush.xpose.msra.mxu0 0.0
  %3040 = vmatpush.xpose.msra.mxu0 0.0
  %3041 = vmatpush.xpose.msra.mxu0 0.0
  %3042 = vmatpush.xpose.msra.mxu0 0.0
  %3043 = vmatpush.xpose.msra.mxu0 %v3033
  %3044 = vmatpush.xpose.msra.mxu0 %v3030
  %3045 = vmatpush.xpose.msra.mxu0 %v3027
  %3046 = vmatpush.xpose.msra.mxu0 %v3024
  %3047 = vmatpush.xpose.msra.mxu0 %v3021
  %3048 = vmatpush.xpose.msra.mxu0 %v3018
  %3049 = vmatpush.xpose.msra.mxu0 %v3015
  %3050 = vmatpush.xpose.msra.mxu0 %v3012
  %3051 = vmatmul.f32.gmra.mxu0 %v3006
  %v3052 = vpop.f32.mrf.mxu0
  %v3053 = vadd.f32 0.0, %v3052
  %3054 = vmatmul.f32.gmra.mxu0 %v3009
  %v3055 = vpop.f32.mrf.mxu0
  %v3056 = vadd.f32 0.0, %v3055
  %3057 = vdwg.mxu0
  %v3059 = vsel %vm87, %v2771, 0
  %v3062 = vsel %vm87, %v2772, 0
  %v3065 = vsel %vm87, %v2661, 0
  %v3068 = vsel %vm87, %v2662, 0
  %v3071 = vsel %vm87, %v2663, 0
  %v3074 = vsel %vm87, %v2664, 0
  %v3077 = vsel %vm87, %v2665, 0
  %v3080 = vsel %vm87, %v2666, 0
  %v3083 = vsel %vm87, %v2667, 0
  %v3086 = vsel %vm87, %v2668, 0
  %3088 = vmatpush.xpose.msra.mxu0 0.0
  %3089 = vmatpush.xpose.msra.mxu0 0.0
  %3090 = vmatpush.xpose.msra.mxu0 0.0
  %3091 = vmatpush.xpose.msra.mxu0 0.0
  %3092 = vmatpush.xpose.msra.mxu0 0.0
  %3093 = vmatpush.xpose.msra.mxu0 0.0
  %3094 = vmatpush.xpose.msra.mxu0 0.0
  %3095 = vmatpush.xpose.msra.mxu0 0.0
  %3096 = vmatpush.xpose.msra.mxu0 %v3086
  %3097 = vmatpush.xpose.msra.mxu0 %v3083
  %3098 = vmatpush.xpose.msra.mxu0 %v3080
  %3099 = vmatpush.xpose.msra.mxu0 %v3077
  %3100 = vmatpush.xpose.msra.mxu0 %v3074
  %3101 = vmatpush.xpose.msra.mxu0 %v3071
  %3102 = vmatpush.xpose.msra.mxu0 %v3068
  %3103 = vmatpush.xpose.msra.mxu0 %v3065
  %3104 = vmatmul.f32.gmra.mxu0 %v3059
  %v3105 = vpop.f32.mrf.mxu0
  %v3106 = vadd.f32 0.0, %v3105
  %3107 = vmatmul.f32.gmra.mxu0 %v3062
  %v3108 = vpop.f32.mrf.mxu0
  %v3109 = vadd.f32 0.0, %v3108
  %3110 = vdwg.mxu0
  %v3112 = vsel %vm87, %v2773, 0
  %v3115 = vsel %vm87, %v2774, 0
  %v3118 = vsel %vm87, %v2669, 0
  %v3121 = vsel %vm87, %v2670, 0
  %v3124 = vsel %vm87, %v2671, 0
  %v3127 = vsel %vm87, %v2672, 0
  %v3130 = vsel %vm87, %v2673, 0
  %v3133 = vsel %vm87, %v2674, 0
  %v3136 = vsel %vm87, %v2675, 0
  %v3139 = vsel %vm87, %v2676, 0
  %3141 = vmatpush.xpose.msra.mxu0 0.0
  %3142 = vmatpush.xpose.msra.mxu0 0.0
  %3143 = vmatpush.xpose.msra.mxu0 0.0
  %3144 = vmatpush.xpose.msra.mxu0 0.0
  %3145 = vmatpush.xpose.msra.mxu0 0.0
  %3146 = vmatpush.xpose.msra.mxu0 0.0
  %3147 = vmatpush.xpose.msra.mxu0 0.0
  %3148 = vmatpush.xpose.msra.mxu0 0.0
  %3149 = vmatpush.xpose.msra.mxu0 %v3139
  %3150 = vmatpush.xpose.msra.mxu0 %v3136
  %3151 = vmatpush.xpose.msra.mxu0 %v3133
  %3152 = vmatpush.xpose.msra.mxu0 %v3130
  %3153 = vmatpush.xpose.msra.mxu0 %v3127
  %3154 = vmatpush.xpose.msra.mxu0 %v3124
  %3155 = vmatpush.xpose.msra.mxu0 %v3121
  %3156 = vmatpush.xpose.msra.mxu0 %v3118
  %3157 = vmatmul.f32.gmra.mxu0 %v3112
  %v3158 = vpop.f32.mrf.mxu0
  %v3159 = vadd.f32 0.0, %v3158
  %3160 = vmatmul.f32.gmra.mxu0 %v3115
  %v3161 = vpop.f32.mrf.mxu0
  %v3162 = vadd.f32 0.0, %v3161
  %3163 = vdwg.mxu0
  %v3165 = vsel %vm87, %v2775, 0
  %v3168 = vsel %vm87, %v2776, 0
  %v3171 = vsel %vm87, %v2677, 0
  %v3174 = vsel %vm87, %v2678, 0
  %v3177 = vsel %vm87, %v2679, 0
  %v3180 = vsel %vm87, %v2680, 0
  %v3183 = vsel %vm87, %v2681, 0
  %v3186 = vsel %vm87, %v2682, 0
  %v3189 = vsel %vm87, %v2683, 0
  %v3192 = vsel %vm87, %v2684, 0
  %3194 = vmatpush.xpose.msra.mxu0 0.0
  %3195 = vmatpush.xpose.msra.mxu0 0.0
  %3196 = vmatpush.xpose.msra.mxu0 0.0
  %3197 = vmatpush.xpose.msra.mxu0 0.0
  %3198 = vmatpush.xpose.msra.mxu0 0.0
  %3199 = vmatpush.xpose.msra.mxu0 0.0
  %3200 = vmatpush.xpose.msra.mxu0 0.0
  %3201 = vmatpush.xpose.msra.mxu0 0.0
  %3202 = vmatpush.xpose.msra.mxu0 %v3192
  %3203 = vmatpush.xpose.msra.mxu0 %v3189
  %3204 = vmatpush.xpose.msra.mxu0 %v3186
  %3205 = vmatpush.xpose.msra.mxu0 %v3183
  %3206 = vmatpush.xpose.msra.mxu0 %v3180
  %3207 = vmatpush.xpose.msra.mxu0 %v3177
  %3208 = vmatpush.xpose.msra.mxu0 %v3174
  %3209 = vmatpush.xpose.msra.mxu0 %v3171
  %3210 = vmatmul.f32.gmra.mxu0 %v3165
  %v3211 = vpop.f32.mrf.mxu0
  %v3212 = vadd.f32 0.0, %v3211
  %3213 = vmatmul.f32.gmra.mxu0 %v3168
  %v3214 = vpop.f32.mrf.mxu0
  %v3215 = vadd.f32 0.0, %v3214
  %3216 = vdwg.mxu0
  %v3218 = vsel %vm87, %v2777, 0
  %v3221 = vsel %vm87, %v2778, 0
  %v3224 = vsel %vm87, %v2685, 0
  %v3227 = vsel %vm87, %v2686, 0
  %v3230 = vsel %vm87, %v2687, 0
  %v3233 = vsel %vm87, %v2688, 0
  %v3236 = vsel %vm87, %v2689, 0
  %v3239 = vsel %vm87, %v2690, 0
  %v3242 = vsel %vm87, %v2691, 0
  %v3245 = vsel %vm87, %v2692, 0
  %3247 = vmatpush.xpose.msra.mxu0 0.0
  %3248 = vmatpush.xpose.msra.mxu0 0.0
  %3249 = vmatpush.xpose.msra.mxu0 0.0
  %3250 = vmatpush.xpose.msra.mxu0 0.0
  %3251 = vmatpush.xpose.msra.mxu0 0.0
  %3252 = vmatpush.xpose.msra.mxu0 0.0
  %3253 = vmatpush.xpose.msra.mxu0 0.0
  %3254 = vmatpush.xpose.msra.mxu0 0.0
  %3255 = vmatpush.xpose.msra.mxu0 %v3245
  %3256 = vmatpush.xpose.msra.mxu0 %v3242
  %3257 = vmatpush.xpose.msra.mxu0 %v3239
  %3258 = vmatpush.xpose.msra.mxu0 %v3236
  %3259 = vmatpush.xpose.msra.mxu0 %v3233
  %3260 = vmatpush.xpose.msra.mxu0 %v3230
  %3261 = vmatpush.xpose.msra.mxu0 %v3227
  %3262 = vmatpush.xpose.msra.mxu0 %v3224
  %3263 = vmatmul.f32.gmra.mxu0 %v3218
  %v3264 = vpop.f32.mrf.mxu0
  %v3265 = vadd.f32 0.0, %v3264
  %3266 = vmatmul.f32.gmra.mxu0 %v3221
  %v3267 = vpop.f32.mrf.mxu0
  %v3268 = vadd.f32 0.0, %v3267
  %3269 = vdwg.mxu0
  %v3271 = vsel %vm87, %v2779, 0
  %v3274 = vsel %vm87, %v2780, 0
  %v3277 = vsel %vm87, %v2693, 0
  %v3280 = vsel %vm87, %v2694, 0
  %v3283 = vsel %vm87, %v2695, 0
  %v3286 = vsel %vm87, %v2696, 0
  %v3289 = vsel %vm87, %v2697, 0
  %v3292 = vsel %vm87, %v2698, 0
  %v3295 = vsel %vm87, %v2699, 0
  %v3298 = vsel %vm87, %v2700, 0
  %3300 = vmatpush.xpose.msra.mxu0 0.0
  %3301 = vmatpush.xpose.msra.mxu0 0.0
  %3302 = vmatpush.xpose.msra.mxu0 0.0
  %3303 = vmatpush.xpose.msra.mxu0 0.0
  %3304 = vmatpush.xpose.msra.mxu0 0.0
  %3305 = vmatpush.xpose.msra.mxu0 0.0
  %3306 = vmatpush.xpose.msra.mxu0 0.0
  %3307 = vmatpush.xpose.msra.mxu0 0.0
  %3308 = vmatpush.xpose.msra.mxu0 %v3298
  %3309 = vmatpush.xpose.msra.mxu0 %v3295
  %3310 = vmatpush.xpose.msra.mxu0 %v3292
  %3311 = vmatpush.xpose.msra.mxu0 %v3289
  %3312 = vmatpush.xpose.msra.mxu0 %v3286
  %3313 = vmatpush.xpose.msra.mxu0 %v3283
  %3314 = vmatpush.xpose.msra.mxu0 %v3280
  %3315 = vmatpush.xpose.msra.mxu0 %v3277
  %3316 = vmatmul.f32.gmra.mxu0 %v3271
  %v3317 = vpop.f32.mrf.mxu0
  %v3318 = vadd.f32 0.0, %v3317
  %3319 = vmatmul.f32.gmra.mxu0 %v3274
  %v3320 = vpop.f32.mrf.mxu0
  %v3321 = vadd.f32 0.0, %v3320
  %3322 = vdwg.mxu0
  %v3324 = vsel %vm87, %v2781, 0
  %v3327 = vsel %vm87, %v2782, 0
  %v3330 = vsel %vm87, %v2701, 0
  %v3333 = vsel %vm87, %v2702, 0
  %v3336 = vsel %vm87, %v2703, 0
  %v3339 = vsel %vm87, %v2704, 0
  %v3342 = vsel %vm87, %v2705, 0
  %v3345 = vsel %vm87, %v2706, 0
  %v3348 = vsel %vm87, %v2707, 0
  %v3351 = vsel %vm87, %v2708, 0
  %3353 = vmatpush.xpose.msra.mxu0 0.0
  %3354 = vmatpush.xpose.msra.mxu0 0.0
  %3355 = vmatpush.xpose.msra.mxu0 0.0
  %3356 = vmatpush.xpose.msra.mxu0 0.0
  %3357 = vmatpush.xpose.msra.mxu0 0.0
  %3358 = vmatpush.xpose.msra.mxu0 0.0
  %3359 = vmatpush.xpose.msra.mxu0 0.0
  %3360 = vmatpush.xpose.msra.mxu0 0.0
  %3361 = vmatpush.xpose.msra.mxu0 %v3351
  %3362 = vmatpush.xpose.msra.mxu0 %v3348
  %3363 = vmatpush.xpose.msra.mxu0 %v3345
  %3364 = vmatpush.xpose.msra.mxu0 %v3342
  %3365 = vmatpush.xpose.msra.mxu0 %v3339
  %3366 = vmatpush.xpose.msra.mxu0 %v3336
  %3367 = vmatpush.xpose.msra.mxu0 %v3333
  %3368 = vmatpush.xpose.msra.mxu0 %v3330
  %3369 = vmatmul.f32.gmra.mxu0 %v3324
  %v3370 = vpop.f32.mrf.mxu0
  %v3371 = vadd.f32 0.0, %v3370
  %3372 = vmatmul.f32.gmra.mxu0 %v3327
  %v3373 = vpop.f32.mrf.mxu0
  %v3374 = vadd.f32 0.0, %v3373
  %3375 = vdwg.mxu0
  %v3377 = vsel %vm87, %v2783, 0
  %v3380 = vsel %vm87, %v2784, 0
  %v3383 = vsel %vm87, %v2709, 0
  %v3386 = vsel %vm87, %v2710, 0
  %v3389 = vsel %vm87, %v2711, 0
  %v3392 = vsel %vm87, %v2712, 0
  %v3395 = vsel %vm87, %v2713, 0
  %v3398 = vsel %vm87, %v2714, 0
  %v3401 = vsel %vm87, %v2715, 0
  %v3404 = vsel %vm87, %v2716, 0
  %3406 = vmatpush.xpose.msra.mxu0 0.0
  %3407 = vmatpush.xpose.msra.mxu0 0.0
  %3408 = vmatpush.xpose.msra.mxu0 0.0
  %3409 = vmatpush.xpose.msra.mxu0 0.0
  %3410 = vmatpush.xpose.msra.mxu0 0.0
  %3411 = vmatpush.xpose.msra.mxu0 0.0
  %3412 = vmatpush.xpose.msra.mxu0 0.0
  %3413 = vmatpush.xpose.msra.mxu0 0.0
  %3414 = vmatpush.xpose.msra.mxu0 %v3404
  %3415 = vmatpush.xpose.msra.mxu0 %v3401
  %3416 = vmatpush.xpose.msra.mxu0 %v3398
  %3417 = vmatpush.xpose.msra.mxu0 %v3395
  %3418 = vmatpush.xpose.msra.mxu0 %v3392
  %3419 = vmatpush.xpose.msra.mxu0 %v3389
  %3420 = vmatpush.xpose.msra.mxu0 %v3386
  %3421 = vmatpush.xpose.msra.mxu0 %v3383
  %3422 = vmatmul.f32.gmra.mxu0 %v3377
  %v3423 = vpop.f32.mrf.mxu0
  %v3424 = vadd.f32 0.0, %v3423
  %3425 = vmatmul.f32.gmra.mxu0 %v3380
  %v3426 = vpop.f32.mrf.mxu0
  %v3427 = vadd.f32 0.0, %v3426
  %3428 = vdwg.mxu0
  %v3430 = vsel %vm87, %v2785, 0
  %v3433 = vsel %vm87, %v2786, 0
  %v3436 = vsel %vm87, %v2717, 0
  %v3439 = vsel %vm87, %v2718, 0
  %v3442 = vsel %vm87, %v2719, 0
  %v3445 = vsel %vm87, %v2720, 0
  %v3448 = vsel %vm87, %v2721, 0
  %v3451 = vsel %vm87, %v2722, 0
  %v3454 = vsel %vm87, %v2723, 0
  %v3457 = vsel %vm87, %v2724, 0
  %3459 = vmatpush.xpose.msra.mxu0 0.0
  %3460 = vmatpush.xpose.msra.mxu0 0.0
  %3461 = vmatpush.xpose.msra.mxu0 0.0
  %3462 = vmatpush.xpose.msra.mxu0 0.0
  %3463 = vmatpush.xpose.msra.mxu0 0.0
  %3464 = vmatpush.xpose.msra.mxu0 0.0
  %3465 = vmatpush.xpose.msra.mxu0 0.0
  %3466 = vmatpush.xpose.msra.mxu0 0.0
  %3467 = vmatpush.xpose.msra.mxu0 %v3457
  %3468 = vmatpush.xpose.msra.mxu0 %v3454
  %3469 = vmatpush.xpose.msra.mxu0 %v3451
  %3470 = vmatpush.xpose.msra.mxu0 %v3448
  %3471 = vmatpush.xpose.msra.mxu0 %v3445
  %3472 = vmatpush.xpose.msra.mxu0 %v3442
  %3473 = vmatpush.xpose.msra.mxu0 %v3439
  %3474 = vmatpush.xpose.msra.mxu0 %v3436
  %3475 = vmatmul.f32.gmra.mxu0 %v3430
  %v3476 = vpop.f32.mrf.mxu0
  %v3477 = vadd.f32 0.0, %v3476
  %3478 = vmatmul.f32.gmra.mxu0 %v3433
  %v3479 = vpop.f32.mrf.mxu0
  %v3480 = vadd.f32 0.0, %v3479
  %3481 = vdwg.mxu0
  %v3483 = vsel %vm87, %v2787, 0
  %v3486 = vsel %vm87, %v2788, 0
  %v3489 = vsel %vm87, %v2725, 0
  %v3492 = vsel %vm87, %v2726, 0
  %v3495 = vsel %vm87, %v2727, 0
  %v3498 = vsel %vm87, %v2728, 0
  %v3501 = vsel %vm87, %v2729, 0
  %v3504 = vsel %vm87, %v2730, 0
  %v3507 = vsel %vm87, %v2731, 0
  %v3510 = vsel %vm87, %v2732, 0
  %3512 = vmatpush.xpose.msra.mxu0 0.0
  %3513 = vmatpush.xpose.msra.mxu0 0.0
  %3514 = vmatpush.xpose.msra.mxu0 0.0
  %3515 = vmatpush.xpose.msra.mxu0 0.0
  %3516 = vmatpush.xpose.msra.mxu0 0.0
  %3517 = vmatpush.xpose.msra.mxu0 0.0
  %3518 = vmatpush.xpose.msra.mxu0 0.0
  %3519 = vmatpush.xpose.msra.mxu0 0.0
  %3520 = vmatpush.xpose.msra.mxu0 %v3510
  %3521 = vmatpush.xpose.msra.mxu0 %v3507
  %3522 = vmatpush.xpose.msra.mxu0 %v3504
  %3523 = vmatpush.xpose.msra.mxu0 %v3501
  %3524 = vmatpush.xpose.msra.mxu0 %v3498
  %3525 = vmatpush.xpose.msra.mxu0 %v3495
  %3526 = vmatpush.xpose.msra.mxu0 %v3492
  %3527 = vmatpush.xpose.msra.mxu0 %v3489
  %3528 = vmatmul.f32.gmra.mxu0 %v3483
  %v3529 = vpop.f32.mrf.mxu0
  %v3530 = vadd.f32 0.0, %v3529
  %3531 = vmatmul.f32.gmra.mxu0 %v3486
  %v3532 = vpop.f32.mrf.mxu0
  %v3533 = vadd.f32 0.0, %v3532
  %3534 = vdwg.mxu0
  %v3536 = vsel %vm87, %v2789, 0
  %v3539 = vsel %vm87, %v2790, 0
  %v3542 = vsel %vm87, %v2733, 0
  %v3545 = vsel %vm87, %v2734, 0
  %v3548 = vsel %vm87, %v2735, 0
  %v3551 = vsel %vm87, %v2736, 0
  %v3554 = vsel %vm87, %v2737, 0
  %v3557 = vsel %vm87, %v2738, 0
  %v3560 = vsel %vm87, %v2739, 0
  %v3563 = vsel %vm87, %v2740, 0
  %3565 = vmatpush.xpose.msra.mxu0 0.0
  %3566 = vmatpush.xpose.msra.mxu0 0.0
  %3567 = vmatpush.xpose.msra.mxu0 0.0
  %3568 = vmatpush.xpose.msra.mxu0 0.0
  %3569 = vmatpush.xpose.msra.mxu0 0.0
  %3570 = vmatpush.xpose.msra.mxu0 0.0
  %3571 = vmatpush.xpose.msra.mxu0 0.0
  %3572 = vmatpush.xpose.msra.mxu0 0.0
  %3573 = vmatpush.xpose.msra.mxu0 %v3563
  %3574 = vmatpush.xpose.msra.mxu0 %v3560
  %3575 = vmatpush.xpose.msra.mxu0 %v3557
  %3576 = vmatpush.xpose.msra.mxu0 %v3554
  %3577 = vmatpush.xpose.msra.mxu0 %v3551
  %3578 = vmatpush.xpose.msra.mxu0 %v3548
  %3579 = vmatpush.xpose.msra.mxu0 %v3545
  %3580 = vmatpush.xpose.msra.mxu0 %v3542
  %3581 = vmatmul.f32.gmra.mxu0 %v3536
  %v3582 = vpop.f32.mrf.mxu0
  %v3583 = vadd.f32 0.0, %v3582
  %3584 = vmatmul.f32.gmra.mxu0 %v3539
  %v3585 = vpop.f32.mrf.mxu0
  %v3586 = vadd.f32 0.0, %v3585
  %3587 = vdwg.mxu0
  %v3589 = vsel %vm87, %v2791, 0
  %v3592 = vsel %vm87, %v2792, 0
  %v3595 = vsel %vm87, %v2741, 0
  %v3598 = vsel %vm87, %v2742, 0
  %v3601 = vsel %vm87, %v2743, 0
  %v3604 = vsel %vm87, %v2744, 0
  %v3607 = vsel %vm87, %v2745, 0
  %v3610 = vsel %vm87, %v2746, 0
  %v3613 = vsel %vm87, %v2747, 0
  %v3616 = vsel %vm87, %v2748, 0
  %3618 = vmatpush.xpose.msra.mxu0 0.0
  %3619 = vmatpush.xpose.msra.mxu0 0.0
  %3620 = vmatpush.xpose.msra.mxu0 0.0
  %3621 = vmatpush.xpose.msra.mxu0 0.0
  %3622 = vmatpush.xpose.msra.mxu0 0.0
  %3623 = vmatpush.xpose.msra.mxu0 0.0
  %3624 = vmatpush.xpose.msra.mxu0 0.0
  %3625 = vmatpush.xpose.msra.mxu0 0.0
  %3626 = vmatpush.xpose.msra.mxu0 %v3616
  %3627 = vmatpush.xpose.msra.mxu0 %v3613
  %3628 = vmatpush.xpose.msra.mxu0 %v3610
  %3629 = vmatpush.xpose.msra.mxu0 %v3607
  %3630 = vmatpush.xpose.msra.mxu0 %v3604
  %3631 = vmatpush.xpose.msra.mxu0 %v3601
  %3632 = vmatpush.xpose.msra.mxu0 %v3598
  %3633 = vmatpush.xpose.msra.mxu0 %v3595
  %3634 = vmatmul.f32.gmra.mxu0 %v3589
  %v3635 = vpop.f32.mrf.mxu0
  %v3636 = vadd.f32 0.0, %v3635
  %3637 = vmatmul.f32.gmra.mxu0 %v3592
  %v3638 = vpop.f32.mrf.mxu0
  %v3639 = vadd.f32 0.0, %v3638
  %3640 = vdwg.mxu0
  %v3641 = vld [vmem:[%s2] sm:$0xff]
  %v3642 = vld [vmem:[%s2 + $0x8] sm:$0xff]
  %v3643 = vld [vmem:[%s2 + $0x10] sm:$0xff]
  %v3644 = vld [vmem:[%s2 + $0x18] sm:$0xff]
  %v3645 = vadd.f32 %v2841, %v3641
  %v3646 = vadd.f32 %v2844, %v3642
  %v3647 = vadd.f32 %v2894, %v3641
  %v3648 = vadd.f32 %v2897, %v3642
  %v3649 = vadd.f32 %v2947, %v3641
  %v3650 = vadd.f32 %v2950, %v3642
  %v3651 = vadd.f32 %v3000, %v3641
  %v3652 = vadd.f32 %v3003, %v3642
  %v3653 = vadd.f32 %v3053, %v3641
  %v3654 = vadd.f32 %v3056, %v3642
  %v3655 = vadd.f32 %v3106, %v3641
  %v3656 = vadd.f32 %v3109, %v3642
  %v3657 = vadd.f32 %v3159, %v3641
  %v3658 = vadd.f32 %v3162, %v3642
  %v3659 = vadd.f32 %v3212, %v3641
  %v3660 = vadd.f32 %v3215, %v3642
  %v3661 = vadd.f32 %v3265, %v3643
  %v3662 = vadd.f32 %v3268, %v3644
  %v3663 = vadd.f32 %v3318, %v3643
  %v3664 = vadd.f32 %v3321, %v3644
  %v3665 = vadd.f32 %v3371, %v3643
  %v3666 = vadd.f32 %v3374, %v3644
  %v3667 = vadd.f32 %v3424, %v3643
  %v3668 = vadd.f32 %v3427, %v3644
  %v3669 = vadd.f32 %v3477, %v3643
  %v3670 = vadd.f32 %v3480, %v3644
  %v3671 = vadd.f32 %v3530, %v3643
  %v3672 = vadd.f32 %v3533, %v3644
  %v3673 = vadd.f32 %v3583, %v3643
  %v3674 = vadd.f32 %v3586, %v3644
  %v3675 = vadd.f32 %v3636, %v3643
  %v3676 = vadd.f32 %v3639, %v3644
  %vm3677 = vcmask 523264
  %v3678 = vsel %vm3677, %v3645, -inf
  %3679 = vmax.xlane.f32.xlu0 %v3678
  %v3680 = vpop.xlane.xlu0 %3679
  %v3681 = vsel %vm3677, %v3646, -inf
  %3682 = vmax.xlane.f32.xlu0 %v3681
  %v3683 = vpop.xlane.xlu0 %3682
  %v3684 = vsel %vm3677, %v3647, -inf
  %3685 = vmax.xlane.f32.xlu0 %v3684
  %v3686 = vpop.xlane.xlu0 %3685
  %v3687 = vsel %vm3677, %v3648, -inf
  %3688 = vmax.xlane.f32.xlu0 %v3687
  %v3689 = vpop.xlane.xlu0 %3688
  %v3690 = vsel %vm3677, %v3649, -inf
  %3691 = vmax.xlane.f32.xlu0 %v3690
  %v3692 = vpop.xlane.xlu0 %3691
  %v3693 = vsel %vm3677, %v3650, -inf
  %3694 = vmax.xlane.f32.xlu0 %v3693
  %v3695 = vpop.xlane.xlu0 %3694
  %v3696 = vsel %vm3677, %v3651, -inf
  %3697 = vmax.xlane.f32.xlu0 %v3696
  %v3698 = vpop.xlane.xlu0 %3697
  %v3699 = vsel %vm3677, %v3652, -inf
  %3700 = vmax.xlane.f32.xlu0 %v3699
  %v3701 = vpop.xlane.xlu0 %3700
  %v3702 = vsel %vm3677, %v3653, -inf
  %3703 = vmax.xlane.f32.xlu0 %v3702
  %v3704 = vpop.xlane.xlu0 %3703
  %v3705 = vsel %vm3677, %v3654, -inf
  %3706 = vmax.xlane.f32.xlu0 %v3705
  %v3707 = vpop.xlane.xlu0 %3706
  %v3708 = vsel %vm3677, %v3655, -inf
  %3709 = vmax.xlane.f32.xlu0 %v3708
  %v3710 = vpop.xlane.xlu0 %3709
  %v3711 = vsel %vm3677, %v3656, -inf
  %3712 = vmax.xlane.f32.xlu0 %v3711
  %v3713 = vpop.xlane.xlu0 %3712
  %v3714 = vsel %vm3677, %v3657, -inf
  %3715 = vmax.xlane.f32.xlu0 %v3714
  %v3716 = vpop.xlane.xlu0 %3715
  %v3717 = vsel %vm3677, %v3658, -inf
  %3718 = vmax.xlane.f32.xlu0 %v3717
  %v3719 = vpop.xlane.xlu0 %3718
  %v3720 = vsel %vm3677, %v3659, -inf
  %3721 = vmax.xlane.f32.xlu0 %v3720
  %v3722 = vpop.xlane.xlu0 %3721
  %v3723 = vsel %vm3677, %v3660, -inf
  %3724 = vmax.xlane.f32.xlu0 %v3723
  %v3725 = vpop.xlane.xlu0 %3724
  %v3726 = vsel %vm3677, %v3661, -inf
  %3727 = vmax.xlane.f32.xlu0 %v3726
  %v3728 = vpop.xlane.xlu0 %3727
  %v3729 = vsel %vm3677, %v3662, -inf
  %3730 = vmax.xlane.f32.xlu0 %v3729
  %v3731 = vpop.xlane.xlu0 %3730
  %v3732 = vsel %vm3677, %v3663, -inf
  %3733 = vmax.xlane.f32.xlu0 %v3732
  %v3734 = vpop.xlane.xlu0 %3733
  %v3735 = vsel %vm3677, %v3664, -inf
  %3736 = vmax.xlane.f32.xlu0 %v3735
  %v3737 = vpop.xlane.xlu0 %3736
  %v3738 = vsel %vm3677, %v3665, -inf
  %3739 = vmax.xlane.f32.xlu0 %v3738
  %v3740 = vpop.xlane.xlu0 %3739
  %v3741 = vsel %vm3677, %v3666, -inf
  %3742 = vmax.xlane.f32.xlu0 %v3741
  %v3743 = vpop.xlane.xlu0 %3742
  %v3744 = vsel %vm3677, %v3667, -inf
  %3745 = vmax.xlane.f32.xlu0 %v3744
  %v3746 = vpop.xlane.xlu0 %3745
  %v3747 = vsel %vm3677, %v3668, -inf
  %3748 = vmax.xlane.f32.xlu0 %v3747
  %v3749 = vpop.xlane.xlu0 %3748
  %v3750 = vsel %vm3677, %v3669, -inf
  %3751 = vmax.xlane.f32.xlu0 %v3750
  %v3752 = vpop.xlane.xlu0 %3751
  %v3753 = vsel %vm3677, %v3670, -inf
  %3754 = vmax.xlane.f32.xlu0 %v3753
  %v3755 = vpop.xlane.xlu0 %3754
  %v3756 = vsel %vm3677, %v3671, -inf
  %3757 = vmax.xlane.f32.xlu0 %v3756
  %v3758 = vpop.xlane.xlu0 %3757
  %v3759 = vsel %vm3677, %v3672, -inf
  %3760 = vmax.xlane.f32.xlu0 %v3759
  %v3761 = vpop.xlane.xlu0 %3760
  %v3762 = vsel %vm3677, %v3673, -inf
  %3763 = vmax.xlane.f32.xlu0 %v3762
  %v3764 = vpop.xlane.xlu0 %3763
  %v3765 = vsel %vm3677, %v3674, -inf
  %3766 = vmax.xlane.f32.xlu0 %v3765
  %v3767 = vpop.xlane.xlu0 %3766
  %v3768 = vsel %vm3677, %v3675, -inf
  %3769 = vmax.xlane.f32.xlu0 %v3768
  %v3770 = vpop.xlane.xlu0 %3769
  %v3771 = vsel %vm3677, %v3676, -inf
  %3772 = vmax.xlane.f32.xlu0 %v3771
  %v3773 = vpop.xlane.xlu0 %3772
  %v3774 = vsub.f32 %v3645, %v3680
  %v3775 = vsub.f32 %v3646, %v3683
  %v3776 = vsub.f32 %v3647, %v3686
  %v3777 = vsub.f32 %v3648, %v3689
  %v3778 = vsub.f32 %v3649, %v3692
  %v3779 = vsub.f32 %v3650, %v3695
  %v3780 = vsub.f32 %v3651, %v3698
  %v3781 = vsub.f32 %v3652, %v3701
  %v3782 = vsub.f32 %v3653, %v3704
  %v3783 = vsub.f32 %v3654, %v3707
  %v3784 = vsub.f32 %v3655, %v3710
  %v3785 = vsub.f32 %v3656, %v3713
  %v3786 = vsub.f32 %v3657, %v3716
  %v3787 = vsub.f32 %v3658, %v3719
  %v3788 = vsub.f32 %v3659, %v3722
  %v3789 = vsub.f32 %v3660, %v3725
  %v3790 = vsub.f32 %v3661, %v3728
  %v3791 = vsub.f32 %v3662, %v3731
  %v3792 = vsub.f32 %v3663, %v3734
  %v3793 = vsub.f32 %v3664, %v3737
  %v3794 = vsub.f32 %v3665, %v3740
  %v3795 = vsub.f32 %v3666, %v3743
  %v3796 = vsub.f32 %v3667, %v3746
  %v3797 = vsub.f32 %v3668, %v3749
  %v3798 = vsub.f32 %v3669, %v3752
  %v3799 = vsub.f32 %v3670, %v3755
  %v3800 = vsub.f32 %v3671, %v3758
  %v3801 = vsub.f32 %v3672, %v3761
  %v3802 = vsub.f32 %v3673, %v3764
  %v3803 = vsub.f32 %v3674, %v3767
  %v3804 = vsub.f32 %v3675, %v3770
  %v3805 = vsub.f32 %v3676, %v3773
  %v3806 = vmul.f32 %v3774, 1.442695
  %v3807 = vpow.pop %v3806
  %v3808 = vmul.f32 %v3775, 1.442695
  %v3809 = vpow.pop %v3808
  %v3810 = vmul.f32 %v3776, 1.442695
  %v3811 = vpow.pop %v3810
  %v3812 = vmul.f32 %v3777, 1.442695
  %v3813 = vpow.pop %v3812
  %v3814 = vmul.f32 %v3778, 1.442695
  %v3815 = vpow.pop %v3814
  %v3816 = vmul.f32 %v3779, 1.442695
  %v3817 = vpow.pop %v3816
  %v3818 = vmul.f32 %v3780, 1.442695
  %v3819 = vpow.pop %v3818
  %v3820 = vmul.f32 %v3781, 1.442695
  %v3821 = vpow.pop %v3820
  %v3822 = vmul.f32 %v3782, 1.442695
  %v3823 = vpow.pop %v3822
  %v3824 = vmul.f32 %v3783, 1.442695
  %v3825 = vpow.pop %v3824
  %v3826 = vmul.f32 %v3784, 1.442695
  %v3827 = vpow.pop %v3826
  %v3828 = vmul.f32 %v3785, 1.442695
  %v3829 = vpow.pop %v3828
  %v3830 = vmul.f32 %v3786, 1.442695
  %v3831 = vpow.pop %v3830
  %v3832 = vmul.f32 %v3787, 1.442695
  %v3833 = vpow.pop %v3832
  %v3834 = vmul.f32 %v3788, 1.442695
  %v3835 = vpow.pop %v3834
  %v3836 = vmul.f32 %v3789, 1.442695
  %v3837 = vpow.pop %v3836
  %v3838 = vmul.f32 %v3790, 1.442695
  %v3839 = vpow.pop %v3838
  %v3840 = vmul.f32 %v3791, 1.442695
  %v3841 = vpow.pop %v3840
  %v3842 = vmul.f32 %v3792, 1.442695
  %v3843 = vpow.pop %v3842
  %v3844 = vmul.f32 %v3793, 1.442695
  %v3845 = vpow.pop %v3844
  %v3846 = vmul.f32 %v3794, 1.442695
  %v3847 = vpow.pop %v3846
  %v3848 = vmul.f32 %v3795, 1.442695
  %v3849 = vpow.pop %v3848
  %v3850 = vmul.f32 %v3796, 1.442695
  %v3851 = vpow.pop %v3850
  %v3852 = vmul.f32 %v3797, 1.442695
  %v3853 = vpow.pop %v3852
  %v3854 = vmul.f32 %v3798, 1.442695
  %v3855 = vpow.pop %v3854
  %v3856 = vmul.f32 %v3799, 1.442695
  %v3857 = vpow.pop %v3856
  %v3858 = vmul.f32 %v3800, 1.442695
  %v3859 = vpow.pop %v3858
  %v3860 = vmul.f32 %v3801, 1.442695
  %v3861 = vpow.pop %v3860
  %v3862 = vmul.f32 %v3802, 1.442695
  %v3863 = vpow.pop %v3862
  %v3864 = vmul.f32 %v3803, 1.442695
  %v3865 = vpow.pop %v3864
  %v3866 = vmul.f32 %v3804, 1.442695
  %v3867 = vpow.pop %v3866
  %v3868 = vmul.f32 %v3805, 1.442695
  %v3869 = vpow.pop %v3868
  %v3870 = vsel %vm3677, %v3807, 0.0
  %3871 = vadd.xlane.f32.xlu0 %v3870
  %v3872 = vpop.xlane.xlu0 %3871
  %v3873 = vsel %vm3677, %v3809, 0.0
  %3874 = vadd.xlane.f32.xlu0 %v3873
  %v3875 = vpop.xlane.xlu0 %3874
  %v3876 = vsel %vm3677, %v3811, 0.0
  %3877 = vadd.xlane.f32.xlu0 %v3876
  %v3878 = vpop.xlane.xlu0 %3877
  %v3879 = vsel %vm3677, %v3813, 0.0
  %3880 = vadd.xlane.f32.xlu0 %v3879
  %v3881 = vpop.xlane.xlu0 %3880
  %v3882 = vsel %vm3677, %v3815, 0.0
  %3883 = vadd.xlane.f32.xlu0 %v3882
  %v3884 = vpop.xlane.xlu0 %3883
  %v3885 = vsel %vm3677, %v3817, 0.0
  %3886 = vadd.xlane.f32.xlu0 %v3885
  %v3887 = vpop.xlane.xlu0 %3886
  %v3888 = vsel %vm3677, %v3819, 0.0
  %3889 = vadd.xlane.f32.xlu0 %v3888
  %v3890 = vpop.xlane.xlu0 %3889
  %v3891 = vsel %vm3677, %v3821, 0.0
  %3892 = vadd.xlane.f32.xlu0 %v3891
  %v3893 = vpop.xlane.xlu0 %3892
  %v3894 = vsel %vm3677, %v3823, 0.0
  %3895 = vadd.xlane.f32.xlu0 %v3894
  %v3896 = vpop.xlane.xlu0 %3895
  %v3897 = vsel %vm3677, %v3825, 0.0
  %3898 = vadd.xlane.f32.xlu0 %v3897
  %v3899 = vpop.xlane.xlu0 %3898
  %v3900 = vsel %vm3677, %v3827, 0.0
  %3901 = vadd.xlane.f32.xlu0 %v3900
  %v3902 = vpop.xlane.xlu0 %3901
  %v3903 = vsel %vm3677, %v3829, 0.0
  %3904 = vadd.xlane.f32.xlu0 %v3903
  %v3905 = vpop.xlane.xlu0 %3904
  %v3906 = vsel %vm3677, %v3831, 0.0
  %3907 = vadd.xlane.f32.xlu0 %v3906
  %v3908 = vpop.xlane.xlu0 %3907
  %v3909 = vsel %vm3677, %v3833, 0.0
  %3910 = vadd.xlane.f32.xlu0 %v3909
  %v3911 = vpop.xlane.xlu0 %3910
  %v3912 = vsel %vm3677, %v3835, 0.0
  %3913 = vadd.xlane.f32.xlu0 %v3912
  %v3914 = vpop.xlane.xlu0 %3913
  %v3915 = vsel %vm3677, %v3837, 0.0
  %3916 = vadd.xlane.f32.xlu0 %v3915
  %v3917 = vpop.xlane.xlu0 %3916
  %v3918 = vsel %vm3677, %v3839, 0.0
  %3919 = vadd.xlane.f32.xlu0 %v3918
  %v3920 = vpop.xlane.xlu0 %3919
  %v3921 = vsel %vm3677, %v3841, 0.0
  %3922 = vadd.xlane.f32.xlu0 %v3921
  %v3923 = vpop.xlane.xlu0 %3922
  %v3924 = vsel %vm3677, %v3843, 0.0
  %3925 = vadd.xlane.f32.xlu0 %v3924
  %v3926 = vpop.xlane.xlu0 %3925
  %v3927 = vsel %vm3677, %v3845, 0.0
  %3928 = vadd.xlane.f32.xlu0 %v3927
  %v3929 = vpop.xlane.xlu0 %3928
  %v3930 = vsel %vm3677, %v3847, 0.0
  %3931 = vadd.xlane.f32.xlu0 %v3930
  %v3932 = vpop.xlane.xlu0 %3931
  %v3933 = vsel %vm3677, %v3849, 0.0
  %3934 = vadd.xlane.f32.xlu0 %v3933
  %v3935 = vpop.xlane.xlu0 %3934
  %v3936 = vsel %vm3677, %v3851, 0.0
  %3937 = vadd.xlane.f32.xlu0 %v3936
  %v3938 = vpop.xlane.xlu0 %3937
  %v3939 = vsel %vm3677, %v3853, 0.0
  %3940 = vadd.xlane.f32.xlu0 %v3939
  %v3941 = vpop.xlane.xlu0 %3940
  %v3942 = vsel %vm3677, %v3855, 0.0
  %3943 = vadd.xlane.f32.xlu0 %v3942
  %v3944 = vpop.xlane.xlu0 %3943
  %v3945 = vsel %vm3677, %v3857, 0.0
  %3946 = vadd.xlane.f32.xlu0 %v3945
  %v3947 = vpop.xlane.xlu0 %3946
  %v3948 = vsel %vm3677, %v3859, 0.0
  %3949 = vadd.xlane.f32.xlu0 %v3948
  %v3950 = vpop.xlane.xlu0 %3949
  %v3951 = vsel %vm3677, %v3861, 0.0
  %3952 = vadd.xlane.f32.xlu0 %v3951
  %v3953 = vpop.xlane.xlu0 %3952
  %v3954 = vsel %vm3677, %v3863, 0.0
  %3955 = vadd.xlane.f32.xlu0 %v3954
  %v3956 = vpop.xlane.xlu0 %3955
  %v3957 = vsel %vm3677, %v3865, 0.0
  %3958 = vadd.xlane.f32.xlu0 %v3957
  %v3959 = vpop.xlane.xlu0 %3958
  %v3960 = vsel %vm3677, %v3867, 0.0
  %3961 = vadd.xlane.f32.xlu0 %v3960
  %v3962 = vpop.xlane.xlu0 %3961
  %v3963 = vsel %vm3677, %v3869, 0.0
  %3964 = vadd.xlane.f32.xlu0 %v3963
  %v3965 = vpop.xlane.xlu0 %3964
  %v3966 = vrcp.pop %v3872
  %v3967 = vmul.f32 %v3872, %v3966
  %v3968 = vsub.f32 1.0, %v3967
  %v3969 = vmul.f32 %v3966, %v3968
  %v3970 = vadd.f32 %v3966, %v3969
  %vm3971 = vweird.f32 %v3872
  %vm3972 = vweird.f32 %v3966
  %vm3973 = vmor %vm3971, %vm3972
  %v3974 = vsel %vm3973, %v3966, %v3970
  %v3975 = vand.u32 2147483647, %v3872
  %vm3976 = vcmp.eq.f32.partialorder %v3975, 8.507059e+37
  %v3977 = vand.u32 %v3872, 2147483648
  %v3978 = vor.u32 1.1754944e-38, %v3977
  %v3979 = vsel %vm3976, %v3978, %v3974
  %v3980 = vmul.f32 %v3807, %v3979
  %v3981 = vrcp.pop %v3875
  %v3982 = vmul.f32 %v3875, %v3981
  %v3983 = vsub.f32 1.0, %v3982
  %v3984 = vmul.f32 %v3981, %v3983
  %v3985 = vadd.f32 %v3981, %v3984
  %vm3986 = vweird.f32 %v3875
  %vm3987 = vweird.f32 %v3981
  %vm3988 = vmor %vm3986, %vm3987
  %v3989 = vsel %vm3988, %v3981, %v3985
  %v3990 = vand.u32 2147483647, %v3875
  %vm3991 = vcmp.eq.f32.partialorder %v3990, 8.507059e+37
  %v3992 = vand.u32 %v3875, 2147483648
  %v3993 = vor.u32 1.1754944e-38, %v3992
  %v3994 = vsel %vm3991, %v3993, %v3989
  %v3995 = vmul.f32 %v3809, %v3994
  %v3996 = vrcp.pop %v3878
  %v3997 = vmul.f32 %v3878, %v3996
  %v3998 = vsub.f32 1.0, %v3997
  %v3999 = vmul.f32 %v3996, %v3998
  %v4000 = vadd.f32 %v3996, %v3999
  %vm4001 = vweird.f32 %v3878
  %vm4002 = vweird.f32 %v3996
  %vm4003 = vmor %vm4001, %vm4002
  %v4004 = vsel %vm4003, %v3996, %v4000
  %v4005 = vand.u32 2147483647, %v3878
  %vm4006 = vcmp.eq.f32.partialorder %v4005, 8.507059e+37
  %v4007 = vand.u32 %v3878, 2147483648
  %v4008 = vor.u32 1.1754944e-38, %v4007
  %v4009 = vsel %vm4006, %v4008, %v4004
  %v4010 = vmul.f32 %v3811, %v4009
  %v4011 = vrcp.pop %v3881
  %v4012 = vmul.f32 %v3881, %v4011
  %v4013 = vsub.f32 1.0, %v4012
  %v4014 = vmul.f32 %v4011, %v4013
  %v4015 = vadd.f32 %v4011, %v4014
  %vm4016 = vweird.f32 %v3881
  %vm4017 = vweird.f32 %v4011
  %vm4018 = vmor %vm4016, %vm4017
  %v4019 = vsel %vm4018, %v4011, %v4015
  %v4020 = vand.u32 2147483647, %v3881
  %vm4021 = vcmp.eq.f32.partialorder %v4020, 8.507059e+37
  %v4022 = vand.u32 %v3881, 2147483648
  %v4023 = vor.u32 1.1754944e-38, %v4022
  %v4024 = vsel %vm4021, %v4023, %v4019
  %v4025 = vmul.f32 %v3813, %v4024
  %v4026 = vrcp.pop %v3884
  %v4027 = vmul.f32 %v3884, %v4026
  %v4028 = vsub.f32 1.0, %v4027
  %v4029 = vmul.f32 %v4026, %v4028
  %v4030 = vadd.f32 %v4026, %v4029
  %vm4031 = vweird.f32 %v3884
  %vm4032 = vweird.f32 %v4026
  %vm4033 = vmor %vm4031, %vm4032
  %v4034 = vsel %vm4033, %v4026, %v4030
  %v4035 = vand.u32 2147483647, %v3884
  %vm4036 = vcmp.eq.f32.partialorder %v4035, 8.507059e+37
  %v4037 = vand.u32 %v3884, 2147483648
  %v4038 = vor.u32 1.1754944e-38, %v4037
  %v4039 = vsel %vm4036, %v4038, %v4034
  %v4040 = vmul.f32 %v3815, %v4039
  %v4041 = vrcp.pop %v3887
  %v4042 = vmul.f32 %v3887, %v4041
  %v4043 = vsub.f32 1.0, %v4042
  %v4044 = vmul.f32 %v4041, %v4043
  %v4045 = vadd.f32 %v4041, %v4044
  %vm4046 = vweird.f32 %v3887
  %vm4047 = vweird.f32 %v4041
  %vm4048 = vmor %vm4046, %vm4047
  %v4049 = vsel %vm4048, %v4041, %v4045
  %v4050 = vand.u32 2147483647, %v3887
  %vm4051 = vcmp.eq.f32.partialorder %v4050, 8.507059e+37
  %v4052 = vand.u32 %v3887, 2147483648
  %v4053 = vor.u32 1.1754944e-38, %v4052
  %v4054 = vsel %vm4051, %v4053, %v4049
  %v4055 = vmul.f32 %v3817, %v4054
  %v4056 = vrcp.pop %v3890
  %v4057 = vmul.f32 %v3890, %v4056
  %v4058 = vsub.f32 1.0, %v4057
  %v4059 = vmul.f32 %v4056, %v4058
  %v4060 = vadd.f32 %v4056, %v4059
  %vm4061 = vweird.f32 %v3890
  %vm4062 = vweird.f32 %v4056
  %vm4063 = vmor %vm4061, %vm4062
  %v4064 = vsel %vm4063, %v4056, %v4060
  %v4065 = vand.u32 2147483647, %v3890
  %vm4066 = vcmp.eq.f32.partialorder %v4065, 8.507059e+37
  %v4067 = vand.u32 %v3890, 2147483648
  %v4068 = vor.u32 1.1754944e-38, %v4067
  %v4069 = vsel %vm4066, %v4068, %v4064
  %v4070 = vmul.f32 %v3819, %v4069
  %v4071 = vrcp.pop %v3893
  %v4072 = vmul.f32 %v3893, %v4071
  %v4073 = vsub.f32 1.0, %v4072
  %v4074 = vmul.f32 %v4071, %v4073
  %v4075 = vadd.f32 %v4071, %v4074
  %vm4076 = vweird.f32 %v3893
  %vm4077 = vweird.f32 %v4071
  %vm4078 = vmor %vm4076, %vm4077
  %v4079 = vsel %vm4078, %v4071, %v4075
  %v4080 = vand.u32 2147483647, %v3893
  %vm4081 = vcmp.eq.f32.partialorder %v4080, 8.507059e+37
  %v4082 = vand.u32 %v3893, 2147483648
  %v4083 = vor.u32 1.1754944e-38, %v4082
  %v4084 = vsel %vm4081, %v4083, %v4079
  %v4085 = vmul.f32 %v3821, %v4084
  %v4086 = vrcp.pop %v3896
  %v4087 = vmul.f32 %v3896, %v4086
  %v4088 = vsub.f32 1.0, %v4087
  %v4089 = vmul.f32 %v4086, %v4088
  %v4090 = vadd.f32 %v4086, %v4089
  %vm4091 = vweird.f32 %v3896
  %vm4092 = vweird.f32 %v4086
  %vm4093 = vmor %vm4091, %vm4092
  %v4094 = vsel %vm4093, %v4086, %v4090
  %v4095 = vand.u32 2147483647, %v3896
  %vm4096 = vcmp.eq.f32.partialorder %v4095, 8.507059e+37
  %v4097 = vand.u32 %v3896, 2147483648
  %v4098 = vor.u32 1.1754944e-38, %v4097
  %v4099 = vsel %vm4096, %v4098, %v4094
  %v4100 = vmul.f32 %v3823, %v4099
  %v4101 = vrcp.pop %v3899
  %v4102 = vmul.f32 %v3899, %v4101
  %v4103 = vsub.f32 1.0, %v4102
  %v4104 = vmul.f32 %v4101, %v4103
  %v4105 = vadd.f32 %v4101, %v4104
  %vm4106 = vweird.f32 %v3899
  %vm4107 = vweird.f32 %v4101
  %vm4108 = vmor %vm4106, %vm4107
  %v4109 = vsel %vm4108, %v4101, %v4105
  %v4110 = vand.u32 2147483647, %v3899
  %vm4111 = vcmp.eq.f32.partialorder %v4110, 8.507059e+37
  %v4112 = vand.u32 %v3899, 2147483648
  %v4113 = vor.u32 1.1754944e-38, %v4112
  %v4114 = vsel %vm4111, %v4113, %v4109
  %v4115 = vmul.f32 %v3825, %v4114
  %v4116 = vrcp.pop %v3902
  %v4117 = vmul.f32 %v3902, %v4116
  %v4118 = vsub.f32 1.0, %v4117
  %v4119 = vmul.f32 %v4116, %v4118
  %v4120 = vadd.f32 %v4116, %v4119
  %vm4121 = vweird.f32 %v3902
  %vm4122 = vweird.f32 %v4116
  %vm4123 = vmor %vm4121, %vm4122
  %v4124 = vsel %vm4123, %v4116, %v4120
  %v4125 = vand.u32 2147483647, %v3902
  %vm4126 = vcmp.eq.f32.partialorder %v4125, 8.507059e+37
  %v4127 = vand.u32 %v3902, 2147483648
  %v4128 = vor.u32 1.1754944e-38, %v4127
  %v4129 = vsel %vm4126, %v4128, %v4124
  %v4130 = vmul.f32 %v3827, %v4129
  %v4131 = vrcp.pop %v3905
  %v4132 = vmul.f32 %v3905, %v4131
  %v4133 = vsub.f32 1.0, %v4132
  %v4134 = vmul.f32 %v4131, %v4133
  %v4135 = vadd.f32 %v4131, %v4134
  %vm4136 = vweird.f32 %v3905
  %vm4137 = vweird.f32 %v4131
  %vm4138 = vmor %vm4136, %vm4137
  %v4139 = vsel %vm4138, %v4131, %v4135
  %v4140 = vand.u32 2147483647, %v3905
  %vm4141 = vcmp.eq.f32.partialorder %v4140, 8.507059e+37
  %v4142 = vand.u32 %v3905, 2147483648
  %v4143 = vor.u32 1.1754944e-38, %v4142
  %v4144 = vsel %vm4141, %v4143, %v4139
  %v4145 = vmul.f32 %v3829, %v4144
  %v4146 = vrcp.pop %v3908
  %v4147 = vmul.f32 %v3908, %v4146
  %v4148 = vsub.f32 1.0, %v4147
  %v4149 = vmul.f32 %v4146, %v4148
  %v4150 = vadd.f32 %v4146, %v4149
  %vm4151 = vweird.f32 %v3908
  %vm4152 = vweird.f32 %v4146
  %vm4153 = vmor %vm4151, %vm4152
  %v4154 = vsel %vm4153, %v4146, %v4150
  %v4155 = vand.u32 2147483647, %v3908
  %vm4156 = vcmp.eq.f32.partialorder %v4155, 8.507059e+37
  %v4157 = vand.u32 %v3908, 2147483648
  %v4158 = vor.u32 1.1754944e-38, %v4157
  %v4159 = vsel %vm4156, %v4158, %v4154
  %v4160 = vmul.f32 %v3831, %v4159
  %v4161 = vrcp.pop %v3911
  %v4162 = vmul.f32 %v3911, %v4161
  %v4163 = vsub.f32 1.0, %v4162
  %v4164 = vmul.f32 %v4161, %v4163
  %v4165 = vadd.f32 %v4161, %v4164
  %vm4166 = vweird.f32 %v3911
  %vm4167 = vweird.f32 %v4161
  %vm4168 = vmor %vm4166, %vm4167
  %v4169 = vsel %vm4168, %v4161, %v4165
  %v4170 = vand.u32 2147483647, %v3911
  %vm4171 = vcmp.eq.f32.partialorder %v4170, 8.507059e+37
  %v4172 = vand.u32 %v3911, 2147483648
  %v4173 = vor.u32 1.1754944e-38, %v4172
  %v4174 = vsel %vm4171, %v4173, %v4169
  %v4175 = vmul.f32 %v3833, %v4174
  %v4176 = vrcp.pop %v3914
  %v4177 = vmul.f32 %v3914, %v4176
  %v4178 = vsub.f32 1.0, %v4177
  %v4179 = vmul.f32 %v4176, %v4178
  %v4180 = vadd.f32 %v4176, %v4179
  %vm4181 = vweird.f32 %v3914
  %vm4182 = vweird.f32 %v4176
  %vm4183 = vmor %vm4181, %vm4182
  %v4184 = vsel %vm4183, %v4176, %v4180
  %v4185 = vand.u32 2147483647, %v3914
  %vm4186 = vcmp.eq.f32.partialorder %v4185, 8.507059e+37
  %v4187 = vand.u32 %v3914, 2147483648
  %v4188 = vor.u32 1.1754944e-38, %v4187
  %v4189 = vsel %vm4186, %v4188, %v4184
  %v4190 = vmul.f32 %v3835, %v4189
  %v4191 = vrcp.pop %v3917
  %v4192 = vmul.f32 %v3917, %v4191
  %v4193 = vsub.f32 1.0, %v4192
  %v4194 = vmul.f32 %v4191, %v4193
  %v4195 = vadd.f32 %v4191, %v4194
  %vm4196 = vweird.f32 %v3917
  %vm4197 = vweird.f32 %v4191
  %vm4198 = vmor %vm4196, %vm4197
  %v4199 = vsel %vm4198, %v4191, %v4195
  %v4200 = vand.u32 2147483647, %v3917
  %vm4201 = vcmp.eq.f32.partialorder %v4200, 8.507059e+37
  %v4202 = vand.u32 %v3917, 2147483648
  %v4203 = vor.u32 1.1754944e-38, %v4202
  %v4204 = vsel %vm4201, %v4203, %v4199
  %v4205 = vmul.f32 %v3837, %v4204
  %v4206 = vrcp.pop %v3920
  %v4207 = vmul.f32 %v3920, %v4206
  %v4208 = vsub.f32 1.0, %v4207
  %v4209 = vmul.f32 %v4206, %v4208
  %v4210 = vadd.f32 %v4206, %v4209
  %vm4211 = vweird.f32 %v3920
  %vm4212 = vweird.f32 %v4206
  %vm4213 = vmor %vm4211, %vm4212
  %v4214 = vsel %vm4213, %v4206, %v4210
  %v4215 = vand.u32 2147483647, %v3920
  %vm4216 = vcmp.eq.f32.partialorder %v4215, 8.507059e+37
  %v4217 = vand.u32 %v3920, 2147483648
  %v4218 = vor.u32 1.1754944e-38, %v4217
  %v4219 = vsel %vm4216, %v4218, %v4214
  %v4220 = vmul.f32 %v3839, %v4219
  %v4221 = vrcp.pop %v3923
  %v4222 = vmul.f32 %v3923, %v4221
  %v4223 = vsub.f32 1.0, %v4222
  %v4224 = vmul.f32 %v4221, %v4223
  %v4225 = vadd.f32 %v4221, %v4224
  %vm4226 = vweird.f32 %v3923
  %vm4227 = vweird.f32 %v4221
  %vm4228 = vmor %vm4226, %vm4227
  %v4229 = vsel %vm4228, %v4221, %v4225
  %v4230 = vand.u32 2147483647, %v3923
  %vm4231 = vcmp.eq.f32.partialorder %v4230, 8.507059e+37
  %v4232 = vand.u32 %v3923, 2147483648
  %v4233 = vor.u32 1.1754944e-38, %v4232
  %v4234 = vsel %vm4231, %v4233, %v4229
  %v4235 = vmul.f32 %v3841, %v4234
  %v4236 = vrcp.pop %v3926
  %v4237 = vmul.f32 %v3926, %v4236
  %v4238 = vsub.f32 1.0, %v4237
  %v4239 = vmul.f32 %v4236, %v4238
  %v4240 = vadd.f32 %v4236, %v4239
  %vm4241 = vweird.f32 %v3926
  %vm4242 = vweird.f32 %v4236
  %vm4243 = vmor %vm4241, %vm4242
  %v4244 = vsel %vm4243, %v4236, %v4240
  %v4245 = vand.u32 2147483647, %v3926
  %vm4246 = vcmp.eq.f32.partialorder %v4245, 8.507059e+37
  %v4247 = vand.u32 %v3926, 2147483648
  %v4248 = vor.u32 1.1754944e-38, %v4247
  %v4249 = vsel %vm4246, %v4248, %v4244
  %v4250 = vmul.f32 %v3843, %v4249
  %v4251 = vrcp.pop %v3929
  %v4252 = vmul.f32 %v3929, %v4251
  %v4253 = vsub.f32 1.0, %v4252
  %v4254 = vmul.f32 %v4251, %v4253
  %v4255 = vadd.f32 %v4251, %v4254
  %vm4256 = vweird.f32 %v3929
  %vm4257 = vweird.f32 %v4251
  %vm4258 = vmor %vm4256, %vm4257
  %v4259 = vsel %vm4258, %v4251, %v4255
  %v4260 = vand.u32 2147483647, %v3929
  %vm4261 = vcmp.eq.f32.partialorder %v4260, 8.507059e+37
  %v4262 = vand.u32 %v3929, 2147483648
  %v4263 = vor.u32 1.1754944e-38, %v4262
  %v4264 = vsel %vm4261, %v4263, %v4259
  %v4265 = vmul.f32 %v3845, %v4264
  %v4266 = vrcp.pop %v3932
  %v4267 = vmul.f32 %v3932, %v4266
  %v4268 = vsub.f32 1.0, %v4267
  %v4269 = vmul.f32 %v4266, %v4268
  %v4270 = vadd.f32 %v4266, %v4269
  %vm4271 = vweird.f32 %v3932
  %vm4272 = vweird.f32 %v4266
  %vm4273 = vmor %vm4271, %vm4272
  %v4274 = vsel %vm4273, %v4266, %v4270
  %v4275 = vand.u32 2147483647, %v3932
  %vm4276 = vcmp.eq.f32.partialorder %v4275, 8.507059e+37
  %v4277 = vand.u32 %v3932, 2147483648
  %v4278 = vor.u32 1.1754944e-38, %v4277
  %v4279 = vsel %vm4276, %v4278, %v4274
  %v4280 = vmul.f32 %v3847, %v4279
  %v4281 = vrcp.pop %v3935
  %v4282 = vmul.f32 %v3935, %v4281
  %v4283 = vsub.f32 1.0, %v4282
  %v4284 = vmul.f32 %v4281, %v4283
  %v4285 = vadd.f32 %v4281, %v4284
  %vm4286 = vweird.f32 %v3935
  %vm4287 = vweird.f32 %v4281
  %vm4288 = vmor %vm4286, %vm4287
  %v4289 = vsel %vm4288, %v4281, %v4285
  %v4290 = vand.u32 2147483647, %v3935
  %vm4291 = vcmp.eq.f32.partialorder %v4290, 8.507059e+37
  %v4292 = vand.u32 %v3935, 2147483648
  %v4293 = vor.u32 1.1754944e-38, %v4292
  %v4294 = vsel %vm4291, %v4293, %v4289
  %v4295 = vmul.f32 %v3849, %v4294
  %v4296 = vrcp.pop %v3938
  %v4297 = vmul.f32 %v3938, %v4296
  %v4298 = vsub.f32 1.0, %v4297
  %v4299 = vmul.f32 %v4296, %v4298
  %v4300 = vadd.f32 %v4296, %v4299
  %vm4301 = vweird.f32 %v3938
  %vm4302 = vweird.f32 %v4296
  %vm4303 = vmor %vm4301, %vm4302
  %v4304 = vsel %vm4303, %v4296, %v4300
  %v4305 = vand.u32 2147483647, %v3938
  %vm4306 = vcmp.eq.f32.partialorder %v4305, 8.507059e+37
  %v4307 = vand.u32 %v3938, 2147483648
  %v4308 = vor.u32 1.1754944e-38, %v4307
  %v4309 = vsel %vm4306, %v4308, %v4304
  %v4310 = vmul.f32 %v3851, %v4309
  %v4311 = vrcp.pop %v3941
  %v4312 = vmul.f32 %v3941, %v4311
  %v4313 = vsub.f32 1.0, %v4312
  %v4314 = vmul.f32 %v4311, %v4313
  %v4315 = vadd.f32 %v4311, %v4314
  %vm4316 = vweird.f32 %v3941
  %vm4317 = vweird.f32 %v4311
  %vm4318 = vmor %vm4316, %vm4317
  %v4319 = vsel %vm4318, %v4311, %v4315
  %v4320 = vand.u32 2147483647, %v3941
  %vm4321 = vcmp.eq.f32.partialorder %v4320, 8.507059e+37
  %v4322 = vand.u32 %v3941, 2147483648
  %v4323 = vor.u32 1.1754944e-38, %v4322
  %v4324 = vsel %vm4321, %v4323, %v4319
  %v4325 = vmul.f32 %v3853, %v4324
  %v4326 = vrcp.pop %v3944
  %v4327 = vmul.f32 %v3944, %v4326
  %v4328 = vsub.f32 1.0, %v4327
  %v4329 = vmul.f32 %v4326, %v4328
  %v4330 = vadd.f32 %v4326, %v4329
  %vm4331 = vweird.f32 %v3944
  %vm4332 = vweird.f32 %v4326
  %vm4333 = vmor %vm4331, %vm4332
  %v4334 = vsel %vm4333, %v4326, %v4330
  %v4335 = vand.u32 2147483647, %v3944
  %vm4336 = vcmp.eq.f32.partialorder %v4335, 8.507059e+37
  %v4337 = vand.u32 %v3944, 2147483648
  %v4338 = vor.u32 1.1754944e-38, %v4337
  %v4339 = vsel %vm4336, %v4338, %v4334
  %v4340 = vmul.f32 %v3855, %v4339
  %v4341 = vrcp.pop %v3947
  %v4342 = vmul.f32 %v3947, %v4341
  %v4343 = vsub.f32 1.0, %v4342
  %v4344 = vmul.f32 %v4341, %v4343
  %v4345 = vadd.f32 %v4341, %v4344
  %vm4346 = vweird.f32 %v3947
  %vm4347 = vweird.f32 %v4341
  %vm4348 = vmor %vm4346, %vm4347
  %v4349 = vsel %vm4348, %v4341, %v4345
  %v4350 = vand.u32 2147483647, %v3947
  %vm4351 = vcmp.eq.f32.partialorder %v4350, 8.507059e+37
  %v4352 = vand.u32 %v3947, 2147483648
  %v4353 = vor.u32 1.1754944e-38, %v4352
  %v4354 = vsel %vm4351, %v4353, %v4349
  %v4355 = vmul.f32 %v3857, %v4354
  %v4356 = vrcp.pop %v3950
  %v4357 = vmul.f32 %v3950, %v4356
  %v4358 = vsub.f32 1.0, %v4357
  %v4359 = vmul.f32 %v4356, %v4358
  %v4360 = vadd.f32 %v4356, %v4359
  %vm4361 = vweird.f32 %v3950
  %vm4362 = vweird.f32 %v4356
  %vm4363 = vmor %vm4361, %vm4362
  %v4364 = vsel %vm4363, %v4356, %v4360
  %v4365 = vand.u32 2147483647, %v3950
  %vm4366 = vcmp.eq.f32.partialorder %v4365, 8.507059e+37
  %v4367 = vand.u32 %v3950, 2147483648
  %v4368 = vor.u32 1.1754944e-38, %v4367
  %v4369 = vsel %vm4366, %v4368, %v4364
  %v4370 = vmul.f32 %v3859, %v4369
  %v4371 = vrcp.pop %v3953
  %v4372 = vmul.f32 %v3953, %v4371
  %v4373 = vsub.f32 1.0, %v4372
  %v4374 = vmul.f32 %v4371, %v4373
  %v4375 = vadd.f32 %v4371, %v4374
  %vm4376 = vweird.f32 %v3953
  %vm4377 = vweird.f32 %v4371
  %vm4378 = vmor %vm4376, %vm4377
  %v4379 = vsel %vm4378, %v4371, %v4375
  %v4380 = vand.u32 2147483647, %v3953
  %vm4381 = vcmp.eq.f32.partialorder %v4380, 8.507059e+37
  %v4382 = vand.u32 %v3953, 2147483648
  %v4383 = vor.u32 1.1754944e-38, %v4382
  %v4384 = vsel %vm4381, %v4383, %v4379
  %v4385 = vmul.f32 %v3861, %v4384
  %v4386 = vrcp.pop %v3956
  %v4387 = vmul.f32 %v3956, %v4386
  %v4388 = vsub.f32 1.0, %v4387
  %v4389 = vmul.f32 %v4386, %v4388
  %v4390 = vadd.f32 %v4386, %v4389
  %vm4391 = vweird.f32 %v3956
  %vm4392 = vweird.f32 %v4386
  %vm4393 = vmor %vm4391, %vm4392
  %v4394 = vsel %vm4393, %v4386, %v4390
  %v4395 = vand.u32 2147483647, %v3956
  %vm4396 = vcmp.eq.f32.partialorder %v4395, 8.507059e+37
  %v4397 = vand.u32 %v3956, 2147483648
  %v4398 = vor.u32 1.1754944e-38, %v4397
  %v4399 = vsel %vm4396, %v4398, %v4394
  %v4400 = vmul.f32 %v3863, %v4399
  %v4401 = vrcp.pop %v3959
  %v4402 = vmul.f32 %v3959, %v4401
  %v4403 = vsub.f32 1.0, %v4402
  %v4404 = vmul.f32 %v4401, %v4403
  %v4405 = vadd.f32 %v4401, %v4404
  %vm4406 = vweird.f32 %v3959
  %vm4407 = vweird.f32 %v4401
  %vm4408 = vmor %vm4406, %vm4407
  %v4409 = vsel %vm4408, %v4401, %v4405
  %v4410 = vand.u32 2147483647, %v3959
  %vm4411 = vcmp.eq.f32.partialorder %v4410, 8.507059e+37
  %v4412 = vand.u32 %v3959, 2147483648
  %v4413 = vor.u32 1.1754944e-38, %v4412
  %v4414 = vsel %vm4411, %v4413, %v4409
  %v4415 = vmul.f32 %v3865, %v4414
  %v4416 = vrcp.pop %v3962
  %v4417 = vmul.f32 %v3962, %v4416
  %v4418 = vsub.f32 1.0, %v4417
  %v4419 = vmul.f32 %v4416, %v4418
  %v4420 = vadd.f32 %v4416, %v4419
  %vm4421 = vweird.f32 %v3962
  %vm4422 = vweird.f32 %v4416
  %vm4423 = vmor %vm4421, %vm4422
  %v4424 = vsel %vm4423, %v4416, %v4420
  %v4425 = vand.u32 2147483647, %v3962
  %vm4426 = vcmp.eq.f32.partialorder %v4425, 8.507059e+37
  %v4427 = vand.u32 %v3962, 2147483648
  %v4428 = vor.u32 1.1754944e-38, %v4427
  %v4429 = vsel %vm4426, %v4428, %v4424
  %v4430 = vmul.f32 %v3867, %v4429
  %v4431 = vrcp.pop %v3965
  %v4432 = vmul.f32 %v3965, %v4431
  %v4433 = vsub.f32 1.0, %v4432
  %v4434 = vmul.f32 %v4431, %v4433
  %v4435 = vadd.f32 %v4431, %v4434
  %vm4436 = vweird.f32 %v3965
  %vm4437 = vweird.f32 %v4431
  %vm4438 = vmor %vm4436, %vm4437
  %v4439 = vsel %vm4438, %v4431, %v4435
  %v4440 = vand.u32 2147483647, %v3965
  %vm4441 = vcmp.eq.f32.partialorder %v4440, 8.507059e+37
  %v4442 = vand.u32 %v3965, 2147483648
  %v4443 = vor.u32 1.1754944e-38, %v4442
  %v4444 = vsel %vm4441, %v4443, %v4439
  %v4445 = vmul.f32 %v3869, %v4444
  %s4446 = scalar_lea.vmem %s0, 2048
  %v4447 = vld [vmem:[%s4446] sm:$0xff]
  %v4448 = vld [vmem:[%s4446 + $0x8] sm:$0xff]
  %v4449 = vld [vmem:[%s4446 + $0x10] sm:$0xff]
  %v4450 = vld [vmem:[%s4446 + $0x18] sm:$0xff]
  %v4451 = vld [vmem:[%s4446 + $0x20] sm:$0xff]
  %v4452 = vld [vmem:[%s4446 + $0x28] sm:$0xff]
  %v4453 = vld [vmem:[%s4446 + $0x30] sm:$0xff]
  %v4454 = vld [vmem:[%s4446 + $0x38] sm:$0xff]
  %v4455 = vld [vmem:[%s4446 + $0x40] sm:$0xff]
  %v4456 = vld [vmem:[%s4446 + $0x48] sm:$0xff]
  %v4457 = vld [vmem:[%s4446 + $0x50] sm:$0xff]
  %v4458 = vld [vmem:[%s4446 + $0x58] sm:$0xff]
  %v4459 = vld [vmem:[%s4446 + $0x60] sm:$0xff]
  %v4460 = vld [vmem:[%s4446 + $0x68] sm:$0xff]
  %v4461 = vld [vmem:[%s4446 + $0x70] sm:$0xff]
  %v4462 = vld [vmem:[%s4446 + $0x78] sm:$0xff]
  %v4463 = vld [vmem:[%s4446 + $0x80] sm:$0xff]
  %v4464 = vld [vmem:[%s4446 + $0x88] sm:$0xff]
  %v4465 = vld [vmem:[%s4446 + $0x90] sm:$0xff]
  %v4466 = vld [vmem:[%s4446 + $0x98] sm:$0xff]
  %v4467 = vld [vmem:[%s4446 + $0xa0] sm:$0xff]
  %v4468 = vld [vmem:[%s4446 + $0xa8] sm:$0xff]
  %v4469 = vld [vmem:[%s4446 + $0xb0] sm:$0xff]
  %v4470 = vld [vmem:[%s4446 + $0xb8] sm:$0xff]
  %v4471 = vld [vmem:[%s4446 + $0xc0] sm:$0xff]
  %v4472 = vld [vmem:[%s4446 + $0xc8] sm:$0xff]
  %v4473 = vld [vmem:[%s4446 + $0xd0] sm:$0xff]
  %v4474 = vld [vmem:[%s4446 + $0xd8] sm:$0xff]
  %v4475 = vld [vmem:[%s4446 + $0xe0] sm:$0xff]
  %v4476 = vld [vmem:[%s4446 + $0xe8] sm:$0xff]
  %v4477 = vld [vmem:[%s4446 + $0xf0] sm:$0xff]
  %v4478 = vld [vmem:[%s4446 + $0xf8] sm:$0xff]
  %v4479 = vld [vmem:[%s4446 + $0x100] sm:$0xff]
  %v4480 = vld [vmem:[%s4446 + $0x108] sm:$0xff]
  %v4481 = vld [vmem:[%s4446 + $0x110] sm:$0xff]
  %v4482 = vld [vmem:[%s4446 + $0x118] sm:$0xff]
  %v4483 = vld [vmem:[%s4446 + $0x120] sm:$0xff]
  %v4484 = vld [vmem:[%s4446 + $0x128] sm:$0xff]
  %v4485 = vld [vmem:[%s4446 + $0x130] sm:$0xff]
  %v4486 = vld [vmem:[%s4446 + $0x138] sm:$0xff]
  %v4487 = vld [vmem:[%s4446 + $0x140] sm:$0xff]
  %v4488 = vld [vmem:[%s4446 + $0x148] sm:$0xff]
  %v4489 = vld [vmem:[%s4446 + $0x150] sm:$0xff]
  %v4490 = vld [vmem:[%s4446 + $0x158] sm:$0xff]
  %v4491 = vld [vmem:[%s4446 + $0x160] sm:$0xff]
  %v4492 = vld [vmem:[%s4446 + $0x168] sm:$0xff]
  %v4493 = vld [vmem:[%s4446 + $0x170] sm:$0xff]
  %v4494 = vld [vmem:[%s4446 + $0x178] sm:$0xff]
  %v4495 = vld [vmem:[%s4446 + $0x180] sm:$0xff]
  %v4496 = vld [vmem:[%s4446 + $0x188] sm:$0xff]
  %v4497 = vld [vmem:[%s4446 + $0x190] sm:$0xff]
  %v4498 = vld [vmem:[%s4446 + $0x198] sm:$0xff]
  %v4499 = vld [vmem:[%s4446 + $0x1a0] sm:$0xff]
  %v4500 = vld [vmem:[%s4446 + $0x1a8] sm:$0xff]
  %v4501 = vld [vmem:[%s4446 + $0x1b0] sm:$0xff]
  %v4502 = vld [vmem:[%s4446 + $0x1b8] sm:$0xff]
  %v4503 = vld [vmem:[%s4446 + $0x1c0] sm:$0xff]
  %v4504 = vld [vmem:[%s4446 + $0x1c8] sm:$0xff]
  %v4505 = vld [vmem:[%s4446 + $0x1d0] sm:$0xff]
  %v4506 = vld [vmem:[%s4446 + $0x1d8] sm:$0xff]
  %v4507 = vld [vmem:[%s4446 + $0x1e0] sm:$0xff]
  %v4508 = vld [vmem:[%s4446 + $0x1e8] sm:$0xff]
  %v4509 = vld [vmem:[%s4446 + $0x1f0] sm:$0xff]
  %v4510 = vld [vmem:[%s4446 + $0x1f8] sm:$0xff]
  %v4511 = vld [vmem:[%s4446 + $0x200] sm:$0xff]
  %v4512 = vld [vmem:[%s4446 + $0x208] sm:$0xff]
  %v4513 = vld [vmem:[%s4446 + $0x210] sm:$0xff]
  %v4514 = vld [vmem:[%s4446 + $0x218] sm:$0xff]
  %v4515 = vld [vmem:[%s4446 + $0x220] sm:$0xff]
  %v4516 = vld [vmem:[%s4446 + $0x228] sm:$0xff]
  %v4517 = vld [vmem:[%s4446 + $0x230] sm:$0xff]
  %v4518 = vld [vmem:[%s4446 + $0x238] sm:$0xff]
  %v4519 = vld [vmem:[%s4446 + $0x240] sm:$0xff]
  %v4520 = vld [vmem:[%s4446 + $0x248] sm:$0xff]
  %v4521 = vld [vmem:[%s4446 + $0x250] sm:$0xff]
  %v4522 = vld [vmem:[%s4446 + $0x258] sm:$0xff]
  %v4523 = vld [vmem:[%s4446 + $0x260] sm:$0xff]
  %v4524 = vld [vmem:[%s4446 + $0x268] sm:$0xff]
  %v4525 = vld [vmem:[%s4446 + $0x270] sm:$0xff]
  %v4526 = vld [vmem:[%s4446 + $0x278] sm:$0xff]
  %v4527 = vld [vmem:[%s4446 + $0x280] sm:$0xff]
  %v4528 = vld [vmem:[%s4446 + $0x288] sm:$0xff]
  %v4529 = vld [vmem:[%s4446 + $0x290] sm:$0xff]
  %v4530 = vld [vmem:[%s4446 + $0x298] sm:$0xff]
  %v4531 = vld [vmem:[%s4446 + $0x2a0] sm:$0xff]
  %v4532 = vld [vmem:[%s4446 + $0x2a8] sm:$0xff]
  %v4533 = vld [vmem:[%s4446 + $0x2b0] sm:$0xff]
  %v4534 = vld [vmem:[%s4446 + $0x2b8] sm:$0xff]
  %v4535 = vld [vmem:[%s4446 + $0x2c0] sm:$0xff]
  %v4536 = vld [vmem:[%s4446 + $0x2c8] sm:$0xff]
  %v4537 = vld [vmem:[%s4446 + $0x2d0] sm:$0xff]
  %v4538 = vld [vmem:[%s4446 + $0x2d8] sm:$0xff]
  %v4539 = vld [vmem:[%s4446 + $0x2e0] sm:$0xff]
  %v4540 = vld [vmem:[%s4446 + $0x2e8] sm:$0xff]
  %v4541 = vld [vmem:[%s4446 + $0x2f0] sm:$0xff]
  %v4542 = vld [vmem:[%s4446 + $0x2f8] sm:$0xff]
  %v4543 = vld [vmem:[%s4446 + $0x300] sm:$0xff]
  %v4544 = vld [vmem:[%s4446 + $0x308] sm:$0xff]
  %v4545 = vld [vmem:[%s4446 + $0x310] sm:$0xff]
  %v4546 = vld [vmem:[%s4446 + $0x318] sm:$0xff]
  %v4547 = vld [vmem:[%s4446 + $0x320] sm:$0xff]
  %v4548 = vld [vmem:[%s4446 + $0x328] sm:$0xff]
  %v4549 = vld [vmem:[%s4446 + $0x330] sm:$0xff]
  %v4550 = vld [vmem:[%s4446 + $0x338] sm:$0xff]
  %v4551 = vld [vmem:[%s4446 + $0x340] sm:$0xff]
  %v4552 = vld [vmem:[%s4446 + $0x348] sm:$0xff]
  %v4553 = vld [vmem:[%s4446 + $0x350] sm:$0xff]
  %v4554 = vld [vmem:[%s4446 + $0x358] sm:$0xff]
  %v4555 = vld [vmem:[%s4446 + $0x360] sm:$0xff]
  %v4556 = vld [vmem:[%s4446 + $0x368] sm:$0xff]
  %v4557 = vld [vmem:[%s4446 + $0x370] sm:$0xff]
  %v4558 = vld [vmem:[%s4446 + $0x378] sm:$0xff]
  %v4559 = vld [vmem:[%s4446 + $0x380] sm:$0xff]
  %v4560 = vld [vmem:[%s4446 + $0x388] sm:$0xff]
  %v4561 = vld [vmem:[%s4446 + $0x390] sm:$0xff]
  %v4562 = vld [vmem:[%s4446 + $0x398] sm:$0xff]
  %v4563 = vld [vmem:[%s4446 + $0x3a0] sm:$0xff]
  %v4564 = vld [vmem:[%s4446 + $0x3a8] sm:$0xff]
  %v4565 = vld [vmem:[%s4446 + $0x3b0] sm:$0xff]
  %v4566 = vld [vmem:[%s4446 + $0x3b8] sm:$0xff]
  %v4567 = vld [vmem:[%s4446 + $0x3c0] sm:$0xff]
  %v4568 = vld [vmem:[%s4446 + $0x3c8] sm:$0xff]
  %v4569 = vld [vmem:[%s4446 + $0x3d0] sm:$0xff]
  %v4570 = vld [vmem:[%s4446 + $0x3d8] sm:$0xff]
  %v4571 = vld [vmem:[%s4446 + $0x3e0] sm:$0xff]
  %v4572 = vld [vmem:[%s4446 + $0x3e8] sm:$0xff]
  %v4573 = vld [vmem:[%s4446 + $0x3f0] sm:$0xff]
  %v4574 = vld [vmem:[%s4446 + $0x3f8] sm:$0xff]
  %v4576 = vsel %vm3677, %v3980, 0
  %v4579 = vsel %vm3677, %v3995, 0
  %4581 = vmatpush.msra.mxu0 0.0
  %4582 = vmatpush.msra.mxu0 0.0
  %4583 = vmatpush.msra.mxu0 0.0
  %4584 = vmatpush.msra.mxu0 0.0
  %4585 = vmatpush.msra.mxu0 0.0
  %4586 = vmatpush.msra.mxu0 0.0
  %4587 = vmatpush.msra.mxu0 0.0
  %4588 = vmatpush.msra.mxu0 0.0
  %4589 = vmatpush.msra.mxu0 %v4454
  %4590 = vmatpush.msra.mxu0 %v4453
  %4591 = vmatpush.msra.mxu0 %v4452
  %4592 = vmatpush.msra.mxu0 %v4451
  %4593 = vmatpush.msra.mxu0 %v4450
  %4594 = vmatpush.msra.mxu0 %v4449
  %4595 = vmatpush.msra.mxu0 %v4448
  %4596 = vmatpush.msra.mxu0 %v4447
  %4597 = vmatmul.f32.gmra.mxu0 %v4576
  %v4598 = vpop.f32.mrf.mxu0
  %v4599 = vadd.f32 0.0, %v4598
  %4600 = vmatmul.f32.gmra.mxu0 %v4579
  %v4601 = vpop.f32.mrf.mxu0
  %v4602 = vadd.f32 0.0, %v4601
  %4603 = vdwg.mxu0
  %v4605 = vsel %vm3677, %v4010, 0
  %v4608 = vsel %vm3677, %v4025, 0
  %4610 = vmatpush.msra.mxu0 0.0
  %4611 = vmatpush.msra.mxu0 0.0
  %4612 = vmatpush.msra.mxu0 0.0
  %4613 = vmatpush.msra.mxu0 0.0
  %4614 = vmatpush.msra.mxu0 0.0
  %4615 = vmatpush.msra.mxu0 0.0
  %4616 = vmatpush.msra.mxu0 0.0
  %4617 = vmatpush.msra.mxu0 0.0
  %4618 = vmatpush.msra.mxu0 %v4462
  %4619 = vmatpush.msra.mxu0 %v4461
  %4620 = vmatpush.msra.mxu0 %v4460
  %4621 = vmatpush.msra.mxu0 %v4459
  %4622 = vmatpush.msra.mxu0 %v4458
  %4623 = vmatpush.msra.mxu0 %v4457
  %4624 = vmatpush.msra.mxu0 %v4456
  %4625 = vmatpush.msra.mxu0 %v4455
  %4626 = vmatmul.f32.gmra.mxu0 %v4605
  %v4627 = vpop.f32.mrf.mxu0
  %v4628 = vadd.f32 0.0, %v4627
  %4629 = vmatmul.f32.gmra.mxu0 %v4608
  %v4630 = vpop.f32.mrf.mxu0
  %v4631 = vadd.f32 0.0, %v4630
  %4632 = vdwg.mxu0
  %v4634 = vsel %vm3677, %v4040, 0
  %v4637 = vsel %vm3677, %v4055, 0
  %4639 = vmatpush.msra.mxu0 0.0
  %4640 = vmatpush.msra.mxu0 0.0
  %4641 = vmatpush.msra.mxu0 0.0
  %4642 = vmatpush.msra.mxu0 0.0
  %4643 = vmatpush.msra.mxu0 0.0
  %4644 = vmatpush.msra.mxu0 0.0
  %4645 = vmatpush.msra.mxu0 0.0
  %4646 = vmatpush.msra.mxu0 0.0
  %4647 = vmatpush.msra.mxu0 %v4470
  %4648 = vmatpush.msra.mxu0 %v4469
  %4649 = vmatpush.msra.mxu0 %v4468
  %4650 = vmatpush.msra.mxu0 %v4467
  %4651 = vmatpush.msra.mxu0 %v4466
  %4652 = vmatpush.msra.mxu0 %v4465
  %4653 = vmatpush.msra.mxu0 %v4464
  %4654 = vmatpush.msra.mxu0 %v4463
  %4655 = vmatmul.f32.gmra.mxu0 %v4634
  %v4656 = vpop.f32.mrf.mxu0
  %v4657 = vadd.f32 0.0, %v4656
  %4658 = vmatmul.f32.gmra.mxu0 %v4637
  %v4659 = vpop.f32.mrf.mxu0
  %v4660 = vadd.f32 0.0, %v4659
  %4661 = vdwg.mxu0
  %v4663 = vsel %vm3677, %v4070, 0
  %v4666 = vsel %vm3677, %v4085, 0
  %4668 = vmatpush.msra.mxu0 0.0
  %4669 = vmatpush.msra.mxu0 0.0
  %4670 = vmatpush.msra.mxu0 0.0
  %4671 = vmatpush.msra.mxu0 0.0
  %4672 = vmatpush.msra.mxu0 0.0
  %4673 = vmatpush.msra.mxu0 0.0
  %4674 = vmatpush.msra.mxu0 0.0
  %4675 = vmatpush.msra.mxu0 0.0
  %4676 = vmatpush.msra.mxu0 %v4478
  %4677 = vmatpush.msra.mxu0 %v4477
  %4678 = vmatpush.msra.mxu0 %v4476
  %4679 = vmatpush.msra.mxu0 %v4475
  %4680 = vmatpush.msra.mxu0 %v4474
  %4681 = vmatpush.msra.mxu0 %v4473
  %4682 = vmatpush.msra.mxu0 %v4472
  %4683 = vmatpush.msra.mxu0 %v4471
  %4684 = vmatmul.f32.gmra.mxu0 %v4663
  %v4685 = vpop.f32.mrf.mxu0
  %v4686 = vadd.f32 0.0, %v4685
  %4687 = vmatmul.f32.gmra.mxu0 %v4666
  %v4688 = vpop.f32.mrf.mxu0
  %v4689 = vadd.f32 0.0, %v4688
  %4690 = vdwg.mxu0
  %v4692 = vsel %vm3677, %v4100, 0
  %v4695 = vsel %vm3677, %v4115, 0
  %4697 = vmatpush.msra.mxu0 0.0
  %4698 = vmatpush.msra.mxu0 0.0
  %4699 = vmatpush.msra.mxu0 0.0
  %4700 = vmatpush.msra.mxu0 0.0
  %4701 = vmatpush.msra.mxu0 0.0
  %4702 = vmatpush.msra.mxu0 0.0
  %4703 = vmatpush.msra.mxu0 0.0
  %4704 = vmatpush.msra.mxu0 0.0
  %4705 = vmatpush.msra.mxu0 %v4486
  %4706 = vmatpush.msra.mxu0 %v4485
  %4707 = vmatpush.msra.mxu0 %v4484
  %4708 = vmatpush.msra.mxu0 %v4483
  %4709 = vmatpush.msra.mxu0 %v4482
  %4710 = vmatpush.msra.mxu0 %v4481
  %4711 = vmatpush.msra.mxu0 %v4480
  %4712 = vmatpush.msra.mxu0 %v4479
  %4713 = vmatmul.f32.gmra.mxu0 %v4692
  %v4714 = vpop.f32.mrf.mxu0
  %v4715 = vadd.f32 0.0, %v4714
  %4716 = vmatmul.f32.gmra.mxu0 %v4695
  %v4717 = vpop.f32.mrf.mxu0
  %v4718 = vadd.f32 0.0, %v4717
  %4719 = vdwg.mxu0
  %v4721 = vsel %vm3677, %v4130, 0
  %v4724 = vsel %vm3677, %v4145, 0
  %4726 = vmatpush.msra.mxu0 0.0
  %4727 = vmatpush.msra.mxu0 0.0
  %4728 = vmatpush.msra.mxu0 0.0
  %4729 = vmatpush.msra.mxu0 0.0
  %4730 = vmatpush.msra.mxu0 0.0
  %4731 = vmatpush.msra.mxu0 0.0
  %4732 = vmatpush.msra.mxu0 0.0
  %4733 = vmatpush.msra.mxu0 0.0
  %4734 = vmatpush.msra.mxu0 %v4494
  %4735 = vmatpush.msra.mxu0 %v4493
  %4736 = vmatpush.msra.mxu0 %v4492
  %4737 = vmatpush.msra.mxu0 %v4491
  %4738 = vmatpush.msra.mxu0 %v4490
  %4739 = vmatpush.msra.mxu0 %v4489
  %4740 = vmatpush.msra.mxu0 %v4488
  %4741 = vmatpush.msra.mxu0 %v4487
  %4742 = vmatmul.f32.gmra.mxu0 %v4721
  %v4743 = vpop.f32.mrf.mxu0
  %v4744 = vadd.f32 0.0, %v4743
  %4745 = vmatmul.f32.gmra.mxu0 %v4724
  %v4746 = vpop.f32.mrf.mxu0
  %v4747 = vadd.f32 0.0, %v4746
  %4748 = vdwg.mxu0
  %v4750 = vsel %vm3677, %v4160, 0
  %v4753 = vsel %vm3677, %v4175, 0
  %4755 = vmatpush.msra.mxu0 0.0
  %4756 = vmatpush.msra.mxu0 0.0
  %4757 = vmatpush.msra.mxu0 0.0
  %4758 = vmatpush.msra.mxu0 0.0
  %4759 = vmatpush.msra.mxu0 0.0
  %4760 = vmatpush.msra.mxu0 0.0
  %4761 = vmatpush.msra.mxu0 0.0
  %4762 = vmatpush.msra.mxu0 0.0
  %4763 = vmatpush.msra.mxu0 %v4502
  %4764 = vmatpush.msra.mxu0 %v4501
  %4765 = vmatpush.msra.mxu0 %v4500
  %4766 = vmatpush.msra.mxu0 %v4499
  %4767 = vmatpush.msra.mxu0 %v4498
  %4768 = vmatpush.msra.mxu0 %v4497
  %4769 = vmatpush.msra.mxu0 %v4496
  %4770 = vmatpush.msra.mxu0 %v4495
  %4771 = vmatmul.f32.gmra.mxu0 %v4750
  %v4772 = vpop.f32.mrf.mxu0
  %v4773 = vadd.f32 0.0, %v4772
  %4774 = vmatmul.f32.gmra.mxu0 %v4753
  %v4775 = vpop.f32.mrf.mxu0
  %v4776 = vadd.f32 0.0, %v4775
  %4777 = vdwg.mxu0
  %v4779 = vsel %vm3677, %v4190, 0
  %v4782 = vsel %vm3677, %v4205, 0
  %4784 = vmatpush.msra.mxu0 0.0
  %4785 = vmatpush.msra.mxu0 0.0
  %4786 = vmatpush.msra.mxu0 0.0
  %4787 = vmatpush.msra.mxu0 0.0
  %4788 = vmatpush.msra.mxu0 0.0
  %4789 = vmatpush.msra.mxu0 0.0
  %4790 = vmatpush.msra.mxu0 0.0
  %4791 = vmatpush.msra.mxu0 0.0
  %4792 = vmatpush.msra.mxu0 %v4510
  %4793 = vmatpush.msra.mxu0 %v4509
  %4794 = vmatpush.msra.mxu0 %v4508
  %4795 = vmatpush.msra.mxu0 %v4507
  %4796 = vmatpush.msra.mxu0 %v4506
  %4797 = vmatpush.msra.mxu0 %v4505
  %4798 = vmatpush.msra.mxu0 %v4504
  %4799 = vmatpush.msra.mxu0 %v4503
  %4800 = vmatmul.f32.gmra.mxu0 %v4779
  %v4801 = vpop.f32.mrf.mxu0
  %v4802 = vadd.f32 0.0, %v4801
  %4803 = vmatmul.f32.gmra.mxu0 %v4782
  %v4804 = vpop.f32.mrf.mxu0
  %v4805 = vadd.f32 0.0, %v4804
  %4806 = vdwg.mxu0
  %v4808 = vsel %vm3677, %v4220, 0
  %v4811 = vsel %vm3677, %v4235, 0
  %4813 = vmatpush.msra.mxu0 0.0
  %4814 = vmatpush.msra.mxu0 0.0
  %4815 = vmatpush.msra.mxu0 0.0
  %4816 = vmatpush.msra.mxu0 0.0
  %4817 = vmatpush.msra.mxu0 0.0
  %4818 = vmatpush.msra.mxu0 0.0
  %4819 = vmatpush.msra.mxu0 0.0
  %4820 = vmatpush.msra.mxu0 0.0
  %4821 = vmatpush.msra.mxu0 %v4518
  %4822 = vmatpush.msra.mxu0 %v4517
  %4823 = vmatpush.msra.mxu0 %v4516
  %4824 = vmatpush.msra.mxu0 %v4515
  %4825 = vmatpush.msra.mxu0 %v4514
  %4826 = vmatpush.msra.mxu0 %v4513
  %4827 = vmatpush.msra.mxu0 %v4512
  %4828 = vmatpush.msra.mxu0 %v4511
  %4829 = vmatmul.f32.gmra.mxu0 %v4808
  %v4830 = vpop.f32.mrf.mxu0
  %v4831 = vadd.f32 0.0, %v4830
  %4832 = vmatmul.f32.gmra.mxu0 %v4811
  %v4833 = vpop.f32.mrf.mxu0
  %v4834 = vadd.f32 0.0, %v4833
  %4835 = vdwg.mxu0
  %v4837 = vsel %vm3677, %v4250, 0
  %v4840 = vsel %vm3677, %v4265, 0
  %4842 = vmatpush.msra.mxu0 0.0
  %4843 = vmatpush.msra.mxu0 0.0
  %4844 = vmatpush.msra.mxu0 0.0
  %4845 = vmatpush.msra.mxu0 0.0
  %4846 = vmatpush.msra.mxu0 0.0
  %4847 = vmatpush.msra.mxu0 0.0
  %4848 = vmatpush.msra.mxu0 0.0
  %4849 = vmatpush.msra.mxu0 0.0
  %4850 = vmatpush.msra.mxu0 %v4526
  %4851 = vmatpush.msra.mxu0 %v4525
  %4852 = vmatpush.msra.mxu0 %v4524
  %4853 = vmatpush.msra.mxu0 %v4523
  %4854 = vmatpush.msra.mxu0 %v4522
  %4855 = vmatpush.msra.mxu0 %v4521
  %4856 = vmatpush.msra.mxu0 %v4520
  %4857 = vmatpush.msra.mxu0 %v4519
  %4858 = vmatmul.f32.gmra.mxu0 %v4837
  %v4859 = vpop.f32.mrf.mxu0
  %v4860 = vadd.f32 0.0, %v4859
  %4861 = vmatmul.f32.gmra.mxu0 %v4840
  %v4862 = vpop.f32.mrf.mxu0
  %v4863 = vadd.f32 0.0, %v4862
  %4864 = vdwg.mxu0
  %v4866 = vsel %vm3677, %v4280, 0
  %v4869 = vsel %vm3677, %v4295, 0
  %4871 = vmatpush.msra.mxu0 0.0
  %4872 = vmatpush.msra.mxu0 0.0
  %4873 = vmatpush.msra.mxu0 0.0
  %4874 = vmatpush.msra.mxu0 0.0
  %4875 = vmatpush.msra.mxu0 0.0
  %4876 = vmatpush.msra.mxu0 0.0
  %4877 = vmatpush.msra.mxu0 0.0
  %4878 = vmatpush.msra.mxu0 0.0
  %4879 = vmatpush.msra.mxu0 %v4534
  %4880 = vmatpush.msra.mxu0 %v4533
  %4881 = vmatpush.msra.mxu0 %v4532
  %4882 = vmatpush.msra.mxu0 %v4531
  %4883 = vmatpush.msra.mxu0 %v4530
  %4884 = vmatpush.msra.mxu0 %v4529
  %4885 = vmatpush.msra.mxu0 %v4528
  %4886 = vmatpush.msra.mxu0 %v4527
  %4887 = vmatmul.f32.gmra.mxu0 %v4866
  %v4888 = vpop.f32.mrf.mxu0
  %v4889 = vadd.f32 0.0, %v4888
  %4890 = vmatmul.f32.gmra.mxu0 %v4869
  %v4891 = vpop.f32.mrf.mxu0
  %v4892 = vadd.f32 0.0, %v4891
  %4893 = vdwg.mxu0
  %v4895 = vsel %vm3677, %v4310, 0
  %v4898 = vsel %vm3677, %v4325, 0
  %4900 = vmatpush.msra.mxu0 0.0
  %4901 = vmatpush.msra.mxu0 0.0
  %4902 = vmatpush.msra.mxu0 0.0
  %4903 = vmatpush.msra.mxu0 0.0
  %4904 = vmatpush.msra.mxu0 0.0
  %4905 = vmatpush.msra.mxu0 0.0
  %4906 = vmatpush.msra.mxu0 0.0
  %4907 = vmatpush.msra.mxu0 0.0
  %4908 = vmatpush.msra.mxu0 %v4542
  %4909 = vmatpush.msra.mxu0 %v4541
  %4910 = vmatpush.msra.mxu0 %v4540
  %4911 = vmatpush.msra.mxu0 %v4539
  %4912 = vmatpush.msra.mxu0 %v4538
  %4913 = vmatpush.msra.mxu0 %v4537
  %4914 = vmatpush.msra.mxu0 %v4536
  %4915 = vmatpush.msra.mxu0 %v4535
  %4916 = vmatmul.f32.gmra.mxu0 %v4895
  %v4917 = vpop.f32.mrf.mxu0
  %v4918 = vadd.f32 0.0, %v4917
  %4919 = vmatmul.f32.gmra.mxu0 %v4898
  %v4920 = vpop.f32.mrf.mxu0
  %v4921 = vadd.f32 0.0, %v4920
  %4922 = vdwg.mxu0
  %v4924 = vsel %vm3677, %v4340, 0
  %v4927 = vsel %vm3677, %v4355, 0
  %4929 = vmatpush.msra.mxu0 0.0
  %4930 = vmatpush.msra.mxu0 0.0
  %4931 = vmatpush.msra.mxu0 0.0
  %4932 = vmatpush.msra.mxu0 0.0
  %4933 = vmatpush.msra.mxu0 0.0
  %4934 = vmatpush.msra.mxu0 0.0
  %4935 = vmatpush.msra.mxu0 0.0
  %4936 = vmatpush.msra.mxu0 0.0
  %4937 = vmatpush.msra.mxu0 %v4550
  %4938 = vmatpush.msra.mxu0 %v4549
  %4939 = vmatpush.msra.mxu0 %v4548
  %4940 = vmatpush.msra.mxu0 %v4547
  %4941 = vmatpush.msra.mxu0 %v4546
  %4942 = vmatpush.msra.mxu0 %v4545
  %4943 = vmatpush.msra.mxu0 %v4544
  %4944 = vmatpush.msra.mxu0 %v4543
  %4945 = vmatmul.f32.gmra.mxu0 %v4924
  %v4946 = vpop.f32.mrf.mxu0
  %v4947 = vadd.f32 0.0, %v4946
  %4948 = vmatmul.f32.gmra.mxu0 %v4927
  %v4949 = vpop.f32.mrf.mxu0
  %v4950 = vadd.f32 0.0, %v4949
  %4951 = vdwg.mxu0
  %v4953 = vsel %vm3677, %v4370, 0
  %v4956 = vsel %vm3677, %v4385, 0
  %4958 = vmatpush.msra.mxu0 0.0
  %4959 = vmatpush.msra.mxu0 0.0
  %4960 = vmatpush.msra.mxu0 0.0
  %4961 = vmatpush.msra.mxu0 0.0
  %4962 = vmatpush.msra.mxu0 0.0
  %4963 = vmatpush.msra.mxu0 0.0
  %4964 = vmatpush.msra.mxu0 0.0
  %4965 = vmatpush.msra.mxu0 0.0
  %4966 = vmatpush.msra.mxu0 %v4558
  %4967 = vmatpush.msra.mxu0 %v4557
  %4968 = vmatpush.msra.mxu0 %v4556
  %4969 = vmatpush.msra.mxu0 %v4555
  %4970 = vmatpush.msra.mxu0 %v4554
  %4971 = vmatpush.msra.mxu0 %v4553
  %4972 = vmatpush.msra.mxu0 %v4552
  %4973 = vmatpush.msra.mxu0 %v4551
  %4974 = vmatmul.f32.gmra.mxu0 %v4953
  %v4975 = vpop.f32.mrf.mxu0
  %v4976 = vadd.f32 0.0, %v4975
  %4977 = vmatmul.f32.gmra.mxu0 %v4956
  %v4978 = vpop.f32.mrf.mxu0
  %v4979 = vadd.f32 0.0, %v4978
  %4980 = vdwg.mxu0
  %v4982 = vsel %vm3677, %v4400, 0
  %v4985 = vsel %vm3677, %v4415, 0
  %4987 = vmatpush.msra.mxu0 0.0
  %4988 = vmatpush.msra.mxu0 0.0
  %4989 = vmatpush.msra.mxu0 0.0
  %4990 = vmatpush.msra.mxu0 0.0
  %4991 = vmatpush.msra.mxu0 0.0
  %4992 = vmatpush.msra.mxu0 0.0
  %4993 = vmatpush.msra.mxu0 0.0
  %4994 = vmatpush.msra.mxu0 0.0
  %4995 = vmatpush.msra.mxu0 %v4566
  %4996 = vmatpush.msra.mxu0 %v4565
  %4997 = vmatpush.msra.mxu0 %v4564
  %4998 = vmatpush.msra.mxu0 %v4563
  %4999 = vmatpush.msra.mxu0 %v4562
  %5000 = vmatpush.msra.mxu0 %v4561
  %5001 = vmatpush.msra.mxu0 %v4560
  %5002 = vmatpush.msra.mxu0 %v4559
  %5003 = vmatmul.f32.gmra.mxu0 %v4982
  %v5004 = vpop.f32.mrf.mxu0
  %v5005 = vadd.f32 0.0, %v5004
  %5006 = vmatmul.f32.gmra.mxu0 %v4985
  %v5007 = vpop.f32.mrf.mxu0
  %v5008 = vadd.f32 0.0, %v5007
  %5009 = vdwg.mxu0
  %v5011 = vsel %vm3677, %v4430, 0
  %v5014 = vsel %vm3677, %v4445, 0
  %5016 = vmatpush.msra.mxu0 0.0
  %5017 = vmatpush.msra.mxu0 0.0
  %5018 = vmatpush.msra.mxu0 0.0
  %5019 = vmatpush.msra.mxu0 0.0
  %5020 = vmatpush.msra.mxu0 0.0
  %5021 = vmatpush.msra.mxu0 0.0
  %5022 = vmatpush.msra.mxu0 0.0
  %5023 = vmatpush.msra.mxu0 0.0
  %5024 = vmatpush.msra.mxu0 %v4574
  %5025 = vmatpush.msra.mxu0 %v4573
  %5026 = vmatpush.msra.mxu0 %v4572
  %5027 = vmatpush.msra.mxu0 %v4571
  %5028 = vmatpush.msra.mxu0 %v4570
  %5029 = vmatpush.msra.mxu0 %v4569
  %5030 = vmatpush.msra.mxu0 %v4568
  %5031 = vmatpush.msra.mxu0 %v4567
  %5032 = vmatmul.f32.gmra.mxu0 %v5011
  %v5033 = vpop.f32.mrf.mxu0
  %v5034 = vadd.f32 0.0, %v5033
  %5035 = vmatmul.f32.gmra.mxu0 %v5014
  %v5036 = vpop.f32.mrf.mxu0
  %v5037 = vadd.f32 0.0, %v5036
  %5038 = vdwg.mxu0
  %v5039 = vld [vmem:[%s0] sm:$0xff]
  %v5040 = vld [vmem:[%s0 + $0x8] sm:$0xff]
  %v5041 = vld [vmem:[%s0 + $0x10] sm:$0xff]
  %v5042 = vld [vmem:[%s0 + $0x18] sm:$0xff]
  %v5043 = vld [vmem:[%s0 + $0x20] sm:$0xff]
  %v5044 = vld [vmem:[%s0 + $0x28] sm:$0xff]
  %v5045 = vld [vmem:[%s0 + $0x30] sm:$0xff]
  %v5046 = vld [vmem:[%s0 + $0x38] sm:$0xff]
  %v5047 = vld [vmem:[%s0 + $0x40] sm:$0xff]
  %v5048 = vld [vmem:[%s0 + $0x48] sm:$0xff]
  %v5049 = vld [vmem:[%s0 + $0x50] sm:$0xff]
  %v5050 = vld [vmem:[%s0 + $0x58] sm:$0xff]
  %v5051 = vld [vmem:[%s0 + $0x60] sm:$0xff]
  %v5052 = vld [vmem:[%s0 + $0x68] sm:$0xff]
  %v5053 = vld [vmem:[%s0 + $0x70] sm:$0xff]
  %v5054 = vld [vmem:[%s0 + $0x78] sm:$0xff]
  %v5055 = vld [vmem:[%s0 + $0x80] sm:$0xff]
  %v5056 = vld [vmem:[%s0 + $0x88] sm:$0xff]
  %v5057 = vld [vmem:[%s0 + $0x90] sm:$0xff]
  %v5058 = vld [vmem:[%s0 + $0x98] sm:$0xff]
  %v5059 = vld [vmem:[%s0 + $0xa0] sm:$0xff]
  %v5060 = vld [vmem:[%s0 + $0xa8] sm:$0xff]
  %v5061 = vld [vmem:[%s0 + $0xb0] sm:$0xff]
  %v5062 = vld [vmem:[%s0 + $0xb8] sm:$0xff]
  %v5063 = vld [vmem:[%s0 + $0xc0] sm:$0xff]
  %v5064 = vld [vmem:[%s0 + $0xc8] sm:$0xff]
  %v5065 = vld [vmem:[%s0 + $0xd0] sm:$0xff]
  %v5066 = vld [vmem:[%s0 + $0xd8] sm:$0xff]
  %v5067 = vld [vmem:[%s0 + $0xe0] sm:$0xff]
  %v5068 = vld [vmem:[%s0 + $0xe8] sm:$0xff]
  %v5069 = vld [vmem:[%s0 + $0xf0] sm:$0xff]
  %v5070 = vld [vmem:[%s0 + $0xf8] sm:$0xff]
  %v5071 = vld [vmem:[%s0 + $0x100] sm:$0xff]
  %v5072 = vld [vmem:[%s0 + $0x108] sm:$0xff]
  %v5073 = vld [vmem:[%s0 + $0x110] sm:$0xff]
  %v5074 = vld [vmem:[%s0 + $0x118] sm:$0xff]
  %v5075 = vld [vmem:[%s0 + $0x120] sm:$0xff]
  %v5076 = vld [vmem:[%s0 + $0x128] sm:$0xff]
  %v5077 = vld [vmem:[%s0 + $0x130] sm:$0xff]
  %v5078 = vld [vmem:[%s0 + $0x138] sm:$0xff]
  %v5079 = vld [vmem:[%s0 + $0x140] sm:$0xff]
  %v5080 = vld [vmem:[%s0 + $0x148] sm:$0xff]
  %v5081 = vld [vmem:[%s0 + $0x150] sm:$0xff]
  %v5082 = vld [vmem:[%s0 + $0x158] sm:$0xff]
  %v5083 = vld [vmem:[%s0 + $0x160] sm:$0xff]
  %v5084 = vld [vmem:[%s0 + $0x168] sm:$0xff]
  %v5085 = vld [vmem:[%s0 + $0x170] sm:$0xff]
  %v5086 = vld [vmem:[%s0 + $0x178] sm:$0xff]
  %v5087 = vld [vmem:[%s0 + $0x180] sm:$0xff]
  %v5088 = vld [vmem:[%s0 + $0x188] sm:$0xff]
  %v5089 = vld [vmem:[%s0 + $0x190] sm:$0xff]
  %v5090 = vld [vmem:[%s0 + $0x198] sm:$0xff]
  %v5091 = vld [vmem:[%s0 + $0x1a0] sm:$0xff]
  %v5092 = vld [vmem:[%s0 + $0x1a8] sm:$0xff]
  %v5093 = vld [vmem:[%s0 + $0x1b0] sm:$0xff]
  %v5094 = vld [vmem:[%s0 + $0x1b8] sm:$0xff]
  %v5095 = vld [vmem:[%s0 + $0x1c0] sm:$0xff]
  %v5096 = vld [vmem:[%s0 + $0x1c8] sm:$0xff]
  %v5097 = vld [vmem:[%s0 + $0x1d0] sm:$0xff]
  %v5098 = vld [vmem:[%s0 + $0x1d8] sm:$0xff]
  %v5099 = vld [vmem:[%s0 + $0x1e0] sm:$0xff]
  %v5100 = vld [vmem:[%s0 + $0x1e8] sm:$0xff]
  %v5101 = vld [vmem:[%s0 + $0x1f0] sm:$0xff]
  %v5102 = vld [vmem:[%s0 + $0x1f8] sm:$0xff]
  %v5103 = vld [vmem:[%s0 + $0x200] sm:$0xff]
  %v5104 = vld [vmem:[%s0 + $0x208] sm:$0xff]
  %v5105 = vld [vmem:[%s0 + $0x210] sm:$0xff]
  %v5106 = vld [vmem:[%s0 + $0x218] sm:$0xff]
  %v5107 = vld [vmem:[%s0 + $0x220] sm:$0xff]
  %v5108 = vld [vmem:[%s0 + $0x228] sm:$0xff]
  %v5109 = vld [vmem:[%s0 + $0x230] sm:$0xff]
  %v5110 = vld [vmem:[%s0 + $0x238] sm:$0xff]
  %v5111 = vld [vmem:[%s0 + $0x240] sm:$0xff]
  %v5112 = vld [vmem:[%s0 + $0x248] sm:$0xff]
  %v5113 = vld [vmem:[%s0 + $0x250] sm:$0xff]
  %v5114 = vld [vmem:[%s0 + $0x258] sm:$0xff]
  %v5115 = vld [vmem:[%s0 + $0x260] sm:$0xff]
  %v5116 = vld [vmem:[%s0 + $0x268] sm:$0xff]
  %v5117 = vld [vmem:[%s0 + $0x270] sm:$0xff]
  %v5118 = vld [vmem:[%s0 + $0x278] sm:$0xff]
  %v5119 = vld [vmem:[%s0 + $0x280] sm:$0xff]
  %v5120 = vld [vmem:[%s0 + $0x288] sm:$0xff]
  %v5121 = vld [vmem:[%s0 + $0x290] sm:$0xff]
  %v5122 = vld [vmem:[%s0 + $0x298] sm:$0xff]
  %v5123 = vld [vmem:[%s0 + $0x2a0] sm:$0xff]
  %v5124 = vld [vmem:[%s0 + $0x2a8] sm:$0xff]
  %v5125 = vld [vmem:[%s0 + $0x2b0] sm:$0xff]
  %v5126 = vld [vmem:[%s0 + $0x2b8] sm:$0xff]
  %v5127 = vld [vmem:[%s0 + $0x2c0] sm:$0xff]
  %v5128 = vld [vmem:[%s0 + $0x2c8] sm:$0xff]
  %v5129 = vld [vmem:[%s0 + $0x2d0] sm:$0xff]
  %v5130 = vld [vmem:[%s0 + $0x2d8] sm:$0xff]
  %v5131 = vld [vmem:[%s0 + $0x2e0] sm:$0xff]
  %v5132 = vld [vmem:[%s0 + $0x2e8] sm:$0xff]
  %v5133 = vld [vmem:[%s0 + $0x2f0] sm:$0xff]
  %v5134 = vld [vmem:[%s0 + $0x2f8] sm:$0xff]
  %v5135 = vld [vmem:[%s0 + $0x300] sm:$0xff]
  %v5136 = vld [vmem:[%s0 + $0x308] sm:$0xff]
  %v5137 = vld [vmem:[%s0 + $0x310] sm:$0xff]
  %v5138 = vld [vmem:[%s0 + $0x318] sm:$0xff]
  %v5139 = vld [vmem:[%s0 + $0x320] sm:$0xff]
  %v5140 = vld [vmem:[%s0 + $0x328] sm:$0xff]
  %v5141 = vld [vmem:[%s0 + $0x330] sm:$0xff]
  %v5142 = vld [vmem:[%s0 + $0x338] sm:$0xff]
  %v5143 = vld [vmem:[%s0 + $0x340] sm:$0xff]
  %v5144 = vld [vmem:[%s0 + $0x348] sm:$0xff]
  %v5145 = vld [vmem:[%s0 + $0x350] sm:$0xff]
  %v5146 = vld [vmem:[%s0 + $0x358] sm:$0xff]
  %v5147 = vld [vmem:[%s0 + $0x360] sm:$0xff]
  %v5148 = vld [vmem:[%s0 + $0x368] sm:$0xff]
  %v5149 = vld [vmem:[%s0 + $0x370] sm:$0xff]
  %v5150 = vld [vmem:[%s0 + $0x378] sm:$0xff]
  %v5151 = vld [vmem:[%s0 + $0x380] sm:$0xff]
  %v5152 = vld [vmem:[%s0 + $0x388] sm:$0xff]
  %v5153 = vld [vmem:[%s0 + $0x390] sm:$0xff]
  %v5154 = vld [vmem:[%s0 + $0x398] sm:$0xff]
  %v5155 = vld [vmem:[%s0 + $0x3a0] sm:$0xff]
  %v5156 = vld [vmem:[%s0 + $0x3a8] sm:$0xff]
  %v5157 = vld [vmem:[%s0 + $0x3b0] sm:$0xff]
  %v5158 = vld [vmem:[%s0 + $0x3b8] sm:$0xff]
  %v5159 = vld [vmem:[%s0 + $0x3c0] sm:$0xff]
  %v5160 = vld [vmem:[%s0 + $0x3c8] sm:$0xff]
  %v5161 = vld [vmem:[%s0 + $0x3d0] sm:$0xff]
  %v5162 = vld [vmem:[%s0 + $0x3d8] sm:$0xff]
  %v5163 = vld [vmem:[%s0 + $0x3e0] sm:$0xff]
  %v5164 = vld [vmem:[%s0 + $0x3e8] sm:$0xff]
  %v5165 = vld [vmem:[%s0 + $0x3f0] sm:$0xff]
  %v5166 = vld [vmem:[%s0 + $0x3f8] sm:$0xff]
  %v5167 = vmul.f32 %v5039, %v5039
  %v5168 = vmul.f32 %v5040, %v5040
  %v5169 = vmul.f32 %v5041, %v5041
  %v5170 = vmul.f32 %v5042, %v5042
  %v5171 = vmul.f32 %v5043, %v5043
  %v5172 = vmul.f32 %v5044, %v5044
  %v5173 = vmul.f32 %v5045, %v5045
  %v5174 = vmul.f32 %v5046, %v5046
  %v5175 = vmul.f32 %v5047, %v5047
  %v5176 = vmul.f32 %v5048, %v5048
  %v5177 = vmul.f32 %v5049, %v5049
  %v5178 = vmul.f32 %v5050, %v5050
  %v5179 = vmul.f32 %v5051, %v5051
  %v5180 = vmul.f32 %v5052, %v5052
  %v5181 = vmul.f32 %v5053, %v5053
  %v5182 = vmul.f32 %v5054, %v5054
  %v5183 = vmul.f32 %v5055, %v5055
  %v5184 = vmul.f32 %v5056, %v5056
  %v5185 = vmul.f32 %v5057, %v5057
  %v5186 = vmul.f32 %v5058, %v5058
  %v5187 = vmul.f32 %v5059, %v5059
  %v5188 = vmul.f32 %v5060, %v5060
  %v5189 = vmul.f32 %v5061, %v5061
  %v5190 = vmul.f32 %v5062, %v5062
  %v5191 = vmul.f32 %v5063, %v5063
  %v5192 = vmul.f32 %v5064, %v5064
  %v5193 = vmul.f32 %v5065, %v5065
  %v5194 = vmul.f32 %v5066, %v5066
  %v5195 = vmul.f32 %v5067, %v5067
  %v5196 = vmul.f32 %v5068, %v5068
  %v5197 = vmul.f32 %v5069, %v5069
  %v5198 = vmul.f32 %v5070, %v5070
  %v5199 = vmul.f32 %v5071, %v5071
  %v5200 = vmul.f32 %v5072, %v5072
  %v5201 = vmul.f32 %v5073, %v5073
  %v5202 = vmul.f32 %v5074, %v5074
  %v5203 = vmul.f32 %v5075, %v5075
  %v5204 = vmul.f32 %v5076, %v5076
  %v5205 = vmul.f32 %v5077, %v5077
  %v5206 = vmul.f32 %v5078, %v5078
  %v5207 = vmul.f32 %v5079, %v5079
  %v5208 = vmul.f32 %v5080, %v5080
  %v5209 = vmul.f32 %v5081, %v5081
  %v5210 = vmul.f32 %v5082, %v5082
  %v5211 = vmul.f32 %v5083, %v5083
  %v5212 = vmul.f32 %v5084, %v5084
  %v5213 = vmul.f32 %v5085, %v5085
  %v5214 = vmul.f32 %v5086, %v5086
  %v5215 = vmul.f32 %v5087, %v5087
  %v5216 = vmul.f32 %v5088, %v5088
  %v5217 = vmul.f32 %v5089, %v5089
  %v5218 = vmul.f32 %v5090, %v5090
  %v5219 = vmul.f32 %v5091, %v5091
  %v5220 = vmul.f32 %v5092, %v5092
  %v5221 = vmul.f32 %v5093, %v5093
  %v5222 = vmul.f32 %v5094, %v5094
  %v5223 = vmul.f32 %v5095, %v5095
  %v5224 = vmul.f32 %v5096, %v5096
  %v5225 = vmul.f32 %v5097, %v5097
  %v5226 = vmul.f32 %v5098, %v5098
  %v5227 = vmul.f32 %v5099, %v5099
  %v5228 = vmul.f32 %v5100, %v5100
  %v5229 = vmul.f32 %v5101, %v5101
  %v5230 = vmul.f32 %v5102, %v5102
  %v5231 = vmul.f32 %v5103, %v5103
  %v5232 = vmul.f32 %v5104, %v5104
  %v5233 = vmul.f32 %v5105, %v5105
  %v5234 = vmul.f32 %v5106, %v5106
  %v5235 = vmul.f32 %v5107, %v5107
  %v5236 = vmul.f32 %v5108, %v5108
  %v5237 = vmul.f32 %v5109, %v5109
  %v5238 = vmul.f32 %v5110, %v5110
  %v5239 = vmul.f32 %v5111, %v5111
  %v5240 = vmul.f32 %v5112, %v5112
  %v5241 = vmul.f32 %v5113, %v5113
  %v5242 = vmul.f32 %v5114, %v5114
  %v5243 = vmul.f32 %v5115, %v5115
  %v5244 = vmul.f32 %v5116, %v5116
  %v5245 = vmul.f32 %v5117, %v5117
  %v5246 = vmul.f32 %v5118, %v5118
  %v5247 = vmul.f32 %v5119, %v5119
  %v5248 = vmul.f32 %v5120, %v5120
  %v5249 = vmul.f32 %v5121, %v5121
  %v5250 = vmul.f32 %v5122, %v5122
  %v5251 = vmul.f32 %v5123, %v5123
  %v5252 = vmul.f32 %v5124, %v5124
  %v5253 = vmul.f32 %v5125, %v5125
  %v5254 = vmul.f32 %v5126, %v5126
  %v5255 = vmul.f32 %v5127, %v5127
  %v5256 = vmul.f32 %v5128, %v5128
  %v5257 = vmul.f32 %v5129, %v5129
  %v5258 = vmul.f32 %v5130, %v5130
  %v5259 = vmul.f32 %v5131, %v5131
  %v5260 = vmul.f32 %v5132, %v5132
  %v5261 = vmul.f32 %v5133, %v5133
  %v5262 = vmul.f32 %v5134, %v5134
  %v5263 = vmul.f32 %v5135, %v5135
  %v5264 = vmul.f32 %v5136, %v5136
  %v5265 = vmul.f32 %v5137, %v5137
  %v5266 = vmul.f32 %v5138, %v5138
  %v5267 = vmul.f32 %v5139, %v5139
  %v5268 = vmul.f32 %v5140, %v5140
  %v5269 = vmul.f32 %v5141, %v5141
  %v5270 = vmul.f32 %v5142, %v5142
  %v5271 = vmul.f32 %v5143, %v5143
  %v5272 = vmul.f32 %v5144, %v5144
  %v5273 = vmul.f32 %v5145, %v5145
  %v5274 = vmul.f32 %v5146, %v5146
  %v5275 = vmul.f32 %v5147, %v5147
  %v5276 = vmul.f32 %v5148, %v5148
  %v5277 = vmul.f32 %v5149, %v5149
  %v5278 = vmul.f32 %v5150, %v5150
  %v5279 = vmul.f32 %v5151, %v5151
  %v5280 = vmul.f32 %v5152, %v5152
  %v5281 = vmul.f32 %v5153, %v5153
  %v5282 = vmul.f32 %v5154, %v5154
  %v5283 = vmul.f32 %v5155, %v5155
  %v5284 = vmul.f32 %v5156, %v5156
  %v5285 = vmul.f32 %v5157, %v5157
  %v5286 = vmul.f32 %v5158, %v5158
  %v5287 = vmul.f32 %v5159, %v5159
  %v5288 = vmul.f32 %v5160, %v5160
  %v5289 = vmul.f32 %v5161, %v5161
  %v5290 = vmul.f32 %v5162, %v5162
  %v5291 = vmul.f32 %v5163, %v5163
  %v5292 = vmul.f32 %v5164, %v5164
  %v5293 = vmul.f32 %v5165, %v5165
  %v5294 = vmul.f32 %v5166, %v5166
  %v5295 = vsel %vm87, %v5167, 0.0
  %5296 = vadd.xlane.f32.xlu0 %v5295
  %v5297 = vpop.xlane.xlu0 %5296
  %v5298 = vsel %vm87, %v5168, 0.0
  %5299 = vadd.xlane.f32.xlu0 %v5298
  %v5300 = vpop.xlane.xlu0 %5299
  %v5301 = vsel %vm87, %v5169, 0.0
  %5302 = vadd.xlane.f32.xlu0 %v5301
  %v5303 = vpop.xlane.xlu0 %5302
  %v5304 = vsel %vm87, %v5170, 0.0
  %5305 = vadd.xlane.f32.xlu0 %v5304
  %v5306 = vpop.xlane.xlu0 %5305
  %v5307 = vsel %vm87, %v5171, 0.0
  %5308 = vadd.xlane.f32.xlu0 %v5307
  %v5309 = vpop.xlane.xlu0 %5308
  %v5310 = vsel %vm87, %v5172, 0.0
  %5311 = vadd.xlane.f32.xlu0 %v5310
  %v5312 = vpop.xlane.xlu0 %5311
  %v5313 = vsel %vm87, %v5173, 0.0
  %5314 = vadd.xlane.f32.xlu0 %v5313
  %v5315 = vpop.xlane.xlu0 %5314
  %v5316 = vsel %vm87, %v5174, 0.0
  %5317 = vadd.xlane.f32.xlu0 %v5316
  %v5318 = vpop.xlane.xlu0 %5317
  %v5319 = vsel %vm87, %v5175, 0.0
  %5320 = vadd.xlane.f32.xlu0 %v5319
  %v5321 = vpop.xlane.xlu0 %5320
  %v5322 = vsel %vm87, %v5176, 0.0
  %5323 = vadd.xlane.f32.xlu0 %v5322
  %v5324 = vpop.xlane.xlu0 %5323
  %v5325 = vsel %vm87, %v5177, 0.0
  %5326 = vadd.xlane.f32.xlu0 %v5325
  %v5327 = vpop.xlane.xlu0 %5326
  %v5328 = vsel %vm87, %v5178, 0.0
  %5329 = vadd.xlane.f32.xlu0 %v5328
  %v5330 = vpop.xlane.xlu0 %5329
  %v5331 = vsel %vm87, %v5179, 0.0
  %5332 = vadd.xlane.f32.xlu0 %v5331
  %v5333 = vpop.xlane.xlu0 %5332
  %v5334 = vsel %vm87, %v5180, 0.0
  %5335 = vadd.xlane.f32.xlu0 %v5334
  %v5336 = vpop.xlane.xlu0 %5335
  %v5337 = vsel %vm87, %v5181, 0.0
  %5338 = vadd.xlane.f32.xlu0 %v5337
  %v5339 = vpop.xlane.xlu0 %5338
  %v5340 = vsel %vm87, %v5182, 0.0
  %5341 = vadd.xlane.f32.xlu0 %v5340
  %v5342 = vpop.xlane.xlu0 %5341
  %v5343 = vsel %vm87, %v5183, 0.0
  %5344 = vadd.xlane.f32.xlu0 %v5343
  %v5345 = vpop.xlane.xlu0 %5344
  %v5346 = vsel %vm87, %v5184, 0.0
  %5347 = vadd.xlane.f32.xlu0 %v5346
  %v5348 = vpop.xlane.xlu0 %5347
  %v5349 = vsel %vm87, %v5185, 0.0
  %5350 = vadd.xlane.f32.xlu0 %v5349
  %v5351 = vpop.xlane.xlu0 %5350
  %v5352 = vsel %vm87, %v5186, 0.0
  %5353 = vadd.xlane.f32.xlu0 %v5352
  %v5354 = vpop.xlane.xlu0 %5353
  %v5355 = vsel %vm87, %v5187, 0.0
  %5356 = vadd.xlane.f32.xlu0 %v5355
  %v5357 = vpop.xlane.xlu0 %5356
  %v5358 = vsel %vm87, %v5188, 0.0
  %5359 = vadd.xlane.f32.xlu0 %v5358
  %v5360 = vpop.xlane.xlu0 %5359
  %v5361 = vsel %vm87, %v5189, 0.0
  %5362 = vadd.xlane.f32.xlu0 %v5361
  %v5363 = vpop.xlane.xlu0 %5362
  %v5364 = vsel %vm87, %v5190, 0.0
  %5365 = vadd.xlane.f32.xlu0 %v5364
  %v5366 = vpop.xlane.xlu0 %5365
  %v5367 = vsel %vm87, %v5191, 0.0
  %5368 = vadd.xlane.f32.xlu0 %v5367
  %v5369 = vpop.xlane.xlu0 %5368
  %v5370 = vsel %vm87, %v5192, 0.0
  %5371 = vadd.xlane.f32.xlu0 %v5370
  %v5372 = vpop.xlane.xlu0 %5371
  %v5373 = vsel %vm87, %v5193, 0.0
  %5374 = vadd.xlane.f32.xlu0 %v5373
  %v5375 = vpop.xlane.xlu0 %5374
  %v5376 = vsel %vm87, %v5194, 0.0
  %5377 = vadd.xlane.f32.xlu0 %v5376
  %v5378 = vpop.xlane.xlu0 %5377
  %v5379 = vsel %vm87, %v5195, 0.0
  %5380 = vadd.xlane.f32.xlu0 %v5379
  %v5381 = vpop.xlane.xlu0 %5380
  %v5382 = vsel %vm87, %v5196, 0.0
  %5383 = vadd.xlane.f32.xlu0 %v5382
  %v5384 = vpop.xlane.xlu0 %5383
  %v5385 = vsel %vm87, %v5197, 0.0
  %5386 = vadd.xlane.f32.xlu0 %v5385
  %v5387 = vpop.xlane.xlu0 %5386
  %v5388 = vsel %vm87, %v5198, 0.0
  %5389 = vadd.xlane.f32.xlu0 %v5388
  %v5390 = vpop.xlane.xlu0 %5389
  %v5391 = vsel %vm87, %v5199, 0.0
  %5392 = vadd.xlane.f32.xlu0 %v5391
  %v5393 = vpop.xlane.xlu0 %5392
  %v5394 = vsel %vm87, %v5200, 0.0
  %5395 = vadd.xlane.f32.xlu0 %v5394
  %v5396 = vpop.xlane.xlu0 %5395
  %v5397 = vsel %vm87, %v5201, 0.0
  %5398 = vadd.xlane.f32.xlu0 %v5397
  %v5399 = vpop.xlane.xlu0 %5398
  %v5400 = vsel %vm87, %v5202, 0.0
  %5401 = vadd.xlane.f32.xlu0 %v5400
  %v5402 = vpop.xlane.xlu0 %5401
  %v5403 = vsel %vm87, %v5203, 0.0
  %5404 = vadd.xlane.f32.xlu0 %v5403
  %v5405 = vpop.xlane.xlu0 %5404
  %v5406 = vsel %vm87, %v5204, 0.0
  %5407 = vadd.xlane.f32.xlu0 %v5406
  %v5408 = vpop.xlane.xlu0 %5407
  %v5409 = vsel %vm87, %v5205, 0.0
  %5410 = vadd.xlane.f32.xlu0 %v5409
  %v5411 = vpop.xlane.xlu0 %5410
  %v5412 = vsel %vm87, %v5206, 0.0
  %5413 = vadd.xlane.f32.xlu0 %v5412
  %v5414 = vpop.xlane.xlu0 %5413
  %v5415 = vsel %vm87, %v5207, 0.0
  %5416 = vadd.xlane.f32.xlu0 %v5415
  %v5417 = vpop.xlane.xlu0 %5416
  %v5418 = vsel %vm87, %v5208, 0.0
  %5419 = vadd.xlane.f32.xlu0 %v5418
  %v5420 = vpop.xlane.xlu0 %5419
  %v5421 = vsel %vm87, %v5209, 0.0
  %5422 = vadd.xlane.f32.xlu0 %v5421
  %v5423 = vpop.xlane.xlu0 %5422
  %v5424 = vsel %vm87, %v5210, 0.0
  %5425 = vadd.xlane.f32.xlu0 %v5424
  %v5426 = vpop.xlane.xlu0 %5425
  %v5427 = vsel %vm87, %v5211, 0.0
  %5428 = vadd.xlane.f32.xlu0 %v5427
  %v5429 = vpop.xlane.xlu0 %5428
  %v5430 = vsel %vm87, %v5212, 0.0
  %5431 = vadd.xlane.f32.xlu0 %v5430
  %v5432 = vpop.xlane.xlu0 %5431
  %v5433 = vsel %vm87, %v5213, 0.0
  %5434 = vadd.xlane.f32.xlu0 %v5433
  %v5435 = vpop.xlane.xlu0 %5434
  %v5436 = vsel %vm87, %v5214, 0.0
  %5437 = vadd.xlane.f32.xlu0 %v5436
  %v5438 = vpop.xlane.xlu0 %5437
  %v5439 = vsel %vm87, %v5215, 0.0
  %5440 = vadd.xlane.f32.xlu0 %v5439
  %v5441 = vpop.xlane.xlu0 %5440
  %v5442 = vsel %vm87, %v5216, 0.0
  %5443 = vadd.xlane.f32.xlu0 %v5442
  %v5444 = vpop.xlane.xlu0 %5443
  %v5445 = vsel %vm87, %v5217, 0.0
  %5446 = vadd.xlane.f32.xlu0 %v5445
  %v5447 = vpop.xlane.xlu0 %5446
  %v5448 = vsel %vm87, %v5218, 0.0
  %5449 = vadd.xlane.f32.xlu0 %v5448
  %v5450 = vpop.xlane.xlu0 %5449
  %v5451 = vsel %vm87, %v5219, 0.0
  %5452 = vadd.xlane.f32.xlu0 %v5451
  %v5453 = vpop.xlane.xlu0 %5452
  %v5454 = vsel %vm87, %v5220, 0.0
  %5455 = vadd.xlane.f32.xlu0 %v5454
  %v5456 = vpop.xlane.xlu0 %5455
  %v5457 = vsel %vm87, %v5221, 0.0
  %5458 = vadd.xlane.f32.xlu0 %v5457
  %v5459 = vpop.xlane.xlu0 %5458
  %v5460 = vsel %vm87, %v5222, 0.0
  %5461 = vadd.xlane.f32.xlu0 %v5460
  %v5462 = vpop.xlane.xlu0 %5461
  %v5463 = vsel %vm87, %v5223, 0.0
  %5464 = vadd.xlane.f32.xlu0 %v5463
  %v5465 = vpop.xlane.xlu0 %5464
  %v5466 = vsel %vm87, %v5224, 0.0
  %5467 = vadd.xlane.f32.xlu0 %v5466
  %v5468 = vpop.xlane.xlu0 %5467
  %v5469 = vsel %vm87, %v5225, 0.0
  %5470 = vadd.xlane.f32.xlu0 %v5469
  %v5471 = vpop.xlane.xlu0 %5470
  %v5472 = vsel %vm87, %v5226, 0.0
  %5473 = vadd.xlane.f32.xlu0 %v5472
  %v5474 = vpop.xlane.xlu0 %5473
  %v5475 = vsel %vm87, %v5227, 0.0
  %5476 = vadd.xlane.f32.xlu0 %v5475
  %v5477 = vpop.xlane.xlu0 %5476
  %v5478 = vsel %vm87, %v5228, 0.0
  %5479 = vadd.xlane.f32.xlu0 %v5478
  %v5480 = vpop.xlane.xlu0 %5479
  %v5481 = vsel %vm87, %v5229, 0.0
  %5482 = vadd.xlane.f32.xlu0 %v5481
  %v5483 = vpop.xlane.xlu0 %5482
  %v5484 = vsel %vm87, %v5230, 0.0
  %5485 = vadd.xlane.f32.xlu0 %v5484
  %v5486 = vpop.xlane.xlu0 %5485
  %v5487 = vsel %vm87, %v5231, 0.0
  %5488 = vadd.xlane.f32.xlu0 %v5487
  %v5489 = vpop.xlane.xlu0 %5488
  %v5490 = vsel %vm87, %v5232, 0.0
  %5491 = vadd.xlane.f32.xlu0 %v5490
  %v5492 = vpop.xlane.xlu0 %5491
  %v5493 = vsel %vm87, %v5233, 0.0
  %5494 = vadd.xlane.f32.xlu0 %v5493
  %v5495 = vpop.xlane.xlu0 %5494
  %v5496 = vsel %vm87, %v5234, 0.0
  %5497 = vadd.xlane.f32.xlu0 %v5496
  %v5498 = vpop.xlane.xlu0 %5497
  %v5499 = vsel %vm87, %v5235, 0.0
  %5500 = vadd.xlane.f32.xlu0 %v5499
  %v5501 = vpop.xlane.xlu0 %5500
  %v5502 = vsel %vm87, %v5236, 0.0
  %5503 = vadd.xlane.f32.xlu0 %v5502
  %v5504 = vpop.xlane.xlu0 %5503
  %v5505 = vsel %vm87, %v5237, 0.0
  %5506 = vadd.xlane.f32.xlu0 %v5505
  %v5507 = vpop.xlane.xlu0 %5506
  %v5508 = vsel %vm87, %v5238, 0.0
  %5509 = vadd.xlane.f32.xlu0 %v5508
  %v5510 = vpop.xlane.xlu0 %5509
  %v5511 = vsel %vm87, %v5239, 0.0
  %5512 = vadd.xlane.f32.xlu0 %v5511
  %v5513 = vpop.xlane.xlu0 %5512
  %v5514 = vsel %vm87, %v5240, 0.0
  %5515 = vadd.xlane.f32.xlu0 %v5514
  %v5516 = vpop.xlane.xlu0 %5515
  %v5517 = vsel %vm87, %v5241, 0.0
  %5518 = vadd.xlane.f32.xlu0 %v5517
  %v5519 = vpop.xlane.xlu0 %5518
  %v5520 = vsel %vm87, %v5242, 0.0
  %5521 = vadd.xlane.f32.xlu0 %v5520
  %v5522 = vpop.xlane.xlu0 %5521
  %v5523 = vsel %vm87, %v5243, 0.0
  %5524 = vadd.xlane.f32.xlu0 %v5523
  %v5525 = vpop.xlane.xlu0 %5524
  %v5526 = vsel %vm87, %v5244, 0.0
  %5527 = vadd.xlane.f32.xlu0 %v5526
  %v5528 = vpop.xlane.xlu0 %5527
  %v5529 = vsel %vm87, %v5245, 0.0
  %5530 = vadd.xlane.f32.xlu0 %v5529
  %v5531 = vpop.xlane.xlu0 %5530
  %v5532 = vsel %vm87, %v5246, 0.0
  %5533 = vadd.xlane.f32.xlu0 %v5532
  %v5534 = vpop.xlane.xlu0 %5533
  %v5535 = vsel %vm87, %v5247, 0.0
  %5536 = vadd.xlane.f32.xlu0 %v5535
  %v5537 = vpop.xlane.xlu0 %5536
  %v5538 = vsel %vm87, %v5248, 0.0
  %5539 = vadd.xlane.f32.xlu0 %v5538
  %v5540 = vpop.xlane.xlu0 %5539
  %v5541 = vsel %vm87, %v5249, 0.0
  %5542 = vadd.xlane.f32.xlu0 %v5541
  %v5543 = vpop.xlane.xlu0 %5542
  %v5544 = vsel %vm87, %v5250, 0.0
  %5545 = vadd.xlane.f32.xlu0 %v5544
  %v5546 = vpop.xlane.xlu0 %5545
  %v5547 = vsel %vm87, %v5251, 0.0
  %5548 = vadd.xlane.f32.xlu0 %v5547
  %v5549 = vpop.xlane.xlu0 %5548
  %v5550 = vsel %vm87, %v5252, 0.0
  %5551 = vadd.xlane.f32.xlu0 %v5550
  %v5552 = vpop.xlane.xlu0 %5551
  %v5553 = vsel %vm87, %v5253, 0.0
  %5554 = vadd.xlane.f32.xlu0 %v5553
  %v5555 = vpop.xlane.xlu0 %5554
  %v5556 = vsel %vm87, %v5254, 0.0
  %5557 = vadd.xlane.f32.xlu0 %v5556
  %v5558 = vpop.xlane.xlu0 %5557
  %v5559 = vsel %vm87, %v5255, 0.0
  %5560 = vadd.xlane.f32.xlu0 %v5559
  %v5561 = vpop.xlane.xlu0 %5560
  %v5562 = vsel %vm87, %v5256, 0.0
  %5563 = vadd.xlane.f32.xlu0 %v5562
  %v5564 = vpop.xlane.xlu0 %5563
  %v5565 = vsel %vm87, %v5257, 0.0
  %5566 = vadd.xlane.f32.xlu0 %v5565
  %v5567 = vpop.xlane.xlu0 %5566
  %v5568 = vsel %vm87, %v5258, 0.0
  %5569 = vadd.xlane.f32.xlu0 %v5568
  %v5570 = vpop.xlane.xlu0 %5569
  %v5571 = vsel %vm87, %v5259, 0.0
  %5572 = vadd.xlane.f32.xlu0 %v5571
  %v5573 = vpop.xlane.xlu0 %5572
  %v5574 = vsel %vm87, %v5260, 0.0
  %5575 = vadd.xlane.f32.xlu0 %v5574
  %v5576 = vpop.xlane.xlu0 %5575
  %v5577 = vsel %vm87, %v5261, 0.0
  %5578 = vadd.xlane.f32.xlu0 %v5577
  %v5579 = vpop.xlane.xlu0 %5578
  %v5580 = vsel %vm87, %v5262, 0.0
  %5581 = vadd.xlane.f32.xlu0 %v5580
  %v5582 = vpop.xlane.xlu0 %5581
  %v5583 = vsel %vm87, %v5263, 0.0
  %5584 = vadd.xlane.f32.xlu0 %v5583
  %v5585 = vpop.xlane.xlu0 %5584
  %v5586 = vsel %vm87, %v5264, 0.0
  %5587 = vadd.xlane.f32.xlu0 %v5586
  %v5588 = vpop.xlane.xlu0 %5587
  %v5589 = vsel %vm87, %v5265, 0.0
  %5590 = vadd.xlane.f32.xlu0 %v5589
  %v5591 = vpop.xlane.xlu0 %5590
  %v5592 = vsel %vm87, %v5266, 0.0
  %5593 = vadd.xlane.f32.xlu0 %v5592
  %v5594 = vpop.xlane.xlu0 %5593
  %v5595 = vsel %vm87, %v5267, 0.0
  %5596 = vadd.xlane.f32.xlu0 %v5595
  %v5597 = vpop.xlane.xlu0 %5596
  %v5598 = vsel %vm87, %v5268, 0.0
  %5599 = vadd.xlane.f32.xlu0 %v5598
  %v5600 = vpop.xlane.xlu0 %5599
  %v5601 = vsel %vm87, %v5269, 0.0
  %5602 = vadd.xlane.f32.xlu0 %v5601
  %v5603 = vpop.xlane.xlu0 %5602
  %v5604 = vsel %vm87, %v5270, 0.0
  %5605 = vadd.xlane.f32.xlu0 %v5604
  %v5606 = vpop.xlane.xlu0 %5605
  %v5607 = vsel %vm87, %v5271, 0.0
  %5608 = vadd.xlane.f32.xlu0 %v5607
  %v5609 = vpop.xlane.xlu0 %5608
  %v5610 = vsel %vm87, %v5272, 0.0
  %5611 = vadd.xlane.f32.xlu0 %v5610
  %v5612 = vpop.xlane.xlu0 %5611
  %v5613 = vsel %vm87, %v5273, 0.0
  %5614 = vadd.xlane.f32.xlu0 %v5613
  %v5615 = vpop.xlane.xlu0 %5614
  %v5616 = vsel %vm87, %v5274, 0.0
  %5617 = vadd.xlane.f32.xlu0 %v5616
  %v5618 = vpop.xlane.xlu0 %5617
  %v5619 = vsel %vm87, %v5275, 0.0
  %5620 = vadd.xlane.f32.xlu0 %v5619
  %v5621 = vpop.xlane.xlu0 %5620
  %v5622 = vsel %vm87, %v5276, 0.0
  %5623 = vadd.xlane.f32.xlu0 %v5622
  %v5624 = vpop.xlane.xlu0 %5623
  %v5625 = vsel %vm87, %v5277, 0.0
  %5626 = vadd.xlane.f32.xlu0 %v5625
  %v5627 = vpop.xlane.xlu0 %5626
  %v5628 = vsel %vm87, %v5278, 0.0
  %5629 = vadd.xlane.f32.xlu0 %v5628
  %v5630 = vpop.xlane.xlu0 %5629
  %v5631 = vsel %vm87, %v5279, 0.0
  %5632 = vadd.xlane.f32.xlu0 %v5631
  %v5633 = vpop.xlane.xlu0 %5632
  %v5634 = vsel %vm87, %v5280, 0.0
  %5635 = vadd.xlane.f32.xlu0 %v5634
  %v5636 = vpop.xlane.xlu0 %5635
  %v5637 = vsel %vm87, %v5281, 0.0
  %5638 = vadd.xlane.f32.xlu0 %v5637
  %v5639 = vpop.xlane.xlu0 %5638
  %v5640 = vsel %vm87, %v5282, 0.0
  %5641 = vadd.xlane.f32.xlu0 %v5640
  %v5642 = vpop.xlane.xlu0 %5641
  %v5643 = vsel %vm87, %v5283, 0.0
  %5644 = vadd.xlane.f32.xlu0 %v5643
  %v5645 = vpop.xlane.xlu0 %5644
  %v5646 = vsel %vm87, %v5284, 0.0
  %5647 = vadd.xlane.f32.xlu0 %v5646
  %v5648 = vpop.xlane.xlu0 %5647
  %v5649 = vsel %vm87, %v5285, 0.0
  %5650 = vadd.xlane.f32.xlu0 %v5649
  %v5651 = vpop.xlane.xlu0 %5650
  %v5652 = vsel %vm87, %v5286, 0.0
  %5653 = vadd.xlane.f32.xlu0 %v5652
  %v5654 = vpop.xlane.xlu0 %5653
  %v5655 = vsel %vm87, %v5287, 0.0
  %5656 = vadd.xlane.f32.xlu0 %v5655
  %v5657 = vpop.xlane.xlu0 %5656
  %v5658 = vsel %vm87, %v5288, 0.0
  %5659 = vadd.xlane.f32.xlu0 %v5658
  %v5660 = vpop.xlane.xlu0 %5659
  %v5661 = vsel %vm87, %v5289, 0.0
  %5662 = vadd.xlane.f32.xlu0 %v5661
  %v5663 = vpop.xlane.xlu0 %5662
  %v5664 = vsel %vm87, %v5290, 0.0
  %5665 = vadd.xlane.f32.xlu0 %v5664
  %v5666 = vpop.xlane.xlu0 %5665
  %v5667 = vsel %vm87, %v5291, 0.0
  %5668 = vadd.xlane.f32.xlu0 %v5667
  %v5669 = vpop.xlane.xlu0 %5668
  %v5670 = vsel %vm87, %v5292, 0.0
  %5671 = vadd.xlane.f32.xlu0 %v5670
  %v5672 = vpop.xlane.xlu0 %5671
  %v5673 = vsel %vm87, %v5293, 0.0
  %5674 = vadd.xlane.f32.xlu0 %v5673
  %v5675 = vpop.xlane.xlu0 %5674
  %v5676 = vsel %vm87, %v5294, 0.0
  %5677 = vadd.xlane.f32.xlu0 %v5676
  %v5678 = vpop.xlane.xlu0 %5677
  %v5679 = vmax.f32 %v5297, 1e-24
  %v5680 = vmax.f32 %v5300, 1e-24
  %v5681 = vmax.f32 %v5303, 1e-24
  %v5682 = vmax.f32 %v5306, 1e-24
  %v5683 = vmax.f32 %v5309, 1e-24
  %v5684 = vmax.f32 %v5312, 1e-24
  %v5685 = vmax.f32 %v5315, 1e-24
  %v5686 = vmax.f32 %v5318, 1e-24
  %v5687 = vmax.f32 %v5321, 1e-24
  %v5688 = vmax.f32 %v5324, 1e-24
  %v5689 = vmax.f32 %v5327, 1e-24
  %v5690 = vmax.f32 %v5330, 1e-24
  %v5691 = vmax.f32 %v5333, 1e-24
  %v5692 = vmax.f32 %v5336, 1e-24
  %v5693 = vmax.f32 %v5339, 1e-24
  %v5694 = vmax.f32 %v5342, 1e-24
  %v5695 = vmax.f32 %v5345, 1e-24
  %v5696 = vmax.f32 %v5348, 1e-24
  %v5697 = vmax.f32 %v5351, 1e-24
  %v5698 = vmax.f32 %v5354, 1e-24
  %v5699 = vmax.f32 %v5357, 1e-24
  %v5700 = vmax.f32 %v5360, 1e-24
  %v5701 = vmax.f32 %v5363, 1e-24
  %v5702 = vmax.f32 %v5366, 1e-24
  %v5703 = vmax.f32 %v5369, 1e-24
  %v5704 = vmax.f32 %v5372, 1e-24
  %v5705 = vmax.f32 %v5375, 1e-24
  %v5706 = vmax.f32 %v5378, 1e-24
  %v5707 = vmax.f32 %v5381, 1e-24
  %v5708 = vmax.f32 %v5384, 1e-24
  %v5709 = vmax.f32 %v5387, 1e-24
  %v5710 = vmax.f32 %v5390, 1e-24
  %v5711 = vmax.f32 %v5393, 1e-24
  %v5712 = vmax.f32 %v5396, 1e-24
  %v5713 = vmax.f32 %v5399, 1e-24
  %v5714 = vmax.f32 %v5402, 1e-24
  %v5715 = vmax.f32 %v5405, 1e-24
  %v5716 = vmax.f32 %v5408, 1e-24
  %v5717 = vmax.f32 %v5411, 1e-24
  %v5718 = vmax.f32 %v5414, 1e-24
  %v5719 = vmax.f32 %v5417, 1e-24
  %v5720 = vmax.f32 %v5420, 1e-24
  %v5721 = vmax.f32 %v5423, 1e-24
  %v5722 = vmax.f32 %v5426, 1e-24
  %v5723 = vmax.f32 %v5429, 1e-24
  %v5724 = vmax.f32 %v5432, 1e-24
  %v5725 = vmax.f32 %v5435, 1e-24
  %v5726 = vmax.f32 %v5438, 1e-24
  %v5727 = vmax.f32 %v5441, 1e-24
  %v5728 = vmax.f32 %v5444, 1e-24
  %v5729 = vmax.f32 %v5447, 1e-24
  %v5730 = vmax.f32 %v5450, 1e-24
  %v5731 = vmax.f32 %v5453, 1e-24
  %v5732 = vmax.f32 %v5456, 1e-24
  %v5733 = vmax.f32 %v5459, 1e-24
  %v5734 = vmax.f32 %v5462, 1e-24
  %v5735 = vmax.f32 %v5465, 1e-24
  %v5736 = vmax.f32 %v5468, 1e-24
  %v5737 = vmax.f32 %v5471, 1e-24
  %v5738 = vmax.f32 %v5474, 1e-24
  %v5739 = vmax.f32 %v5477, 1e-24
  %v5740 = vmax.f32 %v5480, 1e-24
  %v5741 = vmax.f32 %v5483, 1e-24
  %v5742 = vmax.f32 %v5486, 1e-24
  %v5743 = vmax.f32 %v5489, 1e-24
  %v5744 = vmax.f32 %v5492, 1e-24
  %v5745 = vmax.f32 %v5495, 1e-24
  %v5746 = vmax.f32 %v5498, 1e-24
  %v5747 = vmax.f32 %v5501, 1e-24
  %v5748 = vmax.f32 %v5504, 1e-24
  %v5749 = vmax.f32 %v5507, 1e-24
  %v5750 = vmax.f32 %v5510, 1e-24
  %v5751 = vmax.f32 %v5513, 1e-24
  %v5752 = vmax.f32 %v5516, 1e-24
  %v5753 = vmax.f32 %v5519, 1e-24
  %v5754 = vmax.f32 %v5522, 1e-24
  %v5755 = vmax.f32 %v5525, 1e-24
  %v5756 = vmax.f32 %v5528, 1e-24
  %v5757 = vmax.f32 %v5531, 1e-24
  %v5758 = vmax.f32 %v5534, 1e-24
  %v5759 = vmax.f32 %v5537, 1e-24
  %v5760 = vmax.f32 %v5540, 1e-24
  %v5761 = vmax.f32 %v5543, 1e-24
  %v5762 = vmax.f32 %v5546, 1e-24
  %v5763 = vmax.f32 %v5549, 1e-24
  %v5764 = vmax.f32 %v5552, 1e-24
  %v5765 = vmax.f32 %v5555, 1e-24
  %v5766 = vmax.f32 %v5558, 1e-24
  %v5767 = vmax.f32 %v5561, 1e-24
  %v5768 = vmax.f32 %v5564, 1e-24
  %v5769 = vmax.f32 %v5567, 1e-24
  %v5770 = vmax.f32 %v5570, 1e-24
  %v5771 = vmax.f32 %v5573, 1e-24
  %v5772 = vmax.f32 %v5576, 1e-24
  %v5773 = vmax.f32 %v5579, 1e-24
  %v5774 = vmax.f32 %v5582, 1e-24
  %v5775 = vmax.f32 %v5585, 1e-24
  %v5776 = vmax.f32 %v5588, 1e-24
  %v5777 = vmax.f32 %v5591, 1e-24
  %v5778 = vmax.f32 %v5594, 1e-24
  %v5779 = vmax.f32 %v5597, 1e-24
  %v5780 = vmax.f32 %v5600, 1e-24
  %v5781 = vmax.f32 %v5603, 1e-24
  %v5782 = vmax.f32 %v5606, 1e-24
  %v5783 = vmax.f32 %v5609, 1e-24
  %v5784 = vmax.f32 %v5612, 1e-24
  %v5785 = vmax.f32 %v5615, 1e-24
  %v5786 = vmax.f32 %v5618, 1e-24
  %v5787 = vmax.f32 %v5621, 1e-24
  %v5788 = vmax.f32 %v5624, 1e-24
  %v5789 = vmax.f32 %v5627, 1e-24
  %v5790 = vmax.f32 %v5630, 1e-24
  %v5791 = vmax.f32 %v5633, 1e-24
  %v5792 = vmax.f32 %v5636, 1e-24
  %v5793 = vmax.f32 %v5639, 1e-24
  %v5794 = vmax.f32 %v5642, 1e-24
  %v5795 = vmax.f32 %v5645, 1e-24
  %v5796 = vmax.f32 %v5648, 1e-24
  %v5797 = vmax.f32 %v5651, 1e-24
  %v5798 = vmax.f32 %v5654, 1e-24
  %v5799 = vmax.f32 %v5657, 1e-24
  %v5800 = vmax.f32 %v5660, 1e-24
  %v5801 = vmax.f32 %v5663, 1e-24
  %v5802 = vmax.f32 %v5666, 1e-24
  %v5803 = vmax.f32 %v5669, 1e-24
  %v5804 = vmax.f32 %v5672, 1e-24
  %v5805 = vmax.f32 %v5675, 1e-24
  %v5806 = vmax.f32 %v5678, 1e-24
  %v5807 = vrsqrt.pop %v5679
  %v5808 = vmul.f32 %v5807, %v5679
  %v5809 = vmul.f32 %v5808, %v5807
  %v5810 = vmul.f32 0.5, %v5809
  %v5811 = vsub.f32 1.5, %v5810
  %v5812 = vmul.f32 %v5807, %v5811
  %vm5813 = vweird.f32 %v5679
  %vm5814 = vweird.f32 %v5807
  %vm5815 = vmor %vm5813, %vm5814
  %v5816 = vsel %vm5815, %v5807, %v5812
  %v5817 = vrsqrt.pop %v5680
  %v5818 = vmul.f32 %v5817, %v5680
  %v5819 = vmul.f32 %v5818, %v5817
  %v5820 = vmul.f32 0.5, %v5819
  %v5821 = vsub.f32 1.5, %v5820
  %v5822 = vmul.f32 %v5817, %v5821
  %vm5823 = vweird.f32 %v5680
  %vm5824 = vweird.f32 %v5817
  %vm5825 = vmor %vm5823, %vm5824
  %v5826 = vsel %vm5825, %v5817, %v5822
  %v5827 = vrsqrt.pop %v5681
  %v5828 = vmul.f32 %v5827, %v5681
  %v5829 = vmul.f32 %v5828, %v5827
  %v5830 = vmul.f32 0.5, %v5829
  %v5831 = vsub.f32 1.5, %v5830
  %v5832 = vmul.f32 %v5827, %v5831
  %vm5833 = vweird.f32 %v5681
  %vm5834 = vweird.f32 %v5827
  %vm5835 = vmor %vm5833, %vm5834
  %v5836 = vsel %vm5835, %v5827, %v5832
  %v5837 = vrsqrt.pop %v5682
  %v5838 = vmul.f32 %v5837, %v5682
  %v5839 = vmul.f32 %v5838, %v5837
  %v5840 = vmul.f32 0.5, %v5839
  %v5841 = vsub.f32 1.5, %v5840
  %v5842 = vmul.f32 %v5837, %v5841
  %vm5843 = vweird.f32 %v5682
  %vm5844 = vweird.f32 %v5837
  %vm5845 = vmor %vm5843, %vm5844
  %v5846 = vsel %vm5845, %v5837, %v5842
  %v5847 = vrsqrt.pop %v5683
  %v5848 = vmul.f32 %v5847, %v5683
  %v5849 = vmul.f32 %v5848, %v5847
  %v5850 = vmul.f32 0.5, %v5849
  %v5851 = vsub.f32 1.5, %v5850
  %v5852 = vmul.f32 %v5847, %v5851
  %vm5853 = vweird.f32 %v5683
  %vm5854 = vweird.f32 %v5847
  %vm5855 = vmor %vm5853, %vm5854
  %v5856 = vsel %vm5855, %v5847, %v5852
  %v5857 = vrsqrt.pop %v5684
  %v5858 = vmul.f32 %v5857, %v5684
  %v5859 = vmul.f32 %v5858, %v5857
  %v5860 = vmul.f32 0.5, %v5859
  %v5861 = vsub.f32 1.5, %v5860
  %v5862 = vmul.f32 %v5857, %v5861
  %vm5863 = vweird.f32 %v5684
  %vm5864 = vweird.f32 %v5857
  %vm5865 = vmor %vm5863, %vm5864
  %v5866 = vsel %vm5865, %v5857, %v5862
  %v5867 = vrsqrt.pop %v5685
  %v5868 = vmul.f32 %v5867, %v5685
  %v5869 = vmul.f32 %v5868, %v5867
  %v5870 = vmul.f32 0.5, %v5869
  %v5871 = vsub.f32 1.5, %v5870
  %v5872 = vmul.f32 %v5867, %v5871
  %vm5873 = vweird.f32 %v5685
  %vm5874 = vweird.f32 %v5867
  %vm5875 = vmor %vm5873, %vm5874
  %v5876 = vsel %vm5875, %v5867, %v5872
  %v5877 = vrsqrt.pop %v5686
  %v5878 = vmul.f32 %v5877, %v5686
  %v5879 = vmul.f32 %v5878, %v5877
  %v5880 = vmul.f32 0.5, %v5879
  %v5881 = vsub.f32 1.5, %v5880
  %v5882 = vmul.f32 %v5877, %v5881
  %vm5883 = vweird.f32 %v5686
  %vm5884 = vweird.f32 %v5877
  %vm5885 = vmor %vm5883, %vm5884
  %v5886 = vsel %vm5885, %v5877, %v5882
  %v5887 = vrsqrt.pop %v5687
  %v5888 = vmul.f32 %v5887, %v5687
  %v5889 = vmul.f32 %v5888, %v5887
  %v5890 = vmul.f32 0.5, %v5889
  %v5891 = vsub.f32 1.5, %v5890
  %v5892 = vmul.f32 %v5887, %v5891
  %vm5893 = vweird.f32 %v5687
  %vm5894 = vweird.f32 %v5887
  %vm5895 = vmor %vm5893, %vm5894
  %v5896 = vsel %vm5895, %v5887, %v5892
  %v5897 = vrsqrt.pop %v5688
  %v5898 = vmul.f32 %v5897, %v5688
  %v5899 = vmul.f32 %v5898, %v5897
  %v5900 = vmul.f32 0.5, %v5899
  %v5901 = vsub.f32 1.5, %v5900
  %v5902 = vmul.f32 %v5897, %v5901
  %vm5903 = vweird.f32 %v5688
  %vm5904 = vweird.f32 %v5897
  %vm5905 = vmor %vm5903, %vm5904
  %v5906 = vsel %vm5905, %v5897, %v5902
  %v5907 = vrsqrt.pop %v5689
  %v5908 = vmul.f32 %v5907, %v5689
  %v5909 = vmul.f32 %v5908, %v5907
  %v5910 = vmul.f32 0.5, %v5909
  %v5911 = vsub.f32 1.5, %v5910
  %v5912 = vmul.f32 %v5907, %v5911
  %vm5913 = vweird.f32 %v5689
  %vm5914 = vweird.f32 %v5907
  %vm5915 = vmor %vm5913, %vm5914
  %v5916 = vsel %vm5915, %v5907, %v5912
  %v5917 = vrsqrt.pop %v5690
  %v5918 = vmul.f32 %v5917, %v5690
  %v5919 = vmul.f32 %v5918, %v5917
  %v5920 = vmul.f32 0.5, %v5919
  %v5921 = vsub.f32 1.5, %v5920
  %v5922 = vmul.f32 %v5917, %v5921
  %vm5923 = vweird.f32 %v5690
  %vm5924 = vweird.f32 %v5917
  %vm5925 = vmor %vm5923, %vm5924
  %v5926 = vsel %vm5925, %v5917, %v5922
  %v5927 = vrsqrt.pop %v5691
  %v5928 = vmul.f32 %v5927, %v5691
  %v5929 = vmul.f32 %v5928, %v5927
  %v5930 = vmul.f32 0.5, %v5929
  %v5931 = vsub.f32 1.5, %v5930
  %v5932 = vmul.f32 %v5927, %v5931
  %vm5933 = vweird.f32 %v5691
  %vm5934 = vweird.f32 %v5927
  %vm5935 = vmor %vm5933, %vm5934
  %v5936 = vsel %vm5935, %v5927, %v5932
  %v5937 = vrsqrt.pop %v5692
  %v5938 = vmul.f32 %v5937, %v5692
  %v5939 = vmul.f32 %v5938, %v5937
  %v5940 = vmul.f32 0.5, %v5939
  %v5941 = vsub.f32 1.5, %v5940
  %v5942 = vmul.f32 %v5937, %v5941
  %vm5943 = vweird.f32 %v5692
  %vm5944 = vweird.f32 %v5937
  %vm5945 = vmor %vm5943, %vm5944
  %v5946 = vsel %vm5945, %v5937, %v5942
  %v5947 = vrsqrt.pop %v5693
  %v5948 = vmul.f32 %v5947, %v5693
  %v5949 = vmul.f32 %v5948, %v5947
  %v5950 = vmul.f32 0.5, %v5949
  %v5951 = vsub.f32 1.5, %v5950
  %v5952 = vmul.f32 %v5947, %v5951
  %vm5953 = vweird.f32 %v5693
  %vm5954 = vweird.f32 %v5947
  %vm5955 = vmor %vm5953, %vm5954
  %v5956 = vsel %vm5955, %v5947, %v5952
  %v5957 = vrsqrt.pop %v5694
  %v5958 = vmul.f32 %v5957, %v5694
  %v5959 = vmul.f32 %v5958, %v5957
  %v5960 = vmul.f32 0.5, %v5959
  %v5961 = vsub.f32 1.5, %v5960
  %v5962 = vmul.f32 %v5957, %v5961
  %vm5963 = vweird.f32 %v5694
  %vm5964 = vweird.f32 %v5957
  %vm5965 = vmor %vm5963, %vm5964
  %v5966 = vsel %vm5965, %v5957, %v5962
  %v5967 = vrsqrt.pop %v5695
  %v5968 = vmul.f32 %v5967, %v5695
  %v5969 = vmul.f32 %v5968, %v5967
  %v5970 = vmul.f32 0.5, %v5969
  %v5971 = vsub.f32 1.5, %v5970
  %v5972 = vmul.f32 %v5967, %v5971
  %vm5973 = vweird.f32 %v5695
  %vm5974 = vweird.f32 %v5967
  %vm5975 = vmor %vm5973, %vm5974
  %v5976 = vsel %vm5975, %v5967, %v5972
  %v5977 = vrsqrt.pop %v5696
  %v5978 = vmul.f32 %v5977, %v5696
  %v5979 = vmul.f32 %v5978, %v5977
  %v5980 = vmul.f32 0.5, %v5979
  %v5981 = vsub.f32 1.5, %v5980
  %v5982 = vmul.f32 %v5977, %v5981
  %vm5983 = vweird.f32 %v5696
  %vm5984 = vweird.f32 %v5977
  %vm5985 = vmor %vm5983, %vm5984
  %v5986 = vsel %vm5985, %v5977, %v5982
  %v5987 = vrsqrt.pop %v5697
  %v5988 = vmul.f32 %v5987, %v5697
  %v5989 = vmul.f32 %v5988, %v5987
  %v5990 = vmul.f32 0.5, %v5989
  %v5991 = vsub.f32 1.5, %v5990
  %v5992 = vmul.f32 %v5987, %v5991
  %vm5993 = vweird.f32 %v5697
  %vm5994 = vweird.f32 %v5987
  %vm5995 = vmor %vm5993, %vm5994
  %v5996 = vsel %vm5995, %v5987, %v5992
  %v5997 = vrsqrt.pop %v5698
  %v5998 = vmul.f32 %v5997, %v5698
  %v5999 = vmul.f32 %v5998, %v5997
  %v6000 = vmul.f32 0.5, %v5999
  %v6001 = vsub.f32 1.5, %v6000
  %v6002 = vmul.f32 %v5997, %v6001
  %vm6003 = vweird.f32 %v5698
  %vm6004 = vweird.f32 %v5997
  %vm6005 = vmor %vm6003, %vm6004
  %v6006 = vsel %vm6005, %v5997, %v6002
  %v6007 = vrsqrt.pop %v5699
  %v6008 = vmul.f32 %v6007, %v5699
  %v6009 = vmul.f32 %v6008, %v6007
  %v6010 = vmul.f32 0.5, %v6009
  %v6011 = vsub.f32 1.5, %v6010
  %v6012 = vmul.f32 %v6007, %v6011
  %vm6013 = vweird.f32 %v5699
  %vm6014 = vweird.f32 %v6007
  %vm6015 = vmor %vm6013, %vm6014
  %v6016 = vsel %vm6015, %v6007, %v6012
  %v6017 = vrsqrt.pop %v5700
  %v6018 = vmul.f32 %v6017, %v5700
  %v6019 = vmul.f32 %v6018, %v6017
  %v6020 = vmul.f32 0.5, %v6019
  %v6021 = vsub.f32 1.5, %v6020
  %v6022 = vmul.f32 %v6017, %v6021
  %vm6023 = vweird.f32 %v5700
  %vm6024 = vweird.f32 %v6017
  %vm6025 = vmor %vm6023, %vm6024
  %v6026 = vsel %vm6025, %v6017, %v6022
  %v6027 = vrsqrt.pop %v5701
  %v6028 = vmul.f32 %v6027, %v5701
  %v6029 = vmul.f32 %v6028, %v6027
  %v6030 = vmul.f32 0.5, %v6029
  %v6031 = vsub.f32 1.5, %v6030
  %v6032 = vmul.f32 %v6027, %v6031
  %vm6033 = vweird.f32 %v5701
  %vm6034 = vweird.f32 %v6027
  %vm6035 = vmor %vm6033, %vm6034
  %v6036 = vsel %vm6035, %v6027, %v6032
  %v6037 = vrsqrt.pop %v5702
  %v6038 = vmul.f32 %v6037, %v5702
  %v6039 = vmul.f32 %v6038, %v6037
  %v6040 = vmul.f32 0.5, %v6039
  %v6041 = vsub.f32 1.5, %v6040
  %v6042 = vmul.f32 %v6037, %v6041
  %vm6043 = vweird.f32 %v5702
  %vm6044 = vweird.f32 %v6037
  %vm6045 = vmor %vm6043, %vm6044
  %v6046 = vsel %vm6045, %v6037, %v6042
  %v6047 = vrsqrt.pop %v5703
  %v6048 = vmul.f32 %v6047, %v5703
  %v6049 = vmul.f32 %v6048, %v6047
  %v6050 = vmul.f32 0.5, %v6049
  %v6051 = vsub.f32 1.5, %v6050
  %v6052 = vmul.f32 %v6047, %v6051
  %vm6053 = vweird.f32 %v5703
  %vm6054 = vweird.f32 %v6047
  %vm6055 = vmor %vm6053, %vm6054
  %v6056 = vsel %vm6055, %v6047, %v6052
  %v6057 = vrsqrt.pop %v5704
  %v6058 = vmul.f32 %v6057, %v5704
  %v6059 = vmul.f32 %v6058, %v6057
  %v6060 = vmul.f32 0.5, %v6059
  %v6061 = vsub.f32 1.5, %v6060
  %v6062 = vmul.f32 %v6057, %v6061
  %vm6063 = vweird.f32 %v5704
  %vm6064 = vweird.f32 %v6057
  %vm6065 = vmor %vm6063, %vm6064
  %v6066 = vsel %vm6065, %v6057, %v6062
  %v6067 = vrsqrt.pop %v5705
  %v6068 = vmul.f32 %v6067, %v5705
  %v6069 = vmul.f32 %v6068, %v6067
  %v6070 = vmul.f32 0.5, %v6069
  %v6071 = vsub.f32 1.5, %v6070
  %v6072 = vmul.f32 %v6067, %v6071
  %vm6073 = vweird.f32 %v5705
  %vm6074 = vweird.f32 %v6067
  %vm6075 = vmor %vm6073, %vm6074
  %v6076 = vsel %vm6075, %v6067, %v6072
  %v6077 = vrsqrt.pop %v5706
  %v6078 = vmul.f32 %v6077, %v5706
  %v6079 = vmul.f32 %v6078, %v6077
  %v6080 = vmul.f32 0.5, %v6079
  %v6081 = vsub.f32 1.5, %v6080
  %v6082 = vmul.f32 %v6077, %v6081
  %vm6083 = vweird.f32 %v5706
  %vm6084 = vweird.f32 %v6077
  %vm6085 = vmor %vm6083, %vm6084
  %v6086 = vsel %vm6085, %v6077, %v6082
  %v6087 = vrsqrt.pop %v5707
  %v6088 = vmul.f32 %v6087, %v5707
  %v6089 = vmul.f32 %v6088, %v6087
  %v6090 = vmul.f32 0.5, %v6089
  %v6091 = vsub.f32 1.5, %v6090
  %v6092 = vmul.f32 %v6087, %v6091
  %vm6093 = vweird.f32 %v5707
  %vm6094 = vweird.f32 %v6087
  %vm6095 = vmor %vm6093, %vm6094
  %v6096 = vsel %vm6095, %v6087, %v6092
  %v6097 = vrsqrt.pop %v5708
  %v6098 = vmul.f32 %v6097, %v5708
  %v6099 = vmul.f32 %v6098, %v6097
  %v6100 = vmul.f32 0.5, %v6099
  %v6101 = vsub.f32 1.5, %v6100
  %v6102 = vmul.f32 %v6097, %v6101
  %vm6103 = vweird.f32 %v5708
  %vm6104 = vweird.f32 %v6097
  %vm6105 = vmor %vm6103, %vm6104
  %v6106 = vsel %vm6105, %v6097, %v6102
  %v6107 = vrsqrt.pop %v5709
  %v6108 = vmul.f32 %v6107, %v5709
  %v6109 = vmul.f32 %v6108, %v6107
  %v6110 = vmul.f32 0.5, %v6109
  %v6111 = vsub.f32 1.5, %v6110
  %v6112 = vmul.f32 %v6107, %v6111
  %vm6113 = vweird.f32 %v5709
  %vm6114 = vweird.f32 %v6107
  %vm6115 = vmor %vm6113, %vm6114
  %v6116 = vsel %vm6115, %v6107, %v6112
  %v6117 = vrsqrt.pop %v5710
  %v6118 = vmul.f32 %v6117, %v5710
  %v6119 = vmul.f32 %v6118, %v6117
  %v6120 = vmul.f32 0.5, %v6119
  %v6121 = vsub.f32 1.5, %v6120
  %v6122 = vmul.f32 %v6117, %v6121
  %vm6123 = vweird.f32 %v5710
  %vm6124 = vweird.f32 %v6117
  %vm6125 = vmor %vm6123, %vm6124
  %v6126 = vsel %vm6125, %v6117, %v6122
  %v6127 = vrsqrt.pop %v5711
  %v6128 = vmul.f32 %v6127, %v5711
  %v6129 = vmul.f32 %v6128, %v6127
  %v6130 = vmul.f32 0.5, %v6129
  %v6131 = vsub.f32 1.5, %v6130
  %v6132 = vmul.f32 %v6127, %v6131
  %vm6133 = vweird.f32 %v5711
  %vm6134 = vweird.f32 %v6127
  %vm6135 = vmor %vm6133, %vm6134
  %v6136 = vsel %vm6135, %v6127, %v6132
  %v6137 = vrsqrt.pop %v5712
  %v6138 = vmul.f32 %v6137, %v5712
  %v6139 = vmul.f32 %v6138, %v6137
  %v6140 = vmul.f32 0.5, %v6139
  %v6141 = vsub.f32 1.5, %v6140
  %v6142 = vmul.f32 %v6137, %v6141
  %vm6143 = vweird.f32 %v5712
  %vm6144 = vweird.f32 %v6137
  %vm6145 = vmor %vm6143, %vm6144
  %v6146 = vsel %vm6145, %v6137, %v6142
  %v6147 = vrsqrt.pop %v5713
  %v6148 = vmul.f32 %v6147, %v5713
  %v6149 = vmul.f32 %v6148, %v6147
  %v6150 = vmul.f32 0.5, %v6149
  %v6151 = vsub.f32 1.5, %v6150
  %v6152 = vmul.f32 %v6147, %v6151
  %vm6153 = vweird.f32 %v5713
  %vm6154 = vweird.f32 %v6147
  %vm6155 = vmor %vm6153, %vm6154
  %v6156 = vsel %vm6155, %v6147, %v6152
  %v6157 = vrsqrt.pop %v5714
  %v6158 = vmul.f32 %v6157, %v5714
  %v6159 = vmul.f32 %v6158, %v6157
  %v6160 = vmul.f32 0.5, %v6159
  %v6161 = vsub.f32 1.5, %v6160
  %v6162 = vmul.f32 %v6157, %v6161
  %vm6163 = vweird.f32 %v5714
  %vm6164 = vweird.f32 %v6157
  %vm6165 = vmor %vm6163, %vm6164
  %v6166 = vsel %vm6165, %v6157, %v6162
  %v6167 = vrsqrt.pop %v5715
  %v6168 = vmul.f32 %v6167, %v5715
  %v6169 = vmul.f32 %v6168, %v6167
  %v6170 = vmul.f32 0.5, %v6169
  %v6171 = vsub.f32 1.5, %v6170
  %v6172 = vmul.f32 %v6167, %v6171
  %vm6173 = vweird.f32 %v5715
  %vm6174 = vweird.f32 %v6167
  %vm6175 = vmor %vm6173, %vm6174
  %v6176 = vsel %vm6175, %v6167, %v6172
  %v6177 = vrsqrt.pop %v5716
  %v6178 = vmul.f32 %v6177, %v5716
  %v6179 = vmul.f32 %v6178, %v6177
  %v6180 = vmul.f32 0.5, %v6179
  %v6181 = vsub.f32 1.5, %v6180
  %v6182 = vmul.f32 %v6177, %v6181
  %vm6183 = vweird.f32 %v5716
  %vm6184 = vweird.f32 %v6177
  %vm6185 = vmor %vm6183, %vm6184
  %v6186 = vsel %vm6185, %v6177, %v6182
  %v6187 = vrsqrt.pop %v5717
  %v6188 = vmul.f32 %v6187, %v5717
  %v6189 = vmul.f32 %v6188, %v6187
  %v6190 = vmul.f32 0.5, %v6189
  %v6191 = vsub.f32 1.5, %v6190
  %v6192 = vmul.f32 %v6187, %v6191
  %vm6193 = vweird.f32 %v5717
  %vm6194 = vweird.f32 %v6187
  %vm6195 = vmor %vm6193, %vm6194
  %v6196 = vsel %vm6195, %v6187, %v6192
  %v6197 = vrsqrt.pop %v5718
  %v6198 = vmul.f32 %v6197, %v5718
  %v6199 = vmul.f32 %v6198, %v6197
  %v6200 = vmul.f32 0.5, %v6199
  %v6201 = vsub.f32 1.5, %v6200
  %v6202 = vmul.f32 %v6197, %v6201
  %vm6203 = vweird.f32 %v5718
  %vm6204 = vweird.f32 %v6197
  %vm6205 = vmor %vm6203, %vm6204
  %v6206 = vsel %vm6205, %v6197, %v6202
  %v6207 = vrsqrt.pop %v5719
  %v6208 = vmul.f32 %v6207, %v5719
  %v6209 = vmul.f32 %v6208, %v6207
  %v6210 = vmul.f32 0.5, %v6209
  %v6211 = vsub.f32 1.5, %v6210
  %v6212 = vmul.f32 %v6207, %v6211
  %vm6213 = vweird.f32 %v5719
  %vm6214 = vweird.f32 %v6207
  %vm6215 = vmor %vm6213, %vm6214
  %v6216 = vsel %vm6215, %v6207, %v6212
  %v6217 = vrsqrt.pop %v5720
  %v6218 = vmul.f32 %v6217, %v5720
  %v6219 = vmul.f32 %v6218, %v6217
  %v6220 = vmul.f32 0.5, %v6219
  %v6221 = vsub.f32 1.5, %v6220
  %v6222 = vmul.f32 %v6217, %v6221
  %vm6223 = vweird.f32 %v5720
  %vm6224 = vweird.f32 %v6217
  %vm6225 = vmor %vm6223, %vm6224
  %v6226 = vsel %vm6225, %v6217, %v6222
  %v6227 = vrsqrt.pop %v5721
  %v6228 = vmul.f32 %v6227, %v5721
  %v6229 = vmul.f32 %v6228, %v6227
  %v6230 = vmul.f32 0.5, %v6229
  %v6231 = vsub.f32 1.5, %v6230
  %v6232 = vmul.f32 %v6227, %v6231
  %vm6233 = vweird.f32 %v5721
  %vm6234 = vweird.f32 %v6227
  %vm6235 = vmor %vm6233, %vm6234
  %v6236 = vsel %vm6235, %v6227, %v6232
  %v6237 = vrsqrt.pop %v5722
  %v6238 = vmul.f32 %v6237, %v5722
  %v6239 = vmul.f32 %v6238, %v6237
  %v6240 = vmul.f32 0.5, %v6239
  %v6241 = vsub.f32 1.5, %v6240
  %v6242 = vmul.f32 %v6237, %v6241
  %vm6243 = vweird.f32 %v5722
  %vm6244 = vweird.f32 %v6237
  %vm6245 = vmor %vm6243, %vm6244
  %v6246 = vsel %vm6245, %v6237, %v6242
  %v6247 = vrsqrt.pop %v5723
  %v6248 = vmul.f32 %v6247, %v5723
  %v6249 = vmul.f32 %v6248, %v6247
  %v6250 = vmul.f32 0.5, %v6249
  %v6251 = vsub.f32 1.5, %v6250
  %v6252 = vmul.f32 %v6247, %v6251
  %vm6253 = vweird.f32 %v5723
  %vm6254 = vweird.f32 %v6247
  %vm6255 = vmor %vm6253, %vm6254
  %v6256 = vsel %vm6255, %v6247, %v6252
  %v6257 = vrsqrt.pop %v5724
  %v6258 = vmul.f32 %v6257, %v5724
  %v6259 = vmul.f32 %v6258, %v6257
  %v6260 = vmul.f32 0.5, %v6259
  %v6261 = vsub.f32 1.5, %v6260
  %v6262 = vmul.f32 %v6257, %v6261
  %vm6263 = vweird.f32 %v5724
  %vm6264 = vweird.f32 %v6257
  %vm6265 = vmor %vm6263, %vm6264
  %v6266 = vsel %vm6265, %v6257, %v6262
  %v6267 = vrsqrt.pop %v5725
  %v6268 = vmul.f32 %v6267, %v5725
  %v6269 = vmul.f32 %v6268, %v6267
  %v6270 = vmul.f32 0.5, %v6269
  %v6271 = vsub.f32 1.5, %v6270
  %v6272 = vmul.f32 %v6267, %v6271
  %vm6273 = vweird.f32 %v5725
  %vm6274 = vweird.f32 %v6267
  %vm6275 = vmor %vm6273, %vm6274
  %v6276 = vsel %vm6275, %v6267, %v6272
  %v6277 = vrsqrt.pop %v5726
  %v6278 = vmul.f32 %v6277, %v5726
  %v6279 = vmul.f32 %v6278, %v6277
  %v6280 = vmul.f32 0.5, %v6279
  %v6281 = vsub.f32 1.5, %v6280
  %v6282 = vmul.f32 %v6277, %v6281
  %vm6283 = vweird.f32 %v5726
  %vm6284 = vweird.f32 %v6277
  %vm6285 = vmor %vm6283, %vm6284
  %v6286 = vsel %vm6285, %v6277, %v6282
  %v6287 = vrsqrt.pop %v5727
  %v6288 = vmul.f32 %v6287, %v5727
  %v6289 = vmul.f32 %v6288, %v6287
  %v6290 = vmul.f32 0.5, %v6289
  %v6291 = vsub.f32 1.5, %v6290
  %v6292 = vmul.f32 %v6287, %v6291
  %vm6293 = vweird.f32 %v5727
  %vm6294 = vweird.f32 %v6287
  %vm6295 = vmor %vm6293, %vm6294
  %v6296 = vsel %vm6295, %v6287, %v6292
  %v6297 = vrsqrt.pop %v5728
  %v6298 = vmul.f32 %v6297, %v5728
  %v6299 = vmul.f32 %v6298, %v6297
  %v6300 = vmul.f32 0.5, %v6299
  %v6301 = vsub.f32 1.5, %v6300
  %v6302 = vmul.f32 %v6297, %v6301
  %vm6303 = vweird.f32 %v5728
  %vm6304 = vweird.f32 %v6297
  %vm6305 = vmor %vm6303, %vm6304
  %v6306 = vsel %vm6305, %v6297, %v6302
  %v6307 = vrsqrt.pop %v5729
  %v6308 = vmul.f32 %v6307, %v5729
  %v6309 = vmul.f32 %v6308, %v6307
  %v6310 = vmul.f32 0.5, %v6309
  %v6311 = vsub.f32 1.5, %v6310
  %v6312 = vmul.f32 %v6307, %v6311
  %vm6313 = vweird.f32 %v5729
  %vm6314 = vweird.f32 %v6307
  %vm6315 = vmor %vm6313, %vm6314
  %v6316 = vsel %vm6315, %v6307, %v6312
  %v6317 = vrsqrt.pop %v5730
  %v6318 = vmul.f32 %v6317, %v5730
  %v6319 = vmul.f32 %v6318, %v6317
  %v6320 = vmul.f32 0.5, %v6319
  %v6321 = vsub.f32 1.5, %v6320
  %v6322 = vmul.f32 %v6317, %v6321
  %vm6323 = vweird.f32 %v5730
  %vm6324 = vweird.f32 %v6317
  %vm6325 = vmor %vm6323, %vm6324
  %v6326 = vsel %vm6325, %v6317, %v6322
  %v6327 = vrsqrt.pop %v5731
  %v6328 = vmul.f32 %v6327, %v5731
  %v6329 = vmul.f32 %v6328, %v6327
  %v6330 = vmul.f32 0.5, %v6329
  %v6331 = vsub.f32 1.5, %v6330
  %v6332 = vmul.f32 %v6327, %v6331
  %vm6333 = vweird.f32 %v5731
  %vm6334 = vweird.f32 %v6327
  %vm6335 = vmor %vm6333, %vm6334
  %v6336 = vsel %vm6335, %v6327, %v6332
  %v6337 = vrsqrt.pop %v5732
  %v6338 = vmul.f32 %v6337, %v5732
  %v6339 = vmul.f32 %v6338, %v6337
  %v6340 = vmul.f32 0.5, %v6339
  %v6341 = vsub.f32 1.5, %v6340
  %v6342 = vmul.f32 %v6337, %v6341
  %vm6343 = vweird.f32 %v5732
  %vm6344 = vweird.f32 %v6337
  %vm6345 = vmor %vm6343, %vm6344
  %v6346 = vsel %vm6345, %v6337, %v6342
  %v6347 = vrsqrt.pop %v5733
  %v6348 = vmul.f32 %v6347, %v5733
  %v6349 = vmul.f32 %v6348, %v6347
  %v6350 = vmul.f32 0.5, %v6349
  %v6351 = vsub.f32 1.5, %v6350
  %v6352 = vmul.f32 %v6347, %v6351
  %vm6353 = vweird.f32 %v5733
  %vm6354 = vweird.f32 %v6347
  %vm6355 = vmor %vm6353, %vm6354
  %v6356 = vsel %vm6355, %v6347, %v6352
  %v6357 = vrsqrt.pop %v5734
  %v6358 = vmul.f32 %v6357, %v5734
  %v6359 = vmul.f32 %v6358, %v6357
  %v6360 = vmul.f32 0.5, %v6359
  %v6361 = vsub.f32 1.5, %v6360
  %v6362 = vmul.f32 %v6357, %v6361
  %vm6363 = vweird.f32 %v5734
  %vm6364 = vweird.f32 %v6357
  %vm6365 = vmor %vm6363, %vm6364
  %v6366 = vsel %vm6365, %v6357, %v6362
  %v6367 = vrsqrt.pop %v5735
  %v6368 = vmul.f32 %v6367, %v5735
  %v6369 = vmul.f32 %v6368, %v6367
  %v6370 = vmul.f32 0.5, %v6369
  %v6371 = vsub.f32 1.5, %v6370
  %v6372 = vmul.f32 %v6367, %v6371
  %vm6373 = vweird.f32 %v5735
  %vm6374 = vweird.f32 %v6367
  %vm6375 = vmor %vm6373, %vm6374
  %v6376 = vsel %vm6375, %v6367, %v6372
  %v6377 = vrsqrt.pop %v5736
  %v6378 = vmul.f32 %v6377, %v5736
  %v6379 = vmul.f32 %v6378, %v6377
  %v6380 = vmul.f32 0.5, %v6379
  %v6381 = vsub.f32 1.5, %v6380
  %v6382 = vmul.f32 %v6377, %v6381
  %vm6383 = vweird.f32 %v5736
  %vm6384 = vweird.f32 %v6377
  %vm6385 = vmor %vm6383, %vm6384
  %v6386 = vsel %vm6385, %v6377, %v6382
  %v6387 = vrsqrt.pop %v5737
  %v6388 = vmul.f32 %v6387, %v5737
  %v6389 = vmul.f32 %v6388, %v6387
  %v6390 = vmul.f32 0.5, %v6389
  %v6391 = vsub.f32 1.5, %v6390
  %v6392 = vmul.f32 %v6387, %v6391
  %vm6393 = vweird.f32 %v5737
  %vm6394 = vweird.f32 %v6387
  %vm6395 = vmor %vm6393, %vm6394
  %v6396 = vsel %vm6395, %v6387, %v6392
  %v6397 = vrsqrt.pop %v5738
  %v6398 = vmul.f32 %v6397, %v5738
  %v6399 = vmul.f32 %v6398, %v6397
  %v6400 = vmul.f32 0.5, %v6399
  %v6401 = vsub.f32 1.5, %v6400
  %v6402 = vmul.f32 %v6397, %v6401
  %vm6403 = vweird.f32 %v5738
  %vm6404 = vweird.f32 %v6397
  %vm6405 = vmor %vm6403, %vm6404
  %v6406 = vsel %vm6405, %v6397, %v6402
  %v6407 = vrsqrt.pop %v5739
  %v6408 = vmul.f32 %v6407, %v5739
  %v6409 = vmul.f32 %v6408, %v6407
  %v6410 = vmul.f32 0.5, %v6409
  %v6411 = vsub.f32 1.5, %v6410
  %v6412 = vmul.f32 %v6407, %v6411
  %vm6413 = vweird.f32 %v5739
  %vm6414 = vweird.f32 %v6407
  %vm6415 = vmor %vm6413, %vm6414
  %v6416 = vsel %vm6415, %v6407, %v6412
  %v6417 = vrsqrt.pop %v5740
  %v6418 = vmul.f32 %v6417, %v5740
  %v6419 = vmul.f32 %v6418, %v6417
  %v6420 = vmul.f32 0.5, %v6419
  %v6421 = vsub.f32 1.5, %v6420
  %v6422 = vmul.f32 %v6417, %v6421
  %vm6423 = vweird.f32 %v5740
  %vm6424 = vweird.f32 %v6417
  %vm6425 = vmor %vm6423, %vm6424
  %v6426 = vsel %vm6425, %v6417, %v6422
  %v6427 = vrsqrt.pop %v5741
  %v6428 = vmul.f32 %v6427, %v5741
  %v6429 = vmul.f32 %v6428, %v6427
  %v6430 = vmul.f32 0.5, %v6429
  %v6431 = vsub.f32 1.5, %v6430
  %v6432 = vmul.f32 %v6427, %v6431
  %vm6433 = vweird.f32 %v5741
  %vm6434 = vweird.f32 %v6427
  %vm6435 = vmor %vm6433, %vm6434
  %v6436 = vsel %vm6435, %v6427, %v6432
  %v6437 = vrsqrt.pop %v5742
  %v6438 = vmul.f32 %v6437, %v5742
  %v6439 = vmul.f32 %v6438, %v6437
  %v6440 = vmul.f32 0.5, %v6439
  %v6441 = vsub.f32 1.5, %v6440
  %v6442 = vmul.f32 %v6437, %v6441
  %vm6443 = vweird.f32 %v5742
  %vm6444 = vweird.f32 %v6437
  %vm6445 = vmor %vm6443, %vm6444
  %v6446 = vsel %vm6445, %v6437, %v6442
  %v6447 = vrsqrt.pop %v5743
  %v6448 = vmul.f32 %v6447, %v5743
  %v6449 = vmul.f32 %v6448, %v6447
  %v6450 = vmul.f32 0.5, %v6449
  %v6451 = vsub.f32 1.5, %v6450
  %v6452 = vmul.f32 %v6447, %v6451
  %vm6453 = vweird.f32 %v5743
  %vm6454 = vweird.f32 %v6447
  %vm6455 = vmor %vm6453, %vm6454
  %v6456 = vsel %vm6455, %v6447, %v6452
  %v6457 = vrsqrt.pop %v5744
  %v6458 = vmul.f32 %v6457, %v5744
  %v6459 = vmul.f32 %v6458, %v6457
  %v6460 = vmul.f32 0.5, %v6459
  %v6461 = vsub.f32 1.5, %v6460
  %v6462 = vmul.f32 %v6457, %v6461
  %vm6463 = vweird.f32 %v5744
  %vm6464 = vweird.f32 %v6457
  %vm6465 = vmor %vm6463, %vm6464
  %v6466 = vsel %vm6465, %v6457, %v6462
  %v6467 = vrsqrt.pop %v5745
  %v6468 = vmul.f32 %v6467, %v5745
  %v6469 = vmul.f32 %v6468, %v6467
  %v6470 = vmul.f32 0.5, %v6469
  %v6471 = vsub.f32 1.5, %v6470
  %v6472 = vmul.f32 %v6467, %v6471
  %vm6473 = vweird.f32 %v5745
  %vm6474 = vweird.f32 %v6467
  %vm6475 = vmor %vm6473, %vm6474
  %v6476 = vsel %vm6475, %v6467, %v6472
  %v6477 = vrsqrt.pop %v5746
  %v6478 = vmul.f32 %v6477, %v5746
  %v6479 = vmul.f32 %v6478, %v6477
  %v6480 = vmul.f32 0.5, %v6479
  %v6481 = vsub.f32 1.5, %v6480
  %v6482 = vmul.f32 %v6477, %v6481
  %vm6483 = vweird.f32 %v5746
  %vm6484 = vweird.f32 %v6477
  %vm6485 = vmor %vm6483, %vm6484
  %v6486 = vsel %vm6485, %v6477, %v6482
  %v6487 = vrsqrt.pop %v5747
  %v6488 = vmul.f32 %v6487, %v5747
  %v6489 = vmul.f32 %v6488, %v6487
  %v6490 = vmul.f32 0.5, %v6489
  %v6491 = vsub.f32 1.5, %v6490
  %v6492 = vmul.f32 %v6487, %v6491
  %vm6493 = vweird.f32 %v5747
  %vm6494 = vweird.f32 %v6487
  %vm6495 = vmor %vm6493, %vm6494
  %v6496 = vsel %vm6495, %v6487, %v6492
  %v6497 = vrsqrt.pop %v5748
  %v6498 = vmul.f32 %v6497, %v5748
  %v6499 = vmul.f32 %v6498, %v6497
  %v6500 = vmul.f32 0.5, %v6499
  %v6501 = vsub.f32 1.5, %v6500
  %v6502 = vmul.f32 %v6497, %v6501
  %vm6503 = vweird.f32 %v5748
  %vm6504 = vweird.f32 %v6497
  %vm6505 = vmor %vm6503, %vm6504
  %v6506 = vsel %vm6505, %v6497, %v6502
  %v6507 = vrsqrt.pop %v5749
  %v6508 = vmul.f32 %v6507, %v5749
  %v6509 = vmul.f32 %v6508, %v6507
  %v6510 = vmul.f32 0.5, %v6509
  %v6511 = vsub.f32 1.5, %v6510
  %v6512 = vmul.f32 %v6507, %v6511
  %vm6513 = vweird.f32 %v5749
  %vm6514 = vweird.f32 %v6507
  %vm6515 = vmor %vm6513, %vm6514
  %v6516 = vsel %vm6515, %v6507, %v6512
  %v6517 = vrsqrt.pop %v5750
  %v6518 = vmul.f32 %v6517, %v5750
  %v6519 = vmul.f32 %v6518, %v6517
  %v6520 = vmul.f32 0.5, %v6519
  %v6521 = vsub.f32 1.5, %v6520
  %v6522 = vmul.f32 %v6517, %v6521
  %vm6523 = vweird.f32 %v5750
  %vm6524 = vweird.f32 %v6517
  %vm6525 = vmor %vm6523, %vm6524
  %v6526 = vsel %vm6525, %v6517, %v6522
  %v6527 = vrsqrt.pop %v5751
  %v6528 = vmul.f32 %v6527, %v5751
  %v6529 = vmul.f32 %v6528, %v6527
  %v6530 = vmul.f32 0.5, %v6529
  %v6531 = vsub.f32 1.5, %v6530
  %v6532 = vmul.f32 %v6527, %v6531
  %vm6533 = vweird.f32 %v5751
  %vm6534 = vweird.f32 %v6527
  %vm6535 = vmor %vm6533, %vm6534
  %v6536 = vsel %vm6535, %v6527, %v6532
  %v6537 = vrsqrt.pop %v5752
  %v6538 = vmul.f32 %v6537, %v5752
  %v6539 = vmul.f32 %v6538, %v6537
  %v6540 = vmul.f32 0.5, %v6539
  %v6541 = vsub.f32 1.5, %v6540
  %v6542 = vmul.f32 %v6537, %v6541
  %vm6543 = vweird.f32 %v5752
  %vm6544 = vweird.f32 %v6537
  %vm6545 = vmor %vm6543, %vm6544
  %v6546 = vsel %vm6545, %v6537, %v6542
  %v6547 = vrsqrt.pop %v5753
  %v6548 = vmul.f32 %v6547, %v5753
  %v6549 = vmul.f32 %v6548, %v6547
  %v6550 = vmul.f32 0.5, %v6549
  %v6551 = vsub.f32 1.5, %v6550
  %v6552 = vmul.f32 %v6547, %v6551
  %vm6553 = vweird.f32 %v5753
  %vm6554 = vweird.f32 %v6547
  %vm6555 = vmor %vm6553, %vm6554
  %v6556 = vsel %vm6555, %v6547, %v6552
  %v6557 = vrsqrt.pop %v5754
  %v6558 = vmul.f32 %v6557, %v5754
  %v6559 = vmul.f32 %v6558, %v6557
  %v6560 = vmul.f32 0.5, %v6559
  %v6561 = vsub.f32 1.5, %v6560
  %v6562 = vmul.f32 %v6557, %v6561
  %vm6563 = vweird.f32 %v5754
  %vm6564 = vweird.f32 %v6557
  %vm6565 = vmor %vm6563, %vm6564
  %v6566 = vsel %vm6565, %v6557, %v6562
  %v6567 = vrsqrt.pop %v5755
  %v6568 = vmul.f32 %v6567, %v5755
  %v6569 = vmul.f32 %v6568, %v6567
  %v6570 = vmul.f32 0.5, %v6569
  %v6571 = vsub.f32 1.5, %v6570
  %v6572 = vmul.f32 %v6567, %v6571
  %vm6573 = vweird.f32 %v5755
  %vm6574 = vweird.f32 %v6567
  %vm6575 = vmor %vm6573, %vm6574
  %v6576 = vsel %vm6575, %v6567, %v6572
  %v6577 = vrsqrt.pop %v5756
  %v6578 = vmul.f32 %v6577, %v5756
  %v6579 = vmul.f32 %v6578, %v6577
  %v6580 = vmul.f32 0.5, %v6579
  %v6581 = vsub.f32 1.5, %v6580
  %v6582 = vmul.f32 %v6577, %v6581
  %vm6583 = vweird.f32 %v5756
  %vm6584 = vweird.f32 %v6577
  %vm6585 = vmor %vm6583, %vm6584
  %v6586 = vsel %vm6585, %v6577, %v6582
  %v6587 = vrsqrt.pop %v5757
  %v6588 = vmul.f32 %v6587, %v5757
  %v6589 = vmul.f32 %v6588, %v6587
  %v6590 = vmul.f32 0.5, %v6589
  %v6591 = vsub.f32 1.5, %v6590
  %v6592 = vmul.f32 %v6587, %v6591
  %vm6593 = vweird.f32 %v5757
  %vm6594 = vweird.f32 %v6587
  %vm6595 = vmor %vm6593, %vm6594
  %v6596 = vsel %vm6595, %v6587, %v6592
  %v6597 = vrsqrt.pop %v5758
  %v6598 = vmul.f32 %v6597, %v5758
  %v6599 = vmul.f32 %v6598, %v6597
  %v6600 = vmul.f32 0.5, %v6599
  %v6601 = vsub.f32 1.5, %v6600
  %v6602 = vmul.f32 %v6597, %v6601
  %vm6603 = vweird.f32 %v5758
  %vm6604 = vweird.f32 %v6597
  %vm6605 = vmor %vm6603, %vm6604
  %v6606 = vsel %vm6605, %v6597, %v6602
  %v6607 = vrsqrt.pop %v5759
  %v6608 = vmul.f32 %v6607, %v5759
  %v6609 = vmul.f32 %v6608, %v6607
  %v6610 = vmul.f32 0.5, %v6609
  %v6611 = vsub.f32 1.5, %v6610
  %v6612 = vmul.f32 %v6607, %v6611
  %vm6613 = vweird.f32 %v5759
  %vm6614 = vweird.f32 %v6607
  %vm6615 = vmor %vm6613, %vm6614
  %v6616 = vsel %vm6615, %v6607, %v6612
  %v6617 = vrsqrt.pop %v5760
  %v6618 = vmul.f32 %v6617, %v5760
  %v6619 = vmul.f32 %v6618, %v6617
  %v6620 = vmul.f32 0.5, %v6619
  %v6621 = vsub.f32 1.5, %v6620
  %v6622 = vmul.f32 %v6617, %v6621
  %vm6623 = vweird.f32 %v5760
  %vm6624 = vweird.f32 %v6617
  %vm6625 = vmor %vm6623, %vm6624
  %v6626 = vsel %vm6625, %v6617, %v6622
  %v6627 = vrsqrt.pop %v5761
  %v6628 = vmul.f32 %v6627, %v5761
  %v6629 = vmul.f32 %v6628, %v6627
  %v6630 = vmul.f32 0.5, %v6629
  %v6631 = vsub.f32 1.5, %v6630
  %v6632 = vmul.f32 %v6627, %v6631
  %vm6633 = vweird.f32 %v5761
  %vm6634 = vweird.f32 %v6627
  %vm6635 = vmor %vm6633, %vm6634
  %v6636 = vsel %vm6635, %v6627, %v6632
  %v6637 = vrsqrt.pop %v5762
  %v6638 = vmul.f32 %v6637, %v5762
  %v6639 = vmul.f32 %v6638, %v6637
  %v6640 = vmul.f32 0.5, %v6639
  %v6641 = vsub.f32 1.5, %v6640
  %v6642 = vmul.f32 %v6637, %v6641
  %vm6643 = vweird.f32 %v5762
  %vm6644 = vweird.f32 %v6637
  %vm6645 = vmor %vm6643, %vm6644
  %v6646 = vsel %vm6645, %v6637, %v6642
  %v6647 = vrsqrt.pop %v5763
  %v6648 = vmul.f32 %v6647, %v5763
  %v6649 = vmul.f32 %v6648, %v6647
  %v6650 = vmul.f32 0.5, %v6649
  %v6651 = vsub.f32 1.5, %v6650
  %v6652 = vmul.f32 %v6647, %v6651
  %vm6653 = vweird.f32 %v5763
  %vm6654 = vweird.f32 %v6647
  %vm6655 = vmor %vm6653, %vm6654
  %v6656 = vsel %vm6655, %v6647, %v6652
  %v6657 = vrsqrt.pop %v5764
  %v6658 = vmul.f32 %v6657, %v5764
  %v6659 = vmul.f32 %v6658, %v6657
  %v6660 = vmul.f32 0.5, %v6659
  %v6661 = vsub.f32 1.5, %v6660
  %v6662 = vmul.f32 %v6657, %v6661
  %vm6663 = vweird.f32 %v5764
  %vm6664 = vweird.f32 %v6657
  %vm6665 = vmor %vm6663, %vm6664
  %v6666 = vsel %vm6665, %v6657, %v6662
  %v6667 = vrsqrt.pop %v5765
  %v6668 = vmul.f32 %v6667, %v5765
  %v6669 = vmul.f32 %v6668, %v6667
  %v6670 = vmul.f32 0.5, %v6669
  %v6671 = vsub.f32 1.5, %v6670
  %v6672 = vmul.f32 %v6667, %v6671
  %vm6673 = vweird.f32 %v5765
  %vm6674 = vweird.f32 %v6667
  %vm6675 = vmor %vm6673, %vm6674
  %v6676 = vsel %vm6675, %v6667, %v6672
  %v6677 = vrsqrt.pop %v5766
  %v6678 = vmul.f32 %v6677, %v5766
  %v6679 = vmul.f32 %v6678, %v6677
  %v6680 = vmul.f32 0.5, %v6679
  %v6681 = vsub.f32 1.5, %v6680
  %v6682 = vmul.f32 %v6677, %v6681
  %vm6683 = vweird.f32 %v5766
  %vm6684 = vweird.f32 %v6677
  %vm6685 = vmor %vm6683, %vm6684
  %v6686 = vsel %vm6685, %v6677, %v6682
  %v6687 = vrsqrt.pop %v5767
  %v6688 = vmul.f32 %v6687, %v5767
  %v6689 = vmul.f32 %v6688, %v6687
  %v6690 = vmul.f32 0.5, %v6689
  %v6691 = vsub.f32 1.5, %v6690
  %v6692 = vmul.f32 %v6687, %v6691
  %vm6693 = vweird.f32 %v5767
  %vm6694 = vweird.f32 %v6687
  %vm6695 = vmor %vm6693, %vm6694
  %v6696 = vsel %vm6695, %v6687, %v6692
  %v6697 = vrsqrt.pop %v5768
  %v6698 = vmul.f32 %v6697, %v5768
  %v6699 = vmul.f32 %v6698, %v6697
  %v6700 = vmul.f32 0.5, %v6699
  %v6701 = vsub.f32 1.5, %v6700
  %v6702 = vmul.f32 %v6697, %v6701
  %vm6703 = vweird.f32 %v5768
  %vm6704 = vweird.f32 %v6697
  %vm6705 = vmor %vm6703, %vm6704
  %v6706 = vsel %vm6705, %v6697, %v6702
  %v6707 = vrsqrt.pop %v5769
  %v6708 = vmul.f32 %v6707, %v5769
  %v6709 = vmul.f32 %v6708, %v6707
  %v6710 = vmul.f32 0.5, %v6709
  %v6711 = vsub.f32 1.5, %v6710
  %v6712 = vmul.f32 %v6707, %v6711
  %vm6713 = vweird.f32 %v5769
  %vm6714 = vweird.f32 %v6707
  %vm6715 = vmor %vm6713, %vm6714
  %v6716 = vsel %vm6715, %v6707, %v6712
  %v6717 = vrsqrt.pop %v5770
  %v6718 = vmul.f32 %v6717, %v5770
  %v6719 = vmul.f32 %v6718, %v6717
  %v6720 = vmul.f32 0.5, %v6719
  %v6721 = vsub.f32 1.5, %v6720
  %v6722 = vmul.f32 %v6717, %v6721
  %vm6723 = vweird.f32 %v5770
  %vm6724 = vweird.f32 %v6717
  %vm6725 = vmor %vm6723, %vm6724
  %v6726 = vsel %vm6725, %v6717, %v6722
  %v6727 = vrsqrt.pop %v5771
  %v6728 = vmul.f32 %v6727, %v5771
  %v6729 = vmul.f32 %v6728, %v6727
  %v6730 = vmul.f32 0.5, %v6729
  %v6731 = vsub.f32 1.5, %v6730
  %v6732 = vmul.f32 %v6727, %v6731
  %vm6733 = vweird.f32 %v5771
  %vm6734 = vweird.f32 %v6727
  %vm6735 = vmor %vm6733, %vm6734
  %v6736 = vsel %vm6735, %v6727, %v6732
  %v6737 = vrsqrt.pop %v5772
  %v6738 = vmul.f32 %v6737, %v5772
  %v6739 = vmul.f32 %v6738, %v6737
  %v6740 = vmul.f32 0.5, %v6739
  %v6741 = vsub.f32 1.5, %v6740
  %v6742 = vmul.f32 %v6737, %v6741
  %vm6743 = vweird.f32 %v5772
  %vm6744 = vweird.f32 %v6737
  %vm6745 = vmor %vm6743, %vm6744
  %v6746 = vsel %vm6745, %v6737, %v6742
  %v6747 = vrsqrt.pop %v5773
  %v6748 = vmul.f32 %v6747, %v5773
  %v6749 = vmul.f32 %v6748, %v6747
  %v6750 = vmul.f32 0.5, %v6749
  %v6751 = vsub.f32 1.5, %v6750
  %v6752 = vmul.f32 %v6747, %v6751
  %vm6753 = vweird.f32 %v5773
  %vm6754 = vweird.f32 %v6747
  %vm6755 = vmor %vm6753, %vm6754
  %v6756 = vsel %vm6755, %v6747, %v6752
  %v6757 = vrsqrt.pop %v5774
  %v6758 = vmul.f32 %v6757, %v5774
  %v6759 = vmul.f32 %v6758, %v6757
  %v6760 = vmul.f32 0.5, %v6759
  %v6761 = vsub.f32 1.5, %v6760
  %v6762 = vmul.f32 %v6757, %v6761
  %vm6763 = vweird.f32 %v5774
  %vm6764 = vweird.f32 %v6757
  %vm6765 = vmor %vm6763, %vm6764
  %v6766 = vsel %vm6765, %v6757, %v6762
  %v6767 = vrsqrt.pop %v5775
  %v6768 = vmul.f32 %v6767, %v5775
  %v6769 = vmul.f32 %v6768, %v6767
  %v6770 = vmul.f32 0.5, %v6769
  %v6771 = vsub.f32 1.5, %v6770
  %v6772 = vmul.f32 %v6767, %v6771
  %vm6773 = vweird.f32 %v5775
  %vm6774 = vweird.f32 %v6767
  %vm6775 = vmor %vm6773, %vm6774
  %v6776 = vsel %vm6775, %v6767, %v6772
  %v6777 = vrsqrt.pop %v5776
  %v6778 = vmul.f32 %v6777, %v5776
  %v6779 = vmul.f32 %v6778, %v6777
  %v6780 = vmul.f32 0.5, %v6779
  %v6781 = vsub.f32 1.5, %v6780
  %v6782 = vmul.f32 %v6777, %v6781
  %vm6783 = vweird.f32 %v5776
  %vm6784 = vweird.f32 %v6777
  %vm6785 = vmor %vm6783, %vm6784
  %v6786 = vsel %vm6785, %v6777, %v6782
  %v6787 = vrsqrt.pop %v5777
  %v6788 = vmul.f32 %v6787, %v5777
  %v6789 = vmul.f32 %v6788, %v6787
  %v6790 = vmul.f32 0.5, %v6789
  %v6791 = vsub.f32 1.5, %v6790
  %v6792 = vmul.f32 %v6787, %v6791
  %vm6793 = vweird.f32 %v5777
  %vm6794 = vweird.f32 %v6787
  %vm6795 = vmor %vm6793, %vm6794
  %v6796 = vsel %vm6795, %v6787, %v6792
  %v6797 = vrsqrt.pop %v5778
  %v6798 = vmul.f32 %v6797, %v5778
  %v6799 = vmul.f32 %v6798, %v6797
  %v6800 = vmul.f32 0.5, %v6799
  %v6801 = vsub.f32 1.5, %v6800
  %v6802 = vmul.f32 %v6797, %v6801
  %vm6803 = vweird.f32 %v5778
  %vm6804 = vweird.f32 %v6797
  %vm6805 = vmor %vm6803, %vm6804
  %v6806 = vsel %vm6805, %v6797, %v6802
  %v6807 = vrsqrt.pop %v5779
  %v6808 = vmul.f32 %v6807, %v5779
  %v6809 = vmul.f32 %v6808, %v6807
  %v6810 = vmul.f32 0.5, %v6809
  %v6811 = vsub.f32 1.5, %v6810
  %v6812 = vmul.f32 %v6807, %v6811
  %vm6813 = vweird.f32 %v5779
  %vm6814 = vweird.f32 %v6807
  %vm6815 = vmor %vm6813, %vm6814
  %v6816 = vsel %vm6815, %v6807, %v6812
  %v6817 = vrsqrt.pop %v5780
  %v6818 = vmul.f32 %v6817, %v5780
  %v6819 = vmul.f32 %v6818, %v6817
  %v6820 = vmul.f32 0.5, %v6819
  %v6821 = vsub.f32 1.5, %v6820
  %v6822 = vmul.f32 %v6817, %v6821
  %vm6823 = vweird.f32 %v5780
  %vm6824 = vweird.f32 %v6817
  %vm6825 = vmor %vm6823, %vm6824
  %v6826 = vsel %vm6825, %v6817, %v6822
  %v6827 = vrsqrt.pop %v5781
  %v6828 = vmul.f32 %v6827, %v5781
  %v6829 = vmul.f32 %v6828, %v6827
  %v6830 = vmul.f32 0.5, %v6829
  %v6831 = vsub.f32 1.5, %v6830
  %v6832 = vmul.f32 %v6827, %v6831
  %vm6833 = vweird.f32 %v5781
  %vm6834 = vweird.f32 %v6827
  %vm6835 = vmor %vm6833, %vm6834
  %v6836 = vsel %vm6835, %v6827, %v6832
  %v6837 = vrsqrt.pop %v5782
  %v6838 = vmul.f32 %v6837, %v5782
  %v6839 = vmul.f32 %v6838, %v6837
  %v6840 = vmul.f32 0.5, %v6839
  %v6841 = vsub.f32 1.5, %v6840
  %v6842 = vmul.f32 %v6837, %v6841
  %vm6843 = vweird.f32 %v5782
  %vm6844 = vweird.f32 %v6837
  %vm6845 = vmor %vm6843, %vm6844
  %v6846 = vsel %vm6845, %v6837, %v6842
  %v6847 = vrsqrt.pop %v5783
  %v6848 = vmul.f32 %v6847, %v5783
  %v6849 = vmul.f32 %v6848, %v6847
  %v6850 = vmul.f32 0.5, %v6849
  %v6851 = vsub.f32 1.5, %v6850
  %v6852 = vmul.f32 %v6847, %v6851
  %vm6853 = vweird.f32 %v5783
  %vm6854 = vweird.f32 %v6847
  %vm6855 = vmor %vm6853, %vm6854
  %v6856 = vsel %vm6855, %v6847, %v6852
  %v6857 = vrsqrt.pop %v5784
  %v6858 = vmul.f32 %v6857, %v5784
  %v6859 = vmul.f32 %v6858, %v6857
  %v6860 = vmul.f32 0.5, %v6859
  %v6861 = vsub.f32 1.5, %v6860
  %v6862 = vmul.f32 %v6857, %v6861
  %vm6863 = vweird.f32 %v5784
  %vm6864 = vweird.f32 %v6857
  %vm6865 = vmor %vm6863, %vm6864
  %v6866 = vsel %vm6865, %v6857, %v6862
  %v6867 = vrsqrt.pop %v5785
  %v6868 = vmul.f32 %v6867, %v5785
  %v6869 = vmul.f32 %v6868, %v6867
  %v6870 = vmul.f32 0.5, %v6869
  %v6871 = vsub.f32 1.5, %v6870
  %v6872 = vmul.f32 %v6867, %v6871
  %vm6873 = vweird.f32 %v5785
  %vm6874 = vweird.f32 %v6867
  %vm6875 = vmor %vm6873, %vm6874
  %v6876 = vsel %vm6875, %v6867, %v6872
  %v6877 = vrsqrt.pop %v5786
  %v6878 = vmul.f32 %v6877, %v5786
  %v6879 = vmul.f32 %v6878, %v6877
  %v6880 = vmul.f32 0.5, %v6879
  %v6881 = vsub.f32 1.5, %v6880
  %v6882 = vmul.f32 %v6877, %v6881
  %vm6883 = vweird.f32 %v5786
  %vm6884 = vweird.f32 %v6877
  %vm6885 = vmor %vm6883, %vm6884
  %v6886 = vsel %vm6885, %v6877, %v6882
  %v6887 = vrsqrt.pop %v5787
  %v6888 = vmul.f32 %v6887, %v5787
  %v6889 = vmul.f32 %v6888, %v6887
  %v6890 = vmul.f32 0.5, %v6889
  %v6891 = vsub.f32 1.5, %v6890
  %v6892 = vmul.f32 %v6887, %v6891
  %vm6893 = vweird.f32 %v5787
  %vm6894 = vweird.f32 %v6887
  %vm6895 = vmor %vm6893, %vm6894
  %v6896 = vsel %vm6895, %v6887, %v6892
  %v6897 = vrsqrt.pop %v5788
  %v6898 = vmul.f32 %v6897, %v5788
  %v6899 = vmul.f32 %v6898, %v6897
  %v6900 = vmul.f32 0.5, %v6899
  %v6901 = vsub.f32 1.5, %v6900
  %v6902 = vmul.f32 %v6897, %v6901
  %vm6903 = vweird.f32 %v5788
  %vm6904 = vweird.f32 %v6897
  %vm6905 = vmor %vm6903, %vm6904
  %v6906 = vsel %vm6905, %v6897, %v6902
  %v6907 = vrsqrt.pop %v5789
  %v6908 = vmul.f32 %v6907, %v5789
  %v6909 = vmul.f32 %v6908, %v6907
  %v6910 = vmul.f32 0.5, %v6909
  %v6911 = vsub.f32 1.5, %v6910
  %v6912 = vmul.f32 %v6907, %v6911
  %vm6913 = vweird.f32 %v5789
  %vm6914 = vweird.f32 %v6907
  %vm6915 = vmor %vm6913, %vm6914
  %v6916 = vsel %vm6915, %v6907, %v6912
  %v6917 = vrsqrt.pop %v5790
  %v6918 = vmul.f32 %v6917, %v5790
  %v6919 = vmul.f32 %v6918, %v6917
  %v6920 = vmul.f32 0.5, %v6919
  %v6921 = vsub.f32 1.5, %v6920
  %v6922 = vmul.f32 %v6917, %v6921
  %vm6923 = vweird.f32 %v5790
  %vm6924 = vweird.f32 %v6917
  %vm6925 = vmor %vm6923, %vm6924
  %v6926 = vsel %vm6925, %v6917, %v6922
  %v6927 = vrsqrt.pop %v5791
  %v6928 = vmul.f32 %v6927, %v5791
  %v6929 = vmul.f32 %v6928, %v6927
  %v6930 = vmul.f32 0.5, %v6929
  %v6931 = vsub.f32 1.5, %v6930
  %v6932 = vmul.f32 %v6927, %v6931
  %vm6933 = vweird.f32 %v5791
  %vm6934 = vweird.f32 %v6927
  %vm6935 = vmor %vm6933, %vm6934
  %v6936 = vsel %vm6935, %v6927, %v6932
  %v6937 = vrsqrt.pop %v5792
  %v6938 = vmul.f32 %v6937, %v5792
  %v6939 = vmul.f32 %v6938, %v6937
  %v6940 = vmul.f32 0.5, %v6939
  %v6941 = vsub.f32 1.5, %v6940
  %v6942 = vmul.f32 %v6937, %v6941
  %vm6943 = vweird.f32 %v5792
  %vm6944 = vweird.f32 %v6937
  %vm6945 = vmor %vm6943, %vm6944
  %v6946 = vsel %vm6945, %v6937, %v6942
  %v6947 = vrsqrt.pop %v5793
  %v6948 = vmul.f32 %v6947, %v5793
  %v6949 = vmul.f32 %v6948, %v6947
  %v6950 = vmul.f32 0.5, %v6949
  %v6951 = vsub.f32 1.5, %v6950
  %v6952 = vmul.f32 %v6947, %v6951
  %vm6953 = vweird.f32 %v5793
  %vm6954 = vweird.f32 %v6947
  %vm6955 = vmor %vm6953, %vm6954
  %v6956 = vsel %vm6955, %v6947, %v6952
  %v6957 = vrsqrt.pop %v5794
  %v6958 = vmul.f32 %v6957, %v5794
  %v6959 = vmul.f32 %v6958, %v6957
  %v6960 = vmul.f32 0.5, %v6959
  %v6961 = vsub.f32 1.5, %v6960
  %v6962 = vmul.f32 %v6957, %v6961
  %vm6963 = vweird.f32 %v5794
  %vm6964 = vweird.f32 %v6957
  %vm6965 = vmor %vm6963, %vm6964
  %v6966 = vsel %vm6965, %v6957, %v6962
  %v6967 = vrsqrt.pop %v5795
  %v6968 = vmul.f32 %v6967, %v5795
  %v6969 = vmul.f32 %v6968, %v6967
  %v6970 = vmul.f32 0.5, %v6969
  %v6971 = vsub.f32 1.5, %v6970
  %v6972 = vmul.f32 %v6967, %v6971
  %vm6973 = vweird.f32 %v5795
  %vm6974 = vweird.f32 %v6967
  %vm6975 = vmor %vm6973, %vm6974
  %v6976 = vsel %vm6975, %v6967, %v6972
  %v6977 = vrsqrt.pop %v5796
  %v6978 = vmul.f32 %v6977, %v5796
  %v6979 = vmul.f32 %v6978, %v6977
  %v6980 = vmul.f32 0.5, %v6979
  %v6981 = vsub.f32 1.5, %v6980
  %v6982 = vmul.f32 %v6977, %v6981
  %vm6983 = vweird.f32 %v5796
  %vm6984 = vweird.f32 %v6977
  %vm6985 = vmor %vm6983, %vm6984
  %v6986 = vsel %vm6985, %v6977, %v6982
  %v6987 = vrsqrt.pop %v5797
  %v6988 = vmul.f32 %v6987, %v5797
  %v6989 = vmul.f32 %v6988, %v6987
  %v6990 = vmul.f32 0.5, %v6989
  %v6991 = vsub.f32 1.5, %v6990
  %v6992 = vmul.f32 %v6987, %v6991
  %vm6993 = vweird.f32 %v5797
  %vm6994 = vweird.f32 %v6987
  %vm6995 = vmor %vm6993, %vm6994
  %v6996 = vsel %vm6995, %v6987, %v6992
  %v6997 = vrsqrt.pop %v5798
  %v6998 = vmul.f32 %v6997, %v5798
  %v6999 = vmul.f32 %v6998, %v6997
  %v7000 = vmul.f32 0.5, %v6999
  %v7001 = vsub.f32 1.5, %v7000
  %v7002 = vmul.f32 %v6997, %v7001
  %vm7003 = vweird.f32 %v5798
  %vm7004 = vweird.f32 %v6997
  %vm7005 = vmor %vm7003, %vm7004
  %v7006 = vsel %vm7005, %v6997, %v7002
  %v7007 = vrsqrt.pop %v5799
  %v7008 = vmul.f32 %v7007, %v5799
  %v7009 = vmul.f32 %v7008, %v7007
  %v7010 = vmul.f32 0.5, %v7009
  %v7011 = vsub.f32 1.5, %v7010
  %v7012 = vmul.f32 %v7007, %v7011
  %vm7013 = vweird.f32 %v5799
  %vm7014 = vweird.f32 %v7007
  %vm7015 = vmor %vm7013, %vm7014
  %v7016 = vsel %vm7015, %v7007, %v7012
  %v7017 = vrsqrt.pop %v5800
  %v7018 = vmul.f32 %v7017, %v5800
  %v7019 = vmul.f32 %v7018, %v7017
  %v7020 = vmul.f32 0.5, %v7019
  %v7021 = vsub.f32 1.5, %v7020
  %v7022 = vmul.f32 %v7017, %v7021
  %vm7023 = vweird.f32 %v5800
  %vm7024 = vweird.f32 %v7017
  %vm7025 = vmor %vm7023, %vm7024
  %v7026 = vsel %vm7025, %v7017, %v7022
  %v7027 = vrsqrt.pop %v5801
  %v7028 = vmul.f32 %v7027, %v5801
  %v7029 = vmul.f32 %v7028, %v7027
  %v7030 = vmul.f32 0.5, %v7029
  %v7031 = vsub.f32 1.5, %v7030
  %v7032 = vmul.f32 %v7027, %v7031
  %vm7033 = vweird.f32 %v5801
  %vm7034 = vweird.f32 %v7027
  %vm7035 = vmor %vm7033, %vm7034
  %v7036 = vsel %vm7035, %v7027, %v7032
  %v7037 = vrsqrt.pop %v5802
  %v7038 = vmul.f32 %v7037, %v5802
  %v7039 = vmul.f32 %v7038, %v7037
  %v7040 = vmul.f32 0.5, %v7039
  %v7041 = vsub.f32 1.5, %v7040
  %v7042 = vmul.f32 %v7037, %v7041
  %vm7043 = vweird.f32 %v5802
  %vm7044 = vweird.f32 %v7037
  %vm7045 = vmor %vm7043, %vm7044
  %v7046 = vsel %vm7045, %v7037, %v7042
  %v7047 = vrsqrt.pop %v5803
  %v7048 = vmul.f32 %v7047, %v5803
  %v7049 = vmul.f32 %v7048, %v7047
  %v7050 = vmul.f32 0.5, %v7049
  %v7051 = vsub.f32 1.5, %v7050
  %v7052 = vmul.f32 %v7047, %v7051
  %vm7053 = vweird.f32 %v5803
  %vm7054 = vweird.f32 %v7047
  %vm7055 = vmor %vm7053, %vm7054
  %v7056 = vsel %vm7055, %v7047, %v7052
  %v7057 = vrsqrt.pop %v5804
  %v7058 = vmul.f32 %v7057, %v5804
  %v7059 = vmul.f32 %v7058, %v7057
  %v7060 = vmul.f32 0.5, %v7059
  %v7061 = vsub.f32 1.5, %v7060
  %v7062 = vmul.f32 %v7057, %v7061
  %vm7063 = vweird.f32 %v5804
  %vm7064 = vweird.f32 %v7057
  %vm7065 = vmor %vm7063, %vm7064
  %v7066 = vsel %vm7065, %v7057, %v7062
  %v7067 = vrsqrt.pop %v5805
  %v7068 = vmul.f32 %v7067, %v5805
  %v7069 = vmul.f32 %v7068, %v7067
  %v7070 = vmul.f32 0.5, %v7069
  %v7071 = vsub.f32 1.5, %v7070
  %v7072 = vmul.f32 %v7067, %v7071
  %vm7073 = vweird.f32 %v5805
  %vm7074 = vweird.f32 %v7067
  %vm7075 = vmor %vm7073, %vm7074
  %v7076 = vsel %vm7075, %v7067, %v7072
  %v7077 = vrsqrt.pop %v5806
  %v7078 = vmul.f32 %v7077, %v5806
  %v7079 = vmul.f32 %v7078, %v7077
  %v7080 = vmul.f32 0.5, %v7079
  %v7081 = vsub.f32 1.5, %v7080
  %v7082 = vmul.f32 %v7077, %v7081
  %vm7083 = vweird.f32 %v5806
  %vm7084 = vweird.f32 %v7077
  %vm7085 = vmor %vm7083, %vm7084
  %v7086 = vsel %vm7085, %v7077, %v7082
  %v7087 = vmul.f32 %v5039, %v5816
  %v7088 = vmul.f32 %v5040, %v5826
  %v7089 = vmul.f32 %v5041, %v5836
  %v7090 = vmul.f32 %v5042, %v5846
  %v7091 = vmul.f32 %v5043, %v5856
  %v7092 = vmul.f32 %v5044, %v5866
  %v7093 = vmul.f32 %v5045, %v5876
  %v7094 = vmul.f32 %v5046, %v5886
  %v7095 = vmul.f32 %v5047, %v5896
  %v7096 = vmul.f32 %v5048, %v5906
  %v7097 = vmul.f32 %v5049, %v5916
  %v7098 = vmul.f32 %v5050, %v5926
  %v7099 = vmul.f32 %v5051, %v5936
  %v7100 = vmul.f32 %v5052, %v5946
  %v7101 = vmul.f32 %v5053, %v5956
  %v7102 = vmul.f32 %v5054, %v5966
  %v7103 = vmul.f32 %v5055, %v5976
  %v7104 = vmul.f32 %v5056, %v5986
  %v7105 = vmul.f32 %v5057, %v5996
  %v7106 = vmul.f32 %v5058, %v6006
  %v7107 = vmul.f32 %v5059, %v6016
  %v7108 = vmul.f32 %v5060, %v6026
  %v7109 = vmul.f32 %v5061, %v6036
  %v7110 = vmul.f32 %v5062, %v6046
  %v7111 = vmul.f32 %v5063, %v6056
  %v7112 = vmul.f32 %v5064, %v6066
  %v7113 = vmul.f32 %v5065, %v6076
  %v7114 = vmul.f32 %v5066, %v6086
  %v7115 = vmul.f32 %v5067, %v6096
  %v7116 = vmul.f32 %v5068, %v6106
  %v7117 = vmul.f32 %v5069, %v6116
  %v7118 = vmul.f32 %v5070, %v6126
  %v7119 = vmul.f32 %v5071, %v6136
  %v7120 = vmul.f32 %v5072, %v6146
  %v7121 = vmul.f32 %v5073, %v6156
  %v7122 = vmul.f32 %v5074, %v6166
  %v7123 = vmul.f32 %v5075, %v6176
  %v7124 = vmul.f32 %v5076, %v6186
  %v7125 = vmul.f32 %v5077, %v6196
  %v7126 = vmul.f32 %v5078, %v6206
  %v7127 = vmul.f32 %v5079, %v6216
  %v7128 = vmul.f32 %v5080, %v6226
  %v7129 = vmul.f32 %v5081, %v6236
  %v7130 = vmul.f32 %v5082, %v6246
  %v7131 = vmul.f32 %v5083, %v6256
  %v7132 = vmul.f32 %v5084, %v6266
  %v7133 = vmul.f32 %v5085, %v6276
  %v7134 = vmul.f32 %v5086, %v6286
  %v7135 = vmul.f32 %v5087, %v6296
  %v7136 = vmul.f32 %v5088, %v6306
  %v7137 = vmul.f32 %v5089, %v6316
  %v7138 = vmul.f32 %v5090, %v6326
  %v7139 = vmul.f32 %v5091, %v6336
  %v7140 = vmul.f32 %v5092, %v6346
  %v7141 = vmul.f32 %v5093, %v6356
  %v7142 = vmul.f32 %v5094, %v6366
  %v7143 = vmul.f32 %v5095, %v6376
  %v7144 = vmul.f32 %v5096, %v6386
  %v7145 = vmul.f32 %v5097, %v6396
  %v7146 = vmul.f32 %v5098, %v6406
  %v7147 = vmul.f32 %v5099, %v6416
  %v7148 = vmul.f32 %v5100, %v6426
  %v7149 = vmul.f32 %v5101, %v6436
  %v7150 = vmul.f32 %v5102, %v6446
  %v7151 = vmul.f32 %v5103, %v6456
  %v7152 = vmul.f32 %v5104, %v6466
  %v7153 = vmul.f32 %v5105, %v6476
  %v7154 = vmul.f32 %v5106, %v6486
  %v7155 = vmul.f32 %v5107, %v6496
  %v7156 = vmul.f32 %v5108, %v6506
  %v7157 = vmul.f32 %v5109, %v6516
  %v7158 = vmul.f32 %v5110, %v6526
  %v7159 = vmul.f32 %v5111, %v6536
  %v7160 = vmul.f32 %v5112, %v6546
  %v7161 = vmul.f32 %v5113, %v6556
  %v7162 = vmul.f32 %v5114, %v6566
  %v7163 = vmul.f32 %v5115, %v6576
  %v7164 = vmul.f32 %v5116, %v6586
  %v7165 = vmul.f32 %v5117, %v6596
  %v7166 = vmul.f32 %v5118, %v6606
  %v7167 = vmul.f32 %v5119, %v6616
  %v7168 = vmul.f32 %v5120, %v6626
  %v7169 = vmul.f32 %v5121, %v6636
  %v7170 = vmul.f32 %v5122, %v6646
  %v7171 = vmul.f32 %v5123, %v6656
  %v7172 = vmul.f32 %v5124, %v6666
  %v7173 = vmul.f32 %v5125, %v6676
  %v7174 = vmul.f32 %v5126, %v6686
  %v7175 = vmul.f32 %v5127, %v6696
  %v7176 = vmul.f32 %v5128, %v6706
  %v7177 = vmul.f32 %v5129, %v6716
  %v7178 = vmul.f32 %v5130, %v6726
  %v7179 = vmul.f32 %v5131, %v6736
  %v7180 = vmul.f32 %v5132, %v6746
  %v7181 = vmul.f32 %v5133, %v6756
  %v7182 = vmul.f32 %v5134, %v6766
  %v7183 = vmul.f32 %v5135, %v6776
  %v7184 = vmul.f32 %v5136, %v6786
  %v7185 = vmul.f32 %v5137, %v6796
  %v7186 = vmul.f32 %v5138, %v6806
  %v7187 = vmul.f32 %v5139, %v6816
  %v7188 = vmul.f32 %v5140, %v6826
  %v7189 = vmul.f32 %v5141, %v6836
  %v7190 = vmul.f32 %v5142, %v6846
  %v7191 = vmul.f32 %v5143, %v6856
  %v7192 = vmul.f32 %v5144, %v6866
  %v7193 = vmul.f32 %v5145, %v6876
  %v7194 = vmul.f32 %v5146, %v6886
  %v7195 = vmul.f32 %v5147, %v6896
  %v7196 = vmul.f32 %v5148, %v6906
  %v7197 = vmul.f32 %v5149, %v6916
  %v7198 = vmul.f32 %v5150, %v6926
  %v7199 = vmul.f32 %v5151, %v6936
  %v7200 = vmul.f32 %v5152, %v6946
  %v7201 = vmul.f32 %v5153, %v6956
  %v7202 = vmul.f32 %v5154, %v6966
  %v7203 = vmul.f32 %v5155, %v6976
  %v7204 = vmul.f32 %v5156, %v6986
  %v7205 = vmul.f32 %v5157, %v6996
  %v7206 = vmul.f32 %v5158, %v7006
  %v7207 = vmul.f32 %v5159, %v7016
  %v7208 = vmul.f32 %v5160, %v7026
  %v7209 = vmul.f32 %v5161, %v7036
  %v7210 = vmul.f32 %v5162, %v7046
  %v7211 = vmul.f32 %v5163, %v7056
  %v7212 = vmul.f32 %v5164, %v7066
  %v7213 = vmul.f32 %v5165, %v7076
  %v7214 = vmul.f32 %v5166, %v7086
  %v7217 = vperm.slane %v570, 0
  %v7218 = vperm.slane %v571, 0
  %7219 = vset.pattern.permute.xlu0 0
  %7220 = vperm.xlu0 %7219, %v7217
  %v7221 = vpop.permute.xlu0 %7220
  %7223 = vset.pattern.permute.xlu0 0
  %7224 = vperm.xlu0 %7223, %v7218
  %v7225 = vpop.permute.xlu0 %7224
  %v7227 = vmul.f32 %v7087, %v7221
  %v7228 = vmul.f32 %v7088, %v7221
  %v7229 = vmul.f32 %v7089, %v7221
  %v7230 = vmul.f32 %v7090, %v7221
  %v7231 = vmul.f32 %v7091, %v7221
  %v7232 = vmul.f32 %v7092, %v7221
  %v7233 = vmul.f32 %v7093, %v7221
  %v7234 = vmul.f32 %v7094, %v7221
  %v7235 = vmul.f32 %v7095, %v7221
  %v7236 = vmul.f32 %v7096, %v7221
  %v7237 = vmul.f32 %v7097, %v7221
  %v7238 = vmul.f32 %v7098, %v7221
  %v7239 = vmul.f32 %v7099, %v7221
  %v7240 = vmul.f32 %v7100, %v7221
  %v7241 = vmul.f32 %v7101, %v7221
  %v7242 = vmul.f32 %v7102, %v7221
  %v7243 = vmul.f32 %v7103, %v7221
  %v7244 = vmul.f32 %v7104, %v7221
  %v7245 = vmul.f32 %v7105, %v7221
  %v7246 = vmul.f32 %v7106, %v7221
  %v7247 = vmul.f32 %v7107, %v7221
  %v7248 = vmul.f32 %v7108, %v7221
  %v7249 = vmul.f32 %v7109, %v7221
  %v7250 = vmul.f32 %v7110, %v7221
  %v7251 = vmul.f32 %v7111, %v7221
  %v7252 = vmul.f32 %v7112, %v7221
  %v7253 = vmul.f32 %v7113, %v7221
  %v7254 = vmul.f32 %v7114, %v7221
  %v7255 = vmul.f32 %v7115, %v7221
  %v7256 = vmul.f32 %v7116, %v7221
  %v7257 = vmul.f32 %v7117, %v7221
  %v7258 = vmul.f32 %v7118, %v7221
  %v7259 = vmul.f32 %v7119, %v7221
  %v7260 = vmul.f32 %v7120, %v7221
  %v7261 = vmul.f32 %v7121, %v7221
  %v7262 = vmul.f32 %v7122, %v7221
  %v7263 = vmul.f32 %v7123, %v7221
  %v7264 = vmul.f32 %v7124, %v7221
  %v7265 = vmul.f32 %v7125, %v7221
  %v7266 = vmul.f32 %v7126, %v7221
  %v7267 = vmul.f32 %v7127, %v7221
  %v7268 = vmul.f32 %v7128, %v7221
  %v7269 = vmul.f32 %v7129, %v7221
  %v7270 = vmul.f32 %v7130, %v7221
  %v7271 = vmul.f32 %v7131, %v7221
  %v7272 = vmul.f32 %v7132, %v7221
  %v7273 = vmul.f32 %v7133, %v7221
  %v7274 = vmul.f32 %v7134, %v7221
  %v7275 = vmul.f32 %v7135, %v7221
  %v7276 = vmul.f32 %v7136, %v7221
  %v7277 = vmul.f32 %v7137, %v7221
  %v7278 = vmul.f32 %v7138, %v7221
  %v7279 = vmul.f32 %v7139, %v7221
  %v7280 = vmul.f32 %v7140, %v7221
  %v7281 = vmul.f32 %v7141, %v7221
  %v7282 = vmul.f32 %v7142, %v7221
  %v7283 = vmul.f32 %v7143, %v7221
  %v7284 = vmul.f32 %v7144, %v7221
  %v7285 = vmul.f32 %v7145, %v7221
  %v7286 = vmul.f32 %v7146, %v7221
  %v7287 = vmul.f32 %v7147, %v7221
  %v7288 = vmul.f32 %v7148, %v7221
  %v7289 = vmul.f32 %v7149, %v7221
  %v7290 = vmul.f32 %v7150, %v7221
  %v7291 = vmul.f32 %v7151, %v7225
  %v7292 = vmul.f32 %v7152, %v7225
  %v7293 = vmul.f32 %v7153, %v7225
  %v7294 = vmul.f32 %v7154, %v7225
  %v7295 = vmul.f32 %v7155, %v7225
  %v7296 = vmul.f32 %v7156, %v7225
  %v7297 = vmul.f32 %v7157, %v7225
  %v7298 = vmul.f32 %v7158, %v7225
  %v7299 = vmul.f32 %v7159, %v7225
  %v7300 = vmul.f32 %v7160, %v7225
  %v7301 = vmul.f32 %v7161, %v7225
  %v7302 = vmul.f32 %v7162, %v7225
  %v7303 = vmul.f32 %v7163, %v7225
  %v7304 = vmul.f32 %v7164, %v7225
  %v7305 = vmul.f32 %v7165, %v7225
  %v7306 = vmul.f32 %v7166, %v7225
  %v7307 = vmul.f32 %v7167, %v7225
  %v7308 = vmul.f32 %v7168, %v7225
  %v7309 = vmul.f32 %v7169, %v7225
  %v7310 = vmul.f32 %v7170, %v7225
  %v7311 = vmul.f32 %v7171, %v7225
  %v7312 = vmul.f32 %v7172, %v7225
  %v7313 = vmul.f32 %v7173, %v7225
  %v7314 = vmul.f32 %v7174, %v7225
  %v7315 = vmul.f32 %v7175, %v7225
  %v7316 = vmul.f32 %v7176, %v7225
  %v7317 = vmul.f32 %v7177, %v7225
  %v7318 = vmul.f32 %v7178, %v7225
  %v7319 = vmul.f32 %v7179, %v7225
  %v7320 = vmul.f32 %v7180, %v7225
  %v7321 = vmul.f32 %v7181, %v7225
  %v7322 = vmul.f32 %v7182, %v7225
  %v7323 = vmul.f32 %v7183, %v7225
  %v7324 = vmul.f32 %v7184, %v7225
  %v7325 = vmul.f32 %v7185, %v7225
  %v7326 = vmul.f32 %v7186, %v7225
  %v7327 = vmul.f32 %v7187, %v7225
  %v7328 = vmul.f32 %v7188, %v7225
  %v7329 = vmul.f32 %v7189, %v7225
  %v7330 = vmul.f32 %v7190, %v7225
  %v7331 = vmul.f32 %v7191, %v7225
  %v7332 = vmul.f32 %v7192, %v7225
  %v7333 = vmul.f32 %v7193, %v7225
  %v7334 = vmul.f32 %v7194, %v7225
  %v7335 = vmul.f32 %v7195, %v7225
  %v7336 = vmul.f32 %v7196, %v7225
  %v7337 = vmul.f32 %v7197, %v7225
  %v7338 = vmul.f32 %v7198, %v7225
  %v7339 = vmul.f32 %v7199, %v7225
  %v7340 = vmul.f32 %v7200, %v7225
  %v7341 = vmul.f32 %v7201, %v7225
  %v7342 = vmul.f32 %v7202, %v7225
  %v7343 = vmul.f32 %v7203, %v7225
  %v7344 = vmul.f32 %v7204, %v7225
  %v7345 = vmul.f32 %v7205, %v7225
  %v7346 = vmul.f32 %v7206, %v7225
  %v7347 = vmul.f32 %v7207, %v7225
  %v7348 = vmul.f32 %v7208, %v7225
  %v7349 = vmul.f32 %v7209, %v7225
  %v7350 = vmul.f32 %v7210, %v7225
  %v7351 = vmul.f32 %v7211, %v7225
  %v7352 = vmul.f32 %v7212, %v7225
  %v7353 = vmul.f32 %v7213, %v7225
  %v7354 = vmul.f32 %v7214, %v7225
  %v7356 = vsel %vm87, %v7227, 0
  %v7359 = vsel %vm87, %v7228, 0
  %v7362 = vsel %vm87, %v7229, 0
  %v7365 = vsel %vm87, %v7230, 0
  %v7368 = vsel %vm87, %v7231, 0
  %v7371 = vsel %vm87, %v7232, 0
  %v7374 = vsel %vm87, %v7233, 0
  %v7377 = vsel %vm87, %v7234, 0
  %v7380 = vsel %vm87, %v536, 0
  %v7383 = vsel %vm87, %v537, 0
  %7385 = vmatpush.xpose.msra.mxu0 0.0
  %7386 = vmatpush.xpose.msra.mxu0 0.0
  %7387 = vmatpush.xpose.msra.mxu0 0.0
  %7388 = vmatpush.xpose.msra.mxu0 0.0
  %7389 = vmatpush.xpose.msra.mxu0 0.0
  %7390 = vmatpush.xpose.msra.mxu0 0.0
  %7391 = vmatpush.xpose.msra.mxu0 0.0
  %7392 = vmatpush.xpose.msra.mxu0 0.0
  %7393 = vmatpush.xpose.msra.mxu0 0.0
  %7394 = vmatpush.xpose.msra.mxu0 0.0
  %7395 = vmatpush.xpose.msra.mxu0 0.0
  %7396 = vmatpush.xpose.msra.mxu0 0.0
  %7397 = vmatpush.xpose.msra.mxu0 0.0
  %7398 = vmatpush.xpose.msra.mxu0 0.0
  %7399 = vmatpush.xpose.msra.mxu0 %v7383
  %7400 = vmatpush.xpose.msra.mxu0 %v7380
  %7401 = vmatmul.f32.gmra.mxu0 %v7356
  %v7402 = vpop.f32.mrf.mxu0
  %v7403 = vadd.f32 0.0, %v7402
  %7404 = vmatmul.f32.gmra.mxu0 %v7359
  %v7405 = vpop.f32.mrf.mxu0
  %v7406 = vadd.f32 0.0, %v7405
  %7407 = vmatmul.f32.gmra.mxu0 %v7362
  %v7408 = vpop.f32.mrf.mxu0
  %v7409 = vadd.f32 0.0, %v7408
  %7410 = vmatmul.f32.gmra.mxu0 %v7365
  %v7411 = vpop.f32.mrf.mxu0
  %v7412 = vadd.f32 0.0, %v7411
  %7413 = vmatmul.f32.gmra.mxu0 %v7368
  %v7414 = vpop.f32.mrf.mxu0
  %v7415 = vadd.f32 0.0, %v7414
  %7416 = vmatmul.f32.gmra.mxu0 %v7371
  %v7417 = vpop.f32.mrf.mxu0
  %v7418 = vadd.f32 0.0, %v7417
  %7419 = vmatmul.f32.gmra.mxu0 %v7374
  %v7420 = vpop.f32.mrf.mxu0
  %v7421 = vadd.f32 0.0, %v7420
  %7422 = vmatmul.f32.gmra.mxu0 %v7377
  %v7423 = vpop.f32.mrf.mxu0
  %v7424 = vadd.f32 0.0, %v7423
  %7425 = vdwg.mxu0
  %v7427 = vsel %vm87, %v7235, 0
  %v7430 = vsel %vm87, %v7236, 0
  %v7433 = vsel %vm87, %v7237, 0
  %v7436 = vsel %vm87, %v7238, 0
  %v7439 = vsel %vm87, %v7239, 0
  %v7442 = vsel %vm87, %v7240, 0
  %v7445 = vsel %vm87, %v7241, 0
  %v7448 = vsel %vm87, %v7242, 0
  %v7451 = vsel %vm87, %v538, 0
  %v7454 = vsel %vm87, %v539, 0
  %7456 = vmatpush.xpose.msra.mxu0 0.0
  %7457 = vmatpush.xpose.msra.mxu0 0.0
  %7458 = vmatpush.xpose.msra.mxu0 0.0
  %7459 = vmatpush.xpose.msra.mxu0 0.0
  %7460 = vmatpush.xpose.msra.mxu0 0.0
  %7461 = vmatpush.xpose.msra.mxu0 0.0
  %7462 = vmatpush.xpose.msra.mxu0 0.0
  %7463 = vmatpush.xpose.msra.mxu0 0.0
  %7464 = vmatpush.xpose.msra.mxu0 0.0
  %7465 = vmatpush.xpose.msra.mxu0 0.0
  %7466 = vmatpush.xpose.msra.mxu0 0.0
  %7467 = vmatpush.xpose.msra.mxu0 0.0
  %7468 = vmatpush.xpose.msra.mxu0 0.0
  %7469 = vmatpush.xpose.msra.mxu0 0.0
  %7470 = vmatpush.xpose.msra.mxu0 %v7454
  %7471 = vmatpush.xpose.msra.mxu0 %v7451
  %7472 = vmatmul.f32.gmra.mxu0 %v7427
  %v7473 = vpop.f32.mrf.mxu0
  %v7474 = vadd.f32 0.0, %v7473
  %7475 = vmatmul.f32.gmra.mxu0 %v7430
  %v7476 = vpop.f32.mrf.mxu0
  %v7477 = vadd.f32 0.0, %v7476
  %7478 = vmatmul.f32.gmra.mxu0 %v7433
  %v7479 = vpop.f32.mrf.mxu0
  %v7480 = vadd.f32 0.0, %v7479
  %7481 = vmatmul.f32.gmra.mxu0 %v7436
  %v7482 = vpop.f32.mrf.mxu0
  %v7483 = vadd.f32 0.0, %v7482
  %7484 = vmatmul.f32.gmra.mxu0 %v7439
  %v7485 = vpop.f32.mrf.mxu0
  %v7486 = vadd.f32 0.0, %v7485
  %7487 = vmatmul.f32.gmra.mxu0 %v7442
  %v7488 = vpop.f32.mrf.mxu0
  %v7489 = vadd.f32 0.0, %v7488
  %7490 = vmatmul.f32.gmra.mxu0 %v7445
  %v7491 = vpop.f32.mrf.mxu0
  %v7492 = vadd.f32 0.0, %v7491
  %7493 = vmatmul.f32.gmra.mxu0 %v7448
  %v7494 = vpop.f32.mrf.mxu0
  %v7495 = vadd.f32 0.0, %v7494
  %7496 = vdwg.mxu0
  %v7498 = vsel %vm87, %v7243, 0
  %v7501 = vsel %vm87, %v7244, 0
  %v7504 = vsel %vm87, %v7245, 0
  %v7507 = vsel %vm87, %v7246, 0
  %v7510 = vsel %vm87, %v7247, 0
  %v7513 = vsel %vm87, %v7248, 0
  %v7516 = vsel %vm87, %v7249, 0
  %v7519 = vsel %vm87, %v7250, 0
  %v7522 = vsel %vm87, %v540, 0
  %v7525 = vsel %vm87, %v541, 0
  %7527 = vmatpush.xpose.msra.mxu0 0.0
  %7528 = vmatpush.xpose.msra.mxu0 0.0
  %7529 = vmatpush.xpose.msra.mxu0 0.0
  %7530 = vmatpush.xpose.msra.mxu0 0.0
  %7531 = vmatpush.xpose.msra.mxu0 0.0
  %7532 = vmatpush.xpose.msra.mxu0 0.0
  %7533 = vmatpush.xpose.msra.mxu0 0.0
  %7534 = vmatpush.xpose.msra.mxu0 0.0
  %7535 = vmatpush.xpose.msra.mxu0 0.0
  %7536 = vmatpush.xpose.msra.mxu0 0.0
  %7537 = vmatpush.xpose.msra.mxu0 0.0
  %7538 = vmatpush.xpose.msra.mxu0 0.0
  %7539 = vmatpush.xpose.msra.mxu0 0.0
  %7540 = vmatpush.xpose.msra.mxu0 0.0
  %7541 = vmatpush.xpose.msra.mxu0 %v7525
  %7542 = vmatpush.xpose.msra.mxu0 %v7522
  %7543 = vmatmul.f32.gmra.mxu0 %v7498
  %v7544 = vpop.f32.mrf.mxu0
  %v7545 = vadd.f32 0.0, %v7544
  %7546 = vmatmul.f32.gmra.mxu0 %v7501
  %v7547 = vpop.f32.mrf.mxu0
  %v7548 = vadd.f32 0.0, %v7547
  %7549 = vmatmul.f32.gmra.mxu0 %v7504
  %v7550 = vpop.f32.mrf.mxu0
  %v7551 = vadd.f32 0.0, %v7550
  %7552 = vmatmul.f32.gmra.mxu0 %v7507
  %v7553 = vpop.f32.mrf.mxu0
  %v7554 = vadd.f32 0.0, %v7553
  %7555 = vmatmul.f32.gmra.mxu0 %v7510
  %v7556 = vpop.f32.mrf.mxu0
  %v7557 = vadd.f32 0.0, %v7556
  %7558 = vmatmul.f32.gmra.mxu0 %v7513
  %v7559 = vpop.f32.mrf.mxu0
  %v7560 = vadd.f32 0.0, %v7559
  %7561 = vmatmul.f32.gmra.mxu0 %v7516
  %v7562 = vpop.f32.mrf.mxu0
  %v7563 = vadd.f32 0.0, %v7562
  %7564 = vmatmul.f32.gmra.mxu0 %v7519
  %v7565 = vpop.f32.mrf.mxu0
  %v7566 = vadd.f32 0.0, %v7565
  %7567 = vdwg.mxu0
  %v7569 = vsel %vm87, %v7251, 0
  %v7572 = vsel %vm87, %v7252, 0
  %v7575 = vsel %vm87, %v7253, 0
  %v7578 = vsel %vm87, %v7254, 0
  %v7581 = vsel %vm87, %v7255, 0
  %v7584 = vsel %vm87, %v7256, 0
  %v7587 = vsel %vm87, %v7257, 0
  %v7590 = vsel %vm87, %v7258, 0
  %v7593 = vsel %vm87, %v542, 0
  %v7596 = vsel %vm87, %v543, 0
  %7598 = vmatpush.xpose.msra.mxu0 0.0
  %7599 = vmatpush.xpose.msra.mxu0 0.0
  %7600 = vmatpush.xpose.msra.mxu0 0.0
  %7601 = vmatpush.xpose.msra.mxu0 0.0
  %7602 = vmatpush.xpose.msra.mxu0 0.0
  %7603 = vmatpush.xpose.msra.mxu0 0.0
  %7604 = vmatpush.xpose.msra.mxu0 0.0
  %7605 = vmatpush.xpose.msra.mxu0 0.0
  %7606 = vmatpush.xpose.msra.mxu0 0.0
  %7607 = vmatpush.xpose.msra.mxu0 0.0
  %7608 = vmatpush.xpose.msra.mxu0 0.0
  %7609 = vmatpush.xpose.msra.mxu0 0.0
  %7610 = vmatpush.xpose.msra.mxu0 0.0
  %7611 = vmatpush.xpose.msra.mxu0 0.0
  %7612 = vmatpush.xpose.msra.mxu0 %v7596
  %7613 = vmatpush.xpose.msra.mxu0 %v7593
  %7614 = vmatmul.f32.gmra.mxu0 %v7569
  %v7615 = vpop.f32.mrf.mxu0
  %v7616 = vadd.f32 0.0, %v7615
  %7617 = vmatmul.f32.gmra.mxu0 %v7572
  %v7618 = vpop.f32.mrf.mxu0
  %v7619 = vadd.f32 0.0, %v7618
  %7620 = vmatmul.f32.gmra.mxu0 %v7575
  %v7621 = vpop.f32.mrf.mxu0
  %v7622 = vadd.f32 0.0, %v7621
  %7623 = vmatmul.f32.gmra.mxu0 %v7578
  %v7624 = vpop.f32.mrf.mxu0
  %v7625 = vadd.f32 0.0, %v7624
  %7626 = vmatmul.f32.gmra.mxu0 %v7581
  %v7627 = vpop.f32.mrf.mxu0
  %v7628 = vadd.f32 0.0, %v7627
  %7629 = vmatmul.f32.gmra.mxu0 %v7584
  %v7630 = vpop.f32.mrf.mxu0
  %v7631 = vadd.f32 0.0, %v7630
  %7632 = vmatmul.f32.gmra.mxu0 %v7587
  %v7633 = vpop.f32.mrf.mxu0
  %v7634 = vadd.f32 0.0, %v7633
  %7635 = vmatmul.f32.gmra.mxu0 %v7590
  %v7636 = vpop.f32.mrf.mxu0
  %v7637 = vadd.f32 0.0, %v7636
  %7638 = vdwg.mxu0
  %v7640 = vsel %vm87, %v7259, 0
  %v7643 = vsel %vm87, %v7260, 0
  %v7646 = vsel %vm87, %v7261, 0
  %v7649 = vsel %vm87, %v7262, 0
  %v7652 = vsel %vm87, %v7263, 0
  %v7655 = vsel %vm87, %v7264, 0
  %v7658 = vsel %vm87, %v7265, 0
  %v7661 = vsel %vm87, %v7266, 0
  %v7664 = vsel %vm87, %v544, 0
  %v7667 = vsel %vm87, %v545, 0
  %7669 = vmatpush.xpose.msra.mxu0 0.0
  %7670 = vmatpush.xpose.msra.mxu0 0.0
  %7671 = vmatpush.xpose.msra.mxu0 0.0
  %7672 = vmatpush.xpose.msra.mxu0 0.0
  %7673 = vmatpush.xpose.msra.mxu0 0.0
  %7674 = vmatpush.xpose.msra.mxu0 0.0
  %7675 = vmatpush.xpose.msra.mxu0 0.0
  %7676 = vmatpush.xpose.msra.mxu0 0.0
  %7677 = vmatpush.xpose.msra.mxu0 0.0
  %7678 = vmatpush.xpose.msra.mxu0 0.0
  %7679 = vmatpush.xpose.msra.mxu0 0.0
  %7680 = vmatpush.xpose.msra.mxu0 0.0
  %7681 = vmatpush.xpose.msra.mxu0 0.0
  %7682 = vmatpush.xpose.msra.mxu0 0.0
  %7683 = vmatpush.xpose.msra.mxu0 %v7667
  %7684 = vmatpush.xpose.msra.mxu0 %v7664
  %7685 = vmatmul.f32.gmra.mxu0 %v7640
  %v7686 = vpop.f32.mrf.mxu0
  %v7687 = vadd.f32 0.0, %v7686
  %7688 = vmatmul.f32.gmra.mxu0 %v7643
  %v7689 = vpop.f32.mrf.mxu0
  %v7690 = vadd.f32 0.0, %v7689
  %7691 = vmatmul.f32.gmra.mxu0 %v7646
  %v7692 = vpop.f32.mrf.mxu0
  %v7693 = vadd.f32 0.0, %v7692
  %7694 = vmatmul.f32.gmra.mxu0 %v7649
  %v7695 = vpop.f32.mrf.mxu0
  %v7696 = vadd.f32 0.0, %v7695
  %7697 = vmatmul.f32.gmra.mxu0 %v7652
  %v7698 = vpop.f32.mrf.mxu0
  %v7699 = vadd.f32 0.0, %v7698
  %7700 = vmatmul.f32.gmra.mxu0 %v7655
  %v7701 = vpop.f32.mrf.mxu0
  %v7702 = vadd.f32 0.0, %v7701
  %7703 = vmatmul.f32.gmra.mxu0 %v7658
  %v7704 = vpop.f32.mrf.mxu0
  %v7705 = vadd.f32 0.0, %v7704
  %7706 = vmatmul.f32.gmra.mxu0 %v7661
  %v7707 = vpop.f32.mrf.mxu0
  %v7708 = vadd.f32 0.0, %v7707
  %7709 = vdwg.mxu0
  %v7711 = vsel %vm87, %v7267, 0
  %v7714 = vsel %vm87, %v7268, 0
  %v7717 = vsel %vm87, %v7269, 0
  %v7720 = vsel %vm87, %v7270, 0
  %v7723 = vsel %vm87, %v7271, 0
  %v7726 = vsel %vm87, %v7272, 0
  %v7729 = vsel %vm87, %v7273, 0
  %v7732 = vsel %vm87, %v7274, 0
  %v7735 = vsel %vm87, %v546, 0
  %v7738 = vsel %vm87, %v547, 0
  %7740 = vmatpush.xpose.msra.mxu0 0.0
  %7741 = vmatpush.xpose.msra.mxu0 0.0
  %7742 = vmatpush.xpose.msra.mxu0 0.0
  %7743 = vmatpush.xpose.msra.mxu0 0.0
  %7744 = vmatpush.xpose.msra.mxu0 0.0
  %7745 = vmatpush.xpose.msra.mxu0 0.0
  %7746 = vmatpush.xpose.msra.mxu0 0.0
  %7747 = vmatpush.xpose.msra.mxu0 0.0
  %7748 = vmatpush.xpose.msra.mxu0 0.0
  %7749 = vmatpush.xpose.msra.mxu0 0.0
  %7750 = vmatpush.xpose.msra.mxu0 0.0
  %7751 = vmatpush.xpose.msra.mxu0 0.0
  %7752 = vmatpush.xpose.msra.mxu0 0.0
  %7753 = vmatpush.xpose.msra.mxu0 0.0
  %7754 = vmatpush.xpose.msra.mxu0 %v7738
  %7755 = vmatpush.xpose.msra.mxu0 %v7735
  %7756 = vmatmul.f32.gmra.mxu0 %v7711
  %v7757 = vpop.f32.mrf.mxu0
  %v7758 = vadd.f32 0.0, %v7757
  %7759 = vmatmul.f32.gmra.mxu0 %v7714
  %v7760 = vpop.f32.mrf.mxu0
  %v7761 = vadd.f32 0.0, %v7760
  %7762 = vmatmul.f32.gmra.mxu0 %v7717
  %v7763 = vpop.f32.mrf.mxu0
  %v7764 = vadd.f32 0.0, %v7763
  %7765 = vmatmul.f32.gmra.mxu0 %v7720
  %v7766 = vpop.f32.mrf.mxu0
  %v7767 = vadd.f32 0.0, %v7766
  %7768 = vmatmul.f32.gmra.mxu0 %v7723
  %v7769 = vpop.f32.mrf.mxu0
  %v7770 = vadd.f32 0.0, %v7769
  %7771 = vmatmul.f32.gmra.mxu0 %v7726
  %v7772 = vpop.f32.mrf.mxu0
  %v7773 = vadd.f32 0.0, %v7772
  %7774 = vmatmul.f32.gmra.mxu0 %v7729
  %v7775 = vpop.f32.mrf.mxu0
  %v7776 = vadd.f32 0.0, %v7775
  %7777 = vmatmul.f32.gmra.mxu0 %v7732
  %v7778 = vpop.f32.mrf.mxu0
  %v7779 = vadd.f32 0.0, %v7778
  %7780 = vdwg.mxu0
  %v7782 = vsel %vm87, %v7275, 0
  %v7785 = vsel %vm87, %v7276, 0
  %v7788 = vsel %vm87, %v7277, 0
  %v7791 = vsel %vm87, %v7278, 0
  %v7794 = vsel %vm87, %v7279, 0
  %v7797 = vsel %vm87, %v7280, 0
  %v7800 = vsel %vm87, %v7281, 0
  %v7803 = vsel %vm87, %v7282, 0
  %v7806 = vsel %vm87, %v548, 0
  %v7809 = vsel %vm87, %v549, 0
  %7811 = vmatpush.xpose.msra.mxu0 0.0
  %7812 = vmatpush.xpose.msra.mxu0 0.0
  %7813 = vmatpush.xpose.msra.mxu0 0.0
  %7814 = vmatpush.xpose.msra.mxu0 0.0
  %7815 = vmatpush.xpose.msra.mxu0 0.0
  %7816 = vmatpush.xpose.msra.mxu0 0.0
  %7817 = vmatpush.xpose.msra.mxu0 0.0
  %7818 = vmatpush.xpose.msra.mxu0 0.0
  %7819 = vmatpush.xpose.msra.mxu0 0.0
  %7820 = vmatpush.xpose.msra.mxu0 0.0
  %7821 = vmatpush.xpose.msra.mxu0 0.0
  %7822 = vmatpush.xpose.msra.mxu0 0.0
  %7823 = vmatpush.xpose.msra.mxu0 0.0
  %7824 = vmatpush.xpose.msra.mxu0 0.0
  %7825 = vmatpush.xpose.msra.mxu0 %v7809
  %7826 = vmatpush.xpose.msra.mxu0 %v7806
  %7827 = vmatmul.f32.gmra.mxu0 %v7782
  %v7828 = vpop.f32.mrf.mxu0
  %v7829 = vadd.f32 0.0, %v7828
  %7830 = vmatmul.f32.gmra.mxu0 %v7785
  %v7831 = vpop.f32.mrf.mxu0
  %v7832 = vadd.f32 0.0, %v7831
  %7833 = vmatmul.f32.gmra.mxu0 %v7788
  %v7834 = vpop.f32.mrf.mxu0
  %v7835 = vadd.f32 0.0, %v7834
  %7836 = vmatmul.f32.gmra.mxu0 %v7791
  %v7837 = vpop.f32.mrf.mxu0
  %v7838 = vadd.f32 0.0, %v7837
  %7839 = vmatmul.f32.gmra.mxu0 %v7794
  %v7840 = vpop.f32.mrf.mxu0
  %v7841 = vadd.f32 0.0, %v7840
  %7842 = vmatmul.f32.gmra.mxu0 %v7797
  %v7843 = vpop.f32.mrf.mxu0
  %v7844 = vadd.f32 0.0, %v7843
  %7845 = vmatmul.f32.gmra.mxu0 %v7800
  %v7846 = vpop.f32.mrf.mxu0
  %v7847 = vadd.f32 0.0, %v7846
  %7848 = vmatmul.f32.gmra.mxu0 %v7803
  %v7849 = vpop.f32.mrf.mxu0
  %v7850 = vadd.f32 0.0, %v7849
  %7851 = vdwg.mxu0
  %v7853 = vsel %vm87, %v7283, 0
  %v7856 = vsel %vm87, %v7284, 0
  %v7859 = vsel %vm87, %v7285, 0
  %v7862 = vsel %vm87, %v7286, 0
  %v7865 = vsel %vm87, %v7287, 0
  %v7868 = vsel %vm87, %v7288, 0
  %v7871 = vsel %vm87, %v7289, 0
  %v7874 = vsel %vm87, %v7290, 0
  %v7877 = vsel %vm87, %v550, 0
  %v7880 = vsel %vm87, %v551, 0
  %7882 = vmatpush.xpose.msra.mxu0 0.0
  %7883 = vmatpush.xpose.msra.mxu0 0.0
  %7884 = vmatpush.xpose.msra.mxu0 0.0
  %7885 = vmatpush.xpose.msra.mxu0 0.0
  %7886 = vmatpush.xpose.msra.mxu0 0.0
  %7887 = vmatpush.xpose.msra.mxu0 0.0
  %7888 = vmatpush.xpose.msra.mxu0 0.0
  %7889 = vmatpush.xpose.msra.mxu0 0.0
  %7890 = vmatpush.xpose.msra.mxu0 0.0
  %7891 = vmatpush.xpose.msra.mxu0 0.0
  %7892 = vmatpush.xpose.msra.mxu0 0.0
  %7893 = vmatpush.xpose.msra.mxu0 0.0
  %7894 = vmatpush.xpose.msra.mxu0 0.0
  %7895 = vmatpush.xpose.msra.mxu0 0.0
  %7896 = vmatpush.xpose.msra.mxu0 %v7880
  %7897 = vmatpush.xpose.msra.mxu0 %v7877
  %7898 = vmatmul.f32.gmra.mxu0 %v7853
  %v7899 = vpop.f32.mrf.mxu0
  %v7900 = vadd.f32 0.0, %v7899
  %7901 = vmatmul.f32.gmra.mxu0 %v7856
  %v7902 = vpop.f32.mrf.mxu0
  %v7903 = vadd.f32 0.0, %v7902
  %7904 = vmatmul.f32.gmra.mxu0 %v7859
  %v7905 = vpop.f32.mrf.mxu0
  %v7906 = vadd.f32 0.0, %v7905
  %7907 = vmatmul.f32.gmra.mxu0 %v7862
  %v7908 = vpop.f32.mrf.mxu0
  %v7909 = vadd.f32 0.0, %v7908
  %7910 = vmatmul.f32.gmra.mxu0 %v7865
  %v7911 = vpop.f32.mrf.mxu0
  %v7912 = vadd.f32 0.0, %v7911
  %7913 = vmatmul.f32.gmra.mxu0 %v7868
  %v7914 = vpop.f32.mrf.mxu0
  %v7915 = vadd.f32 0.0, %v7914
  %7916 = vmatmul.f32.gmra.mxu0 %v7871
  %v7917 = vpop.f32.mrf.mxu0
  %v7918 = vadd.f32 0.0, %v7917
  %7919 = vmatmul.f32.gmra.mxu0 %v7874
  %v7920 = vpop.f32.mrf.mxu0
  %v7921 = vadd.f32 0.0, %v7920
  %7922 = vdwg.mxu0
  %v7924 = vsel %vm87, %v7291, 0
  %v7927 = vsel %vm87, %v7292, 0
  %v7930 = vsel %vm87, %v7293, 0
  %v7933 = vsel %vm87, %v7294, 0
  %v7936 = vsel %vm87, %v7295, 0
  %v7939 = vsel %vm87, %v7296, 0
  %v7942 = vsel %vm87, %v7297, 0
  %v7945 = vsel %vm87, %v7298, 0
  %v7948 = vsel %vm87, %v552, 0
  %v7951 = vsel %vm87, %v553, 0
  %7953 = vmatpush.xpose.msra.mxu0 0.0
  %7954 = vmatpush.xpose.msra.mxu0 0.0
  %7955 = vmatpush.xpose.msra.mxu0 0.0
  %7956 = vmatpush.xpose.msra.mxu0 0.0
  %7957 = vmatpush.xpose.msra.mxu0 0.0
  %7958 = vmatpush.xpose.msra.mxu0 0.0
  %7959 = vmatpush.xpose.msra.mxu0 0.0
  %7960 = vmatpush.xpose.msra.mxu0 0.0
  %7961 = vmatpush.xpose.msra.mxu0 0.0
  %7962 = vmatpush.xpose.msra.mxu0 0.0
  %7963 = vmatpush.xpose.msra.mxu0 0.0
  %7964 = vmatpush.xpose.msra.mxu0 0.0
  %7965 = vmatpush.xpose.msra.mxu0 0.0
  %7966 = vmatpush.xpose.msra.mxu0 0.0
  %7967 = vmatpush.xpose.msra.mxu0 %v7951
  %7968 = vmatpush.xpose.msra.mxu0 %v7948
  %7969 = vmatmul.f32.gmra.mxu0 %v7924
  %v7970 = vpop.f32.mrf.mxu0
  %v7971 = vadd.f32 0.0, %v7970
  %7972 = vmatmul.f32.gmra.mxu0 %v7927
  %v7973 = vpop.f32.mrf.mxu0
  %v7974 = vadd.f32 0.0, %v7973
  %7975 = vmatmul.f32.gmra.mxu0 %v7930
  %v7976 = vpop.f32.mrf.mxu0
  %v7977 = vadd.f32 0.0, %v7976
  %7978 = vmatmul.f32.gmra.mxu0 %v7933
  %v7979 = vpop.f32.mrf.mxu0
  %v7980 = vadd.f32 0.0, %v7979
  %7981 = vmatmul.f32.gmra.mxu0 %v7936
  %v7982 = vpop.f32.mrf.mxu0
  %v7983 = vadd.f32 0.0, %v7982
  %7984 = vmatmul.f32.gmra.mxu0 %v7939
  %v7985 = vpop.f32.mrf.mxu0
  %v7986 = vadd.f32 0.0, %v7985
  %7987 = vmatmul.f32.gmra.mxu0 %v7942
  %v7988 = vpop.f32.mrf.mxu0
  %v7989 = vadd.f32 0.0, %v7988
  %7990 = vmatmul.f32.gmra.mxu0 %v7945
  %v7991 = vpop.f32.mrf.mxu0
  %v7992 = vadd.f32 0.0, %v7991
  %7993 = vdwg.mxu0
  %v7995 = vsel %vm87, %v7299, 0
  %v7998 = vsel %vm87, %v7300, 0
  %v8001 = vsel %vm87, %v7301, 0
  %v8004 = vsel %vm87, %v7302, 0
  %v8007 = vsel %vm87, %v7303, 0
  %v8010 = vsel %vm87, %v7304, 0
  %v8013 = vsel %vm87, %v7305, 0
  %v8016 = vsel %vm87, %v7306, 0
  %v8019 = vsel %vm87, %v554, 0
  %v8022 = vsel %vm87, %v555, 0
  %8024 = vmatpush.xpose.msra.mxu0 0.0
  %8025 = vmatpush.xpose.msra.mxu0 0.0
  %8026 = vmatpush.xpose.msra.mxu0 0.0
  %8027 = vmatpush.xpose.msra.mxu0 0.0
  %8028 = vmatpush.xpose.msra.mxu0 0.0
  %8029 = vmatpush.xpose.msra.mxu0 0.0
  %8030 = vmatpush.xpose.msra.mxu0 0.0
  %8031 = vmatpush.xpose.msra.mxu0 0.0
  %8032 = vmatpush.xpose.msra.mxu0 0.0
  %8033 = vmatpush.xpose.msra.mxu0 0.0
  %8034 = vmatpush.xpose.msra.mxu0 0.0
  %8035 = vmatpush.xpose.msra.mxu0 0.0
  %8036 = vmatpush.xpose.msra.mxu0 0.0
  %8037 = vmatpush.xpose.msra.mxu0 0.0
  %8038 = vmatpush.xpose.msra.mxu0 %v8022
  %8039 = vmatpush.xpose.msra.mxu0 %v8019
  %8040 = vmatmul.f32.gmra.mxu0 %v7995
  %v8041 = vpop.f32.mrf.mxu0
  %v8042 = vadd.f32 0.0, %v8041
  %8043 = vmatmul.f32.gmra.mxu0 %v7998
  %v8044 = vpop.f32.mrf.mxu0
  %v8045 = vadd.f32 0.0, %v8044
  %8046 = vmatmul.f32.gmra.mxu0 %v8001
  %v8047 = vpop.f32.mrf.mxu0
  %v8048 = vadd.f32 0.0, %v8047
  %8049 = vmatmul.f32.gmra.mxu0 %v8004
  %v8050 = vpop.f32.mrf.mxu0
  %v8051 = vadd.f32 0.0, %v8050
  %8052 = vmatmul.f32.gmra.mxu0 %v8007
  %v8053 = vpop.f32.mrf.mxu0
  %v8054 = vadd.f32 0.0, %v8053
  %8055 = vmatmul.f32.gmra.mxu0 %v8010
  %v8056 = vpop.f32.mrf.mxu0
  %v8057 = vadd.f32 0.0, %v8056
  %8058 = vmatmul.f32.gmra.mxu0 %v8013
  %v8059 = vpop.f32.mrf.mxu0
  %v8060 = vadd.f32 0.0, %v8059
  %8061 = vmatmul.f32.gmra.mxu0 %v8016
  %v8062 = vpop.f32.mrf.mxu0
  %v8063 = vadd.f32 0.0, %v8062
  %8064 = vdwg.mxu0
  %v8066 = vsel %vm87, %v7307, 0
  %v8069 = vsel %vm87, %v7308, 0
  %v8072 = vsel %vm87, %v7309, 0
  %v8075 = vsel %vm87, %v7310, 0
  %v8078 = vsel %vm87, %v7311, 0
  %v8081 = vsel %vm87, %v7312, 0
  %v8084 = vsel %vm87, %v7313, 0
  %v8087 = vsel %vm87, %v7314, 0
  %v8090 = vsel %vm87, %v556, 0
  %v8093 = vsel %vm87, %v557, 0
  %8095 = vmatpush.xpose.msra.mxu0 0.0
  %8096 = vmatpush.xpose.msra.mxu0 0.0
  %8097 = vmatpush.xpose.msra.mxu0 0.0
  %8098 = vmatpush.xpose.msra.mxu0 0.0
  %8099 = vmatpush.xpose.msra.mxu0 0.0
  %8100 = vmatpush.xpose.msra.mxu0 0.0
  %8101 = vmatpush.xpose.msra.mxu0 0.0
  %8102 = vmatpush.xpose.msra.mxu0 0.0
  %8103 = vmatpush.xpose.msra.mxu0 0.0
  %8104 = vmatpush.xpose.msra.mxu0 0.0
  %8105 = vmatpush.xpose.msra.mxu0 0.0
  %8106 = vmatpush.xpose.msra.mxu0 0.0
  %8107 = vmatpush.xpose.msra.mxu0 0.0
  %8108 = vmatpush.xpose.msra.mxu0 0.0
  %8109 = vmatpush.xpose.msra.mxu0 %v8093
  %8110 = vmatpush.xpose.msra.mxu0 %v8090
  %8111 = vmatmul.f32.gmra.mxu0 %v8066
  %v8112 = vpop.f32.mrf.mxu0
  %v8113 = vadd.f32 0.0, %v8112
  %8114 = vmatmul.f32.gmra.mxu0 %v8069
  %v8115 = vpop.f32.mrf.mxu0
  %v8116 = vadd.f32 0.0, %v8115
  %8117 = vmatmul.f32.gmra.mxu0 %v8072
  %v8118 = vpop.f32.mrf.mxu0
  %v8119 = vadd.f32 0.0, %v8118
  %8120 = vmatmul.f32.gmra.mxu0 %v8075
  %v8121 = vpop.f32.mrf.mxu0
  %v8122 = vadd.f32 0.0, %v8121
  %8123 = vmatmul.f32.gmra.mxu0 %v8078
  %v8124 = vpop.f32.mrf.mxu0
  %v8125 = vadd.f32 0.0, %v8124
  %8126 = vmatmul.f32.gmra.mxu0 %v8081
  %v8127 = vpop.f32.mrf.mxu0
  %v8128 = vadd.f32 0.0, %v8127
  %8129 = vmatmul.f32.gmra.mxu0 %v8084
  %v8130 = vpop.f32.mrf.mxu0
  %v8131 = vadd.f32 0.0, %v8130
  %8132 = vmatmul.f32.gmra.mxu0 %v8087
  %v8133 = vpop.f32.mrf.mxu0
  %v8134 = vadd.f32 0.0, %v8133
  %8135 = vdwg.mxu0
  %v8137 = vsel %vm87, %v7315, 0
  %v8140 = vsel %vm87, %v7316, 0
  %v8143 = vsel %vm87, %v7317, 0
  %v8146 = vsel %vm87, %v7318, 0
  %v8149 = vsel %vm87, %v7319, 0
  %v8152 = vsel %vm87, %v7320, 0
  %v8155 = vsel %vm87, %v7321, 0
  %v8158 = vsel %vm87, %v7322, 0
  %v8161 = vsel %vm87, %v558, 0
  %v8164 = vsel %vm87, %v559, 0
  %8166 = vmatpush.xpose.msra.mxu0 0.0
  %8167 = vmatpush.xpose.msra.mxu0 0.0
  %8168 = vmatpush.xpose.msra.mxu0 0.0
  %8169 = vmatpush.xpose.msra.mxu0 0.0
  %8170 = vmatpush.xpose.msra.mxu0 0.0
  %8171 = vmatpush.xpose.msra.mxu0 0.0
  %8172 = vmatpush.xpose.msra.mxu0 0.0
  %8173 = vmatpush.xpose.msra.mxu0 0.0
  %8174 = vmatpush.xpose.msra.mxu0 0.0
  %8175 = vmatpush.xpose.msra.mxu0 0.0
  %8176 = vmatpush.xpose.msra.mxu0 0.0
  %8177 = vmatpush.xpose.msra.mxu0 0.0
  %8178 = vmatpush.xpose.msra.mxu0 0.0
  %8179 = vmatpush.xpose.msra.mxu0 0.0
  %8180 = vmatpush.xpose.msra.mxu0 %v8164
  %8181 = vmatpush.xpose.msra.mxu0 %v8161
  %8182 = vmatmul.f32.gmra.mxu0 %v8137
  %v8183 = vpop.f32.mrf.mxu0
  %v8184 = vadd.f32 0.0, %v8183
  %8185 = vmatmul.f32.gmra.mxu0 %v8140
  %v8186 = vpop.f32.mrf.mxu0
  %v8187 = vadd.f32 0.0, %v8186
  %8188 = vmatmul.f32.gmra.mxu0 %v8143
  %v8189 = vpop.f32.mrf.mxu0
  %v8190 = vadd.f32 0.0, %v8189
  %8191 = vmatmul.f32.gmra.mxu0 %v8146
  %v8192 = vpop.f32.mrf.mxu0
  %v8193 = vadd.f32 0.0, %v8192
  %8194 = vmatmul.f32.gmra.mxu0 %v8149
  %v8195 = vpop.f32.mrf.mxu0
  %v8196 = vadd.f32 0.0, %v8195
  %8197 = vmatmul.f32.gmra.mxu0 %v8152
  %v8198 = vpop.f32.mrf.mxu0
  %v8199 = vadd.f32 0.0, %v8198
  %8200 = vmatmul.f32.gmra.mxu0 %v8155
  %v8201 = vpop.f32.mrf.mxu0
  %v8202 = vadd.f32 0.0, %v8201
  %8203 = vmatmul.f32.gmra.mxu0 %v8158
  %v8204 = vpop.f32.mrf.mxu0
  %v8205 = vadd.f32 0.0, %v8204
  %8206 = vdwg.mxu0
  %v8208 = vsel %vm87, %v7323, 0
  %v8211 = vsel %vm87, %v7324, 0
  %v8214 = vsel %vm87, %v7325, 0
  %v8217 = vsel %vm87, %v7326, 0
  %v8220 = vsel %vm87, %v7327, 0
  %v8223 = vsel %vm87, %v7328, 0
  %v8226 = vsel %vm87, %v7329, 0
  %v8229 = vsel %vm87, %v7330, 0
  %v8232 = vsel %vm87, %v560, 0
  %v8235 = vsel %vm87, %v561, 0
  %8237 = vmatpush.xpose.msra.mxu0 0.0
  %8238 = vmatpush.xpose.msra.mxu0 0.0
  %8239 = vmatpush.xpose.msra.mxu0 0.0
  %8240 = vmatpush.xpose.msra.mxu0 0.0
  %8241 = vmatpush.xpose.msra.mxu0 0.0
  %8242 = vmatpush.xpose.msra.mxu0 0.0
  %8243 = vmatpush.xpose.msra.mxu0 0.0
  %8244 = vmatpush.xpose.msra.mxu0 0.0
  %8245 = vmatpush.xpose.msra.mxu0 0.0
  %8246 = vmatpush.xpose.msra.mxu0 0.0
  %8247 = vmatpush.xpose.msra.mxu0 0.0
  %8248 = vmatpush.xpose.msra.mxu0 0.0
  %8249 = vmatpush.xpose.msra.mxu0 0.0
  %8250 = vmatpush.xpose.msra.mxu0 0.0
  %8251 = vmatpush.xpose.msra.mxu0 %v8235
  %8252 = vmatpush.xpose.msra.mxu0 %v8232
  %8253 = vmatmul.f32.gmra.mxu0 %v8208
  %v8254 = vpop.f32.mrf.mxu0
  %v8255 = vadd.f32 0.0, %v8254
  %8256 = vmatmul.f32.gmra.mxu0 %v8211
  %v8257 = vpop.f32.mrf.mxu0
  %v8258 = vadd.f32 0.0, %v8257
  %8259 = vmatmul.f32.gmra.mxu0 %v8214
  %v8260 = vpop.f32.mrf.mxu0
  %v8261 = vadd.f32 0.0, %v8260
  %8262 = vmatmul.f32.gmra.mxu0 %v8217
  %v8263 = vpop.f32.mrf.mxu0
  %v8264 = vadd.f32 0.0, %v8263
  %8265 = vmatmul.f32.gmra.mxu0 %v8220
  %v8266 = vpop.f32.mrf.mxu0
  %v8267 = vadd.f32 0.0, %v8266
  %8268 = vmatmul.f32.gmra.mxu0 %v8223
  %v8269 = vpop.f32.mrf.mxu0
  %v8270 = vadd.f32 0.0, %v8269
  %8271 = vmatmul.f32.gmra.mxu0 %v8226
  %v8272 = vpop.f32.mrf.mxu0
  %v8273 = vadd.f32 0.0, %v8272
  %8274 = vmatmul.f32.gmra.mxu0 %v8229
  %v8275 = vpop.f32.mrf.mxu0
  %v8276 = vadd.f32 0.0, %v8275
  %8277 = vdwg.mxu0
  %v8279 = vsel %vm87, %v7331, 0
  %v8282 = vsel %vm87, %v7332, 0
  %v8285 = vsel %vm87, %v7333, 0
  %v8288 = vsel %vm87, %v7334, 0
  %v8291 = vsel %vm87, %v7335, 0
  %v8294 = vsel %vm87, %v7336, 0
  %v8297 = vsel %vm87, %v7337, 0
  %v8300 = vsel %vm87, %v7338, 0
  %v8303 = vsel %vm87, %v562, 0
  %v8306 = vsel %vm87, %v563, 0
  %8308 = vmatpush.xpose.msra.mxu0 0.0
  %8309 = vmatpush.xpose.msra.mxu0 0.0
  %8310 = vmatpush.xpose.msra.mxu0 0.0
  %8311 = vmatpush.xpose.msra.mxu0 0.0
  %8312 = vmatpush.xpose.msra.mxu0 0.0
  %8313 = vmatpush.xpose.msra.mxu0 0.0
  %8314 = vmatpush.xpose.msra.mxu0 0.0
  %8315 = vmatpush.xpose.msra.mxu0 0.0
  %8316 = vmatpush.xpose.msra.mxu0 0.0
  %8317 = vmatpush.xpose.msra.mxu0 0.0
  %8318 = vmatpush.xpose.msra.mxu0 0.0
  %8319 = vmatpush.xpose.msra.mxu0 0.0
  %8320 = vmatpush.xpose.msra.mxu0 0.0
  %8321 = vmatpush.xpose.msra.mxu0 0.0
  %8322 = vmatpush.xpose.msra.mxu0 %v8306
  %8323 = vmatpush.xpose.msra.mxu0 %v8303
  %8324 = vmatmul.f32.gmra.mxu0 %v8279
  %v8325 = vpop.f32.mrf.mxu0
  %v8326 = vadd.f32 0.0, %v8325
  %8327 = vmatmul.f32.gmra.mxu0 %v8282
  %v8328 = vpop.f32.mrf.mxu0
  %v8329 = vadd.f32 0.0, %v8328
  %8330 = vmatmul.f32.gmra.mxu0 %v8285
  %v8331 = vpop.f32.mrf.mxu0
  %v8332 = vadd.f32 0.0, %v8331
  %8333 = vmatmul.f32.gmra.mxu0 %v8288
  %v8334 = vpop.f32.mrf.mxu0
  %v8335 = vadd.f32 0.0, %v8334
  %8336 = vmatmul.f32.gmra.mxu0 %v8291
  %v8337 = vpop.f32.mrf.mxu0
  %v8338 = vadd.f32 0.0, %v8337
  %8339 = vmatmul.f32.gmra.mxu0 %v8294
  %v8340 = vpop.f32.mrf.mxu0
  %v8341 = vadd.f32 0.0, %v8340
  %8342 = vmatmul.f32.gmra.mxu0 %v8297
  %v8343 = vpop.f32.mrf.mxu0
  %v8344 = vadd.f32 0.0, %v8343
  %8345 = vmatmul.f32.gmra.mxu0 %v8300
  %v8346 = vpop.f32.mrf.mxu0
  %v8347 = vadd.f32 0.0, %v8346
  %8348 = vdwg.mxu0
  %v8350 = vsel %vm87, %v7339, 0
  %v8353 = vsel %vm87, %v7340, 0
  %v8356 = vsel %vm87, %v7341, 0
  %v8359 = vsel %vm87, %v7342, 0
  %v8362 = vsel %vm87, %v7343, 0
  %v8365 = vsel %vm87, %v7344, 0
  %v8368 = vsel %vm87, %v7345, 0
  %v8371 = vsel %vm87, %v7346, 0
  %v8374 = vsel %vm87, %v564, 0
  %v8377 = vsel %vm87, %v565, 0
  %8379 = vmatpush.xpose.msra.mxu0 0.0
  %8380 = vmatpush.xpose.msra.mxu0 0.0
  %8381 = vmatpush.xpose.msra.mxu0 0.0
  %8382 = vmatpush.xpose.msra.mxu0 0.0
  %8383 = vmatpush.xpose.msra.mxu0 0.0
  %8384 = vmatpush.xpose.msra.mxu0 0.0
  %8385 = vmatpush.xpose.msra.mxu0 0.0
  %8386 = vmatpush.xpose.msra.mxu0 0.0
  %8387 = vmatpush.xpose.msra.mxu0 0.0
  %8388 = vmatpush.xpose.msra.mxu0 0.0
  %8389 = vmatpush.xpose.msra.mxu0 0.0
  %8390 = vmatpush.xpose.msra.mxu0 0.0
  %8391 = vmatpush.xpose.msra.mxu0 0.0
  %8392 = vmatpush.xpose.msra.mxu0 0.0
  %8393 = vmatpush.xpose.msra.mxu0 %v8377
  %8394 = vmatpush.xpose.msra.mxu0 %v8374
  %8395 = vmatmul.f32.gmra.mxu0 %v8350
  %v8396 = vpop.f32.mrf.mxu0
  %v8397 = vadd.f32 0.0, %v8396
  %8398 = vmatmul.f32.gmra.mxu0 %v8353
  %v8399 = vpop.f32.mrf.mxu0
  %v8400 = vadd.f32 0.0, %v8399
  %8401 = vmatmul.f32.gmra.mxu0 %v8356
  %v8402 = vpop.f32.mrf.mxu0
  %v8403 = vadd.f32 0.0, %v8402
  %8404 = vmatmul.f32.gmra.mxu0 %v8359
  %v8405 = vpop.f32.mrf.mxu0
  %v8406 = vadd.f32 0.0, %v8405
  %8407 = vmatmul.f32.gmra.mxu0 %v8362
  %v8408 = vpop.f32.mrf.mxu0
  %v8409 = vadd.f32 0.0, %v8408
  %8410 = vmatmul.f32.gmra.mxu0 %v8365
  %v8411 = vpop.f32.mrf.mxu0
  %v8412 = vadd.f32 0.0, %v8411
  %8413 = vmatmul.f32.gmra.mxu0 %v8368
  %v8414 = vpop.f32.mrf.mxu0
  %v8415 = vadd.f32 0.0, %v8414
  %8416 = vmatmul.f32.gmra.mxu0 %v8371
  %v8417 = vpop.f32.mrf.mxu0
  %v8418 = vadd.f32 0.0, %v8417
  %8419 = vdwg.mxu0
  %v8421 = vsel %vm87, %v7347, 0
  %v8424 = vsel %vm87, %v7348, 0
  %v8427 = vsel %vm87, %v7349, 0
  %v8430 = vsel %vm87, %v7350, 0
  %v8433 = vsel %vm87, %v7351, 0
  %v8436 = vsel %vm87, %v7352, 0
  %v8439 = vsel %vm87, %v7353, 0
  %v8442 = vsel %vm87, %v7354, 0
  %v8445 = vsel %vm87, %v566, 0
  %v8448 = vsel %vm87, %v567, 0
  %8450 = vmatpush.xpose.msra.mxu0 0.0
  %8451 = vmatpush.xpose.msra.mxu0 0.0
  %8452 = vmatpush.xpose.msra.mxu0 0.0
  %8453 = vmatpush.xpose.msra.mxu0 0.0
  %8454 = vmatpush.xpose.msra.mxu0 0.0
  %8455 = vmatpush.xpose.msra.mxu0 0.0
  %8456 = vmatpush.xpose.msra.mxu0 0.0
  %8457 = vmatpush.xpose.msra.mxu0 0.0
  %8458 = vmatpush.xpose.msra.mxu0 0.0
  %8459 = vmatpush.xpose.msra.mxu0 0.0
  %8460 = vmatpush.xpose.msra.mxu0 0.0
  %8461 = vmatpush.xpose.msra.mxu0 0.0
  %8462 = vmatpush.xpose.msra.mxu0 0.0
  %8463 = vmatpush.xpose.msra.mxu0 0.0
  %8464 = vmatpush.xpose.msra.mxu0 %v8448
  %8465 = vmatpush.xpose.msra.mxu0 %v8445
  %8466 = vmatmul.f32.gmra.mxu0 %v8421
  %v8467 = vpop.f32.mrf.mxu0
  %v8468 = vadd.f32 0.0, %v8467
  %8469 = vmatmul.f32.gmra.mxu0 %v8424
  %v8470 = vpop.f32.mrf.mxu0
  %v8471 = vadd.f32 0.0, %v8470
  %8472 = vmatmul.f32.gmra.mxu0 %v8427
  %v8473 = vpop.f32.mrf.mxu0
  %v8474 = vadd.f32 0.0, %v8473
  %8475 = vmatmul.f32.gmra.mxu0 %v8430
  %v8476 = vpop.f32.mrf.mxu0
  %v8477 = vadd.f32 0.0, %v8476
  %8478 = vmatmul.f32.gmra.mxu0 %v8433
  %v8479 = vpop.f32.mrf.mxu0
  %v8480 = vadd.f32 0.0, %v8479
  %8481 = vmatmul.f32.gmra.mxu0 %v8436
  %v8482 = vpop.f32.mrf.mxu0
  %v8483 = vadd.f32 0.0, %v8482
  %8484 = vmatmul.f32.gmra.mxu0 %v8439
  %v8485 = vpop.f32.mrf.mxu0
  %v8486 = vadd.f32 0.0, %v8485
  %8487 = vmatmul.f32.gmra.mxu0 %v8442
  %v8488 = vpop.f32.mrf.mxu0
  %v8489 = vadd.f32 0.0, %v8488
  %8490 = vdwg.mxu0
  %v8491 = vld [vmem:[%s3] sm:$0xff]
  %v8492 = vld [vmem:[%s3 + $0x8] sm:$0xff]
  %v8493 = vld [vmem:[%s3 + $0x10] sm:$0xff]
  %v8494 = vld [vmem:[%s3 + $0x18] sm:$0xff]
  %v8495 = vld [vmem:[%s3 + $0x20] sm:$0xff]
  %v8496 = vld [vmem:[%s3 + $0x28] sm:$0xff]
  %v8497 = vld [vmem:[%s3 + $0x30] sm:$0xff]
  %v8498 = vld [vmem:[%s3 + $0x38] sm:$0xff]
  %v8499 = vld [vmem:[%s3 + $0x40] sm:$0xff]
  %v8500 = vld [vmem:[%s3 + $0x48] sm:$0xff]
  %v8501 = vld [vmem:[%s3 + $0x50] sm:$0xff]
  %v8502 = vld [vmem:[%s3 + $0x58] sm:$0xff]
  %v8503 = vld [vmem:[%s3 + $0x60] sm:$0xff]
  %v8504 = vld [vmem:[%s3 + $0x68] sm:$0xff]
  %v8505 = vld [vmem:[%s3 + $0x70] sm:$0xff]
  %v8506 = vld [vmem:[%s3 + $0x78] sm:$0xff]
  %v8507 = vadd.f32 %v7403, %v8491
  %v8508 = vadd.f32 %v7406, %v8492
  %v8509 = vadd.f32 %v7409, %v8493
  %v8510 = vadd.f32 %v7412, %v8494
  %v8511 = vadd.f32 %v7415, %v8495
  %v8512 = vadd.f32 %v7418, %v8496
  %v8513 = vadd.f32 %v7421, %v8497
  %v8514 = vadd.f32 %v7424, %v8498
  %v8515 = vadd.f32 %v7474, %v8491
  %v8516 = vadd.f32 %v7477, %v8492
  %v8517 = vadd.f32 %v7480, %v8493
  %v8518 = vadd.f32 %v7483, %v8494
  %v8519 = vadd.f32 %v7486, %v8495
  %v8520 = vadd.f32 %v7489, %v8496
  %v8521 = vadd.f32 %v7492, %v8497
  %v8522 = vadd.f32 %v7495, %v8498
  %v8523 = vadd.f32 %v7545, %v8491
  %v8524 = vadd.f32 %v7548, %v8492
  %v8525 = vadd.f32 %v7551, %v8493
  %v8526 = vadd.f32 %v7554, %v8494
  %v8527 = vadd.f32 %v7557, %v8495
  %v8528 = vadd.f32 %v7560, %v8496
  %v8529 = vadd.f32 %v7563, %v8497
  %v8530 = vadd.f32 %v7566, %v8498
  %v8531 = vadd.f32 %v7616, %v8491
  %v8532 = vadd.f32 %v7619, %v8492
  %v8533 = vadd.f32 %v7622, %v8493
  %v8534 = vadd.f32 %v7625, %v8494
  %v8535 = vadd.f32 %v7628, %v8495
  %v8536 = vadd.f32 %v7631, %v8496
  %v8537 = vadd.f32 %v7634, %v8497
  %v8538 = vadd.f32 %v7637, %v8498
  %v8539 = vadd.f32 %v7687, %v8491
  %v8540 = vadd.f32 %v7690, %v8492
  %v8541 = vadd.f32 %v7693, %v8493
  %v8542 = vadd.f32 %v7696, %v8494
  %v8543 = vadd.f32 %v7699, %v8495
  %v8544 = vadd.f32 %v7702, %v8496
  %v8545 = vadd.f32 %v7705, %v8497
  %v8546 = vadd.f32 %v7708, %v8498
  %v8547 = vadd.f32 %v7758, %v8491
  %v8548 = vadd.f32 %v7761, %v8492
  %v8549 = vadd.f32 %v7764, %v8493
  %v8550 = vadd.f32 %v7767, %v8494
  %v8551 = vadd.f32 %v7770, %v8495
  %v8552 = vadd.f32 %v7773, %v8496
  %v8553 = vadd.f32 %v7776, %v8497
  %v8554 = vadd.f32 %v7779, %v8498
  %v8555 = vadd.f32 %v7829, %v8491
  %v8556 = vadd.f32 %v7832, %v8492
  %v8557 = vadd.f32 %v7835, %v8493
  %v8558 = vadd.f32 %v7838, %v8494
  %v8559 = vadd.f32 %v7841, %v8495
  %v8560 = vadd.f32 %v7844, %v8496
  %v8561 = vadd.f32 %v7847, %v8497
  %v8562 = vadd.f32 %v7850, %v8498
  %v8563 = vadd.f32 %v7900, %v8491
  %v8564 = vadd.f32 %v7903, %v8492
  %v8565 = vadd.f32 %v7906, %v8493
  %v8566 = vadd.f32 %v7909, %v8494
  %v8567 = vadd.f32 %v7912, %v8495
  %v8568 = vadd.f32 %v7915, %v8496
  %v8569 = vadd.f32 %v7918, %v8497
  %v8570 = vadd.f32 %v7921, %v8498
  %v8571 = vadd.f32 %v7971, %v8499
  %v8572 = vadd.f32 %v7974, %v8500
  %v8573 = vadd.f32 %v7977, %v8501
  %v8574 = vadd.f32 %v7980, %v8502
  %v8575 = vadd.f32 %v7983, %v8503
  %v8576 = vadd.f32 %v7986, %v8504
  %v8577 = vadd.f32 %v7989, %v8505
  %v8578 = vadd.f32 %v7992, %v8506
  %v8579 = vadd.f32 %v8042, %v8499
  %v8580 = vadd.f32 %v8045, %v8500
  %v8581 = vadd.f32 %v8048, %v8501
  %v8582 = vadd.f32 %v8051, %v8502
  %v8583 = vadd.f32 %v8054, %v8503
  %v8584 = vadd.f32 %v8057, %v8504
  %v8585 = vadd.f32 %v8060, %v8505
  %v8586 = vadd.f32 %v8063, %v8506
  %v8587 = vadd.f32 %v8113, %v8499
  %v8588 = vadd.f32 %v8116, %v8500
  %v8589 = vadd.f32 %v8119, %v8501
  %v8590 = vadd.f32 %v8122, %v8502
  %v8591 = vadd.f32 %v8125, %v8503
  %v8592 = vadd.f32 %v8128, %v8504
  %v8593 = vadd.f32 %v8131, %v8505
  %v8594 = vadd.f32 %v8134, %v8506
  %v8595 = vadd.f32 %v8184, %v8499
  %v8596 = vadd.f32 %v8187, %v8500
  %v8597 = vadd.f32 %v8190, %v8501
  %v8598 = vadd.f32 %v8193, %v8502
  %v8599 = vadd.f32 %v8196, %v8503
  %v8600 = vadd.f32 %v8199, %v8504
  %v8601 = vadd.f32 %v8202, %v8505
  %v8602 = vadd.f32 %v8205, %v8506
  %v8603 = vadd.f32 %v8255, %v8499
  %v8604 = vadd.f32 %v8258, %v8500
  %v8605 = vadd.f32 %v8261, %v8501
  %v8606 = vadd.f32 %v8264, %v8502
  %v8607 = vadd.f32 %v8267, %v8503
  %v8608 = vadd.f32 %v8270, %v8504
  %v8609 = vadd.f32 %v8273, %v8505
  %v8610 = vadd.f32 %v8276, %v8506
  %v8611 = vadd.f32 %v8326, %v8499
  %v8612 = vadd.f32 %v8329, %v8500
  %v8613 = vadd.f32 %v8332, %v8501
  %v8614 = vadd.f32 %v8335, %v8502
  %v8615 = vadd.f32 %v8338, %v8503
  %v8616 = vadd.f32 %v8341, %v8504
  %v8617 = vadd.f32 %v8344, %v8505
  %v8618 = vadd.f32 %v8347, %v8506
  %v8619 = vadd.f32 %v8397, %v8499
  %v8620 = vadd.f32 %v8400, %v8500
  %v8621 = vadd.f32 %v8403, %v8501
  %v8622 = vadd.f32 %v8406, %v8502
  %v8623 = vadd.f32 %v8409, %v8503
  %v8624 = vadd.f32 %v8412, %v8504
  %v8625 = vadd.f32 %v8415, %v8505
  %v8626 = vadd.f32 %v8418, %v8506
  %v8627 = vadd.f32 %v8468, %v8499
  %v8628 = vadd.f32 %v8471, %v8500
  %v8629 = vadd.f32 %v8474, %v8501
  %v8630 = vadd.f32 %v8477, %v8502
  %v8631 = vadd.f32 %v8480, %v8503
  %v8632 = vadd.f32 %v8483, %v8504
  %v8633 = vadd.f32 %v8486, %v8505
  %v8634 = vadd.f32 %v8489, %v8506
  %vm8635 = vcmask 130048
  %v8636 = vsel %vm8635, %v8507, -inf
  %8637 = vmax.xlane.f32.xlu0 %v8636
  %v8638 = vpop.xlane.xlu0 %8637
  %v8639 = vsel %vm8635, %v8508, -inf
  %8640 = vmax.xlane.f32.xlu0 %v8639
  %v8641 = vpop.xlane.xlu0 %8640
  %v8642 = vsel %vm8635, %v8509, -inf
  %8643 = vmax.xlane.f32.xlu0 %v8642
  %v8644 = vpop.xlane.xlu0 %8643
  %v8645 = vsel %vm8635, %v8510, -inf
  %8646 = vmax.xlane.f32.xlu0 %v8645
  %v8647 = vpop.xlane.xlu0 %8646
  %v8648 = vsel %vm8635, %v8511, -inf
  %8649 = vmax.xlane.f32.xlu0 %v8648
  %v8650 = vpop.xlane.xlu0 %8649
  %v8651 = vsel %vm8635, %v8512, -inf
  %8652 = vmax.xlane.f32.xlu0 %v8651
  %v8653 = vpop.xlane.xlu0 %8652
  %v8654 = vsel %vm8635, %v8513, -inf
  %8655 = vmax.xlane.f32.xlu0 %v8654
  %v8656 = vpop.xlane.xlu0 %8655
  %v8657 = vsel %vm8635, %v8514, -inf
  %8658 = vmax.xlane.f32.xlu0 %v8657
  %v8659 = vpop.xlane.xlu0 %8658
  %v8660 = vsel %vm8635, %v8515, -inf
  %8661 = vmax.xlane.f32.xlu0 %v8660
  %v8662 = vpop.xlane.xlu0 %8661
  %v8663 = vsel %vm8635, %v8516, -inf
  %8664 = vmax.xlane.f32.xlu0 %v8663
  %v8665 = vpop.xlane.xlu0 %8664
  %v8666 = vsel %vm8635, %v8517, -inf
  %8667 = vmax.xlane.f32.xlu0 %v8666
  %v8668 = vpop.xlane.xlu0 %8667
  %v8669 = vsel %vm8635, %v8518, -inf
  %8670 = vmax.xlane.f32.xlu0 %v8669
  %v8671 = vpop.xlane.xlu0 %8670
  %v8672 = vsel %vm8635, %v8519, -inf
  %8673 = vmax.xlane.f32.xlu0 %v8672
  %v8674 = vpop.xlane.xlu0 %8673
  %v8675 = vsel %vm8635, %v8520, -inf
  %8676 = vmax.xlane.f32.xlu0 %v8675
  %v8677 = vpop.xlane.xlu0 %8676
  %v8678 = vsel %vm8635, %v8521, -inf
  %8679 = vmax.xlane.f32.xlu0 %v8678
  %v8680 = vpop.xlane.xlu0 %8679
  %v8681 = vsel %vm8635, %v8522, -inf
  %8682 = vmax.xlane.f32.xlu0 %v8681
  %v8683 = vpop.xlane.xlu0 %8682
  %v8684 = vsel %vm8635, %v8523, -inf
  %8685 = vmax.xlane.f32.xlu0 %v8684
  %v8686 = vpop.xlane.xlu0 %8685
  %v8687 = vsel %vm8635, %v8524, -inf
  %8688 = vmax.xlane.f32.xlu0 %v8687
  %v8689 = vpop.xlane.xlu0 %8688
  %v8690 = vsel %vm8635, %v8525, -inf
  %8691 = vmax.xlane.f32.xlu0 %v8690
  %v8692 = vpop.xlane.xlu0 %8691
  %v8693 = vsel %vm8635, %v8526, -inf
  %8694 = vmax.xlane.f32.xlu0 %v8693
  %v8695 = vpop.xlane.xlu0 %8694
  %v8696 = vsel %vm8635, %v8527, -inf
  %8697 = vmax.xlane.f32.xlu0 %v8696
  %v8698 = vpop.xlane.xlu0 %8697
  %v8699 = vsel %vm8635, %v8528, -inf
  %8700 = vmax.xlane.f32.xlu0 %v8699
  %v8701 = vpop.xlane.xlu0 %8700
  %v8702 = vsel %vm8635, %v8529, -inf
  %8703 = vmax.xlane.f32.xlu0 %v8702
  %v8704 = vpop.xlane.xlu0 %8703
  %v8705 = vsel %vm8635, %v8530, -inf
  %8706 = vmax.xlane.f32.xlu0 %v8705
  %v8707 = vpop.xlane.xlu0 %8706
  %v8708 = vsel %vm8635, %v8531, -inf
  %8709 = vmax.xlane.f32.xlu0 %v8708
  %v8710 = vpop.xlane.xlu0 %8709
  %v8711 = vsel %vm8635, %v8532, -inf
  %8712 = vmax.xlane.f32.xlu0 %v8711
  %v8713 = vpop.xlane.xlu0 %8712
  %v8714 = vsel %vm8635, %v8533, -inf
  %8715 = vmax.xlane.f32.xlu0 %v8714
  %v8716 = vpop.xlane.xlu0 %8715
  %v8717 = vsel %vm8635, %v8534, -inf
  %8718 = vmax.xlane.f32.xlu0 %v8717
  %v8719 = vpop.xlane.xlu0 %8718
  %v8720 = vsel %vm8635, %v8535, -inf
  %8721 = vmax.xlane.f32.xlu0 %v8720
  %v8722 = vpop.xlane.xlu0 %8721
  %v8723 = vsel %vm8635, %v8536, -inf
  %8724 = vmax.xlane.f32.xlu0 %v8723
  %v8725 = vpop.xlane.xlu0 %8724
  %v8726 = vsel %vm8635, %v8537, -inf
  %8727 = vmax.xlane.f32.xlu0 %v8726
  %v8728 = vpop.xlane.xlu0 %8727
  %v8729 = vsel %vm8635, %v8538, -inf
  %8730 = vmax.xlane.f32.xlu0 %v8729
  %v8731 = vpop.xlane.xlu0 %8730
  %v8732 = vsel %vm8635, %v8539, -inf
  %8733 = vmax.xlane.f32.xlu0 %v8732
  %v8734 = vpop.xlane.xlu0 %8733
  %v8735 = vsel %vm8635, %v8540, -inf
  %8736 = vmax.xlane.f32.xlu0 %v8735
  %v8737 = vpop.xlane.xlu0 %8736
  %v8738 = vsel %vm8635, %v8541, -inf
  %8739 = vmax.xlane.f32.xlu0 %v8738
  %v8740 = vpop.xlane.xlu0 %8739
  %v8741 = vsel %vm8635, %v8542, -inf
  %8742 = vmax.xlane.f32.xlu0 %v8741
  %v8743 = vpop.xlane.xlu0 %8742
  %v8744 = vsel %vm8635, %v8543, -inf
  %8745 = vmax.xlane.f32.xlu0 %v8744
  %v8746 = vpop.xlane.xlu0 %8745
  %v8747 = vsel %vm8635, %v8544, -inf
  %8748 = vmax.xlane.f32.xlu0 %v8747
  %v8749 = vpop.xlane.xlu0 %8748
  %v8750 = vsel %vm8635, %v8545, -inf
  %8751 = vmax.xlane.f32.xlu0 %v8750
  %v8752 = vpop.xlane.xlu0 %8751
  %v8753 = vsel %vm8635, %v8546, -inf
  %8754 = vmax.xlane.f32.xlu0 %v8753
  %v8755 = vpop.xlane.xlu0 %8754
  %v8756 = vsel %vm8635, %v8547, -inf
  %8757 = vmax.xlane.f32.xlu0 %v8756
  %v8758 = vpop.xlane.xlu0 %8757
  %v8759 = vsel %vm8635, %v8548, -inf
  %8760 = vmax.xlane.f32.xlu0 %v8759
  %v8761 = vpop.xlane.xlu0 %8760
  %v8762 = vsel %vm8635, %v8549, -inf
  %8763 = vmax.xlane.f32.xlu0 %v8762
  %v8764 = vpop.xlane.xlu0 %8763
  %v8765 = vsel %vm8635, %v8550, -inf
  %8766 = vmax.xlane.f32.xlu0 %v8765
  %v8767 = vpop.xlane.xlu0 %8766
  %v8768 = vsel %vm8635, %v8551, -inf
  %8769 = vmax.xlane.f32.xlu0 %v8768
  %v8770 = vpop.xlane.xlu0 %8769
  %v8771 = vsel %vm8635, %v8552, -inf
  %8772 = vmax.xlane.f32.xlu0 %v8771
  %v8773 = vpop.xlane.xlu0 %8772
  %v8774 = vsel %vm8635, %v8553, -inf
  %8775 = vmax.xlane.f32.xlu0 %v8774
  %v8776 = vpop.xlane.xlu0 %8775
  %v8777 = vsel %vm8635, %v8554, -inf
  %8778 = vmax.xlane.f32.xlu0 %v8777
  %v8779 = vpop.xlane.xlu0 %8778
  %v8780 = vsel %vm8635, %v8555, -inf
  %8781 = vmax.xlane.f32.xlu0 %v8780
  %v8782 = vpop.xlane.xlu0 %8781
  %v8783 = vsel %vm8635, %v8556, -inf
  %8784 = vmax.xlane.f32.xlu0 %v8783
  %v8785 = vpop.xlane.xlu0 %8784
  %v8786 = vsel %vm8635, %v8557, -inf
  %8787 = vmax.xlane.f32.xlu0 %v8786
  %v8788 = vpop.xlane.xlu0 %8787
  %v8789 = vsel %vm8635, %v8558, -inf
  %8790 = vmax.xlane.f32.xlu0 %v8789
  %v8791 = vpop.xlane.xlu0 %8790
  %v8792 = vsel %vm8635, %v8559, -inf
  %8793 = vmax.xlane.f32.xlu0 %v8792
  %v8794 = vpop.xlane.xlu0 %8793
  %v8795 = vsel %vm8635, %v8560, -inf
  %8796 = vmax.xlane.f32.xlu0 %v8795
  %v8797 = vpop.xlane.xlu0 %8796
  %v8798 = vsel %vm8635, %v8561, -inf
  %8799 = vmax.xlane.f32.xlu0 %v8798
  %v8800 = vpop.xlane.xlu0 %8799
  %v8801 = vsel %vm8635, %v8562, -inf
  %8802 = vmax.xlane.f32.xlu0 %v8801
  %v8803 = vpop.xlane.xlu0 %8802
  %v8804 = vsel %vm8635, %v8563, -inf
  %8805 = vmax.xlane.f32.xlu0 %v8804
  %v8806 = vpop.xlane.xlu0 %8805
  %v8807 = vsel %vm8635, %v8564, -inf
  %8808 = vmax.xlane.f32.xlu0 %v8807
  %v8809 = vpop.xlane.xlu0 %8808
  %v8810 = vsel %vm8635, %v8565, -inf
  %8811 = vmax.xlane.f32.xlu0 %v8810
  %v8812 = vpop.xlane.xlu0 %8811
  %v8813 = vsel %vm8635, %v8566, -inf
  %8814 = vmax.xlane.f32.xlu0 %v8813
  %v8815 = vpop.xlane.xlu0 %8814
  %v8816 = vsel %vm8635, %v8567, -inf
  %8817 = vmax.xlane.f32.xlu0 %v8816
  %v8818 = vpop.xlane.xlu0 %8817
  %v8819 = vsel %vm8635, %v8568, -inf
  %8820 = vmax.xlane.f32.xlu0 %v8819
  %v8821 = vpop.xlane.xlu0 %8820
  %v8822 = vsel %vm8635, %v8569, -inf
  %8823 = vmax.xlane.f32.xlu0 %v8822
  %v8824 = vpop.xlane.xlu0 %8823
  %v8825 = vsel %vm8635, %v8570, -inf
  %8826 = vmax.xlane.f32.xlu0 %v8825
  %v8827 = vpop.xlane.xlu0 %8826
  %v8828 = vsel %vm8635, %v8571, -inf
  %8829 = vmax.xlane.f32.xlu0 %v8828
  %v8830 = vpop.xlane.xlu0 %8829
  %v8831 = vsel %vm8635, %v8572, -inf
  %8832 = vmax.xlane.f32.xlu0 %v8831
  %v8833 = vpop.xlane.xlu0 %8832
  %v8834 = vsel %vm8635, %v8573, -inf
  %8835 = vmax.xlane.f32.xlu0 %v8834
  %v8836 = vpop.xlane.xlu0 %8835
  %v8837 = vsel %vm8635, %v8574, -inf
  %8838 = vmax.xlane.f32.xlu0 %v8837
  %v8839 = vpop.xlane.xlu0 %8838
  %v8840 = vsel %vm8635, %v8575, -inf
  %8841 = vmax.xlane.f32.xlu0 %v8840
  %v8842 = vpop.xlane.xlu0 %8841
  %v8843 = vsel %vm8635, %v8576, -inf
  %8844 = vmax.xlane.f32.xlu0 %v8843
  %v8845 = vpop.xlane.xlu0 %8844
  %v8846 = vsel %vm8635, %v8577, -inf
  %8847 = vmax.xlane.f32.xlu0 %v8846
  %v8848 = vpop.xlane.xlu0 %8847
  %v8849 = vsel %vm8635, %v8578, -inf
  %8850 = vmax.xlane.f32.xlu0 %v8849
  %v8851 = vpop.xlane.xlu0 %8850
  %v8852 = vsel %vm8635, %v8579, -inf
  %8853 = vmax.xlane.f32.xlu0 %v8852
  %v8854 = vpop.xlane.xlu0 %8853
  %v8855 = vsel %vm8635, %v8580, -inf
  %8856 = vmax.xlane.f32.xlu0 %v8855
  %v8857 = vpop.xlane.xlu0 %8856
  %v8858 = vsel %vm8635, %v8581, -inf
  %8859 = vmax.xlane.f32.xlu0 %v8858
  %v8860 = vpop.xlane.xlu0 %8859
  %v8861 = vsel %vm8635, %v8582, -inf
  %8862 = vmax.xlane.f32.xlu0 %v8861
  %v8863 = vpop.xlane.xlu0 %8862
  %v8864 = vsel %vm8635, %v8583, -inf
  %8865 = vmax.xlane.f32.xlu0 %v8864
  %v8866 = vpop.xlane.xlu0 %8865
  %v8867 = vsel %vm8635, %v8584, -inf
  %8868 = vmax.xlane.f32.xlu0 %v8867
  %v8869 = vpop.xlane.xlu0 %8868
  %v8870 = vsel %vm8635, %v8585, -inf
  %8871 = vmax.xlane.f32.xlu0 %v8870
  %v8872 = vpop.xlane.xlu0 %8871
  %v8873 = vsel %vm8635, %v8586, -inf
  %8874 = vmax.xlane.f32.xlu0 %v8873
  %v8875 = vpop.xlane.xlu0 %8874
  %v8876 = vsel %vm8635, %v8587, -inf
  %8877 = vmax.xlane.f32.xlu0 %v8876
  %v8878 = vpop.xlane.xlu0 %8877
  %v8879 = vsel %vm8635, %v8588, -inf
  %8880 = vmax.xlane.f32.xlu0 %v8879
  %v8881 = vpop.xlane.xlu0 %8880
  %v8882 = vsel %vm8635, %v8589, -inf
  %8883 = vmax.xlane.f32.xlu0 %v8882
  %v8884 = vpop.xlane.xlu0 %8883
  %v8885 = vsel %vm8635, %v8590, -inf
  %8886 = vmax.xlane.f32.xlu0 %v8885
  %v8887 = vpop.xlane.xlu0 %8886
  %v8888 = vsel %vm8635, %v8591, -inf
  %8889 = vmax.xlane.f32.xlu0 %v8888
  %v8890 = vpop.xlane.xlu0 %8889
  %v8891 = vsel %vm8635, %v8592, -inf
  %8892 = vmax.xlane.f32.xlu0 %v8891
  %v8893 = vpop.xlane.xlu0 %8892
  %v8894 = vsel %vm8635, %v8593, -inf
  %8895 = vmax.xlane.f32.xlu0 %v8894
  %v8896 = vpop.xlane.xlu0 %8895
  %v8897 = vsel %vm8635, %v8594, -inf
  %8898 = vmax.xlane.f32.xlu0 %v8897
  %v8899 = vpop.xlane.xlu0 %8898
  %v8900 = vsel %vm8635, %v8595, -inf
  %8901 = vmax.xlane.f32.xlu0 %v8900
  %v8902 = vpop.xlane.xlu0 %8901
  %v8903 = vsel %vm8635, %v8596, -inf
  %8904 = vmax.xlane.f32.xlu0 %v8903
  %v8905 = vpop.xlane.xlu0 %8904
  %v8906 = vsel %vm8635, %v8597, -inf
  %8907 = vmax.xlane.f32.xlu0 %v8906
  %v8908 = vpop.xlane.xlu0 %8907
  %v8909 = vsel %vm8635, %v8598, -inf
  %8910 = vmax.xlane.f32.xlu0 %v8909
  %v8911 = vpop.xlane.xlu0 %8910
  %v8912 = vsel %vm8635, %v8599, -inf
  %8913 = vmax.xlane.f32.xlu0 %v8912
  %v8914 = vpop.xlane.xlu0 %8913
  %v8915 = vsel %vm8635, %v8600, -inf
  %8916 = vmax.xlane.f32.xlu0 %v8915
  %v8917 = vpop.xlane.xlu0 %8916
  %v8918 = vsel %vm8635, %v8601, -inf
  %8919 = vmax.xlane.f32.xlu0 %v8918
  %v8920 = vpop.xlane.xlu0 %8919
  %v8921 = vsel %vm8635, %v8602, -inf
  %8922 = vmax.xlane.f32.xlu0 %v8921
  %v8923 = vpop.xlane.xlu0 %8922
  %v8924 = vsel %vm8635, %v8603, -inf
  %8925 = vmax.xlane.f32.xlu0 %v8924
  %v8926 = vpop.xlane.xlu0 %8925
  %v8927 = vsel %vm8635, %v8604, -inf
  %8928 = vmax.xlane.f32.xlu0 %v8927
  %v8929 = vpop.xlane.xlu0 %8928
  %v8930 = vsel %vm8635, %v8605, -inf
  %8931 = vmax.xlane.f32.xlu0 %v8930
  %v8932 = vpop.xlane.xlu0 %8931
  %v8933 = vsel %vm8635, %v8606, -inf
  %8934 = vmax.xlane.f32.xlu0 %v8933
  %v8935 = vpop.xlane.xlu0 %8934
  %v8936 = vsel %vm8635, %v8607, -inf
  %8937 = vmax.xlane.f32.xlu0 %v8936
  %v8938 = vpop.xlane.xlu0 %8937
  %v8939 = vsel %vm8635, %v8608, -inf
  %8940 = vmax.xlane.f32.xlu0 %v8939
  %v8941 = vpop.xlane.xlu0 %8940
  %v8942 = vsel %vm8635, %v8609, -inf
  %8943 = vmax.xlane.f32.xlu0 %v8942
  %v8944 = vpop.xlane.xlu0 %8943
  %v8945 = vsel %vm8635, %v8610, -inf
  %8946 = vmax.xlane.f32.xlu0 %v8945
  %v8947 = vpop.xlane.xlu0 %8946
  %v8948 = vsel %vm8635, %v8611, -inf
  %8949 = vmax.xlane.f32.xlu0 %v8948
  %v8950 = vpop.xlane.xlu0 %8949
  %v8951 = vsel %vm8635, %v8612, -inf
  %8952 = vmax.xlane.f32.xlu0 %v8951
  %v8953 = vpop.xlane.xlu0 %8952
  %v8954 = vsel %vm8635, %v8613, -inf
  %8955 = vmax.xlane.f32.xlu0 %v8954
  %v8956 = vpop.xlane.xlu0 %8955
  %v8957 = vsel %vm8635, %v8614, -inf
  %8958 = vmax.xlane.f32.xlu0 %v8957
  %v8959 = vpop.xlane.xlu0 %8958
  %v8960 = vsel %vm8635, %v8615, -inf
  %8961 = vmax.xlane.f32.xlu0 %v8960
  %v8962 = vpop.xlane.xlu0 %8961
  %v8963 = vsel %vm8635, %v8616, -inf
  %8964 = vmax.xlane.f32.xlu0 %v8963
  %v8965 = vpop.xlane.xlu0 %8964
  %v8966 = vsel %vm8635, %v8617, -inf
  %8967 = vmax.xlane.f32.xlu0 %v8966
  %v8968 = vpop.xlane.xlu0 %8967
  %v8969 = vsel %vm8635, %v8618, -inf
  %8970 = vmax.xlane.f32.xlu0 %v8969
  %v8971 = vpop.xlane.xlu0 %8970
  %v8972 = vsel %vm8635, %v8619, -inf
  %8973 = vmax.xlane.f32.xlu0 %v8972
  %v8974 = vpop.xlane.xlu0 %8973
  %v8975 = vsel %vm8635, %v8620, -inf
  %8976 = vmax.xlane.f32.xlu0 %v8975
  %v8977 = vpop.xlane.xlu0 %8976
  %v8978 = vsel %vm8635, %v8621, -inf
  %8979 = vmax.xlane.f32.xlu0 %v8978
  %v8980 = vpop.xlane.xlu0 %8979
  %v8981 = vsel %vm8635, %v8622, -inf
  %8982 = vmax.xlane.f32.xlu0 %v8981
  %v8983 = vpop.xlane.xlu0 %8982
  %v8984 = vsel %vm8635, %v8623, -inf
  %8985 = vmax.xlane.f32.xlu0 %v8984
  %v8986 = vpop.xlane.xlu0 %8985
  %v8987 = vsel %vm8635, %v8624, -inf
  %8988 = vmax.xlane.f32.xlu0 %v8987
  %v8989 = vpop.xlane.xlu0 %8988
  %v8990 = vsel %vm8635, %v8625, -inf
  %8991 = vmax.xlane.f32.xlu0 %v8990
  %v8992 = vpop.xlane.xlu0 %8991
  %v8993 = vsel %vm8635, %v8626, -inf
  %8994 = vmax.xlane.f32.xlu0 %v8993
  %v8995 = vpop.xlane.xlu0 %8994
  %v8996 = vsel %vm8635, %v8627, -inf
  %8997 = vmax.xlane.f32.xlu0 %v8996
  %v8998 = vpop.xlane.xlu0 %8997
  %v8999 = vsel %vm8635, %v8628, -inf
  %9000 = vmax.xlane.f32.xlu0 %v8999
  %v9001 = vpop.xlane.xlu0 %9000
  %v9002 = vsel %vm8635, %v8629, -inf
  %9003 = vmax.xlane.f32.xlu0 %v9002
  %v9004 = vpop.xlane.xlu0 %9003
  %v9005 = vsel %vm8635, %v8630, -inf
  %9006 = vmax.xlane.f32.xlu0 %v9005
  %v9007 = vpop.xlane.xlu0 %9006
  %v9008 = vsel %vm8635, %v8631, -inf
  %9009 = vmax.xlane.f32.xlu0 %v9008
  %v9010 = vpop.xlane.xlu0 %9009
  %v9011 = vsel %vm8635, %v8632, -inf
  %9012 = vmax.xlane.f32.xlu0 %v9011
  %v9013 = vpop.xlane.xlu0 %9012
  %v9014 = vsel %vm8635, %v8633, -inf
  %9015 = vmax.xlane.f32.xlu0 %v9014
  %v9016 = vpop.xlane.xlu0 %9015
  %v9017 = vsel %vm8635, %v8634, -inf
  %9018 = vmax.xlane.f32.xlu0 %v9017
  %v9019 = vpop.xlane.xlu0 %9018
  %v9020 = vsub.f32 %v8507, %v8638
  %v9021 = vsub.f32 %v8508, %v8641
  %v9022 = vsub.f32 %v8509, %v8644
  %v9023 = vsub.f32 %v8510, %v8647
  %v9024 = vsub.f32 %v8511, %v8650
  %v9025 = vsub.f32 %v8512, %v8653
  %v9026 = vsub.f32 %v8513, %v8656
  %v9027 = vsub.f32 %v8514, %v8659
  %v9028 = vsub.f32 %v8515, %v8662
  %v9029 = vsub.f32 %v8516, %v8665
  %v9030 = vsub.f32 %v8517, %v8668
  %v9031 = vsub.f32 %v8518, %v8671
  %v9032 = vsub.f32 %v8519, %v8674
  %v9033 = vsub.f32 %v8520, %v8677
  %v9034 = vsub.f32 %v8521, %v8680
  %v9035 = vsub.f32 %v8522, %v8683
  %v9036 = vsub.f32 %v8523, %v8686
  %v9037 = vsub.f32 %v8524, %v8689
  %v9038 = vsub.f32 %v8525, %v8692
  %v9039 = vsub.f32 %v8526, %v8695
  %v9040 = vsub.f32 %v8527, %v8698
  %v9041 = vsub.f32 %v8528, %v8701
  %v9042 = vsub.f32 %v8529, %v8704
  %v9043 = vsub.f32 %v8530, %v8707
  %v9044 = vsub.f32 %v8531, %v8710
  %v9045 = vsub.f32 %v8532, %v8713
  %v9046 = vsub.f32 %v8533, %v8716
  %v9047 = vsub.f32 %v8534, %v8719
  %v9048 = vsub.f32 %v8535, %v8722
  %v9049 = vsub.f32 %v8536, %v8725
  %v9050 = vsub.f32 %v8537, %v8728
  %v9051 = vsub.f32 %v8538, %v8731
  %v9052 = vsub.f32 %v8539, %v8734
  %v9053 = vsub.f32 %v8540, %v8737
  %v9054 = vsub.f32 %v8541, %v8740
  %v9055 = vsub.f32 %v8542, %v8743
  %v9056 = vsub.f32 %v8543, %v8746
  %v9057 = vsub.f32 %v8544, %v8749
  %v9058 = vsub.f32 %v8545, %v8752
  %v9059 = vsub.f32 %v8546, %v8755
  %v9060 = vsub.f32 %v8547, %v8758
  %v9061 = vsub.f32 %v8548, %v8761
  %v9062 = vsub.f32 %v8549, %v8764
  %v9063 = vsub.f32 %v8550, %v8767
  %v9064 = vsub.f32 %v8551, %v8770
  %v9065 = vsub.f32 %v8552, %v8773
  %v9066 = vsub.f32 %v8553, %v8776
  %v9067 = vsub.f32 %v8554, %v8779
  %v9068 = vsub.f32 %v8555, %v8782
  %v9069 = vsub.f32 %v8556, %v8785
  %v9070 = vsub.f32 %v8557, %v8788
  %v9071 = vsub.f32 %v8558, %v8791
  %v9072 = vsub.f32 %v8559, %v8794
  %v9073 = vsub.f32 %v8560, %v8797
  %v9074 = vsub.f32 %v8561, %v8800
  %v9075 = vsub.f32 %v8562, %v8803
  %v9076 = vsub.f32 %v8563, %v8806
  %v9077 = vsub.f32 %v8564, %v8809
  %v9078 = vsub.f32 %v8565, %v8812
  %v9079 = vsub.f32 %v8566, %v8815
  %v9080 = vsub.f32 %v8567, %v8818
  %v9081 = vsub.f32 %v8568, %v8821
  %v9082 = vsub.f32 %v8569, %v8824
  %v9083 = vsub.f32 %v8570, %v8827
  %v9084 = vsub.f32 %v8571, %v8830
  %v9085 = vsub.f32 %v8572, %v8833
  %v9086 = vsub.f32 %v8573, %v8836
  %v9087 = vsub.f32 %v8574, %v8839
  %v9088 = vsub.f32 %v8575, %v8842
  %v9089 = vsub.f32 %v8576, %v8845
  %v9090 = vsub.f32 %v8577, %v8848
  %v9091 = vsub.f32 %v8578, %v8851
  %v9092 = vsub.f32 %v8579, %v8854
  %v9093 = vsub.f32 %v8580, %v8857
  %v9094 = vsub.f32 %v8581, %v8860
  %v9095 = vsub.f32 %v8582, %v8863
  %v9096 = vsub.f32 %v8583, %v8866
  %v9097 = vsub.f32 %v8584, %v8869
  %v9098 = vsub.f32 %v8585, %v8872
  %v9099 = vsub.f32 %v8586, %v8875
  %v9100 = vsub.f32 %v8587, %v8878
  %v9101 = vsub.f32 %v8588, %v8881
  %v9102 = vsub.f32 %v8589, %v8884
  %v9103 = vsub.f32 %v8590, %v8887
  %v9104 = vsub.f32 %v8591, %v8890
  %v9105 = vsub.f32 %v8592, %v8893
  %v9106 = vsub.f32 %v8593, %v8896
  %v9107 = vsub.f32 %v8594, %v8899
  %v9108 = vsub.f32 %v8595, %v8902
  %v9109 = vsub.f32 %v8596, %v8905
  %v9110 = vsub.f32 %v8597, %v8908
  %v9111 = vsub.f32 %v8598, %v8911
  %v9112 = vsub.f32 %v8599, %v8914
  %v9113 = vsub.f32 %v8600, %v8917
  %v9114 = vsub.f32 %v8601, %v8920
  %v9115 = vsub.f32 %v8602, %v8923
  %v9116 = vsub.f32 %v8603, %v8926
  %v9117 = vsub.f32 %v8604, %v8929
  %v9118 = vsub.f32 %v8605, %v8932
  %v9119 = vsub.f32 %v8606, %v8935
  %v9120 = vsub.f32 %v8607, %v8938
  %v9121 = vsub.f32 %v8608, %v8941
  %v9122 = vsub.f32 %v8609, %v8944
  %v9123 = vsub.f32 %v8610, %v8947
  %v9124 = vsub.f32 %v8611, %v8950
  %v9125 = vsub.f32 %v8612, %v8953
  %v9126 = vsub.f32 %v8613, %v8956
  %v9127 = vsub.f32 %v8614, %v8959
  %v9128 = vsub.f32 %v8615, %v8962
  %v9129 = vsub.f32 %v8616, %v8965
  %v9130 = vsub.f32 %v8617, %v8968
  %v9131 = vsub.f32 %v8618, %v8971
  %v9132 = vsub.f32 %v8619, %v8974
  %v9133 = vsub.f32 %v8620, %v8977
  %v9134 = vsub.f32 %v8621, %v8980
  %v9135 = vsub.f32 %v8622, %v8983
  %v9136 = vsub.f32 %v8623, %v8986
  %v9137 = vsub.f32 %v8624, %v8989
  %v9138 = vsub.f32 %v8625, %v8992
  %v9139 = vsub.f32 %v8626, %v8995
  %v9140 = vsub.f32 %v8627, %v8998
  %v9141 = vsub.f32 %v8628, %v9001
  %v9142 = vsub.f32 %v8629, %v9004
  %v9143 = vsub.f32 %v8630, %v9007
  %v9144 = vsub.f32 %v8631, %v9010
  %v9145 = vsub.f32 %v8632, %v9013
  %v9146 = vsub.f32 %v8633, %v9016
  %v9147 = vsub.f32 %v8634, %v9019
  %v9148 = vmul.f32 %v9020, 1.442695
  %v9149 = vpow.pop %v9148
  %v9150 = vmul.f32 %v9021, 1.442695
  %v9151 = vpow.pop %v9150
  %v9152 = vmul.f32 %v9022, 1.442695
  %v9153 = vpow.pop %v9152
  %v9154 = vmul.f32 %v9023, 1.442695
  %v9155 = vpow.pop %v9154
  %v9156 = vmul.f32 %v9024, 1.442695
  %v9157 = vpow.pop %v9156
  %v9158 = vmul.f32 %v9025, 1.442695
  %v9159 = vpow.pop %v9158
  %v9160 = vmul.f32 %v9026, 1.442695
  %v9161 = vpow.pop %v9160
  %v9162 = vmul.f32 %v9027, 1.442695
  %v9163 = vpow.pop %v9162
  %v9164 = vmul.f32 %v9028, 1.442695
  %v9165 = vpow.pop %v9164
  %v9166 = vmul.f32 %v9029, 1.442695
  %v9167 = vpow.pop %v9166
  %v9168 = vmul.f32 %v9030, 1.442695
  %v9169 = vpow.pop %v9168
  %v9170 = vmul.f32 %v9031, 1.442695
  %v9171 = vpow.pop %v9170
  %v9172 = vmul.f32 %v9032, 1.442695
  %v9173 = vpow.pop %v9172
  %v9174 = vmul.f32 %v9033, 1.442695
  %v9175 = vpow.pop %v9174
  %v9176 = vmul.f32 %v9034, 1.442695
  %v9177 = vpow.pop %v9176
  %v9178 = vmul.f32 %v9035, 1.442695
  %v9179 = vpow.pop %v9178
  %v9180 = vmul.f32 %v9036, 1.442695
  %v9181 = vpow.pop %v9180
  %v9182 = vmul.f32 %v9037, 1.442695
  %v9183 = vpow.pop %v9182
  %v9184 = vmul.f32 %v9038, 1.442695
  %v9185 = vpow.pop %v9184
  %v9186 = vmul.f32 %v9039, 1.442695
  %v9187 = vpow.pop %v9186
  %v9188 = vmul.f32 %v9040, 1.442695
  %v9189 = vpow.pop %v9188
  %v9190 = vmul.f32 %v9041, 1.442695
  %v9191 = vpow.pop %v9190
  %v9192 = vmul.f32 %v9042, 1.442695
  %v9193 = vpow.pop %v9192
  %v9194 = vmul.f32 %v9043, 1.442695
  %v9195 = vpow.pop %v9194
  %v9196 = vmul.f32 %v9044, 1.442695
  %v9197 = vpow.pop %v9196
  %v9198 = vmul.f32 %v9045, 1.442695
  %v9199 = vpow.pop %v9198
  %v9200 = vmul.f32 %v9046, 1.442695
  %v9201 = vpow.pop %v9200
  %v9202 = vmul.f32 %v9047, 1.442695
  %v9203 = vpow.pop %v9202
  %v9204 = vmul.f32 %v9048, 1.442695
  %v9205 = vpow.pop %v9204
  %v9206 = vmul.f32 %v9049, 1.442695
  %v9207 = vpow.pop %v9206
  %v9208 = vmul.f32 %v9050, 1.442695
  %v9209 = vpow.pop %v9208
  %v9210 = vmul.f32 %v9051, 1.442695
  %v9211 = vpow.pop %v9210
  %v9212 = vmul.f32 %v9052, 1.442695
  %v9213 = vpow.pop %v9212
  %v9214 = vmul.f32 %v9053, 1.442695
  %v9215 = vpow.pop %v9214
  %v9216 = vmul.f32 %v9054, 1.442695
  %v9217 = vpow.pop %v9216
  %v9218 = vmul.f32 %v9055, 1.442695
  %v9219 = vpow.pop %v9218
  %v9220 = vmul.f32 %v9056, 1.442695
  %v9221 = vpow.pop %v9220
  %v9222 = vmul.f32 %v9057, 1.442695
  %v9223 = vpow.pop %v9222
  %v9224 = vmul.f32 %v9058, 1.442695
  %v9225 = vpow.pop %v9224
  %v9226 = vmul.f32 %v9059, 1.442695
  %v9227 = vpow.pop %v9226
  %v9228 = vmul.f32 %v9060, 1.442695
  %v9229 = vpow.pop %v9228
  %v9230 = vmul.f32 %v9061, 1.442695
  %v9231 = vpow.pop %v9230
  %v9232 = vmul.f32 %v9062, 1.442695
  %v9233 = vpow.pop %v9232
  %v9234 = vmul.f32 %v9063, 1.442695
  %v9235 = vpow.pop %v9234
  %v9236 = vmul.f32 %v9064, 1.442695
  %v9237 = vpow.pop %v9236
  %v9238 = vmul.f32 %v9065, 1.442695
  %v9239 = vpow.pop %v9238
  %v9240 = vmul.f32 %v9066, 1.442695
  %v9241 = vpow.pop %v9240
  %v9242 = vmul.f32 %v9067, 1.442695
  %v9243 = vpow.pop %v9242
  %v9244 = vmul.f32 %v9068, 1.442695
  %v9245 = vpow.pop %v9244
  %v9246 = vmul.f32 %v9069, 1.442695
  %v9247 = vpow.pop %v9246
  %v9248 = vmul.f32 %v9070, 1.442695
  %v9249 = vpow.pop %v9248
  %v9250 = vmul.f32 %v9071, 1.442695
  %v9251 = vpow.pop %v9250
  %v9252 = vmul.f32 %v9072, 1.442695
  %v9253 = vpow.pop %v9252
  %v9254 = vmul.f32 %v9073, 1.442695
  %v9255 = vpow.pop %v9254
  %v9256 = vmul.f32 %v9074, 1.442695
  %v9257 = vpow.pop %v9256
  %v9258 = vmul.f32 %v9075, 1.442695
  %v9259 = vpow.pop %v9258
  %v9260 = vmul.f32 %v9076, 1.442695
  %v9261 = vpow.pop %v9260
  %v9262 = vmul.f32 %v9077, 1.442695
  %v9263 = vpow.pop %v9262
  %v9264 = vmul.f32 %v9078, 1.442695
  %v9265 = vpow.pop %v9264
  %v9266 = vmul.f32 %v9079, 1.442695
  %v9267 = vpow.pop %v9266
  %v9268 = vmul.f32 %v9080, 1.442695
  %v9269 = vpow.pop %v9268
  %v9270 = vmul.f32 %v9081, 1.442695
  %v9271 = vpow.pop %v9270
  %v9272 = vmul.f32 %v9082, 1.442695
  %v9273 = vpow.pop %v9272
  %v9274 = vmul.f32 %v9083, 1.442695
  %v9275 = vpow.pop %v9274
  %v9276 = vmul.f32 %v9084, 1.442695
  %v9277 = vpow.pop %v9276
  %v9278 = vmul.f32 %v9085, 1.442695
  %v9279 = vpow.pop %v9278
  %v9280 = vmul.f32 %v9086, 1.442695
  %v9281 = vpow.pop %v9280
  %v9282 = vmul.f32 %v9087, 1.442695
  %v9283 = vpow.pop %v9282
  %v9284 = vmul.f32 %v9088, 1.442695
  %v9285 = vpow.pop %v9284
  %v9286 = vmul.f32 %v9089, 1.442695
  %v9287 = vpow.pop %v9286
  %v9288 = vmul.f32 %v9090, 1.442695
  %v9289 = vpow.pop %v9288
  %v9290 = vmul.f32 %v9091, 1.442695
  %v9291 = vpow.pop %v9290
  %v9292 = vmul.f32 %v9092, 1.442695
  %v9293 = vpow.pop %v9292
  %v9294 = vmul.f32 %v9093, 1.442695
  %v9295 = vpow.pop %v9294
  %v9296 = vmul.f32 %v9094, 1.442695
  %v9297 = vpow.pop %v9296
  %v9298 = vmul.f32 %v9095, 1.442695
  %v9299 = vpow.pop %v9298
  %v9300 = vmul.f32 %v9096, 1.442695
  %v9301 = vpow.pop %v9300
  %v9302 = vmul.f32 %v9097, 1.442695
  %v9303 = vpow.pop %v9302
  %v9304 = vmul.f32 %v9098, 1.442695
  %v9305 = vpow.pop %v9304
  %v9306 = vmul.f32 %v9099, 1.442695
  %v9307 = vpow.pop %v9306
  %v9308 = vmul.f32 %v9100, 1.442695
  %v9309 = vpow.pop %v9308
  %v9310 = vmul.f32 %v9101, 1.442695
  %v9311 = vpow.pop %v9310
  %v9312 = vmul.f32 %v9102, 1.442695
  %v9313 = vpow.pop %v9312
  %v9314 = vmul.f32 %v9103, 1.442695
  %v9315 = vpow.pop %v9314
  %v9316 = vmul.f32 %v9104, 1.442695
  %v9317 = vpow.pop %v9316
  %v9318 = vmul.f32 %v9105, 1.442695
  %v9319 = vpow.pop %v9318
  %v9320 = vmul.f32 %v9106, 1.442695
  %v9321 = vpow.pop %v9320
  %v9322 = vmul.f32 %v9107, 1.442695
  %v9323 = vpow.pop %v9322
  %v9324 = vmul.f32 %v9108, 1.442695
  %v9325 = vpow.pop %v9324
  %v9326 = vmul.f32 %v9109, 1.442695
  %v9327 = vpow.pop %v9326
  %v9328 = vmul.f32 %v9110, 1.442695
  %v9329 = vpow.pop %v9328
  %v9330 = vmul.f32 %v9111, 1.442695
  %v9331 = vpow.pop %v9330
  %v9332 = vmul.f32 %v9112, 1.442695
  %v9333 = vpow.pop %v9332
  %v9334 = vmul.f32 %v9113, 1.442695
  %v9335 = vpow.pop %v9334
  %v9336 = vmul.f32 %v9114, 1.442695
  %v9337 = vpow.pop %v9336
  %v9338 = vmul.f32 %v9115, 1.442695
  %v9339 = vpow.pop %v9338
  %v9340 = vmul.f32 %v9116, 1.442695
  %v9341 = vpow.pop %v9340
  %v9342 = vmul.f32 %v9117, 1.442695
  %v9343 = vpow.pop %v9342
  %v9344 = vmul.f32 %v9118, 1.442695
  %v9345 = vpow.pop %v9344
  %v9346 = vmul.f32 %v9119, 1.442695
  %v9347 = vpow.pop %v9346
  %v9348 = vmul.f32 %v9120, 1.442695
  %v9349 = vpow.pop %v9348
  %v9350 = vmul.f32 %v9121, 1.442695
  %v9351 = vpow.pop %v9350
  %v9352 = vmul.f32 %v9122, 1.442695
  %v9353 = vpow.pop %v9352
  %v9354 = vmul.f32 %v9123, 1.442695
  %v9355 = vpow.pop %v9354
  %v9356 = vmul.f32 %v9124, 1.442695
  %v9357 = vpow.pop %v9356
  %v9358 = vmul.f32 %v9125, 1.442695
  %v9359 = vpow.pop %v9358
  %v9360 = vmul.f32 %v9126, 1.442695
  %v9361 = vpow.pop %v9360
  %v9362 = vmul.f32 %v9127, 1.442695
  %v9363 = vpow.pop %v9362
  %v9364 = vmul.f32 %v9128, 1.442695
  %v9365 = vpow.pop %v9364
  %v9366 = vmul.f32 %v9129, 1.442695
  %v9367 = vpow.pop %v9366
  %v9368 = vmul.f32 %v9130, 1.442695
  %v9369 = vpow.pop %v9368
  %v9370 = vmul.f32 %v9131, 1.442695
  %v9371 = vpow.pop %v9370
  %v9372 = vmul.f32 %v9132, 1.442695
  %v9373 = vpow.pop %v9372
  %v9374 = vmul.f32 %v9133, 1.442695
  %v9375 = vpow.pop %v9374
  %v9376 = vmul.f32 %v9134, 1.442695
  %v9377 = vpow.pop %v9376
  %v9378 = vmul.f32 %v9135, 1.442695
  %v9379 = vpow.pop %v9378
  %v9380 = vmul.f32 %v9136, 1.442695
  %v9381 = vpow.pop %v9380
  %v9382 = vmul.f32 %v9137, 1.442695
  %v9383 = vpow.pop %v9382
  %v9384 = vmul.f32 %v9138, 1.442695
  %v9385 = vpow.pop %v9384
  %v9386 = vmul.f32 %v9139, 1.442695
  %v9387 = vpow.pop %v9386
  %v9388 = vmul.f32 %v9140, 1.442695
  %v9389 = vpow.pop %v9388
  %v9390 = vmul.f32 %v9141, 1.442695
  %v9391 = vpow.pop %v9390
  %v9392 = vmul.f32 %v9142, 1.442695
  %v9393 = vpow.pop %v9392
  %v9394 = vmul.f32 %v9143, 1.442695
  %v9395 = vpow.pop %v9394
  %v9396 = vmul.f32 %v9144, 1.442695
  %v9397 = vpow.pop %v9396
  %v9398 = vmul.f32 %v9145, 1.442695
  %v9399 = vpow.pop %v9398
  %v9400 = vmul.f32 %v9146, 1.442695
  %v9401 = vpow.pop %v9400
  %v9402 = vmul.f32 %v9147, 1.442695
  %v9403 = vpow.pop %v9402
  %v9404 = vsel %vm8635, %v9149, 0.0
  %9405 = vadd.xlane.f32.xlu0 %v9404
  %v9406 = vpop.xlane.xlu0 %9405
  %v9407 = vsel %vm8635, %v9151, 0.0
  %9408 = vadd.xlane.f32.xlu0 %v9407
  %v9409 = vpop.xlane.xlu0 %9408
  %v9410 = vsel %vm8635, %v9153, 0.0
  %9411 = vadd.xlane.f32.xlu0 %v9410
  %v9412 = vpop.xlane.xlu0 %9411
  %v9413 = vsel %vm8635, %v9155, 0.0
  %9414 = vadd.xlane.f32.xlu0 %v9413
  %v9415 = vpop.xlane.xlu0 %9414
  %v9416 = vsel %vm8635, %v9157, 0.0
  %9417 = vadd.xlane.f32.xlu0 %v9416
  %v9418 = vpop.xlane.xlu0 %9417
  %v9419 = vsel %vm8635, %v9159, 0.0
  %9420 = vadd.xlane.f32.xlu0 %v9419
  %v9421 = vpop.xlane.xlu0 %9420
  %v9422 = vsel %vm8635, %v9161, 0.0
  %9423 = vadd.xlane.f32.xlu0 %v9422
  %v9424 = vpop.xlane.xlu0 %9423
  %v9425 = vsel %vm8635, %v9163, 0.0
  %9426 = vadd.xlane.f32.xlu0 %v9425
  %v9427 = vpop.xlane.xlu0 %9426
  %v9428 = vsel %vm8635, %v9165, 0.0
  %9429 = vadd.xlane.f32.xlu0 %v9428
  %v9430 = vpop.xlane.xlu0 %9429
  %v9431 = vsel %vm8635, %v9167, 0.0
  %9432 = vadd.xlane.f32.xlu0 %v9431
  %v9433 = vpop.xlane.xlu0 %9432
  %v9434 = vsel %vm8635, %v9169, 0.0
  %9435 = vadd.xlane.f32.xlu0 %v9434
  %v9436 = vpop.xlane.xlu0 %9435
  %v9437 = vsel %vm8635, %v9171, 0.0
  %9438 = vadd.xlane.f32.xlu0 %v9437
  %v9439 = vpop.xlane.xlu0 %9438
  %v9440 = vsel %vm8635, %v9173, 0.0
  %9441 = vadd.xlane.f32.xlu0 %v9440
  %v9442 = vpop.xlane.xlu0 %9441
  %v9443 = vsel %vm8635, %v9175, 0.0
  %9444 = vadd.xlane.f32.xlu0 %v9443
  %v9445 = vpop.xlane.xlu0 %9444
  %v9446 = vsel %vm8635, %v9177, 0.0
  %9447 = vadd.xlane.f32.xlu0 %v9446
  %v9448 = vpop.xlane.xlu0 %9447
  %v9449 = vsel %vm8635, %v9179, 0.0
  %9450 = vadd.xlane.f32.xlu0 %v9449
  %v9451 = vpop.xlane.xlu0 %9450
  %v9452 = vsel %vm8635, %v9181, 0.0
  %9453 = vadd.xlane.f32.xlu0 %v9452
  %v9454 = vpop.xlane.xlu0 %9453
  %v9455 = vsel %vm8635, %v9183, 0.0
  %9456 = vadd.xlane.f32.xlu0 %v9455
  %v9457 = vpop.xlane.xlu0 %9456
  %v9458 = vsel %vm8635, %v9185, 0.0
  %9459 = vadd.xlane.f32.xlu0 %v9458
  %v9460 = vpop.xlane.xlu0 %9459
  %v9461 = vsel %vm8635, %v9187, 0.0
  %9462 = vadd.xlane.f32.xlu0 %v9461
  %v9463 = vpop.xlane.xlu0 %9462
  %v9464 = vsel %vm8635, %v9189, 0.0
  %9465 = vadd.xlane.f32.xlu0 %v9464
  %v9466 = vpop.xlane.xlu0 %9465
  %v9467 = vsel %vm8635, %v9191, 0.0
  %9468 = vadd.xlane.f32.xlu0 %v9467
  %v9469 = vpop.xlane.xlu0 %9468
  %v9470 = vsel %vm8635, %v9193, 0.0
  %9471 = vadd.xlane.f32.xlu0 %v9470
  %v9472 = vpop.xlane.xlu0 %9471
  %v9473 = vsel %vm8635, %v9195, 0.0
  %9474 = vadd.xlane.f32.xlu0 %v9473
  %v9475 = vpop.xlane.xlu0 %9474
  %v9476 = vsel %vm8635, %v9197, 0.0
  %9477 = vadd.xlane.f32.xlu0 %v9476
  %v9478 = vpop.xlane.xlu0 %9477
  %v9479 = vsel %vm8635, %v9199, 0.0
  %9480 = vadd.xlane.f32.xlu0 %v9479
  %v9481 = vpop.xlane.xlu0 %9480
  %v9482 = vsel %vm8635, %v9201, 0.0
  %9483 = vadd.xlane.f32.xlu0 %v9482
  %v9484 = vpop.xlane.xlu0 %9483
  %v9485 = vsel %vm8635, %v9203, 0.0
  %9486 = vadd.xlane.f32.xlu0 %v9485
  %v9487 = vpop.xlane.xlu0 %9486
  %v9488 = vsel %vm8635, %v9205, 0.0
  %9489 = vadd.xlane.f32.xlu0 %v9488
  %v9490 = vpop.xlane.xlu0 %9489
  %v9491 = vsel %vm8635, %v9207, 0.0
  %9492 = vadd.xlane.f32.xlu0 %v9491
  %v9493 = vpop.xlane.xlu0 %9492
  %v9494 = vsel %vm8635, %v9209, 0.0
  %9495 = vadd.xlane.f32.xlu0 %v9494
  %v9496 = vpop.xlane.xlu0 %9495
  %v9497 = vsel %vm8635, %v9211, 0.0
  %9498 = vadd.xlane.f32.xlu0 %v9497
  %v9499 = vpop.xlane.xlu0 %9498
  %v9500 = vsel %vm8635, %v9213, 0.0
  %9501 = vadd.xlane.f32.xlu0 %v9500
  %v9502 = vpop.xlane.xlu0 %9501
  %v9503 = vsel %vm8635, %v9215, 0.0
  %9504 = vadd.xlane.f32.xlu0 %v9503
  %v9505 = vpop.xlane.xlu0 %9504
  %v9506 = vsel %vm8635, %v9217, 0.0
  %9507 = vadd.xlane.f32.xlu0 %v9506
  %v9508 = vpop.xlane.xlu0 %9507
  %v9509 = vsel %vm8635, %v9219, 0.0
  %9510 = vadd.xlane.f32.xlu0 %v9509
  %v9511 = vpop.xlane.xlu0 %9510
  %v9512 = vsel %vm8635, %v9221, 0.0
  %9513 = vadd.xlane.f32.xlu0 %v9512
  %v9514 = vpop.xlane.xlu0 %9513
  %v9515 = vsel %vm8635, %v9223, 0.0
  %9516 = vadd.xlane.f32.xlu0 %v9515
  %v9517 = vpop.xlane.xlu0 %9516
  %v9518 = vsel %vm8635, %v9225, 0.0
  %9519 = vadd.xlane.f32.xlu0 %v9518
  %v9520 = vpop.xlane.xlu0 %9519
  %v9521 = vsel %vm8635, %v9227, 0.0
  %9522 = vadd.xlane.f32.xlu0 %v9521
  %v9523 = vpop.xlane.xlu0 %9522
  %v9524 = vsel %vm8635, %v9229, 0.0
  %9525 = vadd.xlane.f32.xlu0 %v9524
  %v9526 = vpop.xlane.xlu0 %9525
  %v9527 = vsel %vm8635, %v9231, 0.0
  %9528 = vadd.xlane.f32.xlu0 %v9527
  %v9529 = vpop.xlane.xlu0 %9528
  %v9530 = vsel %vm8635, %v9233, 0.0
  %9531 = vadd.xlane.f32.xlu0 %v9530
  %v9532 = vpop.xlane.xlu0 %9531
  %v9533 = vsel %vm8635, %v9235, 0.0
  %9534 = vadd.xlane.f32.xlu0 %v9533
  %v9535 = vpop.xlane.xlu0 %9534
  %v9536 = vsel %vm8635, %v9237, 0.0
  %9537 = vadd.xlane.f32.xlu0 %v9536
  %v9538 = vpop.xlane.xlu0 %9537
  %v9539 = vsel %vm8635, %v9239, 0.0
  %9540 = vadd.xlane.f32.xlu0 %v9539
  %v9541 = vpop.xlane.xlu0 %9540
  %v9542 = vsel %vm8635, %v9241, 0.0
  %9543 = vadd.xlane.f32.xlu0 %v9542
  %v9544 = vpop.xlane.xlu0 %9543
  %v9545 = vsel %vm8635, %v9243, 0.0
  %9546 = vadd.xlane.f32.xlu0 %v9545
  %v9547 = vpop.xlane.xlu0 %9546
  %v9548 = vsel %vm8635, %v9245, 0.0
  %9549 = vadd.xlane.f32.xlu0 %v9548
  %v9550 = vpop.xlane.xlu0 %9549
  %v9551 = vsel %vm8635, %v9247, 0.0
  %9552 = vadd.xlane.f32.xlu0 %v9551
  %v9553 = vpop.xlane.xlu0 %9552
  %v9554 = vsel %vm8635, %v9249, 0.0
  %9555 = vadd.xlane.f32.xlu0 %v9554
  %v9556 = vpop.xlane.xlu0 %9555
  %v9557 = vsel %vm8635, %v9251, 0.0
  %9558 = vadd.xlane.f32.xlu0 %v9557
  %v9559 = vpop.xlane.xlu0 %9558
  %v9560 = vsel %vm8635, %v9253, 0.0
  %9561 = vadd.xlane.f32.xlu0 %v9560
  %v9562 = vpop.xlane.xlu0 %9561
  %v9563 = vsel %vm8635, %v9255, 0.0
  %9564 = vadd.xlane.f32.xlu0 %v9563
  %v9565 = vpop.xlane.xlu0 %9564
  %v9566 = vsel %vm8635, %v9257, 0.0
  %9567 = vadd.xlane.f32.xlu0 %v9566
  %v9568 = vpop.xlane.xlu0 %9567
  %v9569 = vsel %vm8635, %v9259, 0.0
  %9570 = vadd.xlane.f32.xlu0 %v9569
  %v9571 = vpop.xlane.xlu0 %9570
  %v9572 = vsel %vm8635, %v9261, 0.0
  %9573 = vadd.xlane.f32.xlu0 %v9572
  %v9574 = vpop.xlane.xlu0 %9573
  %v9575 = vsel %vm8635, %v9263, 0.0
  %9576 = vadd.xlane.f32.xlu0 %v9575
  %v9577 = vpop.xlane.xlu0 %9576
  %v9578 = vsel %vm8635, %v9265, 0.0
  %9579 = vadd.xlane.f32.xlu0 %v9578
  %v9580 = vpop.xlane.xlu0 %9579
  %v9581 = vsel %vm8635, %v9267, 0.0
  %9582 = vadd.xlane.f32.xlu0 %v9581
  %v9583 = vpop.xlane.xlu0 %9582
  %v9584 = vsel %vm8635, %v9269, 0.0
  %9585 = vadd.xlane.f32.xlu0 %v9584
  %v9586 = vpop.xlane.xlu0 %9585
  %v9587 = vsel %vm8635, %v9271, 0.0
  %9588 = vadd.xlane.f32.xlu0 %v9587
  %v9589 = vpop.xlane.xlu0 %9588
  %v9590 = vsel %vm8635, %v9273, 0.0
  %9591 = vadd.xlane.f32.xlu0 %v9590
  %v9592 = vpop.xlane.xlu0 %9591
  %v9593 = vsel %vm8635, %v9275, 0.0
  %9594 = vadd.xlane.f32.xlu0 %v9593
  %v9595 = vpop.xlane.xlu0 %9594
  %v9596 = vsel %vm8635, %v9277, 0.0
  %9597 = vadd.xlane.f32.xlu0 %v9596
  %v9598 = vpop.xlane.xlu0 %9597
  %v9599 = vsel %vm8635, %v9279, 0.0
  %9600 = vadd.xlane.f32.xlu0 %v9599
  %v9601 = vpop.xlane.xlu0 %9600
  %v9602 = vsel %vm8635, %v9281, 0.0
  %9603 = vadd.xlane.f32.xlu0 %v9602
  %v9604 = vpop.xlane.xlu0 %9603
  %v9605 = vsel %vm8635, %v9283, 0.0
  %9606 = vadd.xlane.f32.xlu0 %v9605
  %v9607 = vpop.xlane.xlu0 %9606
  %v9608 = vsel %vm8635, %v9285, 0.0
  %9609 = vadd.xlane.f32.xlu0 %v9608
  %v9610 = vpop.xlane.xlu0 %9609
  %v9611 = vsel %vm8635, %v9287, 0.0
  %9612 = vadd.xlane.f32.xlu0 %v9611
  %v9613 = vpop.xlane.xlu0 %9612
  %v9614 = vsel %vm8635, %v9289, 0.0
  %9615 = vadd.xlane.f32.xlu0 %v9614
  %v9616 = vpop.xlane.xlu0 %9615
  %v9617 = vsel %vm8635, %v9291, 0.0
  %9618 = vadd.xlane.f32.xlu0 %v9617
  %v9619 = vpop.xlane.xlu0 %9618
  %v9620 = vsel %vm8635, %v9293, 0.0
  %9621 = vadd.xlane.f32.xlu0 %v9620
  %v9622 = vpop.xlane.xlu0 %9621
  %v9623 = vsel %vm8635, %v9295, 0.0
  %9624 = vadd.xlane.f32.xlu0 %v9623
  %v9625 = vpop.xlane.xlu0 %9624
  %v9626 = vsel %vm8635, %v9297, 0.0
  %9627 = vadd.xlane.f32.xlu0 %v9626
  %v9628 = vpop.xlane.xlu0 %9627
  %v9629 = vsel %vm8635, %v9299, 0.0
  %9630 = vadd.xlane.f32.xlu0 %v9629
  %v9631 = vpop.xlane.xlu0 %9630
  %v9632 = vsel %vm8635, %v9301, 0.0
  %9633 = vadd.xlane.f32.xlu0 %v9632
  %v9634 = vpop.xlane.xlu0 %9633
  %v9635 = vsel %vm8635, %v9303, 0.0
  %9636 = vadd.xlane.f32.xlu0 %v9635
  %v9637 = vpop.xlane.xlu0 %9636
  %v9638 = vsel %vm8635, %v9305, 0.0
  %9639 = vadd.xlane.f32.xlu0 %v9638
  %v9640 = vpop.xlane.xlu0 %9639
  %v9641 = vsel %vm8635, %v9307, 0.0
  %9642 = vadd.xlane.f32.xlu0 %v9641
  %v9643 = vpop.xlane.xlu0 %9642
  %v9644 = vsel %vm8635, %v9309, 0.0
  %9645 = vadd.xlane.f32.xlu0 %v9644
  %v9646 = vpop.xlane.xlu0 %9645
  %v9647 = vsel %vm8635, %v9311, 0.0
  %9648 = vadd.xlane.f32.xlu0 %v9647
  %v9649 = vpop.xlane.xlu0 %9648
  %v9650 = vsel %vm8635, %v9313, 0.0
  %9651 = vadd.xlane.f32.xlu0 %v9650
  %v9652 = vpop.xlane.xlu0 %9651
  %v9653 = vsel %vm8635, %v9315, 0.0
  %9654 = vadd.xlane.f32.xlu0 %v9653
  %v9655 = vpop.xlane.xlu0 %9654
  %v9656 = vsel %vm8635, %v9317, 0.0
  %9657 = vadd.xlane.f32.xlu0 %v9656
  %v9658 = vpop.xlane.xlu0 %9657
  %v9659 = vsel %vm8635, %v9319, 0.0
  %9660 = vadd.xlane.f32.xlu0 %v9659
  %v9661 = vpop.xlane.xlu0 %9660
  %v9662 = vsel %vm8635, %v9321, 0.0
  %9663 = vadd.xlane.f32.xlu0 %v9662
  %v9664 = vpop.xlane.xlu0 %9663
  %v9665 = vsel %vm8635, %v9323, 0.0
  %9666 = vadd.xlane.f32.xlu0 %v9665
  %v9667 = vpop.xlane.xlu0 %9666
  %v9668 = vsel %vm8635, %v9325, 0.0
  %9669 = vadd.xlane.f32.xlu0 %v9668
  %v9670 = vpop.xlane.xlu0 %9669
  %v9671 = vsel %vm8635, %v9327, 0.0
  %9672 = vadd.xlane.f32.xlu0 %v9671
  %v9673 = vpop.xlane.xlu0 %9672
  %v9674 = vsel %vm8635, %v9329, 0.0
  %9675 = vadd.xlane.f32.xlu0 %v9674
  %v9676 = vpop.xlane.xlu0 %9675
  %v9677 = vsel %vm8635, %v9331, 0.0
  %9678 = vadd.xlane.f32.xlu0 %v9677
  %v9679 = vpop.xlane.xlu0 %9678
  %v9680 = vsel %vm8635, %v9333, 0.0
  %9681 = vadd.xlane.f32.xlu0 %v9680
  %v9682 = vpop.xlane.xlu0 %9681
  %v9683 = vsel %vm8635, %v9335, 0.0
  %9684 = vadd.xlane.f32.xlu0 %v9683
  %v9685 = vpop.xlane.xlu0 %9684
  %v9686 = vsel %vm8635, %v9337, 0.0
  %9687 = vadd.xlane.f32.xlu0 %v9686
  %v9688 = vpop.xlane.xlu0 %9687
  %v9689 = vsel %vm8635, %v9339, 0.0
  %9690 = vadd.xlane.f32.xlu0 %v9689
  %v9691 = vpop.xlane.xlu0 %9690
  %v9692 = vsel %vm8635, %v9341, 0.0
  %9693 = vadd.xlane.f32.xlu0 %v9692
  %v9694 = vpop.xlane.xlu0 %9693
  %v9695 = vsel %vm8635, %v9343, 0.0
  %9696 = vadd.xlane.f32.xlu0 %v9695
  %v9697 = vpop.xlane.xlu0 %9696
  %v9698 = vsel %vm8635, %v9345, 0.0
  %9699 = vadd.xlane.f32.xlu0 %v9698
  %v9700 = vpop.xlane.xlu0 %9699
  %v9701 = vsel %vm8635, %v9347, 0.0
  %9702 = vadd.xlane.f32.xlu0 %v9701
  %v9703 = vpop.xlane.xlu0 %9702
  %v9704 = vsel %vm8635, %v9349, 0.0
  %9705 = vadd.xlane.f32.xlu0 %v9704
  %v9706 = vpop.xlane.xlu0 %9705
  %v9707 = vsel %vm8635, %v9351, 0.0
  %9708 = vadd.xlane.f32.xlu0 %v9707
  %v9709 = vpop.xlane.xlu0 %9708
  %v9710 = vsel %vm8635, %v9353, 0.0
  %9711 = vadd.xlane.f32.xlu0 %v9710
  %v9712 = vpop.xlane.xlu0 %9711
  %v9713 = vsel %vm8635, %v9355, 0.0
  %9714 = vadd.xlane.f32.xlu0 %v9713
  %v9715 = vpop.xlane.xlu0 %9714
  %v9716 = vsel %vm8635, %v9357, 0.0
  %9717 = vadd.xlane.f32.xlu0 %v9716
  %v9718 = vpop.xlane.xlu0 %9717
  %v9719 = vsel %vm8635, %v9359, 0.0
  %9720 = vadd.xlane.f32.xlu0 %v9719
  %v9721 = vpop.xlane.xlu0 %9720
  %v9722 = vsel %vm8635, %v9361, 0.0
  %9723 = vadd.xlane.f32.xlu0 %v9722
  %v9724 = vpop.xlane.xlu0 %9723
  %v9725 = vsel %vm8635, %v9363, 0.0
  %9726 = vadd.xlane.f32.xlu0 %v9725
  %v9727 = vpop.xlane.xlu0 %9726
  %v9728 = vsel %vm8635, %v9365, 0.0
  %9729 = vadd.xlane.f32.xlu0 %v9728
  %v9730 = vpop.xlane.xlu0 %9729
  %v9731 = vsel %vm8635, %v9367, 0.0
  %9732 = vadd.xlane.f32.xlu0 %v9731
  %v9733 = vpop.xlane.xlu0 %9732
  %v9734 = vsel %vm8635, %v9369, 0.0
  %9735 = vadd.xlane.f32.xlu0 %v9734
  %v9736 = vpop.xlane.xlu0 %9735
  %v9737 = vsel %vm8635, %v9371, 0.0
  %9738 = vadd.xlane.f32.xlu0 %v9737
  %v9739 = vpop.xlane.xlu0 %9738
  %v9740 = vsel %vm8635, %v9373, 0.0
  %9741 = vadd.xlane.f32.xlu0 %v9740
  %v9742 = vpop.xlane.xlu0 %9741
  %v9743 = vsel %vm8635, %v9375, 0.0
  %9744 = vadd.xlane.f32.xlu0 %v9743
  %v9745 = vpop.xlane.xlu0 %9744
  %v9746 = vsel %vm8635, %v9377, 0.0
  %9747 = vadd.xlane.f32.xlu0 %v9746
  %v9748 = vpop.xlane.xlu0 %9747
  %v9749 = vsel %vm8635, %v9379, 0.0
  %9750 = vadd.xlane.f32.xlu0 %v9749
  %v9751 = vpop.xlane.xlu0 %9750
  %v9752 = vsel %vm8635, %v9381, 0.0
  %9753 = vadd.xlane.f32.xlu0 %v9752
  %v9754 = vpop.xlane.xlu0 %9753
  %v9755 = vsel %vm8635, %v9383, 0.0
  %9756 = vadd.xlane.f32.xlu0 %v9755
  %v9757 = vpop.xlane.xlu0 %9756
  %v9758 = vsel %vm8635, %v9385, 0.0
  %9759 = vadd.xlane.f32.xlu0 %v9758
  %v9760 = vpop.xlane.xlu0 %9759
  %v9761 = vsel %vm8635, %v9387, 0.0
  %9762 = vadd.xlane.f32.xlu0 %v9761
  %v9763 = vpop.xlane.xlu0 %9762
  %v9764 = vsel %vm8635, %v9389, 0.0
  %9765 = vadd.xlane.f32.xlu0 %v9764
  %v9766 = vpop.xlane.xlu0 %9765
  %v9767 = vsel %vm8635, %v9391, 0.0
  %9768 = vadd.xlane.f32.xlu0 %v9767
  %v9769 = vpop.xlane.xlu0 %9768
  %v9770 = vsel %vm8635, %v9393, 0.0
  %9771 = vadd.xlane.f32.xlu0 %v9770
  %v9772 = vpop.xlane.xlu0 %9771
  %v9773 = vsel %vm8635, %v9395, 0.0
  %9774 = vadd.xlane.f32.xlu0 %v9773
  %v9775 = vpop.xlane.xlu0 %9774
  %v9776 = vsel %vm8635, %v9397, 0.0
  %9777 = vadd.xlane.f32.xlu0 %v9776
  %v9778 = vpop.xlane.xlu0 %9777
  %v9779 = vsel %vm8635, %v9399, 0.0
  %9780 = vadd.xlane.f32.xlu0 %v9779
  %v9781 = vpop.xlane.xlu0 %9780
  %v9782 = vsel %vm8635, %v9401, 0.0
  %9783 = vadd.xlane.f32.xlu0 %v9782
  %v9784 = vpop.xlane.xlu0 %9783
  %v9785 = vsel %vm8635, %v9403, 0.0
  %9786 = vadd.xlane.f32.xlu0 %v9785
  %v9787 = vpop.xlane.xlu0 %9786
  %v9788 = vrcp.pop %v9406
  %v9789 = vmul.f32 %v9406, %v9788
  %v9790 = vsub.f32 1.0, %v9789
  %v9791 = vmul.f32 %v9788, %v9790
  %v9792 = vadd.f32 %v9788, %v9791
  %vm9793 = vweird.f32 %v9406
  %vm9794 = vweird.f32 %v9788
  %vm9795 = vmor %vm9793, %vm9794
  %v9796 = vsel %vm9795, %v9788, %v9792
  %v9797 = vand.u32 2147483647, %v9406
  %vm9798 = vcmp.eq.f32.partialorder %v9797, 8.507059e+37
  %v9799 = vand.u32 %v9406, 2147483648
  %v9800 = vor.u32 1.1754944e-38, %v9799
  %v9801 = vsel %vm9798, %v9800, %v9796
  %v9802 = vmul.f32 %v9149, %v9801
  %v9803 = vrcp.pop %v9409
  %v9804 = vmul.f32 %v9409, %v9803
  %v9805 = vsub.f32 1.0, %v9804
  %v9806 = vmul.f32 %v9803, %v9805
  %v9807 = vadd.f32 %v9803, %v9806
  %vm9808 = vweird.f32 %v9409
  %vm9809 = vweird.f32 %v9803
  %vm9810 = vmor %vm9808, %vm9809
  %v9811 = vsel %vm9810, %v9803, %v9807
  %v9812 = vand.u32 2147483647, %v9409
  %vm9813 = vcmp.eq.f32.partialorder %v9812, 8.507059e+37
  %v9814 = vand.u32 %v9409, 2147483648
  %v9815 = vor.u32 1.1754944e-38, %v9814
  %v9816 = vsel %vm9813, %v9815, %v9811
  %v9817 = vmul.f32 %v9151, %v9816
  %v9818 = vrcp.pop %v9412
  %v9819 = vmul.f32 %v9412, %v9818
  %v9820 = vsub.f32 1.0, %v9819
  %v9821 = vmul.f32 %v9818, %v9820
  %v9822 = vadd.f32 %v9818, %v9821
  %vm9823 = vweird.f32 %v9412
  %vm9824 = vweird.f32 %v9818
  %vm9825 = vmor %vm9823, %vm9824
  %v9826 = vsel %vm9825, %v9818, %v9822
  %v9827 = vand.u32 2147483647, %v9412
  %vm9828 = vcmp.eq.f32.partialorder %v9827, 8.507059e+37
  %v9829 = vand.u32 %v9412, 2147483648
  %v9830 = vor.u32 1.1754944e-38, %v9829
  %v9831 = vsel %vm9828, %v9830, %v9826
  %v9832 = vmul.f32 %v9153, %v9831
  %v9833 = vrcp.pop %v9415
  %v9834 = vmul.f32 %v9415, %v9833
  %v9835 = vsub.f32 1.0, %v9834
  %v9836 = vmul.f32 %v9833, %v9835
  %v9837 = vadd.f32 %v9833, %v9836
  %vm9838 = vweird.f32 %v9415
  %vm9839 = vweird.f32 %v9833
  %vm9840 = vmor %vm9838, %vm9839
  %v9841 = vsel %vm9840, %v9833, %v9837
  %v9842 = vand.u32 2147483647, %v9415
  %vm9843 = vcmp.eq.f32.partialorder %v9842, 8.507059e+37
  %v9844 = vand.u32 %v9415, 2147483648
  %v9845 = vor.u32 1.1754944e-38, %v9844
  %v9846 = vsel %vm9843, %v9845, %v9841
  %v9847 = vmul.f32 %v9155, %v9846
  %v9848 = vrcp.pop %v9418
  %v9849 = vmul.f32 %v9418, %v9848
  %v9850 = vsub.f32 1.0, %v9849
  %v9851 = vmul.f32 %v9848, %v9850
  %v9852 = vadd.f32 %v9848, %v9851
  %vm9853 = vweird.f32 %v9418
  %vm9854 = vweird.f32 %v9848
  %vm9855 = vmor %vm9853, %vm9854
  %v9856 = vsel %vm9855, %v9848, %v9852
  %v9857 = vand.u32 2147483647, %v9418
  %vm9858 = vcmp.eq.f32.partialorder %v9857, 8.507059e+37
  %v9859 = vand.u32 %v9418, 2147483648
  %v9860 = vor.u32 1.1754944e-38, %v9859
  %v9861 = vsel %vm9858, %v9860, %v9856
  %v9862 = vmul.f32 %v9157, %v9861
  %v9863 = vrcp.pop %v9421
  %v9864 = vmul.f32 %v9421, %v9863
  %v9865 = vsub.f32 1.0, %v9864
  %v9866 = vmul.f32 %v9863, %v9865
  %v9867 = vadd.f32 %v9863, %v9866
  %vm9868 = vweird.f32 %v9421
  %vm9869 = vweird.f32 %v9863
  %vm9870 = vmor %vm9868, %vm9869
  %v9871 = vsel %vm9870, %v9863, %v9867
  %v9872 = vand.u32 2147483647, %v9421
  %vm9873 = vcmp.eq.f32.partialorder %v9872, 8.507059e+37
  %v9874 = vand.u32 %v9421, 2147483648
  %v9875 = vor.u32 1.1754944e-38, %v9874
  %v9876 = vsel %vm9873, %v9875, %v9871
  %v9877 = vmul.f32 %v9159, %v9876
  %v9878 = vrcp.pop %v9424
  %v9879 = vmul.f32 %v9424, %v9878
  %v9880 = vsub.f32 1.0, %v9879
  %v9881 = vmul.f32 %v9878, %v9880
  %v9882 = vadd.f32 %v9878, %v9881
  %vm9883 = vweird.f32 %v9424
  %vm9884 = vweird.f32 %v9878
  %vm9885 = vmor %vm9883, %vm9884
  %v9886 = vsel %vm9885, %v9878, %v9882
  %v9887 = vand.u32 2147483647, %v9424
  %vm9888 = vcmp.eq.f32.partialorder %v9887, 8.507059e+37
  %v9889 = vand.u32 %v9424, 2147483648
  %v9890 = vor.u32 1.1754944e-38, %v9889
  %v9891 = vsel %vm9888, %v9890, %v9886
  %v9892 = vmul.f32 %v9161, %v9891
  %v9893 = vrcp.pop %v9427
  %v9894 = vmul.f32 %v9427, %v9893
  %v9895 = vsub.f32 1.0, %v9894
  %v9896 = vmul.f32 %v9893, %v9895
  %v9897 = vadd.f32 %v9893, %v9896
  %vm9898 = vweird.f32 %v9427
  %vm9899 = vweird.f32 %v9893
  %vm9900 = vmor %vm9898, %vm9899
  %v9901 = vsel %vm9900, %v9893, %v9897
  %v9902 = vand.u32 2147483647, %v9427
  %vm9903 = vcmp.eq.f32.partialorder %v9902, 8.507059e+37
  %v9904 = vand.u32 %v9427, 2147483648
  %v9905 = vor.u32 1.1754944e-38, %v9904
  %v9906 = vsel %vm9903, %v9905, %v9901
  %v9907 = vmul.f32 %v9163, %v9906
  %v9908 = vrcp.pop %v9430
  %v9909 = vmul.f32 %v9430, %v9908
  %v9910 = vsub.f32 1.0, %v9909
  %v9911 = vmul.f32 %v9908, %v9910
  %v9912 = vadd.f32 %v9908, %v9911
  %vm9913 = vweird.f32 %v9430
  %vm9914 = vweird.f32 %v9908
  %vm9915 = vmor %vm9913, %vm9914
  %v9916 = vsel %vm9915, %v9908, %v9912
  %v9917 = vand.u32 2147483647, %v9430
  %vm9918 = vcmp.eq.f32.partialorder %v9917, 8.507059e+37
  %v9919 = vand.u32 %v9430, 2147483648
  %v9920 = vor.u32 1.1754944e-38, %v9919
  %v9921 = vsel %vm9918, %v9920, %v9916
  %v9922 = vmul.f32 %v9165, %v9921
  %v9923 = vrcp.pop %v9433
  %v9924 = vmul.f32 %v9433, %v9923
  %v9925 = vsub.f32 1.0, %v9924
  %v9926 = vmul.f32 %v9923, %v9925
  %v9927 = vadd.f32 %v9923, %v9926
  %vm9928 = vweird.f32 %v9433
  %vm9929 = vweird.f32 %v9923
  %vm9930 = vmor %vm9928, %vm9929
  %v9931 = vsel %vm9930, %v9923, %v9927
  %v9932 = vand.u32 2147483647, %v9433
  %vm9933 = vcmp.eq.f32.partialorder %v9932, 8.507059e+37
  %v9934 = vand.u32 %v9433, 2147483648
  %v9935 = vor.u32 1.1754944e-38, %v9934
  %v9936 = vsel %vm9933, %v9935, %v9931
  %v9937 = vmul.f32 %v9167, %v9936
  %v9938 = vrcp.pop %v9436
  %v9939 = vmul.f32 %v9436, %v9938
  %v9940 = vsub.f32 1.0, %v9939
  %v9941 = vmul.f32 %v9938, %v9940
  %v9942 = vadd.f32 %v9938, %v9941
  %vm9943 = vweird.f32 %v9436
  %vm9944 = vweird.f32 %v9938
  %vm9945 = vmor %vm9943, %vm9944
  %v9946 = vsel %vm9945, %v9938, %v9942
  %v9947 = vand.u32 2147483647, %v9436
  %vm9948 = vcmp.eq.f32.partialorder %v9947, 8.507059e+37
  %v9949 = vand.u32 %v9436, 2147483648
  %v9950 = vor.u32 1.1754944e-38, %v9949
  %v9951 = vsel %vm9948, %v9950, %v9946
  %v9952 = vmul.f32 %v9169, %v9951
  %v9953 = vrcp.pop %v9439
  %v9954 = vmul.f32 %v9439, %v9953
  %v9955 = vsub.f32 1.0, %v9954
  %v9956 = vmul.f32 %v9953, %v9955
  %v9957 = vadd.f32 %v9953, %v9956
  %vm9958 = vweird.f32 %v9439
  %vm9959 = vweird.f32 %v9953
  %vm9960 = vmor %vm9958, %vm9959
  %v9961 = vsel %vm9960, %v9953, %v9957
  %v9962 = vand.u32 2147483647, %v9439
  %vm9963 = vcmp.eq.f32.partialorder %v9962, 8.507059e+37
  %v9964 = vand.u32 %v9439, 2147483648
  %v9965 = vor.u32 1.1754944e-38, %v9964
  %v9966 = vsel %vm9963, %v9965, %v9961
  %v9967 = vmul.f32 %v9171, %v9966
  %v9968 = vrcp.pop %v9442
  %v9969 = vmul.f32 %v9442, %v9968
  %v9970 = vsub.f32 1.0, %v9969
  %v9971 = vmul.f32 %v9968, %v9970
  %v9972 = vadd.f32 %v9968, %v9971
  %vm9973 = vweird.f32 %v9442
  %vm9974 = vweird.f32 %v9968
  %vm9975 = vmor %vm9973, %vm9974
  %v9976 = vsel %vm9975, %v9968, %v9972
  %v9977 = vand.u32 2147483647, %v9442
  %vm9978 = vcmp.eq.f32.partialorder %v9977, 8.507059e+37
  %v9979 = vand.u32 %v9442, 2147483648
  %v9980 = vor.u32 1.1754944e-38, %v9979
  %v9981 = vsel %vm9978, %v9980, %v9976
  %v9982 = vmul.f32 %v9173, %v9981
  %v9983 = vrcp.pop %v9445
  %v9984 = vmul.f32 %v9445, %v9983
  %v9985 = vsub.f32 1.0, %v9984
  %v9986 = vmul.f32 %v9983, %v9985
  %v9987 = vadd.f32 %v9983, %v9986
  %vm9988 = vweird.f32 %v9445
  %vm9989 = vweird.f32 %v9983
  %vm9990 = vmor %vm9988, %vm9989
  %v9991 = vsel %vm9990, %v9983, %v9987
  %v9992 = vand.u32 2147483647, %v9445
  %vm9993 = vcmp.eq.f32.partialorder %v9992, 8.507059e+37
  %v9994 = vand.u32 %v9445, 2147483648
  %v9995 = vor.u32 1.1754944e-38, %v9994
  %v9996 = vsel %vm9993, %v9995, %v9991
  %v9997 = vmul.f32 %v9175, %v9996
  %v9998 = vrcp.pop %v9448
  %v9999 = vmul.f32 %v9448, %v9998
  %v10000 = vsub.f32 1.0, %v9999
  %v10001 = vmul.f32 %v9998, %v10000
  %v10002 = vadd.f32 %v9998, %v10001
  %vm10003 = vweird.f32 %v9448
  %vm10004 = vweird.f32 %v9998
  %vm10005 = vmor %vm10003, %vm10004
  %v10006 = vsel %vm10005, %v9998, %v10002
  %v10007 = vand.u32 2147483647, %v9448
  %vm10008 = vcmp.eq.f32.partialorder %v10007, 8.507059e+37
  %v10009 = vand.u32 %v9448, 2147483648
  %v10010 = vor.u32 1.1754944e-38, %v10009
  %v10011 = vsel %vm10008, %v10010, %v10006
  %v10012 = vmul.f32 %v9177, %v10011
  %v10013 = vrcp.pop %v9451
  %v10014 = vmul.f32 %v9451, %v10013
  %v10015 = vsub.f32 1.0, %v10014
  %v10016 = vmul.f32 %v10013, %v10015
  %v10017 = vadd.f32 %v10013, %v10016
  %vm10018 = vweird.f32 %v9451
  %vm10019 = vweird.f32 %v10013
  %vm10020 = vmor %vm10018, %vm10019
  %v10021 = vsel %vm10020, %v10013, %v10017
  %v10022 = vand.u32 2147483647, %v9451
  %vm10023 = vcmp.eq.f32.partialorder %v10022, 8.507059e+37
  %v10024 = vand.u32 %v9451, 2147483648
  %v10025 = vor.u32 1.1754944e-38, %v10024
  %v10026 = vsel %vm10023, %v10025, %v10021
  %v10027 = vmul.f32 %v9179, %v10026
  %v10028 = vrcp.pop %v9454
  %v10029 = vmul.f32 %v9454, %v10028
  %v10030 = vsub.f32 1.0, %v10029
  %v10031 = vmul.f32 %v10028, %v10030
  %v10032 = vadd.f32 %v10028, %v10031
  %vm10033 = vweird.f32 %v9454
  %vm10034 = vweird.f32 %v10028
  %vm10035 = vmor %vm10033, %vm10034
  %v10036 = vsel %vm10035, %v10028, %v10032
  %v10037 = vand.u32 2147483647, %v9454
  %vm10038 = vcmp.eq.f32.partialorder %v10037, 8.507059e+37
  %v10039 = vand.u32 %v9454, 2147483648
  %v10040 = vor.u32 1.1754944e-38, %v10039
  %v10041 = vsel %vm10038, %v10040, %v10036
  %v10042 = vmul.f32 %v9181, %v10041
  %v10043 = vrcp.pop %v9457
  %v10044 = vmul.f32 %v9457, %v10043
  %v10045 = vsub.f32 1.0, %v10044
  %v10046 = vmul.f32 %v10043, %v10045
  %v10047 = vadd.f32 %v10043, %v10046
  %vm10048 = vweird.f32 %v9457
  %vm10049 = vweird.f32 %v10043
  %vm10050 = vmor %vm10048, %vm10049
  %v10051 = vsel %vm10050, %v10043, %v10047
  %v10052 = vand.u32 2147483647, %v9457
  %vm10053 = vcmp.eq.f32.partialorder %v10052, 8.507059e+37
  %v10054 = vand.u32 %v9457, 2147483648
  %v10055 = vor.u32 1.1754944e-38, %v10054
  %v10056 = vsel %vm10053, %v10055, %v10051
  %v10057 = vmul.f32 %v9183, %v10056
  %v10058 = vrcp.pop %v9460
  %v10059 = vmul.f32 %v9460, %v10058
  %v10060 = vsub.f32 1.0, %v10059
  %v10061 = vmul.f32 %v10058, %v10060
  %v10062 = vadd.f32 %v10058, %v10061
  %vm10063 = vweird.f32 %v9460
  %vm10064 = vweird.f32 %v10058
  %vm10065 = vmor %vm10063, %vm10064
  %v10066 = vsel %vm10065, %v10058, %v10062
  %v10067 = vand.u32 2147483647, %v9460
  %vm10068 = vcmp.eq.f32.partialorder %v10067, 8.507059e+37
  %v10069 = vand.u32 %v9460, 2147483648
  %v10070 = vor.u32 1.1754944e-38, %v10069
  %v10071 = vsel %vm10068, %v10070, %v10066
  %v10072 = vmul.f32 %v9185, %v10071
  %v10073 = vrcp.pop %v9463
  %v10074 = vmul.f32 %v9463, %v10073
  %v10075 = vsub.f32 1.0, %v10074
  %v10076 = vmul.f32 %v10073, %v10075
  %v10077 = vadd.f32 %v10073, %v10076
  %vm10078 = vweird.f32 %v9463
  %vm10079 = vweird.f32 %v10073
  %vm10080 = vmor %vm10078, %vm10079
  %v10081 = vsel %vm10080, %v10073, %v10077
  %v10082 = vand.u32 2147483647, %v9463
  %vm10083 = vcmp.eq.f32.partialorder %v10082, 8.507059e+37
  %v10084 = vand.u32 %v9463, 2147483648
  %v10085 = vor.u32 1.1754944e-38, %v10084
  %v10086 = vsel %vm10083, %v10085, %v10081
  %v10087 = vmul.f32 %v9187, %v10086
  %v10088 = vrcp.pop %v9466
  %v10089 = vmul.f32 %v9466, %v10088
  %v10090 = vsub.f32 1.0, %v10089
  %v10091 = vmul.f32 %v10088, %v10090
  %v10092 = vadd.f32 %v10088, %v10091
  %vm10093 = vweird.f32 %v9466
  %vm10094 = vweird.f32 %v10088
  %vm10095 = vmor %vm10093, %vm10094
  %v10096 = vsel %vm10095, %v10088, %v10092
  %v10097 = vand.u32 2147483647, %v9466
  %vm10098 = vcmp.eq.f32.partialorder %v10097, 8.507059e+37
  %v10099 = vand.u32 %v9466, 2147483648
  %v10100 = vor.u32 1.1754944e-38, %v10099
  %v10101 = vsel %vm10098, %v10100, %v10096
  %v10102 = vmul.f32 %v9189, %v10101
  %v10103 = vrcp.pop %v9469
  %v10104 = vmul.f32 %v9469, %v10103
  %v10105 = vsub.f32 1.0, %v10104
  %v10106 = vmul.f32 %v10103, %v10105
  %v10107 = vadd.f32 %v10103, %v10106
  %vm10108 = vweird.f32 %v9469
  %vm10109 = vweird.f32 %v10103
  %vm10110 = vmor %vm10108, %vm10109
  %v10111 = vsel %vm10110, %v10103, %v10107
  %v10112 = vand.u32 2147483647, %v9469
  %vm10113 = vcmp.eq.f32.partialorder %v10112, 8.507059e+37
  %v10114 = vand.u32 %v9469, 2147483648
  %v10115 = vor.u32 1.1754944e-38, %v10114
  %v10116 = vsel %vm10113, %v10115, %v10111
  %v10117 = vmul.f32 %v9191, %v10116
  %v10118 = vrcp.pop %v9472
  %v10119 = vmul.f32 %v9472, %v10118
  %v10120 = vsub.f32 1.0, %v10119
  %v10121 = vmul.f32 %v10118, %v10120
  %v10122 = vadd.f32 %v10118, %v10121
  %vm10123 = vweird.f32 %v9472
  %vm10124 = vweird.f32 %v10118
  %vm10125 = vmor %vm10123, %vm10124
  %v10126 = vsel %vm10125, %v10118, %v10122
  %v10127 = vand.u32 2147483647, %v9472
  %vm10128 = vcmp.eq.f32.partialorder %v10127, 8.507059e+37
  %v10129 = vand.u32 %v9472, 2147483648
  %v10130 = vor.u32 1.1754944e-38, %v10129
  %v10131 = vsel %vm10128, %v10130, %v10126
  %v10132 = vmul.f32 %v9193, %v10131
  %v10133 = vrcp.pop %v9475
  %v10134 = vmul.f32 %v9475, %v10133
  %v10135 = vsub.f32 1.0, %v10134
  %v10136 = vmul.f32 %v10133, %v10135
  %v10137 = vadd.f32 %v10133, %v10136
  %vm10138 = vweird.f32 %v9475
  %vm10139 = vweird.f32 %v10133
  %vm10140 = vmor %vm10138, %vm10139
  %v10141 = vsel %vm10140, %v10133, %v10137
  %v10142 = vand.u32 2147483647, %v9475
  %vm10143 = vcmp.eq.f32.partialorder %v10142, 8.507059e+37
  %v10144 = vand.u32 %v9475, 2147483648
  %v10145 = vor.u32 1.1754944e-38, %v10144
  %v10146 = vsel %vm10143, %v10145, %v10141
  %v10147 = vmul.f32 %v9195, %v10146
  %v10148 = vrcp.pop %v9478
  %v10149 = vmul.f32 %v9478, %v10148
  %v10150 = vsub.f32 1.0, %v10149
  %v10151 = vmul.f32 %v10148, %v10150
  %v10152 = vadd.f32 %v10148, %v10151
  %vm10153 = vweird.f32 %v9478
  %vm10154 = vweird.f32 %v10148
  %vm10155 = vmor %vm10153, %vm10154
  %v10156 = vsel %vm10155, %v10148, %v10152
  %v10157 = vand.u32 2147483647, %v9478
  %vm10158 = vcmp.eq.f32.partialorder %v10157, 8.507059e+37
  %v10159 = vand.u32 %v9478, 2147483648
  %v10160 = vor.u32 1.1754944e-38, %v10159
  %v10161 = vsel %vm10158, %v10160, %v10156
  %v10162 = vmul.f32 %v9197, %v10161
  %v10163 = vrcp.pop %v9481
  %v10164 = vmul.f32 %v9481, %v10163
  %v10165 = vsub.f32 1.0, %v10164
  %v10166 = vmul.f32 %v10163, %v10165
  %v10167 = vadd.f32 %v10163, %v10166
  %vm10168 = vweird.f32 %v9481
  %vm10169 = vweird.f32 %v10163
  %vm10170 = vmor %vm10168, %vm10169
  %v10171 = vsel %vm10170, %v10163, %v10167
  %v10172 = vand.u32 2147483647, %v9481
  %vm10173 = vcmp.eq.f32.partialorder %v10172, 8.507059e+37
  %v10174 = vand.u32 %v9481, 2147483648
  %v10175 = vor.u32 1.1754944e-38, %v10174
  %v10176 = vsel %vm10173, %v10175, %v10171
  %v10177 = vmul.f32 %v9199, %v10176
  %v10178 = vrcp.pop %v9484
  %v10179 = vmul.f32 %v9484, %v10178
  %v10180 = vsub.f32 1.0, %v10179
  %v10181 = vmul.f32 %v10178, %v10180
  %v10182 = vadd.f32 %v10178, %v10181
  %vm10183 = vweird.f32 %v9484
  %vm10184 = vweird.f32 %v10178
  %vm10185 = vmor %vm10183, %vm10184
  %v10186 = vsel %vm10185, %v10178, %v10182
  %v10187 = vand.u32 2147483647, %v9484
  %vm10188 = vcmp.eq.f32.partialorder %v10187, 8.507059e+37
  %v10189 = vand.u32 %v9484, 2147483648
  %v10190 = vor.u32 1.1754944e-38, %v10189
  %v10191 = vsel %vm10188, %v10190, %v10186
  %v10192 = vmul.f32 %v9201, %v10191
  %v10193 = vrcp.pop %v9487
  %v10194 = vmul.f32 %v9487, %v10193
  %v10195 = vsub.f32 1.0, %v10194
  %v10196 = vmul.f32 %v10193, %v10195
  %v10197 = vadd.f32 %v10193, %v10196
  %vm10198 = vweird.f32 %v9487
  %vm10199 = vweird.f32 %v10193
  %vm10200 = vmor %vm10198, %vm10199
  %v10201 = vsel %vm10200, %v10193, %v10197
  %v10202 = vand.u32 2147483647, %v9487
  %vm10203 = vcmp.eq.f32.partialorder %v10202, 8.507059e+37
  %v10204 = vand.u32 %v9487, 2147483648
  %v10205 = vor.u32 1.1754944e-38, %v10204
  %v10206 = vsel %vm10203, %v10205, %v10201
  %v10207 = vmul.f32 %v9203, %v10206
  %v10208 = vrcp.pop %v9490
  %v10209 = vmul.f32 %v9490, %v10208
  %v10210 = vsub.f32 1.0, %v10209
  %v10211 = vmul.f32 %v10208, %v10210
  %v10212 = vadd.f32 %v10208, %v10211
  %vm10213 = vweird.f32 %v9490
  %vm10214 = vweird.f32 %v10208
  %vm10215 = vmor %vm10213, %vm10214
  %v10216 = vsel %vm10215, %v10208, %v10212
  %v10217 = vand.u32 2147483647, %v9490
  %vm10218 = vcmp.eq.f32.partialorder %v10217, 8.507059e+37
  %v10219 = vand.u32 %v9490, 2147483648
  %v10220 = vor.u32 1.1754944e-38, %v10219
  %v10221 = vsel %vm10218, %v10220, %v10216
  %v10222 = vmul.f32 %v9205, %v10221
  %v10223 = vrcp.pop %v9493
  %v10224 = vmul.f32 %v9493, %v10223
  %v10225 = vsub.f32 1.0, %v10224
  %v10226 = vmul.f32 %v10223, %v10225
  %v10227 = vadd.f32 %v10223, %v10226
  %vm10228 = vweird.f32 %v9493
  %vm10229 = vweird.f32 %v10223
  %vm10230 = vmor %vm10228, %vm10229
  %v10231 = vsel %vm10230, %v10223, %v10227
  %v10232 = vand.u32 2147483647, %v9493
  %vm10233 = vcmp.eq.f32.partialorder %v10232, 8.507059e+37
  %v10234 = vand.u32 %v9493, 2147483648
  %v10235 = vor.u32 1.1754944e-38, %v10234
  %v10236 = vsel %vm10233, %v10235, %v10231
  %v10237 = vmul.f32 %v9207, %v10236
  %v10238 = vrcp.pop %v9496
  %v10239 = vmul.f32 %v9496, %v10238
  %v10240 = vsub.f32 1.0, %v10239
  %v10241 = vmul.f32 %v10238, %v10240
  %v10242 = vadd.f32 %v10238, %v10241
  %vm10243 = vweird.f32 %v9496
  %vm10244 = vweird.f32 %v10238
  %vm10245 = vmor %vm10243, %vm10244
  %v10246 = vsel %vm10245, %v10238, %v10242
  %v10247 = vand.u32 2147483647, %v9496
  %vm10248 = vcmp.eq.f32.partialorder %v10247, 8.507059e+37
  %v10249 = vand.u32 %v9496, 2147483648
  %v10250 = vor.u32 1.1754944e-38, %v10249
  %v10251 = vsel %vm10248, %v10250, %v10246
  %v10252 = vmul.f32 %v9209, %v10251
  %v10253 = vrcp.pop %v9499
  %v10254 = vmul.f32 %v9499, %v10253
  %v10255 = vsub.f32 1.0, %v10254
  %v10256 = vmul.f32 %v10253, %v10255
  %v10257 = vadd.f32 %v10253, %v10256
  %vm10258 = vweird.f32 %v9499
  %vm10259 = vweird.f32 %v10253
  %vm10260 = vmor %vm10258, %vm10259
  %v10261 = vsel %vm10260, %v10253, %v10257
  %v10262 = vand.u32 2147483647, %v9499
  %vm10263 = vcmp.eq.f32.partialorder %v10262, 8.507059e+37
  %v10264 = vand.u32 %v9499, 2147483648
  %v10265 = vor.u32 1.1754944e-38, %v10264
  %v10266 = vsel %vm10263, %v10265, %v10261
  %v10267 = vmul.f32 %v9211, %v10266
  %v10268 = vrcp.pop %v9502
  %v10269 = vmul.f32 %v9502, %v10268
  %v10270 = vsub.f32 1.0, %v10269
  %v10271 = vmul.f32 %v10268, %v10270
  %v10272 = vadd.f32 %v10268, %v10271
  %vm10273 = vweird.f32 %v9502
  %vm10274 = vweird.f32 %v10268
  %vm10275 = vmor %vm10273, %vm10274
  %v10276 = vsel %vm10275, %v10268, %v10272
  %v10277 = vand.u32 2147483647, %v9502
  %vm10278 = vcmp.eq.f32.partialorder %v10277, 8.507059e+37
  %v10279 = vand.u32 %v9502, 2147483648
  %v10280 = vor.u32 1.1754944e-38, %v10279
  %v10281 = vsel %vm10278, %v10280, %v10276
  %v10282 = vmul.f32 %v9213, %v10281
  %v10283 = vrcp.pop %v9505
  %v10284 = vmul.f32 %v9505, %v10283
  %v10285 = vsub.f32 1.0, %v10284
  %v10286 = vmul.f32 %v10283, %v10285
  %v10287 = vadd.f32 %v10283, %v10286
  %vm10288 = vweird.f32 %v9505
  %vm10289 = vweird.f32 %v10283
  %vm10290 = vmor %vm10288, %vm10289
  %v10291 = vsel %vm10290, %v10283, %v10287
  %v10292 = vand.u32 2147483647, %v9505
  %vm10293 = vcmp.eq.f32.partialorder %v10292, 8.507059e+37
  %v10294 = vand.u32 %v9505, 2147483648
  %v10295 = vor.u32 1.1754944e-38, %v10294
  %v10296 = vsel %vm10293, %v10295, %v10291
  %v10297 = vmul.f32 %v9215, %v10296
  %v10298 = vrcp.pop %v9508
  %v10299 = vmul.f32 %v9508, %v10298
  %v10300 = vsub.f32 1.0, %v10299
  %v10301 = vmul.f32 %v10298, %v10300
  %v10302 = vadd.f32 %v10298, %v10301
  %vm10303 = vweird.f32 %v9508
  %vm10304 = vweird.f32 %v10298
  %vm10305 = vmor %vm10303, %vm10304
  %v10306 = vsel %vm10305, %v10298, %v10302
  %v10307 = vand.u32 2147483647, %v9508
  %vm10308 = vcmp.eq.f32.partialorder %v10307, 8.507059e+37
  %v10309 = vand.u32 %v9508, 2147483648
  %v10310 = vor.u32 1.1754944e-38, %v10309
  %v10311 = vsel %vm10308, %v10310, %v10306
  %v10312 = vmul.f32 %v9217, %v10311
  %v10313 = vrcp.pop %v9511
  %v10314 = vmul.f32 %v9511, %v10313
  %v10315 = vsub.f32 1.0, %v10314
  %v10316 = vmul.f32 %v10313, %v10315
  %v10317 = vadd.f32 %v10313, %v10316
  %vm10318 = vweird.f32 %v9511
  %vm10319 = vweird.f32 %v10313
  %vm10320 = vmor %vm10318, %vm10319
  %v10321 = vsel %vm10320, %v10313, %v10317
  %v10322 = vand.u32 2147483647, %v9511
  %vm10323 = vcmp.eq.f32.partialorder %v10322, 8.507059e+37
  %v10324 = vand.u32 %v9511, 2147483648
  %v10325 = vor.u32 1.1754944e-38, %v10324
  %v10326 = vsel %vm10323, %v10325, %v10321
  %v10327 = vmul.f32 %v9219, %v10326
  %v10328 = vrcp.pop %v9514
  %v10329 = vmul.f32 %v9514, %v10328
  %v10330 = vsub.f32 1.0, %v10329
  %v10331 = vmul.f32 %v10328, %v10330
  %v10332 = vadd.f32 %v10328, %v10331
  %vm10333 = vweird.f32 %v9514
  %vm10334 = vweird.f32 %v10328
  %vm10335 = vmor %vm10333, %vm10334
  %v10336 = vsel %vm10335, %v10328, %v10332
  %v10337 = vand.u32 2147483647, %v9514
  %vm10338 = vcmp.eq.f32.partialorder %v10337, 8.507059e+37
  %v10339 = vand.u32 %v9514, 2147483648
  %v10340 = vor.u32 1.1754944e-38, %v10339
  %v10341 = vsel %vm10338, %v10340, %v10336
  %v10342 = vmul.f32 %v9221, %v10341
  %v10343 = vrcp.pop %v9517
  %v10344 = vmul.f32 %v9517, %v10343
  %v10345 = vsub.f32 1.0, %v10344
  %v10346 = vmul.f32 %v10343, %v10345
  %v10347 = vadd.f32 %v10343, %v10346
  %vm10348 = vweird.f32 %v9517
  %vm10349 = vweird.f32 %v10343
  %vm10350 = vmor %vm10348, %vm10349
  %v10351 = vsel %vm10350, %v10343, %v10347
  %v10352 = vand.u32 2147483647, %v9517
  %vm10353 = vcmp.eq.f32.partialorder %v10352, 8.507059e+37
  %v10354 = vand.u32 %v9517, 2147483648
  %v10355 = vor.u32 1.1754944e-38, %v10354
  %v10356 = vsel %vm10353, %v10355, %v10351
  %v10357 = vmul.f32 %v9223, %v10356
  %v10358 = vrcp.pop %v9520
  %v10359 = vmul.f32 %v9520, %v10358
  %v10360 = vsub.f32 1.0, %v10359
  %v10361 = vmul.f32 %v10358, %v10360
  %v10362 = vadd.f32 %v10358, %v10361
  %vm10363 = vweird.f32 %v9520
  %vm10364 = vweird.f32 %v10358
  %vm10365 = vmor %vm10363, %vm10364
  %v10366 = vsel %vm10365, %v10358, %v10362
  %v10367 = vand.u32 2147483647, %v9520
  %vm10368 = vcmp.eq.f32.partialorder %v10367, 8.507059e+37
  %v10369 = vand.u32 %v9520, 2147483648
  %v10370 = vor.u32 1.1754944e-38, %v10369
  %v10371 = vsel %vm10368, %v10370, %v10366
  %v10372 = vmul.f32 %v9225, %v10371
  %v10373 = vrcp.pop %v9523
  %v10374 = vmul.f32 %v9523, %v10373
  %v10375 = vsub.f32 1.0, %v10374
  %v10376 = vmul.f32 %v10373, %v10375
  %v10377 = vadd.f32 %v10373, %v10376
  %vm10378 = vweird.f32 %v9523
  %vm10379 = vweird.f32 %v10373
  %vm10380 = vmor %vm10378, %vm10379
  %v10381 = vsel %vm10380, %v10373, %v10377
  %v10382 = vand.u32 2147483647, %v9523
  %vm10383 = vcmp.eq.f32.partialorder %v10382, 8.507059e+37
  %v10384 = vand.u32 %v9523, 2147483648
  %v10385 = vor.u32 1.1754944e-38, %v10384
  %v10386 = vsel %vm10383, %v10385, %v10381
  %v10387 = vmul.f32 %v9227, %v10386
  %v10388 = vrcp.pop %v9526
  %v10389 = vmul.f32 %v9526, %v10388
  %v10390 = vsub.f32 1.0, %v10389
  %v10391 = vmul.f32 %v10388, %v10390
  %v10392 = vadd.f32 %v10388, %v10391
  %vm10393 = vweird.f32 %v9526
  %vm10394 = vweird.f32 %v10388
  %vm10395 = vmor %vm10393, %vm10394
  %v10396 = vsel %vm10395, %v10388, %v10392
  %v10397 = vand.u32 2147483647, %v9526
  %vm10398 = vcmp.eq.f32.partialorder %v10397, 8.507059e+37
  %v10399 = vand.u32 %v9526, 2147483648
  %v10400 = vor.u32 1.1754944e-38, %v10399
  %v10401 = vsel %vm10398, %v10400, %v10396
  %v10402 = vmul.f32 %v9229, %v10401
  %v10403 = vrcp.pop %v9529
  %v10404 = vmul.f32 %v9529, %v10403
  %v10405 = vsub.f32 1.0, %v10404
  %v10406 = vmul.f32 %v10403, %v10405
  %v10407 = vadd.f32 %v10403, %v10406
  %vm10408 = vweird.f32 %v9529
  %vm10409 = vweird.f32 %v10403
  %vm10410 = vmor %vm10408, %vm10409
  %v10411 = vsel %vm10410, %v10403, %v10407
  %v10412 = vand.u32 2147483647, %v9529
  %vm10413 = vcmp.eq.f32.partialorder %v10412, 8.507059e+37
  %v10414 = vand.u32 %v9529, 2147483648
  %v10415 = vor.u32 1.1754944e-38, %v10414
  %v10416 = vsel %vm10413, %v10415, %v10411
  %v10417 = vmul.f32 %v9231, %v10416
  %v10418 = vrcp.pop %v9532
  %v10419 = vmul.f32 %v9532, %v10418
  %v10420 = vsub.f32 1.0, %v10419
  %v10421 = vmul.f32 %v10418, %v10420
  %v10422 = vadd.f32 %v10418, %v10421
  %vm10423 = vweird.f32 %v9532
  %vm10424 = vweird.f32 %v10418
  %vm10425 = vmor %vm10423, %vm10424
  %v10426 = vsel %vm10425, %v10418, %v10422
  %v10427 = vand.u32 2147483647, %v9532
  %vm10428 = vcmp.eq.f32.partialorder %v10427, 8.507059e+37
  %v10429 = vand.u32 %v9532, 2147483648
  %v10430 = vor.u32 1.1754944e-38, %v10429
  %v10431 = vsel %vm10428, %v10430, %v10426
  %v10432 = vmul.f32 %v9233, %v10431
  %v10433 = vrcp.pop %v9535
  %v10434 = vmul.f32 %v9535, %v10433
  %v10435 = vsub.f32 1.0, %v10434
  %v10436 = vmul.f32 %v10433, %v10435
  %v10437 = vadd.f32 %v10433, %v10436
  %vm10438 = vweird.f32 %v9535
  %vm10439 = vweird.f32 %v10433
  %vm10440 = vmor %vm10438, %vm10439
  %v10441 = vsel %vm10440, %v10433, %v10437
  %v10442 = vand.u32 2147483647, %v9535
  %vm10443 = vcmp.eq.f32.partialorder %v10442, 8.507059e+37
  %v10444 = vand.u32 %v9535, 2147483648
  %v10445 = vor.u32 1.1754944e-38, %v10444
  %v10446 = vsel %vm10443, %v10445, %v10441
  %v10447 = vmul.f32 %v9235, %v10446
  %v10448 = vrcp.pop %v9538
  %v10449 = vmul.f32 %v9538, %v10448
  %v10450 = vsub.f32 1.0, %v10449
  %v10451 = vmul.f32 %v10448, %v10450
  %v10452 = vadd.f32 %v10448, %v10451
  %vm10453 = vweird.f32 %v9538
  %vm10454 = vweird.f32 %v10448
  %vm10455 = vmor %vm10453, %vm10454
  %v10456 = vsel %vm10455, %v10448, %v10452
  %v10457 = vand.u32 2147483647, %v9538
  %vm10458 = vcmp.eq.f32.partialorder %v10457, 8.507059e+37
  %v10459 = vand.u32 %v9538, 2147483648
  %v10460 = vor.u32 1.1754944e-38, %v10459
  %v10461 = vsel %vm10458, %v10460, %v10456
  %v10462 = vmul.f32 %v9237, %v10461
  %v10463 = vrcp.pop %v9541
  %v10464 = vmul.f32 %v9541, %v10463
  %v10465 = vsub.f32 1.0, %v10464
  %v10466 = vmul.f32 %v10463, %v10465
  %v10467 = vadd.f32 %v10463, %v10466
  %vm10468 = vweird.f32 %v9541
  %vm10469 = vweird.f32 %v10463
  %vm10470 = vmor %vm10468, %vm10469
  %v10471 = vsel %vm10470, %v10463, %v10467
  %v10472 = vand.u32 2147483647, %v9541
  %vm10473 = vcmp.eq.f32.partialorder %v10472, 8.507059e+37
  %v10474 = vand.u32 %v9541, 2147483648
  %v10475 = vor.u32 1.1754944e-38, %v10474
  %v10476 = vsel %vm10473, %v10475, %v10471
  %v10477 = vmul.f32 %v9239, %v10476
  %v10478 = vrcp.pop %v9544
  %v10479 = vmul.f32 %v9544, %v10478
  %v10480 = vsub.f32 1.0, %v10479
  %v10481 = vmul.f32 %v10478, %v10480
  %v10482 = vadd.f32 %v10478, %v10481
  %vm10483 = vweird.f32 %v9544
  %vm10484 = vweird.f32 %v10478
  %vm10485 = vmor %vm10483, %vm10484
  %v10486 = vsel %vm10485, %v10478, %v10482
  %v10487 = vand.u32 2147483647, %v9544
  %vm10488 = vcmp.eq.f32.partialorder %v10487, 8.507059e+37
  %v10489 = vand.u32 %v9544, 2147483648
  %v10490 = vor.u32 1.1754944e-38, %v10489
  %v10491 = vsel %vm10488, %v10490, %v10486
  %v10492 = vmul.f32 %v9241, %v10491
  %v10493 = vrcp.pop %v9547
  %v10494 = vmul.f32 %v9547, %v10493
  %v10495 = vsub.f32 1.0, %v10494
  %v10496 = vmul.f32 %v10493, %v10495
  %v10497 = vadd.f32 %v10493, %v10496
  %vm10498 = vweird.f32 %v9547
  %vm10499 = vweird.f32 %v10493
  %vm10500 = vmor %vm10498, %vm10499
  %v10501 = vsel %vm10500, %v10493, %v10497
  %v10502 = vand.u32 2147483647, %v9547
  %vm10503 = vcmp.eq.f32.partialorder %v10502, 8.507059e+37
  %v10504 = vand.u32 %v9547, 2147483648
  %v10505 = vor.u32 1.1754944e-38, %v10504
  %v10506 = vsel %vm10503, %v10505, %v10501
  %v10507 = vmul.f32 %v9243, %v10506
  %v10508 = vrcp.pop %v9550
  %v10509 = vmul.f32 %v9550, %v10508
  %v10510 = vsub.f32 1.0, %v10509
  %v10511 = vmul.f32 %v10508, %v10510
  %v10512 = vadd.f32 %v10508, %v10511
  %vm10513 = vweird.f32 %v9550
  %vm10514 = vweird.f32 %v10508
  %vm10515 = vmor %vm10513, %vm10514
  %v10516 = vsel %vm10515, %v10508, %v10512
  %v10517 = vand.u32 2147483647, %v9550
  %vm10518 = vcmp.eq.f32.partialorder %v10517, 8.507059e+37
  %v10519 = vand.u32 %v9550, 2147483648
  %v10520 = vor.u32 1.1754944e-38, %v10519
  %v10521 = vsel %vm10518, %v10520, %v10516
  %v10522 = vmul.f32 %v9245, %v10521
  %v10523 = vrcp.pop %v9553
  %v10524 = vmul.f32 %v9553, %v10523
  %v10525 = vsub.f32 1.0, %v10524
  %v10526 = vmul.f32 %v10523, %v10525
  %v10527 = vadd.f32 %v10523, %v10526
  %vm10528 = vweird.f32 %v9553
  %vm10529 = vweird.f32 %v10523
  %vm10530 = vmor %vm10528, %vm10529
  %v10531 = vsel %vm10530, %v10523, %v10527
  %v10532 = vand.u32 2147483647, %v9553
  %vm10533 = vcmp.eq.f32.partialorder %v10532, 8.507059e+37
  %v10534 = vand.u32 %v9553, 2147483648
  %v10535 = vor.u32 1.1754944e-38, %v10534
  %v10536 = vsel %vm10533, %v10535, %v10531
  %v10537 = vmul.f32 %v9247, %v10536
  %v10538 = vrcp.pop %v9556
  %v10539 = vmul.f32 %v9556, %v10538
  %v10540 = vsub.f32 1.0, %v10539
  %v10541 = vmul.f32 %v10538, %v10540
  %v10542 = vadd.f32 %v10538, %v10541
  %vm10543 = vweird.f32 %v9556
  %vm10544 = vweird.f32 %v10538
  %vm10545 = vmor %vm10543, %vm10544
  %v10546 = vsel %vm10545, %v10538, %v10542
  %v10547 = vand.u32 2147483647, %v9556
  %vm10548 = vcmp.eq.f32.partialorder %v10547, 8.507059e+37
  %v10549 = vand.u32 %v9556, 2147483648
  %v10550 = vor.u32 1.1754944e-38, %v10549
  %v10551 = vsel %vm10548, %v10550, %v10546
  %v10552 = vmul.f32 %v9249, %v10551
  %v10553 = vrcp.pop %v9559
  %v10554 = vmul.f32 %v9559, %v10553
  %v10555 = vsub.f32 1.0, %v10554
  %v10556 = vmul.f32 %v10553, %v10555
  %v10557 = vadd.f32 %v10553, %v10556
  %vm10558 = vweird.f32 %v9559
  %vm10559 = vweird.f32 %v10553
  %vm10560 = vmor %vm10558, %vm10559
  %v10561 = vsel %vm10560, %v10553, %v10557
  %v10562 = vand.u32 2147483647, %v9559
  %vm10563 = vcmp.eq.f32.partialorder %v10562, 8.507059e+37
  %v10564 = vand.u32 %v9559, 2147483648
  %v10565 = vor.u32 1.1754944e-38, %v10564
  %v10566 = vsel %vm10563, %v10565, %v10561
  %v10567 = vmul.f32 %v9251, %v10566
  %v10568 = vrcp.pop %v9562
  %v10569 = vmul.f32 %v9562, %v10568
  %v10570 = vsub.f32 1.0, %v10569
  %v10571 = vmul.f32 %v10568, %v10570
  %v10572 = vadd.f32 %v10568, %v10571
  %vm10573 = vweird.f32 %v9562
  %vm10574 = vweird.f32 %v10568
  %vm10575 = vmor %vm10573, %vm10574
  %v10576 = vsel %vm10575, %v10568, %v10572
  %v10577 = vand.u32 2147483647, %v9562
  %vm10578 = vcmp.eq.f32.partialorder %v10577, 8.507059e+37
  %v10579 = vand.u32 %v9562, 2147483648
  %v10580 = vor.u32 1.1754944e-38, %v10579
  %v10581 = vsel %vm10578, %v10580, %v10576
  %v10582 = vmul.f32 %v9253, %v10581
  %v10583 = vrcp.pop %v9565
  %v10584 = vmul.f32 %v9565, %v10583
  %v10585 = vsub.f32 1.0, %v10584
  %v10586 = vmul.f32 %v10583, %v10585
  %v10587 = vadd.f32 %v10583, %v10586
  %vm10588 = vweird.f32 %v9565
  %vm10589 = vweird.f32 %v10583
  %vm10590 = vmor %vm10588, %vm10589
  %v10591 = vsel %vm10590, %v10583, %v10587
  %v10592 = vand.u32 2147483647, %v9565
  %vm10593 = vcmp.eq.f32.partialorder %v10592, 8.507059e+37
  %v10594 = vand.u32 %v9565, 2147483648
  %v10595 = vor.u32 1.1754944e-38, %v10594
  %v10596 = vsel %vm10593, %v10595, %v10591
  %v10597 = vmul.f32 %v9255, %v10596
  %v10598 = vrcp.pop %v9568
  %v10599 = vmul.f32 %v9568, %v10598
  %v10600 = vsub.f32 1.0, %v10599
  %v10601 = vmul.f32 %v10598, %v10600
  %v10602 = vadd.f32 %v10598, %v10601
  %vm10603 = vweird.f32 %v9568
  %vm10604 = vweird.f32 %v10598
  %vm10605 = vmor %vm10603, %vm10604
  %v10606 = vsel %vm10605, %v10598, %v10602
  %v10607 = vand.u32 2147483647, %v9568
  %vm10608 = vcmp.eq.f32.partialorder %v10607, 8.507059e+37
  %v10609 = vand.u32 %v9568, 2147483648
  %v10610 = vor.u32 1.1754944e-38, %v10609
  %v10611 = vsel %vm10608, %v10610, %v10606
  %v10612 = vmul.f32 %v9257, %v10611
  %v10613 = vrcp.pop %v9571
  %v10614 = vmul.f32 %v9571, %v10613
  %v10615 = vsub.f32 1.0, %v10614
  %v10616 = vmul.f32 %v10613, %v10615
  %v10617 = vadd.f32 %v10613, %v10616
  %vm10618 = vweird.f32 %v9571
  %vm10619 = vweird.f32 %v10613
  %vm10620 = vmor %vm10618, %vm10619
  %v10621 = vsel %vm10620, %v10613, %v10617
  %v10622 = vand.u32 2147483647, %v9571
  %vm10623 = vcmp.eq.f32.partialorder %v10622, 8.507059e+37
  %v10624 = vand.u32 %v9571, 2147483648
  %v10625 = vor.u32 1.1754944e-38, %v10624
  %v10626 = vsel %vm10623, %v10625, %v10621
  %v10627 = vmul.f32 %v9259, %v10626
  %v10628 = vrcp.pop %v9574
  %v10629 = vmul.f32 %v9574, %v10628
  %v10630 = vsub.f32 1.0, %v10629
  %v10631 = vmul.f32 %v10628, %v10630
  %v10632 = vadd.f32 %v10628, %v10631
  %vm10633 = vweird.f32 %v9574
  %vm10634 = vweird.f32 %v10628
  %vm10635 = vmor %vm10633, %vm10634
  %v10636 = vsel %vm10635, %v10628, %v10632
  %v10637 = vand.u32 2147483647, %v9574
  %vm10638 = vcmp.eq.f32.partialorder %v10637, 8.507059e+37
  %v10639 = vand.u32 %v9574, 2147483648
  %v10640 = vor.u32 1.1754944e-38, %v10639
  %v10641 = vsel %vm10638, %v10640, %v10636
  %v10642 = vmul.f32 %v9261, %v10641
  %v10643 = vrcp.pop %v9577
  %v10644 = vmul.f32 %v9577, %v10643
  %v10645 = vsub.f32 1.0, %v10644
  %v10646 = vmul.f32 %v10643, %v10645
  %v10647 = vadd.f32 %v10643, %v10646
  %vm10648 = vweird.f32 %v9577
  %vm10649 = vweird.f32 %v10643
  %vm10650 = vmor %vm10648, %vm10649
  %v10651 = vsel %vm10650, %v10643, %v10647
  %v10652 = vand.u32 2147483647, %v9577
  %vm10653 = vcmp.eq.f32.partialorder %v10652, 8.507059e+37
  %v10654 = vand.u32 %v9577, 2147483648
  %v10655 = vor.u32 1.1754944e-38, %v10654
  %v10656 = vsel %vm10653, %v10655, %v10651
  %v10657 = vmul.f32 %v9263, %v10656
  %v10658 = vrcp.pop %v9580
  %v10659 = vmul.f32 %v9580, %v10658
  %v10660 = vsub.f32 1.0, %v10659
  %v10661 = vmul.f32 %v10658, %v10660
  %v10662 = vadd.f32 %v10658, %v10661
  %vm10663 = vweird.f32 %v9580
  %vm10664 = vweird.f32 %v10658
  %vm10665 = vmor %vm10663, %vm10664
  %v10666 = vsel %vm10665, %v10658, %v10662
  %v10667 = vand.u32 2147483647, %v9580
  %vm10668 = vcmp.eq.f32.partialorder %v10667, 8.507059e+37
  %v10669 = vand.u32 %v9580, 2147483648
  %v10670 = vor.u32 1.1754944e-38, %v10669
  %v10671 = vsel %vm10668, %v10670, %v10666
  %v10672 = vmul.f32 %v9265, %v10671
  %v10673 = vrcp.pop %v9583
  %v10674 = vmul.f32 %v9583, %v10673
  %v10675 = vsub.f32 1.0, %v10674
  %v10676 = vmul.f32 %v10673, %v10675
  %v10677 = vadd.f32 %v10673, %v10676
  %vm10678 = vweird.f32 %v9583
  %vm10679 = vweird.f32 %v10673
  %vm10680 = vmor %vm10678, %vm10679
  %v10681 = vsel %vm10680, %v10673, %v10677
  %v10682 = vand.u32 2147483647, %v9583
  %vm10683 = vcmp.eq.f32.partialorder %v10682, 8.507059e+37
  %v10684 = vand.u32 %v9583, 2147483648
  %v10685 = vor.u32 1.1754944e-38, %v10684
  %v10686 = vsel %vm10683, %v10685, %v10681
  %v10687 = vmul.f32 %v9267, %v10686
  %v10688 = vrcp.pop %v9586
  %v10689 = vmul.f32 %v9586, %v10688
  %v10690 = vsub.f32 1.0, %v10689
  %v10691 = vmul.f32 %v10688, %v10690
  %v10692 = vadd.f32 %v10688, %v10691
  %vm10693 = vweird.f32 %v9586
  %vm10694 = vweird.f32 %v10688
  %vm10695 = vmor %vm10693, %vm10694
  %v10696 = vsel %vm10695, %v10688, %v10692
  %v10697 = vand.u32 2147483647, %v9586
  %vm10698 = vcmp.eq.f32.partialorder %v10697, 8.507059e+37
  %v10699 = vand.u32 %v9586, 2147483648
  %v10700 = vor.u32 1.1754944e-38, %v10699
  %v10701 = vsel %vm10698, %v10700, %v10696
  %v10702 = vmul.f32 %v9269, %v10701
  %v10703 = vrcp.pop %v9589
  %v10704 = vmul.f32 %v9589, %v10703
  %v10705 = vsub.f32 1.0, %v10704
  %v10706 = vmul.f32 %v10703, %v10705
  %v10707 = vadd.f32 %v10703, %v10706
  %vm10708 = vweird.f32 %v9589
  %vm10709 = vweird.f32 %v10703
  %vm10710 = vmor %vm10708, %vm10709
  %v10711 = vsel %vm10710, %v10703, %v10707
  %v10712 = vand.u32 2147483647, %v9589
  %vm10713 = vcmp.eq.f32.partialorder %v10712, 8.507059e+37
  %v10714 = vand.u32 %v9589, 2147483648
  %v10715 = vor.u32 1.1754944e-38, %v10714
  %v10716 = vsel %vm10713, %v10715, %v10711
  %v10717 = vmul.f32 %v9271, %v10716
  %v10718 = vrcp.pop %v9592
  %v10719 = vmul.f32 %v9592, %v10718
  %v10720 = vsub.f32 1.0, %v10719
  %v10721 = vmul.f32 %v10718, %v10720
  %v10722 = vadd.f32 %v10718, %v10721
  %vm10723 = vweird.f32 %v9592
  %vm10724 = vweird.f32 %v10718
  %vm10725 = vmor %vm10723, %vm10724
  %v10726 = vsel %vm10725, %v10718, %v10722
  %v10727 = vand.u32 2147483647, %v9592
  %vm10728 = vcmp.eq.f32.partialorder %v10727, 8.507059e+37
  %v10729 = vand.u32 %v9592, 2147483648
  %v10730 = vor.u32 1.1754944e-38, %v10729
  %v10731 = vsel %vm10728, %v10730, %v10726
  %v10732 = vmul.f32 %v9273, %v10731
  %v10733 = vrcp.pop %v9595
  %v10734 = vmul.f32 %v9595, %v10733
  %v10735 = vsub.f32 1.0, %v10734
  %v10736 = vmul.f32 %v10733, %v10735
  %v10737 = vadd.f32 %v10733, %v10736
  %vm10738 = vweird.f32 %v9595
  %vm10739 = vweird.f32 %v10733
  %vm10740 = vmor %vm10738, %vm10739
  %v10741 = vsel %vm10740, %v10733, %v10737
  %v10742 = vand.u32 2147483647, %v9595
  %vm10743 = vcmp.eq.f32.partialorder %v10742, 8.507059e+37
  %v10744 = vand.u32 %v9595, 2147483648
  %v10745 = vor.u32 1.1754944e-38, %v10744
  %v10746 = vsel %vm10743, %v10745, %v10741
  %v10747 = vmul.f32 %v9275, %v10746
  %v10748 = vrcp.pop %v9598
  %v10749 = vmul.f32 %v9598, %v10748
  %v10750 = vsub.f32 1.0, %v10749
  %v10751 = vmul.f32 %v10748, %v10750
  %v10752 = vadd.f32 %v10748, %v10751
  %vm10753 = vweird.f32 %v9598
  %vm10754 = vweird.f32 %v10748
  %vm10755 = vmor %vm10753, %vm10754
  %v10756 = vsel %vm10755, %v10748, %v10752
  %v10757 = vand.u32 2147483647, %v9598
  %vm10758 = vcmp.eq.f32.partialorder %v10757, 8.507059e+37
  %v10759 = vand.u32 %v9598, 2147483648
  %v10760 = vor.u32 1.1754944e-38, %v10759
  %v10761 = vsel %vm10758, %v10760, %v10756
  %v10762 = vmul.f32 %v9277, %v10761
  %v10763 = vrcp.pop %v9601
  %v10764 = vmul.f32 %v9601, %v10763
  %v10765 = vsub.f32 1.0, %v10764
  %v10766 = vmul.f32 %v10763, %v10765
  %v10767 = vadd.f32 %v10763, %v10766
  %vm10768 = vweird.f32 %v9601
  %vm10769 = vweird.f32 %v10763
  %vm10770 = vmor %vm10768, %vm10769
  %v10771 = vsel %vm10770, %v10763, %v10767
  %v10772 = vand.u32 2147483647, %v9601
  %vm10773 = vcmp.eq.f32.partialorder %v10772, 8.507059e+37
  %v10774 = vand.u32 %v9601, 2147483648
  %v10775 = vor.u32 1.1754944e-38, %v10774
  %v10776 = vsel %vm10773, %v10775, %v10771
  %v10777 = vmul.f32 %v9279, %v10776
  %v10778 = vrcp.pop %v9604
  %v10779 = vmul.f32 %v9604, %v10778
  %v10780 = vsub.f32 1.0, %v10779
  %v10781 = vmul.f32 %v10778, %v10780
  %v10782 = vadd.f32 %v10778, %v10781
  %vm10783 = vweird.f32 %v9604
  %vm10784 = vweird.f32 %v10778
  %vm10785 = vmor %vm10783, %vm10784
  %v10786 = vsel %vm10785, %v10778, %v10782
  %v10787 = vand.u32 2147483647, %v9604
  %vm10788 = vcmp.eq.f32.partialorder %v10787, 8.507059e+37
  %v10789 = vand.u32 %v9604, 2147483648
  %v10790 = vor.u32 1.1754944e-38, %v10789
  %v10791 = vsel %vm10788, %v10790, %v10786
  %v10792 = vmul.f32 %v9281, %v10791
  %v10793 = vrcp.pop %v9607
  %v10794 = vmul.f32 %v9607, %v10793
  %v10795 = vsub.f32 1.0, %v10794
  %v10796 = vmul.f32 %v10793, %v10795
  %v10797 = vadd.f32 %v10793, %v10796
  %vm10798 = vweird.f32 %v9607
  %vm10799 = vweird.f32 %v10793
  %vm10800 = vmor %vm10798, %vm10799
  %v10801 = vsel %vm10800, %v10793, %v10797
  %v10802 = vand.u32 2147483647, %v9607
  %vm10803 = vcmp.eq.f32.partialorder %v10802, 8.507059e+37
  %v10804 = vand.u32 %v9607, 2147483648
  %v10805 = vor.u32 1.1754944e-38, %v10804
  %v10806 = vsel %vm10803, %v10805, %v10801
  %v10807 = vmul.f32 %v9283, %v10806
  %v10808 = vrcp.pop %v9610
  %v10809 = vmul.f32 %v9610, %v10808
  %v10810 = vsub.f32 1.0, %v10809
  %v10811 = vmul.f32 %v10808, %v10810
  %v10812 = vadd.f32 %v10808, %v10811
  %vm10813 = vweird.f32 %v9610
  %vm10814 = vweird.f32 %v10808
  %vm10815 = vmor %vm10813, %vm10814
  %v10816 = vsel %vm10815, %v10808, %v10812
  %v10817 = vand.u32 2147483647, %v9610
  %vm10818 = vcmp.eq.f32.partialorder %v10817, 8.507059e+37
  %v10819 = vand.u32 %v9610, 2147483648
  %v10820 = vor.u32 1.1754944e-38, %v10819
  %v10821 = vsel %vm10818, %v10820, %v10816
  %v10822 = vmul.f32 %v9285, %v10821
  %v10823 = vrcp.pop %v9613
  %v10824 = vmul.f32 %v9613, %v10823
  %v10825 = vsub.f32 1.0, %v10824
  %v10826 = vmul.f32 %v10823, %v10825
  %v10827 = vadd.f32 %v10823, %v10826
  %vm10828 = vweird.f32 %v9613
  %vm10829 = vweird.f32 %v10823
  %vm10830 = vmor %vm10828, %vm10829
  %v10831 = vsel %vm10830, %v10823, %v10827
  %v10832 = vand.u32 2147483647, %v9613
  %vm10833 = vcmp.eq.f32.partialorder %v10832, 8.507059e+37
  %v10834 = vand.u32 %v9613, 2147483648
  %v10835 = vor.u32 1.1754944e-38, %v10834
  %v10836 = vsel %vm10833, %v10835, %v10831
  %v10837 = vmul.f32 %v9287, %v10836
  %v10838 = vrcp.pop %v9616
  %v10839 = vmul.f32 %v9616, %v10838
  %v10840 = vsub.f32 1.0, %v10839
  %v10841 = vmul.f32 %v10838, %v10840
  %v10842 = vadd.f32 %v10838, %v10841
  %vm10843 = vweird.f32 %v9616
  %vm10844 = vweird.f32 %v10838
  %vm10845 = vmor %vm10843, %vm10844
  %v10846 = vsel %vm10845, %v10838, %v10842
  %v10847 = vand.u32 2147483647, %v9616
  %vm10848 = vcmp.eq.f32.partialorder %v10847, 8.507059e+37
  %v10849 = vand.u32 %v9616, 2147483648
  %v10850 = vor.u32 1.1754944e-38, %v10849
  %v10851 = vsel %vm10848, %v10850, %v10846
  %v10852 = vmul.f32 %v9289, %v10851
  %v10853 = vrcp.pop %v9619
  %v10854 = vmul.f32 %v9619, %v10853
  %v10855 = vsub.f32 1.0, %v10854
  %v10856 = vmul.f32 %v10853, %v10855
  %v10857 = vadd.f32 %v10853, %v10856
  %vm10858 = vweird.f32 %v9619
  %vm10859 = vweird.f32 %v10853
  %vm10860 = vmor %vm10858, %vm10859
  %v10861 = vsel %vm10860, %v10853, %v10857
  %v10862 = vand.u32 2147483647, %v9619
  %vm10863 = vcmp.eq.f32.partialorder %v10862, 8.507059e+37
  %v10864 = vand.u32 %v9619, 2147483648
  %v10865 = vor.u32 1.1754944e-38, %v10864
  %v10866 = vsel %vm10863, %v10865, %v10861
  %v10867 = vmul.f32 %v9291, %v10866
  %v10868 = vrcp.pop %v9622
  %v10869 = vmul.f32 %v9622, %v10868
  %v10870 = vsub.f32 1.0, %v10869
  %v10871 = vmul.f32 %v10868, %v10870
  %v10872 = vadd.f32 %v10868, %v10871
  %vm10873 = vweird.f32 %v9622
  %vm10874 = vweird.f32 %v10868
  %vm10875 = vmor %vm10873, %vm10874
  %v10876 = vsel %vm10875, %v10868, %v10872
  %v10877 = vand.u32 2147483647, %v9622
  %vm10878 = vcmp.eq.f32.partialorder %v10877, 8.507059e+37
  %v10879 = vand.u32 %v9622, 2147483648
  %v10880 = vor.u32 1.1754944e-38, %v10879
  %v10881 = vsel %vm10878, %v10880, %v10876
  %v10882 = vmul.f32 %v9293, %v10881
  %v10883 = vrcp.pop %v9625
  %v10884 = vmul.f32 %v9625, %v10883
  %v10885 = vsub.f32 1.0, %v10884
  %v10886 = vmul.f32 %v10883, %v10885
  %v10887 = vadd.f32 %v10883, %v10886
  %vm10888 = vweird.f32 %v9625
  %vm10889 = vweird.f32 %v10883
  %vm10890 = vmor %vm10888, %vm10889
  %v10891 = vsel %vm10890, %v10883, %v10887
  %v10892 = vand.u32 2147483647, %v9625
  %vm10893 = vcmp.eq.f32.partialorder %v10892, 8.507059e+37
  %v10894 = vand.u32 %v9625, 2147483648
  %v10895 = vor.u32 1.1754944e-38, %v10894
  %v10896 = vsel %vm10893, %v10895, %v10891
  %v10897 = vmul.f32 %v9295, %v10896
  %v10898 = vrcp.pop %v9628
  %v10899 = vmul.f32 %v9628, %v10898
  %v10900 = vsub.f32 1.0, %v10899
  %v10901 = vmul.f32 %v10898, %v10900
  %v10902 = vadd.f32 %v10898, %v10901
  %vm10903 = vweird.f32 %v9628
  %vm10904 = vweird.f32 %v10898
  %vm10905 = vmor %vm10903, %vm10904
  %v10906 = vsel %vm10905, %v10898, %v10902
  %v10907 = vand.u32 2147483647, %v9628
  %vm10908 = vcmp.eq.f32.partialorder %v10907, 8.507059e+37
  %v10909 = vand.u32 %v9628, 2147483648
  %v10910 = vor.u32 1.1754944e-38, %v10909
  %v10911 = vsel %vm10908, %v10910, %v10906
  %v10912 = vmul.f32 %v9297, %v10911
  %v10913 = vrcp.pop %v9631
  %v10914 = vmul.f32 %v9631, %v10913
  %v10915 = vsub.f32 1.0, %v10914
  %v10916 = vmul.f32 %v10913, %v10915
  %v10917 = vadd.f32 %v10913, %v10916
  %vm10918 = vweird.f32 %v9631
  %vm10919 = vweird.f32 %v10913
  %vm10920 = vmor %vm10918, %vm10919
  %v10921 = vsel %vm10920, %v10913, %v10917
  %v10922 = vand.u32 2147483647, %v9631
  %vm10923 = vcmp.eq.f32.partialorder %v10922, 8.507059e+37
  %v10924 = vand.u32 %v9631, 2147483648
  %v10925 = vor.u32 1.1754944e-38, %v10924
  %v10926 = vsel %vm10923, %v10925, %v10921
  %v10927 = vmul.f32 %v9299, %v10926
  %v10928 = vrcp.pop %v9634
  %v10929 = vmul.f32 %v9634, %v10928
  %v10930 = vsub.f32 1.0, %v10929
  %v10931 = vmul.f32 %v10928, %v10930
  %v10932 = vadd.f32 %v10928, %v10931
  %vm10933 = vweird.f32 %v9634
  %vm10934 = vweird.f32 %v10928
  %vm10935 = vmor %vm10933, %vm10934
  %v10936 = vsel %vm10935, %v10928, %v10932
  %v10937 = vand.u32 2147483647, %v9634
  %vm10938 = vcmp.eq.f32.partialorder %v10937, 8.507059e+37
  %v10939 = vand.u32 %v9634, 2147483648
  %v10940 = vor.u32 1.1754944e-38, %v10939
  %v10941 = vsel %vm10938, %v10940, %v10936
  %v10942 = vmul.f32 %v9301, %v10941
  %v10943 = vrcp.pop %v9637
  %v10944 = vmul.f32 %v9637, %v10943
  %v10945 = vsub.f32 1.0, %v10944
  %v10946 = vmul.f32 %v10943, %v10945
  %v10947 = vadd.f32 %v10943, %v10946
  %vm10948 = vweird.f32 %v9637
  %vm10949 = vweird.f32 %v10943
  %vm10950 = vmor %vm10948, %vm10949
  %v10951 = vsel %vm10950, %v10943, %v10947
  %v10952 = vand.u32 2147483647, %v9637
  %vm10953 = vcmp.eq.f32.partialorder %v10952, 8.507059e+37
  %v10954 = vand.u32 %v9637, 2147483648
  %v10955 = vor.u32 1.1754944e-38, %v10954
  %v10956 = vsel %vm10953, %v10955, %v10951
  %v10957 = vmul.f32 %v9303, %v10956
  %v10958 = vrcp.pop %v9640
  %v10959 = vmul.f32 %v9640, %v10958
  %v10960 = vsub.f32 1.0, %v10959
  %v10961 = vmul.f32 %v10958, %v10960
  %v10962 = vadd.f32 %v10958, %v10961
  %vm10963 = vweird.f32 %v9640
  %vm10964 = vweird.f32 %v10958
  %vm10965 = vmor %vm10963, %vm10964
  %v10966 = vsel %vm10965, %v10958, %v10962
  %v10967 = vand.u32 2147483647, %v9640
  %vm10968 = vcmp.eq.f32.partialorder %v10967, 8.507059e+37
  %v10969 = vand.u32 %v9640, 2147483648
  %v10970 = vor.u32 1.1754944e-38, %v10969
  %v10971 = vsel %vm10968, %v10970, %v10966
  %v10972 = vmul.f32 %v9305, %v10971
  %v10973 = vrcp.pop %v9643
  %v10974 = vmul.f32 %v9643, %v10973
  %v10975 = vsub.f32 1.0, %v10974
  %v10976 = vmul.f32 %v10973, %v10975
  %v10977 = vadd.f32 %v10973, %v10976
  %vm10978 = vweird.f32 %v9643
  %vm10979 = vweird.f32 %v10973
  %vm10980 = vmor %vm10978, %vm10979
  %v10981 = vsel %vm10980, %v10973, %v10977
  %v10982 = vand.u32 2147483647, %v9643
  %vm10983 = vcmp.eq.f32.partialorder %v10982, 8.507059e+37
  %v10984 = vand.u32 %v9643, 2147483648
  %v10985 = vor.u32 1.1754944e-38, %v10984
  %v10986 = vsel %vm10983, %v10985, %v10981
  %v10987 = vmul.f32 %v9307, %v10986
  %v10988 = vrcp.pop %v9646
  %v10989 = vmul.f32 %v9646, %v10988
  %v10990 = vsub.f32 1.0, %v10989
  %v10991 = vmul.f32 %v10988, %v10990
  %v10992 = vadd.f32 %v10988, %v10991
  %vm10993 = vweird.f32 %v9646
  %vm10994 = vweird.f32 %v10988
  %vm10995 = vmor %vm10993, %vm10994
  %v10996 = vsel %vm10995, %v10988, %v10992
  %v10997 = vand.u32 2147483647, %v9646
  %vm10998 = vcmp.eq.f32.partialorder %v10997, 8.507059e+37
  %v10999 = vand.u32 %v9646, 2147483648
  %v11000 = vor.u32 1.1754944e-38, %v10999
  %v11001 = vsel %vm10998, %v11000, %v10996
  %v11002 = vmul.f32 %v9309, %v11001
  %v11003 = vrcp.pop %v9649
  %v11004 = vmul.f32 %v9649, %v11003
  %v11005 = vsub.f32 1.0, %v11004
  %v11006 = vmul.f32 %v11003, %v11005
  %v11007 = vadd.f32 %v11003, %v11006
  %vm11008 = vweird.f32 %v9649
  %vm11009 = vweird.f32 %v11003
  %vm11010 = vmor %vm11008, %vm11009
  %v11011 = vsel %vm11010, %v11003, %v11007
  %v11012 = vand.u32 2147483647, %v9649
  %vm11013 = vcmp.eq.f32.partialorder %v11012, 8.507059e+37
  %v11014 = vand.u32 %v9649, 2147483648
  %v11015 = vor.u32 1.1754944e-38, %v11014
  %v11016 = vsel %vm11013, %v11015, %v11011
  %v11017 = vmul.f32 %v9311, %v11016
  %v11018 = vrcp.pop %v9652
  %v11019 = vmul.f32 %v9652, %v11018
  %v11020 = vsub.f32 1.0, %v11019
  %v11021 = vmul.f32 %v11018, %v11020
  %v11022 = vadd.f32 %v11018, %v11021
  %vm11023 = vweird.f32 %v9652
  %vm11024 = vweird.f32 %v11018
  %vm11025 = vmor %vm11023, %vm11024
  %v11026 = vsel %vm11025, %v11018, %v11022
  %v11027 = vand.u32 2147483647, %v9652
  %vm11028 = vcmp.eq.f32.partialorder %v11027, 8.507059e+37
  %v11029 = vand.u32 %v9652, 2147483648
  %v11030 = vor.u32 1.1754944e-38, %v11029
  %v11031 = vsel %vm11028, %v11030, %v11026
  %v11032 = vmul.f32 %v9313, %v11031
  %v11033 = vrcp.pop %v9655
  %v11034 = vmul.f32 %v9655, %v11033
  %v11035 = vsub.f32 1.0, %v11034
  %v11036 = vmul.f32 %v11033, %v11035
  %v11037 = vadd.f32 %v11033, %v11036
  %vm11038 = vweird.f32 %v9655
  %vm11039 = vweird.f32 %v11033
  %vm11040 = vmor %vm11038, %vm11039
  %v11041 = vsel %vm11040, %v11033, %v11037
  %v11042 = vand.u32 2147483647, %v9655
  %vm11043 = vcmp.eq.f32.partialorder %v11042, 8.507059e+37
  %v11044 = vand.u32 %v9655, 2147483648
  %v11045 = vor.u32 1.1754944e-38, %v11044
  %v11046 = vsel %vm11043, %v11045, %v11041
  %v11047 = vmul.f32 %v9315, %v11046
  %v11048 = vrcp.pop %v9658
  %v11049 = vmul.f32 %v9658, %v11048
  %v11050 = vsub.f32 1.0, %v11049
  %v11051 = vmul.f32 %v11048, %v11050
  %v11052 = vadd.f32 %v11048, %v11051
  %vm11053 = vweird.f32 %v9658
  %vm11054 = vweird.f32 %v11048
  %vm11055 = vmor %vm11053, %vm11054
  %v11056 = vsel %vm11055, %v11048, %v11052
  %v11057 = vand.u32 2147483647, %v9658
  %vm11058 = vcmp.eq.f32.partialorder %v11057, 8.507059e+37
  %v11059 = vand.u32 %v9658, 2147483648
  %v11060 = vor.u32 1.1754944e-38, %v11059
  %v11061 = vsel %vm11058, %v11060, %v11056
  %v11062 = vmul.f32 %v9317, %v11061
  %v11063 = vrcp.pop %v9661
  %v11064 = vmul.f32 %v9661, %v11063
  %v11065 = vsub.f32 1.0, %v11064
  %v11066 = vmul.f32 %v11063, %v11065
  %v11067 = vadd.f32 %v11063, %v11066
  %vm11068 = vweird.f32 %v9661
  %vm11069 = vweird.f32 %v11063
  %vm11070 = vmor %vm11068, %vm11069
  %v11071 = vsel %vm11070, %v11063, %v11067
  %v11072 = vand.u32 2147483647, %v9661
  %vm11073 = vcmp.eq.f32.partialorder %v11072, 8.507059e+37
  %v11074 = vand.u32 %v9661, 2147483648
  %v11075 = vor.u32 1.1754944e-38, %v11074
  %v11076 = vsel %vm11073, %v11075, %v11071
  %v11077 = vmul.f32 %v9319, %v11076
  %v11078 = vrcp.pop %v9664
  %v11079 = vmul.f32 %v9664, %v11078
  %v11080 = vsub.f32 1.0, %v11079
  %v11081 = vmul.f32 %v11078, %v11080
  %v11082 = vadd.f32 %v11078, %v11081
  %vm11083 = vweird.f32 %v9664
  %vm11084 = vweird.f32 %v11078
  %vm11085 = vmor %vm11083, %vm11084
  %v11086 = vsel %vm11085, %v11078, %v11082
  %v11087 = vand.u32 2147483647, %v9664
  %vm11088 = vcmp.eq.f32.partialorder %v11087, 8.507059e+37
  %v11089 = vand.u32 %v9664, 2147483648
  %v11090 = vor.u32 1.1754944e-38, %v11089
  %v11091 = vsel %vm11088, %v11090, %v11086
  %v11092 = vmul.f32 %v9321, %v11091
  %v11093 = vrcp.pop %v9667
  %v11094 = vmul.f32 %v9667, %v11093
  %v11095 = vsub.f32 1.0, %v11094
  %v11096 = vmul.f32 %v11093, %v11095
  %v11097 = vadd.f32 %v11093, %v11096
  %vm11098 = vweird.f32 %v9667
  %vm11099 = vweird.f32 %v11093
  %vm11100 = vmor %vm11098, %vm11099
  %v11101 = vsel %vm11100, %v11093, %v11097
  %v11102 = vand.u32 2147483647, %v9667
  %vm11103 = vcmp.eq.f32.partialorder %v11102, 8.507059e+37
  %v11104 = vand.u32 %v9667, 2147483648
  %v11105 = vor.u32 1.1754944e-38, %v11104
  %v11106 = vsel %vm11103, %v11105, %v11101
  %v11107 = vmul.f32 %v9323, %v11106
  %v11108 = vrcp.pop %v9670
  %v11109 = vmul.f32 %v9670, %v11108
  %v11110 = vsub.f32 1.0, %v11109
  %v11111 = vmul.f32 %v11108, %v11110
  %v11112 = vadd.f32 %v11108, %v11111
  %vm11113 = vweird.f32 %v9670
  %vm11114 = vweird.f32 %v11108
  %vm11115 = vmor %vm11113, %vm11114
  %v11116 = vsel %vm11115, %v11108, %v11112
  %v11117 = vand.u32 2147483647, %v9670
  %vm11118 = vcmp.eq.f32.partialorder %v11117, 8.507059e+37
  %v11119 = vand.u32 %v9670, 2147483648
  %v11120 = vor.u32 1.1754944e-38, %v11119
  %v11121 = vsel %vm11118, %v11120, %v11116
  %v11122 = vmul.f32 %v9325, %v11121
  %v11123 = vrcp.pop %v9673
  %v11124 = vmul.f32 %v9673, %v11123
  %v11125 = vsub.f32 1.0, %v11124
  %v11126 = vmul.f32 %v11123, %v11125
  %v11127 = vadd.f32 %v11123, %v11126
  %vm11128 = vweird.f32 %v9673
  %vm11129 = vweird.f32 %v11123
  %vm11130 = vmor %vm11128, %vm11129
  %v11131 = vsel %vm11130, %v11123, %v11127
  %v11132 = vand.u32 2147483647, %v9673
  %vm11133 = vcmp.eq.f32.partialorder %v11132, 8.507059e+37
  %v11134 = vand.u32 %v9673, 2147483648
  %v11135 = vor.u32 1.1754944e-38, %v11134
  %v11136 = vsel %vm11133, %v11135, %v11131
  %v11137 = vmul.f32 %v9327, %v11136
  %v11138 = vrcp.pop %v9676
  %v11139 = vmul.f32 %v9676, %v11138
  %v11140 = vsub.f32 1.0, %v11139
  %v11141 = vmul.f32 %v11138, %v11140
  %v11142 = vadd.f32 %v11138, %v11141
  %vm11143 = vweird.f32 %v9676
  %vm11144 = vweird.f32 %v11138
  %vm11145 = vmor %vm11143, %vm11144
  %v11146 = vsel %vm11145, %v11138, %v11142
  %v11147 = vand.u32 2147483647, %v9676
  %vm11148 = vcmp.eq.f32.partialorder %v11147, 8.507059e+37
  %v11149 = vand.u32 %v9676, 2147483648
  %v11150 = vor.u32 1.1754944e-38, %v11149
  %v11151 = vsel %vm11148, %v11150, %v11146
  %v11152 = vmul.f32 %v9329, %v11151
  %v11153 = vrcp.pop %v9679
  %v11154 = vmul.f32 %v9679, %v11153
  %v11155 = vsub.f32 1.0, %v11154
  %v11156 = vmul.f32 %v11153, %v11155
  %v11157 = vadd.f32 %v11153, %v11156
  %vm11158 = vweird.f32 %v9679
  %vm11159 = vweird.f32 %v11153
  %vm11160 = vmor %vm11158, %vm11159
  %v11161 = vsel %vm11160, %v11153, %v11157
  %v11162 = vand.u32 2147483647, %v9679
  %vm11163 = vcmp.eq.f32.partialorder %v11162, 8.507059e+37
  %v11164 = vand.u32 %v9679, 2147483648
  %v11165 = vor.u32 1.1754944e-38, %v11164
  %v11166 = vsel %vm11163, %v11165, %v11161
  %v11167 = vmul.f32 %v9331, %v11166
  %v11168 = vrcp.pop %v9682
  %v11169 = vmul.f32 %v9682, %v11168
  %v11170 = vsub.f32 1.0, %v11169
  %v11171 = vmul.f32 %v11168, %v11170
  %v11172 = vadd.f32 %v11168, %v11171
  %vm11173 = vweird.f32 %v9682
  %vm11174 = vweird.f32 %v11168
  %vm11175 = vmor %vm11173, %vm11174
  %v11176 = vsel %vm11175, %v11168, %v11172
  %v11177 = vand.u32 2147483647, %v9682
  %vm11178 = vcmp.eq.f32.partialorder %v11177, 8.507059e+37
  %v11179 = vand.u32 %v9682, 2147483648
  %v11180 = vor.u32 1.1754944e-38, %v11179
  %v11181 = vsel %vm11178, %v11180, %v11176
  %v11182 = vmul.f32 %v9333, %v11181
  %v11183 = vrcp.pop %v9685
  %v11184 = vmul.f32 %v9685, %v11183
  %v11185 = vsub.f32 1.0, %v11184
  %v11186 = vmul.f32 %v11183, %v11185
  %v11187 = vadd.f32 %v11183, %v11186
  %vm11188 = vweird.f32 %v9685
  %vm11189 = vweird.f32 %v11183
  %vm11190 = vmor %vm11188, %vm11189
  %v11191 = vsel %vm11190, %v11183, %v11187
  %v11192 = vand.u32 2147483647, %v9685
  %vm11193 = vcmp.eq.f32.partialorder %v11192, 8.507059e+37
  %v11194 = vand.u32 %v9685, 2147483648
  %v11195 = vor.u32 1.1754944e-38, %v11194
  %v11196 = vsel %vm11193, %v11195, %v11191
  %v11197 = vmul.f32 %v9335, %v11196
  %v11198 = vrcp.pop %v9688
  %v11199 = vmul.f32 %v9688, %v11198
  %v11200 = vsub.f32 1.0, %v11199
  %v11201 = vmul.f32 %v11198, %v11200
  %v11202 = vadd.f32 %v11198, %v11201
  %vm11203 = vweird.f32 %v9688
  %vm11204 = vweird.f32 %v11198
  %vm11205 = vmor %vm11203, %vm11204
  %v11206 = vsel %vm11205, %v11198, %v11202
  %v11207 = vand.u32 2147483647, %v9688
  %vm11208 = vcmp.eq.f32.partialorder %v11207, 8.507059e+37
  %v11209 = vand.u32 %v9688, 2147483648
  %v11210 = vor.u32 1.1754944e-38, %v11209
  %v11211 = vsel %vm11208, %v11210, %v11206
  %v11212 = vmul.f32 %v9337, %v11211
  %v11213 = vrcp.pop %v9691
  %v11214 = vmul.f32 %v9691, %v11213
  %v11215 = vsub.f32 1.0, %v11214
  %v11216 = vmul.f32 %v11213, %v11215
  %v11217 = vadd.f32 %v11213, %v11216
  %vm11218 = vweird.f32 %v9691
  %vm11219 = vweird.f32 %v11213
  %vm11220 = vmor %vm11218, %vm11219
  %v11221 = vsel %vm11220, %v11213, %v11217
  %v11222 = vand.u32 2147483647, %v9691
  %vm11223 = vcmp.eq.f32.partialorder %v11222, 8.507059e+37
  %v11224 = vand.u32 %v9691, 2147483648
  %v11225 = vor.u32 1.1754944e-38, %v11224
  %v11226 = vsel %vm11223, %v11225, %v11221
  %v11227 = vmul.f32 %v9339, %v11226
  %v11228 = vrcp.pop %v9694
  %v11229 = vmul.f32 %v9694, %v11228
  %v11230 = vsub.f32 1.0, %v11229
  %v11231 = vmul.f32 %v11228, %v11230
  %v11232 = vadd.f32 %v11228, %v11231
  %vm11233 = vweird.f32 %v9694
  %vm11234 = vweird.f32 %v11228
  %vm11235 = vmor %vm11233, %vm11234
  %v11236 = vsel %vm11235, %v11228, %v11232
  %v11237 = vand.u32 2147483647, %v9694
  %vm11238 = vcmp.eq.f32.partialorder %v11237, 8.507059e+37
  %v11239 = vand.u32 %v9694, 2147483648
  %v11240 = vor.u32 1.1754944e-38, %v11239
  %v11241 = vsel %vm11238, %v11240, %v11236
  %v11242 = vmul.f32 %v9341, %v11241
  %v11243 = vrcp.pop %v9697
  %v11244 = vmul.f32 %v9697, %v11243
  %v11245 = vsub.f32 1.0, %v11244
  %v11246 = vmul.f32 %v11243, %v11245
  %v11247 = vadd.f32 %v11243, %v11246
  %vm11248 = vweird.f32 %v9697
  %vm11249 = vweird.f32 %v11243
  %vm11250 = vmor %vm11248, %vm11249
  %v11251 = vsel %vm11250, %v11243, %v11247
  %v11252 = vand.u32 2147483647, %v9697
  %vm11253 = vcmp.eq.f32.partialorder %v11252, 8.507059e+37
  %v11254 = vand.u32 %v9697, 2147483648
  %v11255 = vor.u32 1.1754944e-38, %v11254
  %v11256 = vsel %vm11253, %v11255, %v11251
  %v11257 = vmul.f32 %v9343, %v11256
  %v11258 = vrcp.pop %v9700
  %v11259 = vmul.f32 %v9700, %v11258
  %v11260 = vsub.f32 1.0, %v11259
  %v11261 = vmul.f32 %v11258, %v11260
  %v11262 = vadd.f32 %v11258, %v11261
  %vm11263 = vweird.f32 %v9700
  %vm11264 = vweird.f32 %v11258
  %vm11265 = vmor %vm11263, %vm11264
  %v11266 = vsel %vm11265, %v11258, %v11262
  %v11267 = vand.u32 2147483647, %v9700
  %vm11268 = vcmp.eq.f32.partialorder %v11267, 8.507059e+37
  %v11269 = vand.u32 %v9700, 2147483648
  %v11270 = vor.u32 1.1754944e-38, %v11269
  %v11271 = vsel %vm11268, %v11270, %v11266
  %v11272 = vmul.f32 %v9345, %v11271
  %v11273 = vrcp.pop %v9703
  %v11274 = vmul.f32 %v9703, %v11273
  %v11275 = vsub.f32 1.0, %v11274
  %v11276 = vmul.f32 %v11273, %v11275
  %v11277 = vadd.f32 %v11273, %v11276
  %vm11278 = vweird.f32 %v9703
  %vm11279 = vweird.f32 %v11273
  %vm11280 = vmor %vm11278, %vm11279
  %v11281 = vsel %vm11280, %v11273, %v11277
  %v11282 = vand.u32 2147483647, %v9703
  %vm11283 = vcmp.eq.f32.partialorder %v11282, 8.507059e+37
  %v11284 = vand.u32 %v9703, 2147483648
  %v11285 = vor.u32 1.1754944e-38, %v11284
  %v11286 = vsel %vm11283, %v11285, %v11281
  %v11287 = vmul.f32 %v9347, %v11286
  %v11288 = vrcp.pop %v9706
  %v11289 = vmul.f32 %v9706, %v11288
  %v11290 = vsub.f32 1.0, %v11289
  %v11291 = vmul.f32 %v11288, %v11290
  %v11292 = vadd.f32 %v11288, %v11291
  %vm11293 = vweird.f32 %v9706
  %vm11294 = vweird.f32 %v11288
  %vm11295 = vmor %vm11293, %vm11294
  %v11296 = vsel %vm11295, %v11288, %v11292
  %v11297 = vand.u32 2147483647, %v9706
  %vm11298 = vcmp.eq.f32.partialorder %v11297, 8.507059e+37
  %v11299 = vand.u32 %v9706, 2147483648
  %v11300 = vor.u32 1.1754944e-38, %v11299
  %v11301 = vsel %vm11298, %v11300, %v11296
  %v11302 = vmul.f32 %v9349, %v11301
  %v11303 = vrcp.pop %v9709
  %v11304 = vmul.f32 %v9709, %v11303
  %v11305 = vsub.f32 1.0, %v11304
  %v11306 = vmul.f32 %v11303, %v11305
  %v11307 = vadd.f32 %v11303, %v11306
  %vm11308 = vweird.f32 %v9709
  %vm11309 = vweird.f32 %v11303
  %vm11310 = vmor %vm11308, %vm11309
  %v11311 = vsel %vm11310, %v11303, %v11307
  %v11312 = vand.u32 2147483647, %v9709
  %vm11313 = vcmp.eq.f32.partialorder %v11312, 8.507059e+37
  %v11314 = vand.u32 %v9709, 2147483648
  %v11315 = vor.u32 1.1754944e-38, %v11314
  %v11316 = vsel %vm11313, %v11315, %v11311
  %v11317 = vmul.f32 %v9351, %v11316
  %v11318 = vrcp.pop %v9712
  %v11319 = vmul.f32 %v9712, %v11318
  %v11320 = vsub.f32 1.0, %v11319
  %v11321 = vmul.f32 %v11318, %v11320
  %v11322 = vadd.f32 %v11318, %v11321
  %vm11323 = vweird.f32 %v9712
  %vm11324 = vweird.f32 %v11318
  %vm11325 = vmor %vm11323, %vm11324
  %v11326 = vsel %vm11325, %v11318, %v11322
  %v11327 = vand.u32 2147483647, %v9712
  %vm11328 = vcmp.eq.f32.partialorder %v11327, 8.507059e+37
  %v11329 = vand.u32 %v9712, 2147483648
  %v11330 = vor.u32 1.1754944e-38, %v11329
  %v11331 = vsel %vm11328, %v11330, %v11326
  %v11332 = vmul.f32 %v9353, %v11331
  %v11333 = vrcp.pop %v9715
  %v11334 = vmul.f32 %v9715, %v11333
  %v11335 = vsub.f32 1.0, %v11334
  %v11336 = vmul.f32 %v11333, %v11335
  %v11337 = vadd.f32 %v11333, %v11336
  %vm11338 = vweird.f32 %v9715
  %vm11339 = vweird.f32 %v11333
  %vm11340 = vmor %vm11338, %vm11339
  %v11341 = vsel %vm11340, %v11333, %v11337
  %v11342 = vand.u32 2147483647, %v9715
  %vm11343 = vcmp.eq.f32.partialorder %v11342, 8.507059e+37
  %v11344 = vand.u32 %v9715, 2147483648
  %v11345 = vor.u32 1.1754944e-38, %v11344
  %v11346 = vsel %vm11343, %v11345, %v11341
  %v11347 = vmul.f32 %v9355, %v11346
  %v11348 = vrcp.pop %v9718
  %v11349 = vmul.f32 %v9718, %v11348
  %v11350 = vsub.f32 1.0, %v11349
  %v11351 = vmul.f32 %v11348, %v11350
  %v11352 = vadd.f32 %v11348, %v11351
  %vm11353 = vweird.f32 %v9718
  %vm11354 = vweird.f32 %v11348
  %vm11355 = vmor %vm11353, %vm11354
  %v11356 = vsel %vm11355, %v11348, %v11352
  %v11357 = vand.u32 2147483647, %v9718
  %vm11358 = vcmp.eq.f32.partialorder %v11357, 8.507059e+37
  %v11359 = vand.u32 %v9718, 2147483648
  %v11360 = vor.u32 1.1754944e-38, %v11359
  %v11361 = vsel %vm11358, %v11360, %v11356
  %v11362 = vmul.f32 %v9357, %v11361
  %v11363 = vrcp.pop %v9721
  %v11364 = vmul.f32 %v9721, %v11363
  %v11365 = vsub.f32 1.0, %v11364
  %v11366 = vmul.f32 %v11363, %v11365
  %v11367 = vadd.f32 %v11363, %v11366
  %vm11368 = vweird.f32 %v9721
  %vm11369 = vweird.f32 %v11363
  %vm11370 = vmor %vm11368, %vm11369
  %v11371 = vsel %vm11370, %v11363, %v11367
  %v11372 = vand.u32 2147483647, %v9721
  %vm11373 = vcmp.eq.f32.partialorder %v11372, 8.507059e+37
  %v11374 = vand.u32 %v9721, 2147483648
  %v11375 = vor.u32 1.1754944e-38, %v11374
  %v11376 = vsel %vm11373, %v11375, %v11371
  %v11377 = vmul.f32 %v9359, %v11376
  %v11378 = vrcp.pop %v9724
  %v11379 = vmul.f32 %v9724, %v11378
  %v11380 = vsub.f32 1.0, %v11379
  %v11381 = vmul.f32 %v11378, %v11380
  %v11382 = vadd.f32 %v11378, %v11381
  %vm11383 = vweird.f32 %v9724
  %vm11384 = vweird.f32 %v11378
  %vm11385 = vmor %vm11383, %vm11384
  %v11386 = vsel %vm11385, %v11378, %v11382
  %v11387 = vand.u32 2147483647, %v9724
  %vm11388 = vcmp.eq.f32.partialorder %v11387, 8.507059e+37
  %v11389 = vand.u32 %v9724, 2147483648
  %v11390 = vor.u32 1.1754944e-38, %v11389
  %v11391 = vsel %vm11388, %v11390, %v11386
  %v11392 = vmul.f32 %v9361, %v11391
  %v11393 = vrcp.pop %v9727
  %v11394 = vmul.f32 %v9727, %v11393
  %v11395 = vsub.f32 1.0, %v11394
  %v11396 = vmul.f32 %v11393, %v11395
  %v11397 = vadd.f32 %v11393, %v11396
  %vm11398 = vweird.f32 %v9727
  %vm11399 = vweird.f32 %v11393
  %vm11400 = vmor %vm11398, %vm11399
  %v11401 = vsel %vm11400, %v11393, %v11397
  %v11402 = vand.u32 2147483647, %v9727
  %vm11403 = vcmp.eq.f32.partialorder %v11402, 8.507059e+37
  %v11404 = vand.u32 %v9727, 2147483648
  %v11405 = vor.u32 1.1754944e-38, %v11404
  %v11406 = vsel %vm11403, %v11405, %v11401
  %v11407 = vmul.f32 %v9363, %v11406
  %v11408 = vrcp.pop %v9730
  %v11409 = vmul.f32 %v9730, %v11408
  %v11410 = vsub.f32 1.0, %v11409
  %v11411 = vmul.f32 %v11408, %v11410
  %v11412 = vadd.f32 %v11408, %v11411
  %vm11413 = vweird.f32 %v9730
  %vm11414 = vweird.f32 %v11408
  %vm11415 = vmor %vm11413, %vm11414
  %v11416 = vsel %vm11415, %v11408, %v11412
  %v11417 = vand.u32 2147483647, %v9730
  %vm11418 = vcmp.eq.f32.partialorder %v11417, 8.507059e+37
  %v11419 = vand.u32 %v9730, 2147483648
  %v11420 = vor.u32 1.1754944e-38, %v11419
  %v11421 = vsel %vm11418, %v11420, %v11416
  %v11422 = vmul.f32 %v9365, %v11421
  %v11423 = vrcp.pop %v9733
  %v11424 = vmul.f32 %v9733, %v11423
  %v11425 = vsub.f32 1.0, %v11424
  %v11426 = vmul.f32 %v11423, %v11425
  %v11427 = vadd.f32 %v11423, %v11426
  %vm11428 = vweird.f32 %v9733
  %vm11429 = vweird.f32 %v11423
  %vm11430 = vmor %vm11428, %vm11429
  %v11431 = vsel %vm11430, %v11423, %v11427
  %v11432 = vand.u32 2147483647, %v9733
  %vm11433 = vcmp.eq.f32.partialorder %v11432, 8.507059e+37
  %v11434 = vand.u32 %v9733, 2147483648
  %v11435 = vor.u32 1.1754944e-38, %v11434
  %v11436 = vsel %vm11433, %v11435, %v11431
  %v11437 = vmul.f32 %v9367, %v11436
  %v11438 = vrcp.pop %v9736
  %v11439 = vmul.f32 %v9736, %v11438
  %v11440 = vsub.f32 1.0, %v11439
  %v11441 = vmul.f32 %v11438, %v11440
  %v11442 = vadd.f32 %v11438, %v11441
  %vm11443 = vweird.f32 %v9736
  %vm11444 = vweird.f32 %v11438
  %vm11445 = vmor %vm11443, %vm11444
  %v11446 = vsel %vm11445, %v11438, %v11442
  %v11447 = vand.u32 2147483647, %v9736
  %vm11448 = vcmp.eq.f32.partialorder %v11447, 8.507059e+37
  %v11449 = vand.u32 %v9736, 2147483648
  %v11450 = vor.u32 1.1754944e-38, %v11449
  %v11451 = vsel %vm11448, %v11450, %v11446
  %v11452 = vmul.f32 %v9369, %v11451
  %v11453 = vrcp.pop %v9739
  %v11454 = vmul.f32 %v9739, %v11453
  %v11455 = vsub.f32 1.0, %v11454
  %v11456 = vmul.f32 %v11453, %v11455
  %v11457 = vadd.f32 %v11453, %v11456
  %vm11458 = vweird.f32 %v9739
  %vm11459 = vweird.f32 %v11453
  %vm11460 = vmor %vm11458, %vm11459
  %v11461 = vsel %vm11460, %v11453, %v11457
  %v11462 = vand.u32 2147483647, %v9739
  %vm11463 = vcmp.eq.f32.partialorder %v11462, 8.507059e+37
  %v11464 = vand.u32 %v9739, 2147483648
  %v11465 = vor.u32 1.1754944e-38, %v11464
  %v11466 = vsel %vm11463, %v11465, %v11461
  %v11467 = vmul.f32 %v9371, %v11466
  %v11468 = vrcp.pop %v9742
  %v11469 = vmul.f32 %v9742, %v11468
  %v11470 = vsub.f32 1.0, %v11469
  %v11471 = vmul.f32 %v11468, %v11470
  %v11472 = vadd.f32 %v11468, %v11471
  %vm11473 = vweird.f32 %v9742
  %vm11474 = vweird.f32 %v11468
  %vm11475 = vmor %vm11473, %vm11474
  %v11476 = vsel %vm11475, %v11468, %v11472
  %v11477 = vand.u32 2147483647, %v9742
  %vm11478 = vcmp.eq.f32.partialorder %v11477, 8.507059e+37
  %v11479 = vand.u32 %v9742, 2147483648
  %v11480 = vor.u32 1.1754944e-38, %v11479
  %v11481 = vsel %vm11478, %v11480, %v11476
  %v11482 = vmul.f32 %v9373, %v11481
  %v11483 = vrcp.pop %v9745
  %v11484 = vmul.f32 %v9745, %v11483
  %v11485 = vsub.f32 1.0, %v11484
  %v11486 = vmul.f32 %v11483, %v11485
  %v11487 = vadd.f32 %v11483, %v11486
  %vm11488 = vweird.f32 %v9745
  %vm11489 = vweird.f32 %v11483
  %vm11490 = vmor %vm11488, %vm11489
  %v11491 = vsel %vm11490, %v11483, %v11487
  %v11492 = vand.u32 2147483647, %v9745
  %vm11493 = vcmp.eq.f32.partialorder %v11492, 8.507059e+37
  %v11494 = vand.u32 %v9745, 2147483648
  %v11495 = vor.u32 1.1754944e-38, %v11494
  %v11496 = vsel %vm11493, %v11495, %v11491
  %v11497 = vmul.f32 %v9375, %v11496
  %v11498 = vrcp.pop %v9748
  %v11499 = vmul.f32 %v9748, %v11498
  %v11500 = vsub.f32 1.0, %v11499
  %v11501 = vmul.f32 %v11498, %v11500
  %v11502 = vadd.f32 %v11498, %v11501
  %vm11503 = vweird.f32 %v9748
  %vm11504 = vweird.f32 %v11498
  %vm11505 = vmor %vm11503, %vm11504
  %v11506 = vsel %vm11505, %v11498, %v11502
  %v11507 = vand.u32 2147483647, %v9748
  %vm11508 = vcmp.eq.f32.partialorder %v11507, 8.507059e+37
  %v11509 = vand.u32 %v9748, 2147483648
  %v11510 = vor.u32 1.1754944e-38, %v11509
  %v11511 = vsel %vm11508, %v11510, %v11506
  %v11512 = vmul.f32 %v9377, %v11511
  %v11513 = vrcp.pop %v9751
  %v11514 = vmul.f32 %v9751, %v11513
  %v11515 = vsub.f32 1.0, %v11514
  %v11516 = vmul.f32 %v11513, %v11515
  %v11517 = vadd.f32 %v11513, %v11516
  %vm11518 = vweird.f32 %v9751
  %vm11519 = vweird.f32 %v11513
  %vm11520 = vmor %vm11518, %vm11519
  %v11521 = vsel %vm11520, %v11513, %v11517
  %v11522 = vand.u32 2147483647, %v9751
  %vm11523 = vcmp.eq.f32.partialorder %v11522, 8.507059e+37
  %v11524 = vand.u32 %v9751, 2147483648
  %v11525 = vor.u32 1.1754944e-38, %v11524
  %v11526 = vsel %vm11523, %v11525, %v11521
  %v11527 = vmul.f32 %v9379, %v11526
  %v11528 = vrcp.pop %v9754
  %v11529 = vmul.f32 %v9754, %v11528
  %v11530 = vsub.f32 1.0, %v11529
  %v11531 = vmul.f32 %v11528, %v11530
  %v11532 = vadd.f32 %v11528, %v11531
  %vm11533 = vweird.f32 %v9754
  %vm11534 = vweird.f32 %v11528
  %vm11535 = vmor %vm11533, %vm11534
  %v11536 = vsel %vm11535, %v11528, %v11532
  %v11537 = vand.u32 2147483647, %v9754
  %vm11538 = vcmp.eq.f32.partialorder %v11537, 8.507059e+37
  %v11539 = vand.u32 %v9754, 2147483648
  %v11540 = vor.u32 1.1754944e-38, %v11539
  %v11541 = vsel %vm11538, %v11540, %v11536
  %v11542 = vmul.f32 %v9381, %v11541
  %v11543 = vrcp.pop %v9757
  %v11544 = vmul.f32 %v9757, %v11543
  %v11545 = vsub.f32 1.0, %v11544
  %v11546 = vmul.f32 %v11543, %v11545
  %v11547 = vadd.f32 %v11543, %v11546
  %vm11548 = vweird.f32 %v9757
  %vm11549 = vweird.f32 %v11543
  %vm11550 = vmor %vm11548, %vm11549
  %v11551 = vsel %vm11550, %v11543, %v11547
  %v11552 = vand.u32 2147483647, %v9757
  %vm11553 = vcmp.eq.f32.partialorder %v11552, 8.507059e+37
  %v11554 = vand.u32 %v9757, 2147483648
  %v11555 = vor.u32 1.1754944e-38, %v11554
  %v11556 = vsel %vm11553, %v11555, %v11551
  %v11557 = vmul.f32 %v9383, %v11556
  %v11558 = vrcp.pop %v9760
  %v11559 = vmul.f32 %v9760, %v11558
  %v11560 = vsub.f32 1.0, %v11559
  %v11561 = vmul.f32 %v11558, %v11560
  %v11562 = vadd.f32 %v11558, %v11561
  %vm11563 = vweird.f32 %v9760
  %vm11564 = vweird.f32 %v11558
  %vm11565 = vmor %vm11563, %vm11564
  %v11566 = vsel %vm11565, %v11558, %v11562
  %v11567 = vand.u32 2147483647, %v9760
  %vm11568 = vcmp.eq.f32.partialorder %v11567, 8.507059e+37
  %v11569 = vand.u32 %v9760, 2147483648
  %v11570 = vor.u32 1.1754944e-38, %v11569
  %v11571 = vsel %vm11568, %v11570, %v11566
  %v11572 = vmul.f32 %v9385, %v11571
  %v11573 = vrcp.pop %v9763
  %v11574 = vmul.f32 %v9763, %v11573
  %v11575 = vsub.f32 1.0, %v11574
  %v11576 = vmul.f32 %v11573, %v11575
  %v11577 = vadd.f32 %v11573, %v11576
  %vm11578 = vweird.f32 %v9763
  %vm11579 = vweird.f32 %v11573
  %vm11580 = vmor %vm11578, %vm11579
  %v11581 = vsel %vm11580, %v11573, %v11577
  %v11582 = vand.u32 2147483647, %v9763
  %vm11583 = vcmp.eq.f32.partialorder %v11582, 8.507059e+37
  %v11584 = vand.u32 %v9763, 2147483648
  %v11585 = vor.u32 1.1754944e-38, %v11584
  %v11586 = vsel %vm11583, %v11585, %v11581
  %v11587 = vmul.f32 %v9387, %v11586
  %v11588 = vrcp.pop %v9766
  %v11589 = vmul.f32 %v9766, %v11588
  %v11590 = vsub.f32 1.0, %v11589
  %v11591 = vmul.f32 %v11588, %v11590
  %v11592 = vadd.f32 %v11588, %v11591
  %vm11593 = vweird.f32 %v9766
  %vm11594 = vweird.f32 %v11588
  %vm11595 = vmor %vm11593, %vm11594
  %v11596 = vsel %vm11595, %v11588, %v11592
  %v11597 = vand.u32 2147483647, %v9766
  %vm11598 = vcmp.eq.f32.partialorder %v11597, 8.507059e+37
  %v11599 = vand.u32 %v9766, 2147483648
  %v11600 = vor.u32 1.1754944e-38, %v11599
  %v11601 = vsel %vm11598, %v11600, %v11596
  %v11602 = vmul.f32 %v9389, %v11601
  %v11603 = vrcp.pop %v9769
  %v11604 = vmul.f32 %v9769, %v11603
  %v11605 = vsub.f32 1.0, %v11604
  %v11606 = vmul.f32 %v11603, %v11605
  %v11607 = vadd.f32 %v11603, %v11606
  %vm11608 = vweird.f32 %v9769
  %vm11609 = vweird.f32 %v11603
  %vm11610 = vmor %vm11608, %vm11609
  %v11611 = vsel %vm11610, %v11603, %v11607
  %v11612 = vand.u32 2147483647, %v9769
  %vm11613 = vcmp.eq.f32.partialorder %v11612, 8.507059e+37
  %v11614 = vand.u32 %v9769, 2147483648
  %v11615 = vor.u32 1.1754944e-38, %v11614
  %v11616 = vsel %vm11613, %v11615, %v11611
  %v11617 = vmul.f32 %v9391, %v11616
  %v11618 = vrcp.pop %v9772
  %v11619 = vmul.f32 %v9772, %v11618
  %v11620 = vsub.f32 1.0, %v11619
  %v11621 = vmul.f32 %v11618, %v11620
  %v11622 = vadd.f32 %v11618, %v11621
  %vm11623 = vweird.f32 %v9772
  %vm11624 = vweird.f32 %v11618
  %vm11625 = vmor %vm11623, %vm11624
  %v11626 = vsel %vm11625, %v11618, %v11622
  %v11627 = vand.u32 2147483647, %v9772
  %vm11628 = vcmp.eq.f32.partialorder %v11627, 8.507059e+37
  %v11629 = vand.u32 %v9772, 2147483648
  %v11630 = vor.u32 1.1754944e-38, %v11629
  %v11631 = vsel %vm11628, %v11630, %v11626
  %v11632 = vmul.f32 %v9393, %v11631
  %v11633 = vrcp.pop %v9775
  %v11634 = vmul.f32 %v9775, %v11633
  %v11635 = vsub.f32 1.0, %v11634
  %v11636 = vmul.f32 %v11633, %v11635
  %v11637 = vadd.f32 %v11633, %v11636
  %vm11638 = vweird.f32 %v9775
  %vm11639 = vweird.f32 %v11633
  %vm11640 = vmor %vm11638, %vm11639
  %v11641 = vsel %vm11640, %v11633, %v11637
  %v11642 = vand.u32 2147483647, %v9775
  %vm11643 = vcmp.eq.f32.partialorder %v11642, 8.507059e+37
  %v11644 = vand.u32 %v9775, 2147483648
  %v11645 = vor.u32 1.1754944e-38, %v11644
  %v11646 = vsel %vm11643, %v11645, %v11641
  %v11647 = vmul.f32 %v9395, %v11646
  %v11648 = vrcp.pop %v9778
  %v11649 = vmul.f32 %v9778, %v11648
  %v11650 = vsub.f32 1.0, %v11649
  %v11651 = vmul.f32 %v11648, %v11650
  %v11652 = vadd.f32 %v11648, %v11651
  %vm11653 = vweird.f32 %v9778
  %vm11654 = vweird.f32 %v11648
  %vm11655 = vmor %vm11653, %vm11654
  %v11656 = vsel %vm11655, %v11648, %v11652
  %v11657 = vand.u32 2147483647, %v9778
  %vm11658 = vcmp.eq.f32.partialorder %v11657, 8.507059e+37
  %v11659 = vand.u32 %v9778, 2147483648
  %v11660 = vor.u32 1.1754944e-38, %v11659
  %v11661 = vsel %vm11658, %v11660, %v11656
  %v11662 = vmul.f32 %v9397, %v11661
  %v11663 = vrcp.pop %v9781
  %v11664 = vmul.f32 %v9781, %v11663
  %v11665 = vsub.f32 1.0, %v11664
  %v11666 = vmul.f32 %v11663, %v11665
  %v11667 = vadd.f32 %v11663, %v11666
  %vm11668 = vweird.f32 %v9781
  %vm11669 = vweird.f32 %v11663
  %vm11670 = vmor %vm11668, %vm11669
  %v11671 = vsel %vm11670, %v11663, %v11667
  %v11672 = vand.u32 2147483647, %v9781
  %vm11673 = vcmp.eq.f32.partialorder %v11672, 8.507059e+37
  %v11674 = vand.u32 %v9781, 2147483648
  %v11675 = vor.u32 1.1754944e-38, %v11674
  %v11676 = vsel %vm11673, %v11675, %v11671
  %v11677 = vmul.f32 %v9399, %v11676
  %v11678 = vrcp.pop %v9784
  %v11679 = vmul.f32 %v9784, %v11678
  %v11680 = vsub.f32 1.0, %v11679
  %v11681 = vmul.f32 %v11678, %v11680
  %v11682 = vadd.f32 %v11678, %v11681
  %vm11683 = vweird.f32 %v9784
  %vm11684 = vweird.f32 %v11678
  %vm11685 = vmor %vm11683, %vm11684
  %v11686 = vsel %vm11685, %v11678, %v11682
  %v11687 = vand.u32 2147483647, %v9784
  %vm11688 = vcmp.eq.f32.partialorder %v11687, 8.507059e+37
  %v11689 = vand.u32 %v9784, 2147483648
  %v11690 = vor.u32 1.1754944e-38, %v11689
  %v11691 = vsel %vm11688, %v11690, %v11686
  %v11692 = vmul.f32 %v9401, %v11691
  %v11693 = vrcp.pop %v9787
  %v11694 = vmul.f32 %v9787, %v11693
  %v11695 = vsub.f32 1.0, %v11694
  %v11696 = vmul.f32 %v11693, %v11695
  %v11697 = vadd.f32 %v11693, %v11696
  %vm11698 = vweird.f32 %v9787
  %vm11699 = vweird.f32 %v11693
  %vm11700 = vmor %vm11698, %vm11699
  %v11701 = vsel %vm11700, %v11693, %v11697
  %v11702 = vand.u32 2147483647, %v9787
  %vm11703 = vcmp.eq.f32.partialorder %v11702, 8.507059e+37
  %v11704 = vand.u32 %v9787, 2147483648
  %v11705 = vor.u32 1.1754944e-38, %v11704
  %v11706 = vsel %vm11703, %v11705, %v11701
  %v11707 = vmul.f32 %v9403, %v11706
  %v11709 = vsel %vm8635, %v9802, 0
  %v11712 = vsel %vm8635, %v9817, 0
  %v11715 = vsel %vm8635, %v9832, 0
  %v11718 = vsel %vm8635, %v9847, 0
  %v11721 = vsel %vm8635, %v9862, 0
  %v11724 = vsel %vm8635, %v9877, 0
  %v11727 = vsel %vm8635, %v9892, 0
  %v11730 = vsel %vm8635, %v9907, 0
  %11732 = vmatpush.msra.mxu0 0.0
  %11733 = vmatpush.msra.mxu0 0.0
  %11734 = vmatpush.msra.mxu0 0.0
  %11735 = vmatpush.msra.mxu0 0.0
  %11736 = vmatpush.msra.mxu0 0.0
  %11737 = vmatpush.msra.mxu0 0.0
  %11738 = vmatpush.msra.mxu0 0.0
  %11739 = vmatpush.msra.mxu0 0.0
  %11740 = vmatpush.msra.mxu0 0.0
  %11741 = vmatpush.msra.mxu0 0.0
  %11742 = vmatpush.msra.mxu0 0.0
  %11743 = vmatpush.msra.mxu0 0.0
  %11744 = vmatpush.msra.mxu0 0.0
  %11745 = vmatpush.msra.mxu0 0.0
  %11746 = vmatpush.msra.mxu0 %v4602
  %11747 = vmatpush.msra.mxu0 %v4599
  %11748 = vmatmul.f32.gmra.mxu0 %v11709
  %v11749 = vpop.f32.mrf.mxu0
  %v11750 = vadd.f32 0.0, %v11749
  %11751 = vmatmul.f32.gmra.mxu0 %v11712
  %v11752 = vpop.f32.mrf.mxu0
  %v11753 = vadd.f32 0.0, %v11752
  %11754 = vmatmul.f32.gmra.mxu0 %v11715
  %v11755 = vpop.f32.mrf.mxu0
  %v11756 = vadd.f32 0.0, %v11755
  %11757 = vmatmul.f32.gmra.mxu0 %v11718
  %v11758 = vpop.f32.mrf.mxu0
  %v11759 = vadd.f32 0.0, %v11758
  %11760 = vmatmul.f32.gmra.mxu0 %v11721
  %v11761 = vpop.f32.mrf.mxu0
  %v11762 = vadd.f32 0.0, %v11761
  %11763 = vmatmul.f32.gmra.mxu0 %v11724
  %v11764 = vpop.f32.mrf.mxu0
  %v11765 = vadd.f32 0.0, %v11764
  %11766 = vmatmul.f32.gmra.mxu0 %v11727
  %v11767 = vpop.f32.mrf.mxu0
  %v11768 = vadd.f32 0.0, %v11767
  %11769 = vmatmul.f32.gmra.mxu0 %v11730
  %v11770 = vpop.f32.mrf.mxu0
  %v11771 = vadd.f32 0.0, %v11770
  %11772 = vdwg.mxu0
  %v11774 = vsel %vm8635, %v9922, 0
  %v11777 = vsel %vm8635, %v9937, 0
  %v11780 = vsel %vm8635, %v9952, 0
  %v11783 = vsel %vm8635, %v9967, 0
  %v11786 = vsel %vm8635, %v9982, 0
  %v11789 = vsel %vm8635, %v9997, 0
  %v11792 = vsel %vm8635, %v10012, 0
  %v11795 = vsel %vm8635, %v10027, 0
  %11797 = vmatpush.msra.mxu0 0.0
  %11798 = vmatpush.msra.mxu0 0.0
  %11799 = vmatpush.msra.mxu0 0.0
  %11800 = vmatpush.msra.mxu0 0.0
  %11801 = vmatpush.msra.mxu0 0.0
  %11802 = vmatpush.msra.mxu0 0.0
  %11803 = vmatpush.msra.mxu0 0.0
  %11804 = vmatpush.msra.mxu0 0.0
  %11805 = vmatpush.msra.mxu0 0.0
  %11806 = vmatpush.msra.mxu0 0.0
  %11807 = vmatpush.msra.mxu0 0.0
  %11808 = vmatpush.msra.mxu0 0.0
  %11809 = vmatpush.msra.mxu0 0.0
  %11810 = vmatpush.msra.mxu0 0.0
  %11811 = vmatpush.msra.mxu0 %v4631
  %11812 = vmatpush.msra.mxu0 %v4628
  %11813 = vmatmul.f32.gmra.mxu0 %v11774
  %v11814 = vpop.f32.mrf.mxu0
  %v11815 = vadd.f32 0.0, %v11814
  %11816 = vmatmul.f32.gmra.mxu0 %v11777
  %v11817 = vpop.f32.mrf.mxu0
  %v11818 = vadd.f32 0.0, %v11817
  %11819 = vmatmul.f32.gmra.mxu0 %v11780
  %v11820 = vpop.f32.mrf.mxu0
  %v11821 = vadd.f32 0.0, %v11820
  %11822 = vmatmul.f32.gmra.mxu0 %v11783
  %v11823 = vpop.f32.mrf.mxu0
  %v11824 = vadd.f32 0.0, %v11823
  %11825 = vmatmul.f32.gmra.mxu0 %v11786
  %v11826 = vpop.f32.mrf.mxu0
  %v11827 = vadd.f32 0.0, %v11826
  %11828 = vmatmul.f32.gmra.mxu0 %v11789
  %v11829 = vpop.f32.mrf.mxu0
  %v11830 = vadd.f32 0.0, %v11829
  %11831 = vmatmul.f32.gmra.mxu0 %v11792
  %v11832 = vpop.f32.mrf.mxu0
  %v11833 = vadd.f32 0.0, %v11832
  %11834 = vmatmul.f32.gmra.mxu0 %v11795
  %v11835 = vpop.f32.mrf.mxu0
  %v11836 = vadd.f32 0.0, %v11835
  %11837 = vdwg.mxu0
  %v11839 = vsel %vm8635, %v10042, 0
  %v11842 = vsel %vm8635, %v10057, 0
  %v11845 = vsel %vm8635, %v10072, 0
  %v11848 = vsel %vm8635, %v10087, 0
  %v11851 = vsel %vm8635, %v10102, 0
  %v11854 = vsel %vm8635, %v10117, 0
  %v11857 = vsel %vm8635, %v10132, 0
  %v11860 = vsel %vm8635, %v10147, 0
  %11862 = vmatpush.msra.mxu0 0.0
  %11863 = vmatpush.msra.mxu0 0.0
  %11864 = vmatpush.msra.mxu0 0.0
  %11865 = vmatpush.msra.mxu0 0.0
  %11866 = vmatpush.msra.mxu0 0.0
  %11867 = vmatpush.msra.mxu0 0.0
  %11868 = vmatpush.msra.mxu0 0.0
  %11869 = vmatpush.msra.mxu0 0.0
  %11870 = vmatpush.msra.mxu0 0.0
  %11871 = vmatpush.msra.mxu0 0.0
  %11872 = vmatpush.msra.mxu0 0.0
  %11873 = vmatpush.msra.mxu0 0.0
  %11874 = vmatpush.msra.mxu0 0.0
  %11875 = vmatpush.msra.mxu0 0.0
  %11876 = vmatpush.msra.mxu0 %v4660
  %11877 = vmatpush.msra.mxu0 %v4657
  %11878 = vmatmul.f32.gmra.mxu0 %v11839
  %v11879 = vpop.f32.mrf.mxu0
  %v11880 = vadd.f32 0.0, %v11879
  %11881 = vmatmul.f32.gmra.mxu0 %v11842
  %v11882 = vpop.f32.mrf.mxu0
  %v11883 = vadd.f32 0.0, %v11882
  %11884 = vmatmul.f32.gmra.mxu0 %v11845
  %v11885 = vpop.f32.mrf.mxu0
  %v11886 = vadd.f32 0.0, %v11885
  %11887 = vmatmul.f32.gmra.mxu0 %v11848
  %v11888 = vpop.f32.mrf.mxu0
  %v11889 = vadd.f32 0.0, %v11888
  %11890 = vmatmul.f32.gmra.mxu0 %v11851
  %v11891 = vpop.f32.mrf.mxu0
  %v11892 = vadd.f32 0.0, %v11891
  %11893 = vmatmul.f32.gmra.mxu0 %v11854
  %v11894 = vpop.f32.mrf.mxu0
  %v11895 = vadd.f32 0.0, %v11894
  %11896 = vmatmul.f32.gmra.mxu0 %v11857
  %v11897 = vpop.f32.mrf.mxu0
  %v11898 = vadd.f32 0.0, %v11897
  %11899 = vmatmul.f32.gmra.mxu0 %v11860
  %v11900 = vpop.f32.mrf.mxu0
  %v11901 = vadd.f32 0.0, %v11900
  %11902 = vdwg.mxu0
  %v11904 = vsel %vm8635, %v10162, 0
  %v11907 = vsel %vm8635, %v10177, 0
  %v11910 = vsel %vm8635, %v10192, 0
  %v11913 = vsel %vm8635, %v10207, 0
  %v11916 = vsel %vm8635, %v10222, 0
  %v11919 = vsel %vm8635, %v10237, 0
  %v11922 = vsel %vm8635, %v10252, 0
  %v11925 = vsel %vm8635, %v10267, 0
  %11927 = vmatpush.msra.mxu0 0.0
  %11928 = vmatpush.msra.mxu0 0.0
  %11929 = vmatpush.msra.mxu0 0.0
  %11930 = vmatpush.msra.mxu0 0.0
  %11931 = vmatpush.msra.mxu0 0.0
  %11932 = vmatpush.msra.mxu0 0.0
  %11933 = vmatpush.msra.mxu0 0.0
  %11934 = vmatpush.msra.mxu0 0.0
  %11935 = vmatpush.msra.mxu0 0.0
  %11936 = vmatpush.msra.mxu0 0.0
  %11937 = vmatpush.msra.mxu0 0.0
  %11938 = vmatpush.msra.mxu0 0.0
  %11939 = vmatpush.msra.mxu0 0.0
  %11940 = vmatpush.msra.mxu0 0.0
  %11941 = vmatpush.msra.mxu0 %v4689
  %11942 = vmatpush.msra.mxu0 %v4686
  %11943 = vmatmul.f32.gmra.mxu0 %v11904
  %v11944 = vpop.f32.mrf.mxu0
  %v11945 = vadd.f32 0.0, %v11944
  %11946 = vmatmul.f32.gmra.mxu0 %v11907
  %v11947 = vpop.f32.mrf.mxu0
  %v11948 = vadd.f32 0.0, %v11947
  %11949 = vmatmul.f32.gmra.mxu0 %v11910
  %v11950 = vpop.f32.mrf.mxu0
  %v11951 = vadd.f32 0.0, %v11950
  %11952 = vmatmul.f32.gmra.mxu0 %v11913
  %v11953 = vpop.f32.mrf.mxu0
  %v11954 = vadd.f32 0.0, %v11953
  %11955 = vmatmul.f32.gmra.mxu0 %v11916
  %v11956 = vpop.f32.mrf.mxu0
  %v11957 = vadd.f32 0.0, %v11956
  %11958 = vmatmul.f32.gmra.mxu0 %v11919
  %v11959 = vpop.f32.mrf.mxu0
  %v11960 = vadd.f32 0.0, %v11959
  %11961 = vmatmul.f32.gmra.mxu0 %v11922
  %v11962 = vpop.f32.mrf.mxu0
  %v11963 = vadd.f32 0.0, %v11962
  %11964 = vmatmul.f32.gmra.mxu0 %v11925
  %v11965 = vpop.f32.mrf.mxu0
  %v11966 = vadd.f32 0.0, %v11965
  %11967 = vdwg.mxu0
  %v11969 = vsel %vm8635, %v10282, 0
  %v11972 = vsel %vm8635, %v10297, 0
  %v11975 = vsel %vm8635, %v10312, 0
  %v11978 = vsel %vm8635, %v10327, 0
  %v11981 = vsel %vm8635, %v10342, 0
  %v11984 = vsel %vm8635, %v10357, 0
  %v11987 = vsel %vm8635, %v10372, 0
  %v11990 = vsel %vm8635, %v10387, 0
  %11992 = vmatpush.msra.mxu0 0.0
  %11993 = vmatpush.msra.mxu0 0.0
  %11994 = vmatpush.msra.mxu0 0.0
  %11995 = vmatpush.msra.mxu0 0.0
  %11996 = vmatpush.msra.mxu0 0.0
  %11997 = vmatpush.msra.mxu0 0.0
  %11998 = vmatpush.msra.mxu0 0.0
  %11999 = vmatpush.msra.mxu0 0.0
  %12000 = vmatpush.msra.mxu0 0.0
  %12001 = vmatpush.msra.mxu0 0.0
  %12002 = vmatpush.msra.mxu0 0.0
  %12003 = vmatpush.msra.mxu0 0.0
  %12004 = vmatpush.msra.mxu0 0.0
  %12005 = vmatpush.msra.mxu0 0.0
  %12006 = vmatpush.msra.mxu0 %v4718
  %12007 = vmatpush.msra.mxu0 %v4715
  %12008 = vmatmul.f32.gmra.mxu0 %v11969
  %v12009 = vpop.f32.mrf.mxu0
  %v12010 = vadd.f32 0.0, %v12009
  %12011 = vmatmul.f32.gmra.mxu0 %v11972
  %v12012 = vpop.f32.mrf.mxu0
  %v12013 = vadd.f32 0.0, %v12012
  %12014 = vmatmul.f32.gmra.mxu0 %v11975
  %v12015 = vpop.f32.mrf.mxu0
  %v12016 = vadd.f32 0.0, %v12015
  %12017 = vmatmul.f32.gmra.mxu0 %v11978
  %v12018 = vpop.f32.mrf.mxu0
  %v12019 = vadd.f32 0.0, %v12018
  %12020 = vmatmul.f32.gmra.mxu0 %v11981
  %v12021 = vpop.f32.mrf.mxu0
  %v12022 = vadd.f32 0.0, %v12021
  %12023 = vmatmul.f32.gmra.mxu0 %v11984
  %v12024 = vpop.f32.mrf.mxu0
  %v12025 = vadd.f32 0.0, %v12024
  %12026 = vmatmul.f32.gmra.mxu0 %v11987
  %v12027 = vpop.f32.mrf.mxu0
  %v12028 = vadd.f32 0.0, %v12027
  %12029 = vmatmul.f32.gmra.mxu0 %v11990
  %v12030 = vpop.f32.mrf.mxu0
  %v12031 = vadd.f32 0.0, %v12030
  %12032 = vdwg.mxu0
  %v12034 = vsel %vm8635, %v10402, 0
  %v12037 = vsel %vm8635, %v10417, 0
  %v12040 = vsel %vm8635, %v10432, 0
  %v12043 = vsel %vm8635, %v10447, 0
  %v12046 = vsel %vm8635, %v10462, 0
  %v12049 = vsel %vm8635, %v10477, 0
  %v12052 = vsel %vm8635, %v10492, 0
  %v12055 = vsel %vm8635, %v10507, 0
  %12057 = vmatpush.msra.mxu0 0.0
  %12058 = vmatpush.msra.mxu0 0.0
  %12059 = vmatpush.msra.mxu0 0.0
  %12060 = vmatpush.msra.mxu0 0.0
  %12061 = vmatpush.msra.mxu0 0.0
  %12062 = vmatpush.msra.mxu0 0.0
  %12063 = vmatpush.msra.mxu0 0.0
  %12064 = vmatpush.msra.mxu0 0.0
  %12065 = vmatpush.msra.mxu0 0.0
  %12066 = vmatpush.msra.mxu0 0.0
  %12067 = vmatpush.msra.mxu0 0.0
  %12068 = vmatpush.msra.mxu0 0.0
  %12069 = vmatpush.msra.mxu0 0.0
  %12070 = vmatpush.msra.mxu0 0.0
  %12071 = vmatpush.msra.mxu0 %v4747
  %12072 = vmatpush.msra.mxu0 %v4744
  %12073 = vmatmul.f32.gmra.mxu0 %v12034
  %v12074 = vpop.f32.mrf.mxu0
  %v12075 = vadd.f32 0.0, %v12074
  %12076 = vmatmul.f32.gmra.mxu0 %v12037
  %v12077 = vpop.f32.mrf.mxu0
  %v12078 = vadd.f32 0.0, %v12077
  %12079 = vmatmul.f32.gmra.mxu0 %v12040
  %v12080 = vpop.f32.mrf.mxu0
  %v12081 = vadd.f32 0.0, %v12080
  %12082 = vmatmul.f32.gmra.mxu0 %v12043
  %v12083 = vpop.f32.mrf.mxu0
  %v12084 = vadd.f32 0.0, %v12083
  %12085 = vmatmul.f32.gmra.mxu0 %v12046
  %v12086 = vpop.f32.mrf.mxu0
  %v12087 = vadd.f32 0.0, %v12086
  %12088 = vmatmul.f32.gmra.mxu0 %v12049
  %v12089 = vpop.f32.mrf.mxu0
  %v12090 = vadd.f32 0.0, %v12089
  %12091 = vmatmul.f32.gmra.mxu0 %v12052
  %v12092 = vpop.f32.mrf.mxu0
  %v12093 = vadd.f32 0.0, %v12092
  %12094 = vmatmul.f32.gmra.mxu0 %v12055
  %v12095 = vpop.f32.mrf.mxu0
  %v12096 = vadd.f32 0.0, %v12095
  %12097 = vdwg.mxu0
  %v12099 = vsel %vm8635, %v10522, 0
  %v12102 = vsel %vm8635, %v10537, 0
  %v12105 = vsel %vm8635, %v10552, 0
  %v12108 = vsel %vm8635, %v10567, 0
  %v12111 = vsel %vm8635, %v10582, 0
  %v12114 = vsel %vm8635, %v10597, 0
  %v12117 = vsel %vm8635, %v10612, 0
  %v12120 = vsel %vm8635, %v10627, 0
  %12122 = vmatpush.msra.mxu0 0.0
  %12123 = vmatpush.msra.mxu0 0.0
  %12124 = vmatpush.msra.mxu0 0.0
  %12125 = vmatpush.msra.mxu0 0.0
  %12126 = vmatpush.msra.mxu0 0.0
  %12127 = vmatpush.msra.mxu0 0.0
  %12128 = vmatpush.msra.mxu0 0.0
  %12129 = vmatpush.msra.mxu0 0.0
  %12130 = vmatpush.msra.mxu0 0.0
  %12131 = vmatpush.msra.mxu0 0.0
  %12132 = vmatpush.msra.mxu0 0.0
  %12133 = vmatpush.msra.mxu0 0.0
  %12134 = vmatpush.msra.mxu0 0.0
  %12135 = vmatpush.msra.mxu0 0.0
  %12136 = vmatpush.msra.mxu0 %v4776
  %12137 = vmatpush.msra.mxu0 %v4773
  %12138 = vmatmul.f32.gmra.mxu0 %v12099
  %v12139 = vpop.f32.mrf.mxu0
  %v12140 = vadd.f32 0.0, %v12139
  %12141 = vmatmul.f32.gmra.mxu0 %v12102
  %v12142 = vpop.f32.mrf.mxu0
  %v12143 = vadd.f32 0.0, %v12142
  %12144 = vmatmul.f32.gmra.mxu0 %v12105
  %v12145 = vpop.f32.mrf.mxu0
  %v12146 = vadd.f32 0.0, %v12145
  %12147 = vmatmul.f32.gmra.mxu0 %v12108
  %v12148 = vpop.f32.mrf.mxu0
  %v12149 = vadd.f32 0.0, %v12148
  %12150 = vmatmul.f32.gmra.mxu0 %v12111
  %v12151 = vpop.f32.mrf.mxu0
  %v12152 = vadd.f32 0.0, %v12151
  %12153 = vmatmul.f32.gmra.mxu0 %v12114
  %v12154 = vpop.f32.mrf.mxu0
  %v12155 = vadd.f32 0.0, %v12154
  %12156 = vmatmul.f32.gmra.mxu0 %v12117
  %v12157 = vpop.f32.mrf.mxu0
  %v12158 = vadd.f32 0.0, %v12157
  %12159 = vmatmul.f32.gmra.mxu0 %v12120
  %v12160 = vpop.f32.mrf.mxu0
  %v12161 = vadd.f32 0.0, %v12160
  %12162 = vdwg.mxu0
  %v12164 = vsel %vm8635, %v10642, 0
  %v12167 = vsel %vm8635, %v10657, 0
  %v12170 = vsel %vm8635, %v10672, 0
  %v12173 = vsel %vm8635, %v10687, 0
  %v12176 = vsel %vm8635, %v10702, 0
  %v12179 = vsel %vm8635, %v10717, 0
  %v12182 = vsel %vm8635, %v10732, 0
  %v12185 = vsel %vm8635, %v10747, 0
  %12187 = vmatpush.msra.mxu0 0.0
  %12188 = vmatpush.msra.mxu0 0.0
  %12189 = vmatpush.msra.mxu0 0.0
  %12190 = vmatpush.msra.mxu0 0.0
  %12191 = vmatpush.msra.mxu0 0.0
  %12192 = vmatpush.msra.mxu0 0.0
  %12193 = vmatpush.msra.mxu0 0.0
  %12194 = vmatpush.msra.mxu0 0.0
  %12195 = vmatpush.msra.mxu0 0.0
  %12196 = vmatpush.msra.mxu0 0.0
  %12197 = vmatpush.msra.mxu0 0.0
  %12198 = vmatpush.msra.mxu0 0.0
  %12199 = vmatpush.msra.mxu0 0.0
  %12200 = vmatpush.msra.mxu0 0.0
  %12201 = vmatpush.msra.mxu0 %v4805
  %12202 = vmatpush.msra.mxu0 %v4802
  %12203 = vmatmul.f32.gmra.mxu0 %v12164
  %v12204 = vpop.f32.mrf.mxu0
  %v12205 = vadd.f32 0.0, %v12204
  %12206 = vmatmul.f32.gmra.mxu0 %v12167
  %v12207 = vpop.f32.mrf.mxu0
  %v12208 = vadd.f32 0.0, %v12207
  %12209 = vmatmul.f32.gmra.mxu0 %v12170
  %v12210 = vpop.f32.mrf.mxu0
  %v12211 = vadd.f32 0.0, %v12210
  %12212 = vmatmul.f32.gmra.mxu0 %v12173
  %v12213 = vpop.f32.mrf.mxu0
  %v12214 = vadd.f32 0.0, %v12213
  %12215 = vmatmul.f32.gmra.mxu0 %v12176
  %v12216 = vpop.f32.mrf.mxu0
  %v12217 = vadd.f32 0.0, %v12216
  %12218 = vmatmul.f32.gmra.mxu0 %v12179
  %v12219 = vpop.f32.mrf.mxu0
  %v12220 = vadd.f32 0.0, %v12219
  %12221 = vmatmul.f32.gmra.mxu0 %v12182
  %v12222 = vpop.f32.mrf.mxu0
  %v12223 = vadd.f32 0.0, %v12222
  %12224 = vmatmul.f32.gmra.mxu0 %v12185
  %v12225 = vpop.f32.mrf.mxu0
  %v12226 = vadd.f32 0.0, %v12225
  %12227 = vdwg.mxu0
  %v12229 = vsel %vm8635, %v10762, 0
  %v12232 = vsel %vm8635, %v10777, 0
  %v12235 = vsel %vm8635, %v10792, 0
  %v12238 = vsel %vm8635, %v10807, 0
  %v12241 = vsel %vm8635, %v10822, 0
  %v12244 = vsel %vm8635, %v10837, 0
  %v12247 = vsel %vm8635, %v10852, 0
  %v12250 = vsel %vm8635, %v10867, 0
  %12252 = vmatpush.msra.mxu0 0.0
  %12253 = vmatpush.msra.mxu0 0.0
  %12254 = vmatpush.msra.mxu0 0.0
  %12255 = vmatpush.msra.mxu0 0.0
  %12256 = vmatpush.msra.mxu0 0.0
  %12257 = vmatpush.msra.mxu0 0.0
  %12258 = vmatpush.msra.mxu0 0.0
  %12259 = vmatpush.msra.mxu0 0.0
  %12260 = vmatpush.msra.mxu0 0.0
  %12261 = vmatpush.msra.mxu0 0.0
  %12262 = vmatpush.msra.mxu0 0.0
  %12263 = vmatpush.msra.mxu0 0.0
  %12264 = vmatpush.msra.mxu0 0.0
  %12265 = vmatpush.msra.mxu0 0.0
  %12266 = vmatpush.msra.mxu0 %v4834
  %12267 = vmatpush.msra.mxu0 %v4831
  %12268 = vmatmul.f32.gmra.mxu0 %v12229
  %v12269 = vpop.f32.mrf.mxu0
  %v12270 = vadd.f32 0.0, %v12269
  %12271 = vmatmul.f32.gmra.mxu0 %v12232
  %v12272 = vpop.f32.mrf.mxu0
  %v12273 = vadd.f32 0.0, %v12272
  %12274 = vmatmul.f32.gmra.mxu0 %v12235
  %v12275 = vpop.f32.mrf.mxu0
  %v12276 = vadd.f32 0.0, %v12275
  %12277 = vmatmul.f32.gmra.mxu0 %v12238
  %v12278 = vpop.f32.mrf.mxu0
  %v12279 = vadd.f32 0.0, %v12278
  %12280 = vmatmul.f32.gmra.mxu0 %v12241
  %v12281 = vpop.f32.mrf.mxu0
  %v12282 = vadd.f32 0.0, %v12281
  %12283 = vmatmul.f32.gmra.mxu0 %v12244
  %v12284 = vpop.f32.mrf.mxu0
  %v12285 = vadd.f32 0.0, %v12284
  %12286 = vmatmul.f32.gmra.mxu0 %v12247
  %v12287 = vpop.f32.mrf.mxu0
  %v12288 = vadd.f32 0.0, %v12287
  %12289 = vmatmul.f32.gmra.mxu0 %v12250
  %v12290 = vpop.f32.mrf.mxu0
  %v12291 = vadd.f32 0.0, %v12290
  %12292 = vdwg.mxu0
  %v12294 = vsel %vm8635, %v10882, 0
  %v12297 = vsel %vm8635, %v10897, 0
  %v12300 = vsel %vm8635, %v10912, 0
  %v12303 = vsel %vm8635, %v10927, 0
  %v12306 = vsel %vm8635, %v10942, 0
  %v12309 = vsel %vm8635, %v10957, 0
  %v12312 = vsel %vm8635, %v10972, 0
  %v12315 = vsel %vm8635, %v10987, 0
  %12317 = vmatpush.msra.mxu0 0.0
  %12318 = vmatpush.msra.mxu0 0.0
  %12319 = vmatpush.msra.mxu0 0.0
  %12320 = vmatpush.msra.mxu0 0.0
  %12321 = vmatpush.msra.mxu0 0.0
  %12322 = vmatpush.msra.mxu0 0.0
  %12323 = vmatpush.msra.mxu0 0.0
  %12324 = vmatpush.msra.mxu0 0.0
  %12325 = vmatpush.msra.mxu0 0.0
  %12326 = vmatpush.msra.mxu0 0.0
  %12327 = vmatpush.msra.mxu0 0.0
  %12328 = vmatpush.msra.mxu0 0.0
  %12329 = vmatpush.msra.mxu0 0.0
  %12330 = vmatpush.msra.mxu0 0.0
  %12331 = vmatpush.msra.mxu0 %v4863
  %12332 = vmatpush.msra.mxu0 %v4860
  %12333 = vmatmul.f32.gmra.mxu0 %v12294
  %v12334 = vpop.f32.mrf.mxu0
  %v12335 = vadd.f32 0.0, %v12334
  %12336 = vmatmul.f32.gmra.mxu0 %v12297
  %v12337 = vpop.f32.mrf.mxu0
  %v12338 = vadd.f32 0.0, %v12337
  %12339 = vmatmul.f32.gmra.mxu0 %v12300
  %v12340 = vpop.f32.mrf.mxu0
  %v12341 = vadd.f32 0.0, %v12340
  %12342 = vmatmul.f32.gmra.mxu0 %v12303
  %v12343 = vpop.f32.mrf.mxu0
  %v12344 = vadd.f32 0.0, %v12343
  %12345 = vmatmul.f32.gmra.mxu0 %v12306
  %v12346 = vpop.f32.mrf.mxu0
  %v12347 = vadd.f32 0.0, %v12346
  %12348 = vmatmul.f32.gmra.mxu0 %v12309
  %v12349 = vpop.f32.mrf.mxu0
  %v12350 = vadd.f32 0.0, %v12349
  %12351 = vmatmul.f32.gmra.mxu0 %v12312
  %v12352 = vpop.f32.mrf.mxu0
  %v12353 = vadd.f32 0.0, %v12352
  %12354 = vmatmul.f32.gmra.mxu0 %v12315
  %v12355 = vpop.f32.mrf.mxu0
  %v12356 = vadd.f32 0.0, %v12355
  %12357 = vdwg.mxu0
  %v12359 = vsel %vm8635, %v11002, 0
  %v12362 = vsel %vm8635, %v11017, 0
  %v12365 = vsel %vm8635, %v11032, 0
  %v12368 = vsel %vm8635, %v11047, 0
  %v12371 = vsel %vm8635, %v11062, 0
  %v12374 = vsel %vm8635, %v11077, 0
  %v12377 = vsel %vm8635, %v11092, 0
  %v12380 = vsel %vm8635, %v11107, 0
  %12382 = vmatpush.msra.mxu0 0.0
  %12383 = vmatpush.msra.mxu0 0.0
  %12384 = vmatpush.msra.mxu0 0.0
  %12385 = vmatpush.msra.mxu0 0.0
  %12386 = vmatpush.msra.mxu0 0.0
  %12387 = vmatpush.msra.mxu0 0.0
  %12388 = vmatpush.msra.mxu0 0.0
  %12389 = vmatpush.msra.mxu0 0.0
  %12390 = vmatpush.msra.mxu0 0.0
  %12391 = vmatpush.msra.mxu0 0.0
  %12392 = vmatpush.msra.mxu0 0.0
  %12393 = vmatpush.msra.mxu0 0.0
  %12394 = vmatpush.msra.mxu0 0.0
  %12395 = vmatpush.msra.mxu0 0.0
  %12396 = vmatpush.msra.mxu0 %v4892
  %12397 = vmatpush.msra.mxu0 %v4889
  %12398 = vmatmul.f32.gmra.mxu0 %v12359
  %v12399 = vpop.f32.mrf.mxu0
  %v12400 = vadd.f32 0.0, %v12399
  %12401 = vmatmul.f32.gmra.mxu0 %v12362
  %v12402 = vpop.f32.mrf.mxu0
  %v12403 = vadd.f32 0.0, %v12402
  %12404 = vmatmul.f32.gmra.mxu0 %v12365
  %v12405 = vpop.f32.mrf.mxu0
  %v12406 = vadd.f32 0.0, %v12405
  %12407 = vmatmul.f32.gmra.mxu0 %v12368
  %v12408 = vpop.f32.mrf.mxu0
  %v12409 = vadd.f32 0.0, %v12408
  %12410 = vmatmul.f32.gmra.mxu0 %v12371
  %v12411 = vpop.f32.mrf.mxu0
  %v12412 = vadd.f32 0.0, %v12411
  %12413 = vmatmul.f32.gmra.mxu0 %v12374
  %v12414 = vpop.f32.mrf.mxu0
  %v12415 = vadd.f32 0.0, %v12414
  %12416 = vmatmul.f32.gmra.mxu0 %v12377
  %v12417 = vpop.f32.mrf.mxu0
  %v12418 = vadd.f32 0.0, %v12417
  %12419 = vmatmul.f32.gmra.mxu0 %v12380
  %v12420 = vpop.f32.mrf.mxu0
  %v12421 = vadd.f32 0.0, %v12420
  %12422 = vdwg.mxu0
  %v12424 = vsel %vm8635, %v11122, 0
  %v12427 = vsel %vm8635, %v11137, 0
  %v12430 = vsel %vm8635, %v11152, 0
  %v12433 = vsel %vm8635, %v11167, 0
  %v12436 = vsel %vm8635, %v11182, 0
  %v12439 = vsel %vm8635, %v11197, 0
  %v12442 = vsel %vm8635, %v11212, 0
  %v12445 = vsel %vm8635, %v11227, 0
  %12447 = vmatpush.msra.mxu0 0.0
  %12448 = vmatpush.msra.mxu0 0.0
  %12449 = vmatpush.msra.mxu0 0.0
  %12450 = vmatpush.msra.mxu0 0.0
  %12451 = vmatpush.msra.mxu0 0.0
  %12452 = vmatpush.msra.mxu0 0.0
  %12453 = vmatpush.msra.mxu0 0.0
  %12454 = vmatpush.msra.mxu0 0.0
  %12455 = vmatpush.msra.mxu0 0.0
  %12456 = vmatpush.msra.mxu0 0.0
  %12457 = vmatpush.msra.mxu0 0.0
  %12458 = vmatpush.msra.mxu0 0.0
  %12459 = vmatpush.msra.mxu0 0.0
  %12460 = vmatpush.msra.mxu0 0.0
  %12461 = vmatpush.msra.mxu0 %v4921
  %12462 = vmatpush.msra.mxu0 %v4918
  %12463 = vmatmul.f32.gmra.mxu0 %v12424
  %v12464 = vpop.f32.mrf.mxu0
  %v12465 = vadd.f32 0.0, %v12464
  %12466 = vmatmul.f32.gmra.mxu0 %v12427
  %v12467 = vpop.f32.mrf.mxu0
  %v12468 = vadd.f32 0.0, %v12467
  %12469 = vmatmul.f32.gmra.mxu0 %v12430
  %v12470 = vpop.f32.mrf.mxu0
  %v12471 = vadd.f32 0.0, %v12470
  %12472 = vmatmul.f32.gmra.mxu0 %v12433
  %v12473 = vpop.f32.mrf.mxu0
  %v12474 = vadd.f32 0.0, %v12473
  %12475 = vmatmul.f32.gmra.mxu0 %v12436
  %v12476 = vpop.f32.mrf.mxu0
  %v12477 = vadd.f32 0.0, %v12476
  %12478 = vmatmul.f32.gmra.mxu0 %v12439
  %v12479 = vpop.f32.mrf.mxu0
  %v12480 = vadd.f32 0.0, %v12479
  %12481 = vmatmul.f32.gmra.mxu0 %v12442
  %v12482 = vpop.f32.mrf.mxu0
  %v12483 = vadd.f32 0.0, %v12482
  %12484 = vmatmul.f32.gmra.mxu0 %v12445
  %v12485 = vpop.f32.mrf.mxu0
  %v12486 = vadd.f32 0.0, %v12485
  %12487 = vdwg.mxu0
  %v12489 = vsel %vm8635, %v11242, 0
  %v12492 = vsel %vm8635, %v11257, 0
  %v12495 = vsel %vm8635, %v11272, 0
  %v12498 = vsel %vm8635, %v11287, 0
  %v12501 = vsel %vm8635, %v11302, 0
  %v12504 = vsel %vm8635, %v11317, 0
  %v12507 = vsel %vm8635, %v11332, 0
  %v12510 = vsel %vm8635, %v11347, 0
  %12512 = vmatpush.msra.mxu0 0.0
  %12513 = vmatpush.msra.mxu0 0.0
  %12514 = vmatpush.msra.mxu0 0.0
  %12515 = vmatpush.msra.mxu0 0.0
  %12516 = vmatpush.msra.mxu0 0.0
  %12517 = vmatpush.msra.mxu0 0.0
  %12518 = vmatpush.msra.mxu0 0.0
  %12519 = vmatpush.msra.mxu0 0.0
  %12520 = vmatpush.msra.mxu0 0.0
  %12521 = vmatpush.msra.mxu0 0.0
  %12522 = vmatpush.msra.mxu0 0.0
  %12523 = vmatpush.msra.mxu0 0.0
  %12524 = vmatpush.msra.mxu0 0.0
  %12525 = vmatpush.msra.mxu0 0.0
  %12526 = vmatpush.msra.mxu0 %v4950
  %12527 = vmatpush.msra.mxu0 %v4947
  %12528 = vmatmul.f32.gmra.mxu0 %v12489
  %v12529 = vpop.f32.mrf.mxu0
  %v12530 = vadd.f32 0.0, %v12529
  %12531 = vmatmul.f32.gmra.mxu0 %v12492
  %v12532 = vpop.f32.mrf.mxu0
  %v12533 = vadd.f32 0.0, %v12532
  %12534 = vmatmul.f32.gmra.mxu0 %v12495
  %v12535 = vpop.f32.mrf.mxu0
  %v12536 = vadd.f32 0.0, %v12535
  %12537 = vmatmul.f32.gmra.mxu0 %v12498
  %v12538 = vpop.f32.mrf.mxu0
  %v12539 = vadd.f32 0.0, %v12538
  %12540 = vmatmul.f32.gmra.mxu0 %v12501
  %v12541 = vpop.f32.mrf.mxu0
  %v12542 = vadd.f32 0.0, %v12541
  %12543 = vmatmul.f32.gmra.mxu0 %v12504
  %v12544 = vpop.f32.mrf.mxu0
  %v12545 = vadd.f32 0.0, %v12544
  %12546 = vmatmul.f32.gmra.mxu0 %v12507
  %v12547 = vpop.f32.mrf.mxu0
  %v12548 = vadd.f32 0.0, %v12547
  %12549 = vmatmul.f32.gmra.mxu0 %v12510
  %v12550 = vpop.f32.mrf.mxu0
  %v12551 = vadd.f32 0.0, %v12550
  %12552 = vdwg.mxu0
  %v12554 = vsel %vm8635, %v11362, 0
  %v12557 = vsel %vm8635, %v11377, 0
  %v12560 = vsel %vm8635, %v11392, 0
  %v12563 = vsel %vm8635, %v11407, 0
  %v12566 = vsel %vm8635, %v11422, 0
  %v12569 = vsel %vm8635, %v11437, 0
  %v12572 = vsel %vm8635, %v11452, 0
  %v12575 = vsel %vm8635, %v11467, 0
  %12577 = vmatpush.msra.mxu0 0.0
  %12578 = vmatpush.msra.mxu0 0.0
  %12579 = vmatpush.msra.mxu0 0.0
  %12580 = vmatpush.msra.mxu0 0.0
  %12581 = vmatpush.msra.mxu0 0.0
  %12582 = vmatpush.msra.mxu0 0.0
  %12583 = vmatpush.msra.mxu0 0.0
  %12584 = vmatpush.msra.mxu0 0.0
  %12585 = vmatpush.msra.mxu0 0.0
  %12586 = vmatpush.msra.mxu0 0.0
  %12587 = vmatpush.msra.mxu0 0.0
  %12588 = vmatpush.msra.mxu0 0.0
  %12589 = vmatpush.msra.mxu0 0.0
  %12590 = vmatpush.msra.mxu0 0.0
  %12591 = vmatpush.msra.mxu0 %v4979
  %12592 = vmatpush.msra.mxu0 %v4976
  %12593 = vmatmul.f32.gmra.mxu0 %v12554
  %v12594 = vpop.f32.mrf.mxu0
  %v12595 = vadd.f32 0.0, %v12594
  %12596 = vmatmul.f32.gmra.mxu0 %v12557
  %v12597 = vpop.f32.mrf.mxu0
  %v12598 = vadd.f32 0.0, %v12597
  %12599 = vmatmul.f32.gmra.mxu0 %v12560
  %v12600 = vpop.f32.mrf.mxu0
  %v12601 = vadd.f32 0.0, %v12600
  %12602 = vmatmul.f32.gmra.mxu0 %v12563
  %v12603 = vpop.f32.mrf.mxu0
  %v12604 = vadd.f32 0.0, %v12603
  %12605 = vmatmul.f32.gmra.mxu0 %v12566
  %v12606 = vpop.f32.mrf.mxu0
  %v12607 = vadd.f32 0.0, %v12606
  %12608 = vmatmul.f32.gmra.mxu0 %v12569
  %v12609 = vpop.f32.mrf.mxu0
  %v12610 = vadd.f32 0.0, %v12609
  %12611 = vmatmul.f32.gmra.mxu0 %v12572
  %v12612 = vpop.f32.mrf.mxu0
  %v12613 = vadd.f32 0.0, %v12612
  %12614 = vmatmul.f32.gmra.mxu0 %v12575
  %v12615 = vpop.f32.mrf.mxu0
  %v12616 = vadd.f32 0.0, %v12615
  %12617 = vdwg.mxu0
  %v12619 = vsel %vm8635, %v11482, 0
  %v12622 = vsel %vm8635, %v11497, 0
  %v12625 = vsel %vm8635, %v11512, 0
  %v12628 = vsel %vm8635, %v11527, 0
  %v12631 = vsel %vm8635, %v11542, 0
  %v12634 = vsel %vm8635, %v11557, 0
  %v12637 = vsel %vm8635, %v11572, 0
  %v12640 = vsel %vm8635, %v11587, 0
  %12642 = vmatpush.msra.mxu0 0.0
  %12643 = vmatpush.msra.mxu0 0.0
  %12644 = vmatpush.msra.mxu0 0.0
  %12645 = vmatpush.msra.mxu0 0.0
  %12646 = vmatpush.msra.mxu0 0.0
  %12647 = vmatpush.msra.mxu0 0.0
  %12648 = vmatpush.msra.mxu0 0.0
  %12649 = vmatpush.msra.mxu0 0.0
  %12650 = vmatpush.msra.mxu0 0.0
  %12651 = vmatpush.msra.mxu0 0.0
  %12652 = vmatpush.msra.mxu0 0.0
  %12653 = vmatpush.msra.mxu0 0.0
  %12654 = vmatpush.msra.mxu0 0.0
  %12655 = vmatpush.msra.mxu0 0.0
  %12656 = vmatpush.msra.mxu0 %v5008
  %12657 = vmatpush.msra.mxu0 %v5005
  %12658 = vmatmul.f32.gmra.mxu0 %v12619
  %v12659 = vpop.f32.mrf.mxu0
  %v12660 = vadd.f32 0.0, %v12659
  %12661 = vmatmul.f32.gmra.mxu0 %v12622
  %v12662 = vpop.f32.mrf.mxu0
  %v12663 = vadd.f32 0.0, %v12662
  %12664 = vmatmul.f32.gmra.mxu0 %v12625
  %v12665 = vpop.f32.mrf.mxu0
  %v12666 = vadd.f32 0.0, %v12665
  %12667 = vmatmul.f32.gmra.mxu0 %v12628
  %v12668 = vpop.f32.mrf.mxu0
  %v12669 = vadd.f32 0.0, %v12668
  %12670 = vmatmul.f32.gmra.mxu0 %v12631
  %v12671 = vpop.f32.mrf.mxu0
  %v12672 = vadd.f32 0.0, %v12671
  %12673 = vmatmul.f32.gmra.mxu0 %v12634
  %v12674 = vpop.f32.mrf.mxu0
  %v12675 = vadd.f32 0.0, %v12674
  %12676 = vmatmul.f32.gmra.mxu0 %v12637
  %v12677 = vpop.f32.mrf.mxu0
  %v12678 = vadd.f32 0.0, %v12677
  %12679 = vmatmul.f32.gmra.mxu0 %v12640
  %v12680 = vpop.f32.mrf.mxu0
  %v12681 = vadd.f32 0.0, %v12680
  %12682 = vdwg.mxu0
  %v12684 = vsel %vm8635, %v11602, 0
  %v12687 = vsel %vm8635, %v11617, 0
  %v12690 = vsel %vm8635, %v11632, 0
  %v12693 = vsel %vm8635, %v11647, 0
  %v12696 = vsel %vm8635, %v11662, 0
  %v12699 = vsel %vm8635, %v11677, 0
  %v12702 = vsel %vm8635, %v11692, 0
  %v12705 = vsel %vm8635, %v11707, 0
  %12707 = vmatpush.msra.mxu0 0.0
  %12708 = vmatpush.msra.mxu0 0.0
  %12709 = vmatpush.msra.mxu0 0.0
  %12710 = vmatpush.msra.mxu0 0.0
  %12711 = vmatpush.msra.mxu0 0.0
  %12712 = vmatpush.msra.mxu0 0.0
  %12713 = vmatpush.msra.mxu0 0.0
  %12714 = vmatpush.msra.mxu0 0.0
  %12715 = vmatpush.msra.mxu0 0.0
  %12716 = vmatpush.msra.mxu0 0.0
  %12717 = vmatpush.msra.mxu0 0.0
  %12718 = vmatpush.msra.mxu0 0.0
  %12719 = vmatpush.msra.mxu0 0.0
  %12720 = vmatpush.msra.mxu0 0.0
  %12721 = vmatpush.msra.mxu0 %v5037
  %12722 = vmatpush.msra.mxu0 %v5034
  %12723 = vmatmul.f32.gmra.mxu0 %v12684
  %v12724 = vpop.f32.mrf.mxu0
  %v12725 = vadd.f32 0.0, %v12724
  %12726 = vmatmul.f32.gmra.mxu0 %v12687
  %v12727 = vpop.f32.mrf.mxu0
  %v12728 = vadd.f32 0.0, %v12727
  %12729 = vmatmul.f32.gmra.mxu0 %v12690
  %v12730 = vpop.f32.mrf.mxu0
  %v12731 = vadd.f32 0.0, %v12730
  %12732 = vmatmul.f32.gmra.mxu0 %v12693
  %v12733 = vpop.f32.mrf.mxu0
  %v12734 = vadd.f32 0.0, %v12733
  %12735 = vmatmul.f32.gmra.mxu0 %v12696
  %v12736 = vpop.f32.mrf.mxu0
  %v12737 = vadd.f32 0.0, %v12736
  %12738 = vmatmul.f32.gmra.mxu0 %v12699
  %v12739 = vpop.f32.mrf.mxu0
  %v12740 = vadd.f32 0.0, %v12739
  %12741 = vmatmul.f32.gmra.mxu0 %v12702
  %v12742 = vpop.f32.mrf.mxu0
  %v12743 = vadd.f32 0.0, %v12742
  %12744 = vmatmul.f32.gmra.mxu0 %v12705
  %v12745 = vpop.f32.mrf.mxu0
  %v12746 = vadd.f32 0.0, %v12745
  %12747 = vdwg.mxu0
  %12748 = vst.msk [vmem:[%s6] sm:$0xff] %vm87, %v11750
  %12749 = vst.msk [vmem:[%s6 + $0x8] sm:$0xff] %vm87, %v11753
  %12750 = vst.msk [vmem:[%s6 + $0x10] sm:$0xff] %vm87, %v11756
  %12751 = vst.msk [vmem:[%s6 + $0x18] sm:$0xff] %vm87, %v11759
  %12752 = vst.msk [vmem:[%s6 + $0x20] sm:$0xff] %vm87, %v11762
  %12753 = vst.msk [vmem:[%s6 + $0x28] sm:$0xff] %vm87, %v11765
  %12754 = vst.msk [vmem:[%s6 + $0x30] sm:$0xff] %vm87, %v11768
  %12755 = vst.msk [vmem:[%s6 + $0x38] sm:$0xff] %vm87, %v11771
  %12756 = vst.msk [vmem:[%s6 + $0x40] sm:$0xff] %vm87, %v11815
  %12757 = vst.msk [vmem:[%s6 + $0x48] sm:$0xff] %vm87, %v11818
  %12758 = vst.msk [vmem:[%s6 + $0x50] sm:$0xff] %vm87, %v11821
  %12759 = vst.msk [vmem:[%s6 + $0x58] sm:$0xff] %vm87, %v11824
  %12760 = vst.msk [vmem:[%s6 + $0x60] sm:$0xff] %vm87, %v11827
  %12761 = vst.msk [vmem:[%s6 + $0x68] sm:$0xff] %vm87, %v11830
  %12762 = vst.msk [vmem:[%s6 + $0x70] sm:$0xff] %vm87, %v11833
  %12763 = vst.msk [vmem:[%s6 + $0x78] sm:$0xff] %vm87, %v11836
  %12764 = vst.msk [vmem:[%s6 + $0x80] sm:$0xff] %vm87, %v11880
  %12765 = vst.msk [vmem:[%s6 + $0x88] sm:$0xff] %vm87, %v11883
  %12766 = vst.msk [vmem:[%s6 + $0x90] sm:$0xff] %vm87, %v11886
  %12767 = vst.msk [vmem:[%s6 + $0x98] sm:$0xff] %vm87, %v11889
  %12768 = vst.msk [vmem:[%s6 + $0xa0] sm:$0xff] %vm87, %v11892
  %12769 = vst.msk [vmem:[%s6 + $0xa8] sm:$0xff] %vm87, %v11895
  %12770 = vst.msk [vmem:[%s6 + $0xb0] sm:$0xff] %vm87, %v11898
  %12771 = vst.msk [vmem:[%s6 + $0xb8] sm:$0xff] %vm87, %v11901
  %12772 = vst.msk [vmem:[%s6 + $0xc0] sm:$0xff] %vm87, %v11945
  %12773 = vst.msk [vmem:[%s6 + $0xc8] sm:$0xff] %vm87, %v11948
  %12774 = vst.msk [vmem:[%s6 + $0xd0] sm:$0xff] %vm87, %v11951
  %12775 = vst.msk [vmem:[%s6 + $0xd8] sm:$0xff] %vm87, %v11954
  %12776 = vst.msk [vmem:[%s6 + $0xe0] sm:$0xff] %vm87, %v11957
  %12777 = vst.msk [vmem:[%s6 + $0xe8] sm:$0xff] %vm87, %v11960
  %12778 = vst.msk [vmem:[%s6 + $0xf0] sm:$0xff] %vm87, %v11963
  %12779 = vst.msk [vmem:[%s6 + $0xf8] sm:$0xff] %vm87, %v11966
  %12780 = vst.msk [vmem:[%s6 + $0x100] sm:$0xff] %vm87, %v12010
  %12781 = vst.msk [vmem:[%s6 + $0x108] sm:$0xff] %vm87, %v12013
  %12782 = vst.msk [vmem:[%s6 + $0x110] sm:$0xff] %vm87, %v12016
  %12783 = vst.msk [vmem:[%s6 + $0x118] sm:$0xff] %vm87, %v12019
  %12784 = vst.msk [vmem:[%s6 + $0x120] sm:$0xff] %vm87, %v12022
  %12785 = vst.msk [vmem:[%s6 + $0x128] sm:$0xff] %vm87, %v12025
  %12786 = vst.msk [vmem:[%s6 + $0x130] sm:$0xff] %vm87, %v12028
  %12787 = vst.msk [vmem:[%s6 + $0x138] sm:$0xff] %vm87, %v12031
  %12788 = vst.msk [vmem:[%s6 + $0x140] sm:$0xff] %vm87, %v12075
  %12789 = vst.msk [vmem:[%s6 + $0x148] sm:$0xff] %vm87, %v12078
  %12790 = vst.msk [vmem:[%s6 + $0x150] sm:$0xff] %vm87, %v12081
  %12791 = vst.msk [vmem:[%s6 + $0x158] sm:$0xff] %vm87, %v12084
  %12792 = vst.msk [vmem:[%s6 + $0x160] sm:$0xff] %vm87, %v12087
  %12793 = vst.msk [vmem:[%s6 + $0x168] sm:$0xff] %vm87, %v12090
  %12794 = vst.msk [vmem:[%s6 + $0x170] sm:$0xff] %vm87, %v12093
  %12795 = vst.msk [vmem:[%s6 + $0x178] sm:$0xff] %vm87, %v12096
  %12796 = vst.msk [vmem:[%s6 + $0x180] sm:$0xff] %vm87, %v12140
  %12797 = vst.msk [vmem:[%s6 + $0x188] sm:$0xff] %vm87, %v12143
  %12798 = vst.msk [vmem:[%s6 + $0x190] sm:$0xff] %vm87, %v12146
  %12799 = vst.msk [vmem:[%s6 + $0x198] sm:$0xff] %vm87, %v12149
  %12800 = vst.msk [vmem:[%s6 + $0x1a0] sm:$0xff] %vm87, %v12152
  %12801 = vst.msk [vmem:[%s6 + $0x1a8] sm:$0xff] %vm87, %v12155
  %12802 = vst.msk [vmem:[%s6 + $0x1b0] sm:$0xff] %vm87, %v12158
  %12803 = vst.msk [vmem:[%s6 + $0x1b8] sm:$0xff] %vm87, %v12161
  %12804 = vst.msk [vmem:[%s6 + $0x1c0] sm:$0xff] %vm87, %v12205
  %12805 = vst.msk [vmem:[%s6 + $0x1c8] sm:$0xff] %vm87, %v12208
  %12806 = vst.msk [vmem:[%s6 + $0x1d0] sm:$0xff] %vm87, %v12211
  %12807 = vst.msk [vmem:[%s6 + $0x1d8] sm:$0xff] %vm87, %v12214
  %12808 = vst.msk [vmem:[%s6 + $0x1e0] sm:$0xff] %vm87, %v12217
  %12809 = vst.msk [vmem:[%s6 + $0x1e8] sm:$0xff] %vm87, %v12220
  %12810 = vst.msk [vmem:[%s6 + $0x1f0] sm:$0xff] %vm87, %v12223
  %12811 = vst.msk [vmem:[%s6 + $0x1f8] sm:$0xff] %vm87, %v12226
  %12812 = vst.msk [vmem:[%s6 + $0x200] sm:$0xff] %vm87, %v12270
  %12813 = vst.msk [vmem:[%s6 + $0x208] sm:$0xff] %vm87, %v12273
  %12814 = vst.msk [vmem:[%s6 + $0x210] sm:$0xff] %vm87, %v12276
  %12815 = vst.msk [vmem:[%s6 + $0x218] sm:$0xff] %vm87, %v12279
  %12816 = vst.msk [vmem:[%s6 + $0x220] sm:$0xff] %vm87, %v12282
  %12817 = vst.msk [vmem:[%s6 + $0x228] sm:$0xff] %vm87, %v12285
  %12818 = vst.msk [vmem:[%s6 + $0x230] sm:$0xff] %vm87, %v12288
  %12819 = vst.msk [vmem:[%s6 + $0x238] sm:$0xff] %vm87, %v12291
  %12820 = vst.msk [vmem:[%s6 + $0x240] sm:$0xff] %vm87, %v12335
  %12821 = vst.msk [vmem:[%s6 + $0x248] sm:$0xff] %vm87, %v12338
  %12822 = vst.msk [vmem:[%s6 + $0x250] sm:$0xff] %vm87, %v12341
  %12823 = vst.msk [vmem:[%s6 + $0x258] sm:$0xff] %vm87, %v12344
  %12824 = vst.msk [vmem:[%s6 + $0x260] sm:$0xff] %vm87, %v12347
  %12825 = vst.msk [vmem:[%s6 + $0x268] sm:$0xff] %vm87, %v12350
  %12826 = vst.msk [vmem:[%s6 + $0x270] sm:$0xff] %vm87, %v12353
  %12827 = vst.msk [vmem:[%s6 + $0x278] sm:$0xff] %vm87, %v12356
  %12828 = vst.msk [vmem:[%s6 + $0x280] sm:$0xff] %vm87, %v12400
  %12829 = vst.msk [vmem:[%s6 + $0x288] sm:$0xff] %vm87, %v12403
  %12830 = vst.msk [vmem:[%s6 + $0x290] sm:$0xff] %vm87, %v12406
  %12831 = vst.msk [vmem:[%s6 + $0x298] sm:$0xff] %vm87, %v12409
  %12832 = vst.msk [vmem:[%s6 + $0x2a0] sm:$0xff] %vm87, %v12412
  %12833 = vst.msk [vmem:[%s6 + $0x2a8] sm:$0xff] %vm87, %v12415
  %12834 = vst.msk [vmem:[%s6 + $0x2b0] sm:$0xff] %vm87, %v12418
  %12835 = vst.msk [vmem:[%s6 + $0x2b8] sm:$0xff] %vm87, %v12421
  %12836 = vst.msk [vmem:[%s6 + $0x2c0] sm:$0xff] %vm87, %v12465
  %12837 = vst.msk [vmem:[%s6 + $0x2c8] sm:$0xff] %vm87, %v12468
  %12838 = vst.msk [vmem:[%s6 + $0x2d0] sm:$0xff] %vm87, %v12471
  %12839 = vst.msk [vmem:[%s6 + $0x2d8] sm:$0xff] %vm87, %v12474
  %12840 = vst.msk [vmem:[%s6 + $0x2e0] sm:$0xff] %vm87, %v12477
  %12841 = vst.msk [vmem:[%s6 + $0x2e8] sm:$0xff] %vm87, %v12480
  %12842 = vst.msk [vmem:[%s6 + $0x2f0] sm:$0xff] %vm87, %v12483
  %12843 = vst.msk [vmem:[%s6 + $0x2f8] sm:$0xff] %vm87, %v12486
  %12844 = vst.msk [vmem:[%s6 + $0x300] sm:$0xff] %vm87, %v12530
  %12845 = vst.msk [vmem:[%s6 + $0x308] sm:$0xff] %vm87, %v12533
  %12846 = vst.msk [vmem:[%s6 + $0x310] sm:$0xff] %vm87, %v12536
  %12847 = vst.msk [vmem:[%s6 + $0x318] sm:$0xff] %vm87, %v12539
  %12848 = vst.msk [vmem:[%s6 + $0x320] sm:$0xff] %vm87, %v12542
  %12849 = vst.msk [vmem:[%s6 + $0x328] sm:$0xff] %vm87, %v12545
  %12850 = vst.msk [vmem:[%s6 + $0x330] sm:$0xff] %vm87, %v12548
  %12851 = vst.msk [vmem:[%s6 + $0x338] sm:$0xff] %vm87, %v12551
  %12852 = vst.msk [vmem:[%s6 + $0x340] sm:$0xff] %vm87, %v12595
  %12853 = vst.msk [vmem:[%s6 + $0x348] sm:$0xff] %vm87, %v12598
  %12854 = vst.msk [vmem:[%s6 + $0x350] sm:$0xff] %vm87, %v12601
  %12855 = vst.msk [vmem:[%s6 + $0x358] sm:$0xff] %vm87, %v12604
  %12856 = vst.msk [vmem:[%s6 + $0x360] sm:$0xff] %vm87, %v12607
  %12857 = vst.msk [vmem:[%s6 + $0x368] sm:$0xff] %vm87, %v12610
  %12858 = vst.msk [vmem:[%s6 + $0x370] sm:$0xff] %vm87, %v12613
  %12859 = vst.msk [vmem:[%s6 + $0x378] sm:$0xff] %vm87, %v12616
  %12860 = vst.msk [vmem:[%s6 + $0x380] sm:$0xff] %vm87, %v12660
  %12861 = vst.msk [vmem:[%s6 + $0x388] sm:$0xff] %vm87, %v12663
  %12862 = vst.msk [vmem:[%s6 + $0x390] sm:$0xff] %vm87, %v12666
  %12863 = vst.msk [vmem:[%s6 + $0x398] sm:$0xff] %vm87, %v12669
  %12864 = vst.msk [vmem:[%s6 + $0x3a0] sm:$0xff] %vm87, %v12672
  %12865 = vst.msk [vmem:[%s6 + $0x3a8] sm:$0xff] %vm87, %v12675
  %12866 = vst.msk [vmem:[%s6 + $0x3b0] sm:$0xff] %vm87, %v12678
  %12867 = vst.msk [vmem:[%s6 + $0x3b8] sm:$0xff] %vm87, %v12681
  %12868 = vst.msk [vmem:[%s6 + $0x3c0] sm:$0xff] %vm87, %v12725
  %12869 = vst.msk [vmem:[%s6 + $0x3c8] sm:$0xff] %vm87, %v12728
  %12870 = vst.msk [vmem:[%s6 + $0x3d0] sm:$0xff] %vm87, %v12731
  %12871 = vst.msk [vmem:[%s6 + $0x3d8] sm:$0xff] %vm87, %v12734
  %12872 = vst.msk [vmem:[%s6 + $0x3e0] sm:$0xff] %vm87, %v12737
  %12873 = vst.msk [vmem:[%s6 + $0x3e8] sm:$0xff] %vm87, %v12740
  %12874 = vst.msk [vmem:[%s6 + $0x3f0] sm:$0xff] %vm87, %v12743
  %12875 = vst.msk [vmem:[%s6 + $0x3f8] sm:$0xff] %vm87, %v12746
  // Predicated region
  $region26: #{tpu_custom_call.1} parent=0 // pred_check
    _
  $region27: #{tpu_custom_call.1} parent=0 // pred_check_branch
    %12877 = sbr.rel (0) target = $region29
  $region28: #{tpu_custom_call.1} parent=0 // pred_region
    _
  $region29: #{tpu_custom_call.1} parent=0 // pred_fallthru
    _
  // Predicated region
  $region30: #{tpu_custom_call.1} parent=0 // pred_check
    _
  $region31: #{tpu_custom_call.1} parent=0 // pred_check_branch
    %12879 = sbr.rel (0) target = $region33
  $region32: #{tpu_custom_call.1} parent=0 // pred_region
    _
  $region33: #{tpu_custom_call.1} parent=0 // pred_fallthru
    _

</llo_original>
